<compile_context>
chip_gen: v5e
topology: v5e:2x2
jax: 0.10.0
libtpu: 0.0.40
codegen_flags: <defaults>
</compile_context>

<pallas_src>
import jax
import jax.numpy as jnp
from jax.experimental import pallas as pl
from jax.experimental.pallas import tpu as pltpu

NEG_SLOPE = 0.01  # F.leaky_relu default
BN_EPS = 1e-5


def _leaky(x):
    return jnp.where(x > 0, x, NEG_SLOPE * x)


def _log2(n):
    return n.bit_length() - 1


# ----------------------------- fused Pallas kernel ---------------------------

def _conv_bn_lrelu_pool(x2d, w_ref, shift, H, W):
    """One [conv3x3(pad=1) -> BN shift -> leakyReLU -> maxpool2x2/2] block.

    x2d:   (B*H*W, Cin) activations, rows ordered (b, i, j), channels on lanes.
    w_ref: (9, Cin, Cout) BN-scale-folded weights, tap index = kh*3 + kw.
    shift: (1, Cout) folded conv-bias/BN shift.
    Returns (B*(H//2)*(W//2), Cout).
    """
    R = x2d.shape[0]
    Cout = w_ref.shape[-1]
    HW = H * W
    lw = _log2(W)

    # Per-row spatial coordinates (H, W, HW are powers of two -> bit ops only).
    row = jax.lax.broadcasted_iota(jnp.int32, (R, 1), 0)
    ii = (row & (HW - 1)) >> lw
    jj = row & (W - 1)
    rr = jax.lax.broadcasted_iota(jnp.int32, (R, R), 0)
    cc = jax.lax.broadcasted_iota(jnp.int32, (R, R), 1)

    acc = jnp.zeros((R, Cout), jnp.float32)
    for kh in range(3):
        dh = kh - 1
        for kw in range(3):
            dw = kw - 1
            k = dh * W + dw
            valid = ((ii + dh >= 0) & (ii + dh < H) &
                     (jj + dw >= 0) & (jj + dw < W))                 # (R, 1)
            # P[r, r2] = 1  iff  r2 == r + k  and tap (dh,dw) is in-bounds at r
            # (this is "shift the rows by k and zero the padded border").
            P = jnp.where(valid & (cc == rr + k), 1.0, 0.0)          # (R, R)
            xw = jnp.dot(x2d, w_ref[kh * 3 + kw],
                         preferred_element_type=jnp.float32)         # (R, Cout)
            acc = acc + jnp.dot(P, xw, preferred_element_type=jnp.float32)

    y = _leaky(acc + shift)

    # Fused 2x2 stride-2 maxpool: gather the 4 window elements with 0/1
    # selection matmuls and take the elementwise max.
    Ho, Wo = H // 2, W // 2
    Ro = R >> 2                                     # B * Ho * Wo
    p = jax.lax.broadcasted_iota(jnp.int32, (Ro, 1), 0)
    b = p >> _log2(Ho * Wo)
    oi = (p & (Ho * Wo - 1)) >> _log2(Wo)
    oj = p & (Wo - 1)
    src = b * HW + oi * (2 * W) + oj * 2            # row of each window's top-left
    cols = jax.lax.broadcasted_iota(jnp.int32, (Ro, R), 1)
    pooled = None
    for d in (0, 1, W, W + 1):
        sel = jnp.where(cols == src + d, 1.0, 0.0)                   # (Ro, R)
        v = jnp.dot(sel, y, preferred_element_type=jnp.float32)      # (Ro, Cout)
        pooled = v if pooled is None else jnp.maximum(pooled, v)
    return pooled


def qnet_kernel(x_ref, w1_ref, s1_ref, w2_ref, s2_ref, w3_ref, s3_ref,
                fw1_ref, fb1_ref, fw2_ref, fb2_ref, fw3_ref, fb3_ref,
                fw4_ref, fb4_ref, o_ref):
    # Conv stack (everything stays in VMEM / vregs).
    h = _conv_bn_lrelu_pool(x_ref[...], w1_ref, s1_ref[...], 8, 8)   # (B*16, 8)
    h = _conv_bn_lrelu_pool(h, w2_ref, s2_ref[...], 4, 4)            # (B*4, 16)
    h = _conv_bn_lrelu_pool(h, w3_ref, s3_ref[...], 2, 2)            # (B, 32)
    # Fused MLP: 32 -> 128 -> 64 -> 32 -> 3.
    h = _leaky(jnp.dot(h, fw1_ref[...],
                       preferred_element_type=jnp.float32) + fb1_ref[...])
    h = _leaky(jnp.dot(h, fw2_ref[...],
                       preferred_element_type=jnp.float32) + fb2_ref[...])
    h = _leaky(jnp.dot(h, fw3_ref[...],
                       preferred_element_type=jnp.float32) + fb3_ref[...])
    o_ref[...] = jnp.dot(h, fw4_ref[...],
                         preferred_element_type=jnp.float32) + fb4_ref[...]


# ----------------------------- wrapper ---------------------------------------

def _pick_batch_tile(B):
    # Prefer 8-aligned batch tiles so multi-tile grids keep (8,128)-legal blocks;
    # otherwise run the whole batch as a single tile.
    for bt in (128, 64, 32, 16, 8):
        if B % bt == 0:
            return bt
    return B


def _whole_spec(a):
    if a.ndim == 2:
        return pl.BlockSpec(a.shape, lambda i: (0, 0))
    return pl.BlockSpec(a.shape, lambda i: (0, 0, 0))


def qnet_forward(x_nchw, params):
    B = x_nchw.shape[0]
    # NCHW -> NHWC -> flattened (B*H*W, Cin); channels on the lane axis.
    x2d = jnp.transpose(x_nchw, (0, 2, 3, 1)).reshape(B * 64, 3)

    bt = _pick_batch_tile(B)
    grid = (B // bt,)

    w1, s1 = params["conv1"]
    w2, s2 = params["conv2"]
    w3, s3 = params["conv3"]
    fw1, fb1 = params["fc1"]
    fw2, fb2 = params["fc2"]
    fw3, fb3 = params["fc3"]
    fw4, fb4 = params["fc4"]
    consts = (w1, s1, w2, s2, w3, s3, fw1, fb1, fw2, fb2, fw3, fb3, fw4, fb4)

    return pl.pallas_call(
        qnet_kernel,
        grid=grid,
        in_specs=[pl.BlockSpec((bt * 64, 3), lambda i: (i, 0))]
                 + [_whole_spec(a) for a in consts],
        out_specs=pl.BlockSpec((bt, 3), lambda i: (i, 0)),
        out_shape=jax.ShapeDtypeStruct((B, 3), jnp.float32),
        compiler_params=pltpu.CompilerParams(
            dimension_semantics=("parallel",)),
    )(x2d, *consts)


# ----------------------------- parameters ------------------------------------

def init_params(key):
    keys = jax.random.split(key, 20)
    ki = iter(keys)

    def conv_params(cin, cout):
        w = 0.1 * jax.random.normal(next(ki), (cout, cin, 3, 3), jnp.float32)
        bconv = 0.1 * jax.random.normal(next(ki), (cout,), jnp.float32)
        gamma = 1.0 + 0.05 * jax.random.normal(next(ki), (cout,), jnp.float32)
        beta = 0.05 * jax.random.normal(next(ki), (cout,), jnp.float32)
        # Inference-mode BN fold (running_mean=0, running_var=1).
        scale = gamma / jnp.sqrt(1.0 + BN_EPS)
        shift = scale * bconv + beta
        # (Cout,Cin,kh,kw) -> (kh,kw,Cin,Cout) -> (9,Cin,Cout); fold BN scale in.
        w9 = jnp.transpose(w, (2, 3, 1, 0)).reshape(9, cin, cout) * scale
        return w9, shift.reshape(1, cout)

    def fc_params(fin, fout):
        w = 0.1 * jax.random.normal(next(ki), (fin, fout), jnp.float32)
        b = 0.1 * jax.random.normal(next(ki), (1, fout), jnp.float32)
        return w, b

    return {
        "conv1": conv_params(3, 8),
        "conv2": conv_params(8, 16),
        "conv3": conv_params(16, 32),
        "fc1": fc_params(32, 128),
        "fc2": fc_params(128, 64),
        "fc3": fc_params(64, 32),
        "fc4": fc_params(32, 3),
    }


# ----------------------------- pure-JAX reference (sanity) -------------------

def qnet_forward_ref(x_nchw, params):
    x = jnp.transpose(x_nchw, (0, 2, 3, 1))
    for name in ("conv1", "conv2", "conv3"):
        w9, shift = params[name]
        cin, cout = w9.shape[1], w9.shape[2]
        w_hwio = w9.reshape(3, 3, cin, cout)
        y = jax.lax.conv_general_dilated(
            x, w_hwio, window_strides=(1, 1), padding="SAME",
            dimension_numbers=("NHWC", "HWIO", "NHWC"),
            precision=jax.lax.Precision.HIGHEST)
        y = _leaky(y + shift.reshape(1, 1, 1, cout))
        B, H, W, _ = y.shape
        x = y.reshape(B, H // 2, 2, W // 2, 2, cout).max(axis=(2, 4))
    h = x.reshape(x.shape[0], 32)
    w1, b1 = params["fc1"]; w2, b2 = params["fc2"]
    w3, b3 = params["fc3"]; w4, b4 = params["fc4"]
    h = _leaky(h @ w1 + b1)
    h = _leaky(h @ w2 + b2)
    h = _leaky(h @ w3 + b3)
    return h @ w4 + b4


if __name__ == "__main__":
    key = jax.random.PRNGKey(0)
    pkey, xkey = jax.random.split(key)
    params = init_params(pkey)
    # fc1 expects 32*1*1 features after three /2 pools -> input spatial 8x8.
    x = jax.random.normal(xkey, (2, 3, 8, 8), jnp.float32)  # NCHW, like PyTorch

    fwd = jax.jit(qnet_forward)
    out = jax.block_until_ready(fwd(x, params))
    ref = jax.block_until_ready(qnet_forward_ref(x, params))
    assert out.shape == (2, 3), out.shape
    assert jnp.allclose(out, ref, rtol=2e-2, atol=2e-2), (out, ref)
    print("KERNEL_OK")
</pallas_src>

<mosaic_0001>
module attributes {stable_mosaic.version = 11 : i64} {
  func.func @qnet_kernel(%arg0: i32, %arg1: memref<128x3xf32, #tpu.memory_space<vmem>>, %arg2: memref<9x3x8xf32, #tpu.memory_space<vmem>>, %arg3: memref<1x8xf32, #tpu.memory_space<vmem>>, %arg4: memref<9x8x16xf32, #tpu.memory_space<vmem>>, %arg5: memref<1x16xf32, #tpu.memory_space<vmem>>, %arg6: memref<9x16x32xf32, #tpu.memory_space<vmem>>, %arg7: memref<1x32xf32, #tpu.memory_space<vmem>>, %arg8: memref<32x128xf32, #tpu.memory_space<vmem>>, %arg9: memref<1x128xf32, #tpu.memory_space<vmem>>, %arg10: memref<128x64xf32, #tpu.memory_space<vmem>>, %arg11: memref<1x64xf32, #tpu.memory_space<vmem>>, %arg12: memref<64x32xf32, #tpu.memory_space<vmem>>, %arg13: memref<1x32xf32, #tpu.memory_space<vmem>>, %arg14: memref<32x3xf32, #tpu.memory_space<vmem>>, %arg15: memref<1x3xf32, #tpu.memory_space<vmem>>, %arg16: memref<2x3xf32, #tpu.memory_space<vmem>>) attributes {dimension_semantics = [#tpu.dimension_semantics<parallel>], iteration_bounds = array<i64: 1>, scalar_prefetch = 0 : i64, scratch_operands = 0 : i64, tpu.core_type = #tpu.core_type<tc>, window_params = [{transform_indices = @transform_0, window_bounds = array<i64: 128, 3>}, {pipeline_mode = #tpu.pipeline_mode<synchronous>, transform_indices = @transform_1, window_bounds = array<i64: 9, 3, 8>}, {pipeline_mode = #tpu.pipeline_mode<synchronous>, transform_indices = @transform_2, window_bounds = array<i64: 1, 8>}, {pipeline_mode = #tpu.pipeline_mode<synchronous>, transform_indices = @transform_3, window_bounds = array<i64: 9, 8, 16>}, {pipeline_mode = #tpu.pipeline_mode<synchronous>, transform_indices = @transform_4, window_bounds = array<i64: 1, 16>}, {pipeline_mode = #tpu.pipeline_mode<synchronous>, transform_indices = @transform_5, window_bounds = array<i64: 9, 16, 32>}, {pipeline_mode = #tpu.pipeline_mode<synchronous>, transform_indices = @transform_6, window_bounds = array<i64: 1, 32>}, {pipeline_mode = #tpu.pipeline_mode<synchronous>, transform_indices = @transform_7, window_bounds = array<i64: 32, 128>}, {pipeline_mode = #tpu.pipeline_mode<synchronous>, transform_indices = @transform_8, window_bounds = array<i64: 1, 128>}, {pipeline_mode = #tpu.pipeline_mode<synchronous>, transform_indices = @transform_9, window_bounds = array<i64: 128, 64>}, {pipeline_mode = #tpu.pipeline_mode<synchronous>, transform_indices = @transform_10, window_bounds = array<i64: 1, 64>}, {pipeline_mode = #tpu.pipeline_mode<synchronous>, transform_indices = @transform_11, window_bounds = array<i64: 64, 32>}, {pipeline_mode = #tpu.pipeline_mode<synchronous>, transform_indices = @transform_12, window_bounds = array<i64: 1, 32>}, {pipeline_mode = #tpu.pipeline_mode<synchronous>, transform_indices = @transform_13, window_bounds = array<i64: 32, 3>}, {pipeline_mode = #tpu.pipeline_mode<synchronous>, transform_indices = @transform_14, window_bounds = array<i64: 1, 3>}, {transform_indices = @transform_15, window_bounds = array<i64: 2, 3>}]} {
    %c0 = arith.constant 0 : index
    %c0_0 = arith.constant 0 : index
    %0 = vector.load %arg1[%c0, %c0_0] : memref<128x3xf32, #tpu.memory_space<vmem>>, vector<128x3xf32>
    %c0_1 = arith.constant 0 : index
    %c0_2 = arith.constant 0 : index
    %1 = vector.load %arg3[%c0_1, %c0_2] : memref<1x8xf32, #tpu.memory_space<vmem>>, vector<1x8xf32>
    %2 = tpu.iota {dimensions = array<i32: 0>} : vector<128x1xi32>
    %c63_i32 = arith.constant 63 : i32
    %3 = vector.broadcast %c63_i32 : i32 to vector<128x1xi32>
    %4 = arith.andi %2, %3 : vector<128x1xi32>
    %c3_i32 = arith.constant 3 : i32
    %5 = vector.broadcast %c3_i32 : i32 to vector<128x1xi32>
    %6 = arith.shrsi %4, %5 : vector<128x1xi32>
    %c7_i32 = arith.constant 7 : i32
    %7 = vector.broadcast %c7_i32 : i32 to vector<128x1xi32>
    %8 = arith.andi %2, %7 : vector<128x1xi32>
    %9 = tpu.iota {dimensions = array<i32: 0>} : vector<128x128xi32>
    %10 = tpu.iota {dimensions = array<i32: 1>} : vector<128x128xi32>
    %cst = arith.constant 0.000000e+00 : f32
    %11 = vector.broadcast %cst : f32 to vector<128x8xf32>
    %c-1_i32 = arith.constant -1 : i32
    %12 = vector.broadcast %c-1_i32 : i32 to vector<128x1xi32>
    %13 = arith.addi %6, %12 : vector<128x1xi32>
    %c0_i32 = arith.constant 0 : i32
    %14 = vector.broadcast %c0_i32 : i32 to vector<128x1xi32>
    %15 = arith.cmpi sge, %13, %14 : vector<128x1xi32>
    %c-1_i32_3 = arith.constant -1 : i32
    %16 = vector.broadcast %c-1_i32_3 : i32 to vector<128x1xi32>
    %17 = arith.addi %6, %16 : vector<128x1xi32>
    %c8_i32 = arith.constant 8 : i32
    %18 = vector.broadcast %c8_i32 : i32 to vector<128x1xi32>
    %19 = arith.cmpi slt, %17, %18 : vector<128x1xi32>
    %20 = arith.andi %15, %19 : vector<128x1xi1>
    %c-1_i32_4 = arith.constant -1 : i32
    %21 = vector.broadcast %c-1_i32_4 : i32 to vector<128x1xi32>
    %22 = arith.addi %8, %21 : vector<128x1xi32>
    %c0_i32_5 = arith.constant 0 : i32
    %23 = vector.broadcast %c0_i32_5 : i32 to vector<128x1xi32>
    %24 = arith.cmpi sge, %22, %23 : vector<128x1xi32>
    %25 = arith.andi %20, %24 : vector<128x1xi1>
    %c-1_i32_6 = arith.constant -1 : i32
    %26 = vector.broadcast %c-1_i32_6 : i32 to vector<128x1xi32>
    %27 = arith.addi %8, %26 : vector<128x1xi32>
    %c8_i32_7 = arith.constant 8 : i32
    %28 = vector.broadcast %c8_i32_7 : i32 to vector<128x1xi32>
    %29 = arith.cmpi slt, %27, %28 : vector<128x1xi32>
    %30 = arith.andi %25, %29 : vector<128x1xi1>
    %c-9_i32 = arith.constant -9 : i32
    %31 = vector.broadcast %c-9_i32 : i32 to vector<128x128xi32>
    %32 = arith.addi %9, %31 : vector<128x128xi32>
    %33 = arith.cmpi eq, %10, %32 : vector<128x128xi32>
    %34 = vector.broadcast %30 : vector<128x1xi1> to vector<128x128xi1>
    %35 = arith.andi %34, %33 : vector<128x128xi1>
    %cst_8 = arith.constant 1.000000e+00 : f32
    %cst_9 = arith.constant 0.000000e+00 : f32
    %36 = vector.broadcast %cst_8 : f32 to vector<128x128xf32>
    %37 = vector.broadcast %cst_9 : f32 to vector<128x128xf32>
    %38 = arith.select %35, %36, %37 : vector<128x128xi1>, vector<128x128xf32>
    %c0_10 = arith.constant 0 : index
    %c0_11 = arith.constant 0 : index
    %c0_12 = arith.constant 0 : index
    %39 = vector.load %arg2[%c0_10, %c0_11, %c0_12] : memref<9x3x8xf32, #tpu.memory_space<vmem>>, vector<1x3x8xf32>
    %40 = vector.shape_cast %39 : vector<1x3x8xf32> to vector<3x8xf32>
    %cst_13 = arith.constant dense<0.000000e+00> : vector<128x8xf32>
    %41 = tpu.matmul %0, %40, %cst_13 {dimension_numbers = #tpu.dot_dimension_numbers<[1], [0], [0], [1], [0, 0, 1, 1], [], []>} : vector<128x3xf32>, vector<3x8xf32>, vector<128x8xf32> -> vector<128x8xf32>
    %cst_14 = arith.constant dense<0.000000e+00> : vector<128x8xf32>
    %42 = tpu.matmul %38, %41, %cst_14 {dimension_numbers = #tpu.dot_dimension_numbers<[1], [0], [0], [1], [0, 0, 1, 1], [], []>} : vector<128x128xf32>, vector<128x8xf32>, vector<128x8xf32> -> vector<128x8xf32>
    %43 = arith.addf %11, %42 : vector<128x8xf32>
    %c-1_i32_15 = arith.constant -1 : i32
    %44 = vector.broadcast %c-1_i32_15 : i32 to vector<128x1xi32>
    %45 = arith.addi %6, %44 : vector<128x1xi32>
    %c0_i32_16 = arith.constant 0 : i32
    %46 = vector.broadcast %c0_i32_16 : i32 to vector<128x1xi32>
    %47 = arith.cmpi sge, %45, %46 : vector<128x1xi32>
    %c-1_i32_17 = arith.constant -1 : i32
    %48 = vector.broadcast %c-1_i32_17 : i32 to vector<128x1xi32>
    %49 = arith.addi %6, %48 : vector<128x1xi32>
    %c8_i32_18 = arith.constant 8 : i32
    %50 = vector.broadcast %c8_i32_18 : i32 to vector<128x1xi32>
    %51 = arith.cmpi slt, %49, %50 : vector<128x1xi32>
    %52 = arith.andi %47, %51 : vector<128x1xi1>
    %c0_i32_19 = arith.constant 0 : i32
    %53 = vector.broadcast %c0_i32_19 : i32 to vector<128x1xi32>
    %54 = arith.addi %8, %53 : vector<128x1xi32>
    %c0_i32_20 = arith.constant 0 : i32
    %55 = vector.broadcast %c0_i32_20 : i32 to vector<128x1xi32>
    %56 = arith.cmpi sge, %54, %55 : vector<128x1xi32>
    %57 = arith.andi %52, %56 : vector<128x1xi1>
    %c0_i32_21 = arith.constant 0 : i32
    %58 = vector.broadcast %c0_i32_21 : i32 to vector<128x1xi32>
    %59 = arith.addi %8, %58 : vector<128x1xi32>
    %c8_i32_22 = arith.constant 8 : i32
    %60 = vector.broadcast %c8_i32_22 : i32 to vector<128x1xi32>
    %61 = arith.cmpi slt, %59, %60 : vector<128x1xi32>
    %62 = arith.andi %57, %61 : vector<128x1xi1>
    %c-8_i32 = arith.constant -8 : i32
    %63 = vector.broadcast %c-8_i32 : i32 to vector<128x128xi32>
    %64 = arith.addi %9, %63 : vector<128x128xi32>
    %65 = arith.cmpi eq, %10, %64 : vector<128x128xi32>
    %66 = vector.broadcast %62 : vector<128x1xi1> to vector<128x128xi1>
    %67 = arith.andi %66, %65 : vector<128x128xi1>
    %cst_23 = arith.constant 1.000000e+00 : f32
    %cst_24 = arith.constant 0.000000e+00 : f32
    %68 = vector.broadcast %cst_23 : f32 to vector<128x128xf32>
    %69 = vector.broadcast %cst_24 : f32 to vector<128x128xf32>
    %70 = arith.select %67, %68, %69 : vector<128x128xi1>, vector<128x128xf32>
    %c1 = arith.constant 1 : index
    %c0_25 = arith.constant 0 : index
    %c0_26 = arith.constant 0 : index
    %71 = vector.load %arg2[%c1, %c0_25, %c0_26] : memref<9x3x8xf32, #tpu.memory_space<vmem>>, vector<1x3x8xf32>
    %72 = vector.shape_cast %71 : vector<1x3x8xf32> to vector<3x8xf32>
    %cst_27 = arith.constant dense<0.000000e+00> : vector<128x8xf32>
    %73 = tpu.matmul %0, %72, %cst_27 {dimension_numbers = #tpu.dot_dimension_numbers<[1], [0], [0], [1], [0, 0, 1, 1], [], []>} : vector<128x3xf32>, vector<3x8xf32>, vector<128x8xf32> -> vector<128x8xf32>
    %cst_28 = arith.constant dense<0.000000e+00> : vector<128x8xf32>
    %74 = tpu.matmul %70, %73, %cst_28 {dimension_numbers = #tpu.dot_dimension_numbers<[1], [0], [0], [1], [0, 0, 1, 1], [], []>} : vector<128x128xf32>, vector<128x8xf32>, vector<128x8xf32> -> vector<128x8xf32>
    %75 = arith.addf %43, %74 : vector<128x8xf32>
    %c-1_i32_29 = arith.constant -1 : i32
    %76 = vector.broadcast %c-1_i32_29 : i32 to vector<128x1xi32>
    %77 = arith.addi %6, %76 : vector<128x1xi32>
    %c0_i32_30 = arith.constant 0 : i32
    %78 = vector.broadcast %c0_i32_30 : i32 to vector<128x1xi32>
    %79 = arith.cmpi sge, %77, %78 : vector<128x1xi32>
    %c-1_i32_31 = arith.constant -1 : i32
    %80 = vector.broadcast %c-1_i32_31 : i32 to vector<128x1xi32>
    %81 = arith.addi %6, %80 : vector<128x1xi32>
    %c8_i32_32 = arith.constant 8 : i32
    %82 = vector.broadcast %c8_i32_32 : i32 to vector<128x1xi32>
    %83 = arith.cmpi slt, %81, %82 : vector<128x1xi32>
    %84 = arith.andi %79, %83 : vector<128x1xi1>
    %c1_i32 = arith.constant 1 : i32
    %85 = vector.broadcast %c1_i32 : i32 to vector<128x1xi32>
    %86 = arith.addi %8, %85 : vector<128x1xi32>
    %c0_i32_33 = arith.constant 0 : i32
    %87 = vector.broadcast %c0_i32_33 : i32 to vector<128x1xi32>
    %88 = arith.cmpi sge, %86, %87 : vector<128x1xi32>
    %89 = arith.andi %84, %88 : vector<128x1xi1>
    %c1_i32_34 = arith.constant 1 : i32
    %90 = vector.broadcast %c1_i32_34 : i32 to vector<128x1xi32>
    %91 = arith.addi %8, %90 : vector<128x1xi32>
    %c8_i32_35 = arith.constant 8 : i32
    %92 = vector.broadcast %c8_i32_35 : i32 to vector<128x1xi32>
    %93 = arith.cmpi slt, %91, %92 : vector<128x1xi32>
    %94 = arith.andi %89, %93 : vector<128x1xi1>
    %c-7_i32 = arith.constant -7 : i32
    %95 = vector.broadcast %c-7_i32 : i32 to vector<128x128xi32>
    %96 = arith.addi %9, %95 : vector<128x128xi32>
    %97 = arith.cmpi eq, %10, %96 : vector<128x128xi32>
    %98 = vector.broadcast %94 : vector<128x1xi1> to vector<128x128xi1>
    %99 = arith.andi %98, %97 : vector<128x128xi1>
    %cst_36 = arith.constant 1.000000e+00 : f32
    %cst_37 = arith.constant 0.000000e+00 : f32
    %100 = vector.broadcast %cst_36 : f32 to vector<128x128xf32>
    %101 = vector.broadcast %cst_37 : f32 to vector<128x128xf32>
    %102 = arith.select %99, %100, %101 : vector<128x128xi1>, vector<128x128xf32>
    %c2 = arith.constant 2 : index
    %c0_38 = arith.constant 0 : index
    %c0_39 = arith.constant 0 : index
    %103 = vector.load %arg2[%c2, %c0_38, %c0_39] : memref<9x3x8xf32, #tpu.memory_space<vmem>>, vector<1x3x8xf32>
    %104 = vector.shape_cast %103 : vector<1x3x8xf32> to vector<3x8xf32>
    %cst_40 = arith.constant dense<0.000000e+00> : vector<128x8xf32>
    %105 = tpu.matmul %0, %104, %cst_40 {dimension_numbers = #tpu.dot_dimension_numbers<[1], [0], [0], [1], [0, 0, 1, 1], [], []>} : vector<128x3xf32>, vector<3x8xf32>, vector<128x8xf32> -> vector<128x8xf32>
    %cst_41 = arith.constant dense<0.000000e+00> : vector<128x8xf32>
    %106 = tpu.matmul %102, %105, %cst_41 {dimension_numbers = #tpu.dot_dimension_numbers<[1], [0], [0], [1], [0, 0, 1, 1], [], []>} : vector<128x128xf32>, vector<128x8xf32>, vector<128x8xf32> -> vector<128x8xf32>
    %107 = arith.addf %75, %106 : vector<128x8xf32>
    %c0_i32_42 = arith.constant 0 : i32
    %108 = vector.broadcast %c0_i32_42 : i32 to vector<128x1xi32>
    %109 = arith.addi %6, %108 : vector<128x1xi32>
    %c0_i32_43 = arith.constant 0 : i32
    %110 = vector.broadcast %c0_i32_43 : i32 to vector<128x1xi32>
    %111 = arith.cmpi sge, %109, %110 : vector<128x1xi32>
    %c0_i32_44 = arith.constant 0 : i32
    %112 = vector.broadcast %c0_i32_44 : i32 to vector<128x1xi32>
    %113 = arith.addi %6, %112 : vector<128x1xi32>
    %c8_i32_45 = arith.constant 8 : i32
    %114 = vector.broadcast %c8_i32_45 : i32 to vector<128x1xi32>
    %115 = arith.cmpi slt, %113, %114 : vector<128x1xi32>
    %116 = arith.andi %111, %115 : vector<128x1xi1>
    %c-1_i32_46 = arith.constant -1 : i32
    %117 = vector.broadcast %c-1_i32_46 : i32 to vector<128x1xi32>
    %118 = arith.addi %8, %117 : vector<128x1xi32>
    %c0_i32_47 = arith.constant 0 : i32
    %119 = vector.broadcast %c0_i32_47 : i32 to vector<128x1xi32>
    %120 = arith.cmpi sge, %118, %119 : vector<128x1xi32>
    %121 = arith.andi %116, %120 : vector<128x1xi1>
    %c-1_i32_48 = arith.constant -1 : i32
    %122 = vector.broadcast %c-1_i32_48 : i32 to vector<128x1xi32>
    %123 = arith.addi %8, %122 : vector<128x1xi32>
    %c8_i32_49 = arith.constant 8 : i32
    %124 = vector.broadcast %c8_i32_49 : i32 to vector<128x1xi32>
    %125 = arith.cmpi slt, %123, %124 : vector<128x1xi32>
    %126 = arith.andi %121, %125 : vector<128x1xi1>
    %c-1_i32_50 = arith.constant -1 : i32
    %127 = vector.broadcast %c-1_i32_50 : i32 to vector<128x128xi32>
    %128 = arith.addi %9, %127 : vector<128x128xi32>
    %129 = arith.cmpi eq, %10, %128 : vector<128x128xi32>
    %130 = vector.broadcast %126 : vector<128x1xi1> to vector<128x128xi1>
    %131 = arith.andi %130, %129 : vector<128x128xi1>
    %cst_51 = arith.constant 1.000000e+00 : f32
    %cst_52 = arith.constant 0.000000e+00 : f32
    %132 = vector.broadcast %cst_51 : f32 to vector<128x128xf32>
    %133 = vector.broadcast %cst_52 : f32 to vector<128x128xf32>
    %134 = arith.select %131, %132, %133 : vector<128x128xi1>, vector<128x128xf32>
    %c3 = arith.constant 3 : index
    %c0_53 = arith.constant 0 : index
    %c0_54 = arith.constant 0 : index
    %135 = vector.load %arg2[%c3, %c0_53, %c0_54] : memref<9x3x8xf32, #tpu.memory_space<vmem>>, vector<1x3x8xf32>
    %136 = vector.shape_cast %135 : vector<1x3x8xf32> to vector<3x8xf32>
    %cst_55 = arith.constant dense<0.000000e+00> : vector<128x8xf32>
    %137 = tpu.matmul %0, %136, %cst_55 {dimension_numbers = #tpu.dot_dimension_numbers<[1], [0], [0], [1], [0, 0, 1, 1], [], []>} : vector<128x3xf32>, vector<3x8xf32>, vector<128x8xf32> -> vector<128x8xf32>
    %cst_56 = arith.constant dense<0.000000e+00> : vector<128x8xf32>
    %138 = tpu.matmul %134, %137, %cst_56 {dimension_numbers = #tpu.dot_dimension_numbers<[1], [0], [0], [1], [0, 0, 1, 1], [], []>} : vector<128x128xf32>, vector<128x8xf32>, vector<128x8xf32> -> vector<128x8xf32>
    %139 = arith.addf %107, %138 : vector<128x8xf32>
    %c0_i32_57 = arith.constant 0 : i32
    %140 = vector.broadcast %c0_i32_57 : i32 to vector<128x1xi32>
    %141 = arith.addi %6, %140 : vector<128x1xi32>
    %c0_i32_58 = arith.constant 0 : i32
    %142 = vector.broadcast %c0_i32_58 : i32 to vector<128x1xi32>
    %143 = arith.cmpi sge, %141, %142 : vector<128x1xi32>
    %c0_i32_59 = arith.constant 0 : i32
    %144 = vector.broadcast %c0_i32_59 : i32 to vector<128x1xi32>
    %145 = arith.addi %6, %144 : vector<128x1xi32>
    %c8_i32_60 = arith.constant 8 : i32
    %146 = vector.broadcast %c8_i32_60 : i32 to vector<128x1xi32>
    %147 = arith.cmpi slt, %145, %146 : vector<128x1xi32>
    %148 = arith.andi %143, %147 : vector<128x1xi1>
    %c0_i32_61 = arith.constant 0 : i32
    %149 = vector.broadcast %c0_i32_61 : i32 to vector<128x1xi32>
    %150 = arith.addi %8, %149 : vector<128x1xi32>
    %c0_i32_62 = arith.constant 0 : i32
    %151 = vector.broadcast %c0_i32_62 : i32 to vector<128x1xi32>
    %152 = arith.cmpi sge, %150, %151 : vector<128x1xi32>
    %153 = arith.andi %148, %152 : vector<128x1xi1>
    %c0_i32_63 = arith.constant 0 : i32
    %154 = vector.broadcast %c0_i32_63 : i32 to vector<128x1xi32>
    %155 = arith.addi %8, %154 : vector<128x1xi32>
    %c8_i32_64 = arith.constant 8 : i32
    %156 = vector.broadcast %c8_i32_64 : i32 to vector<128x1xi32>
    %157 = arith.cmpi slt, %155, %156 : vector<128x1xi32>
    %158 = arith.andi %153, %157 : vector<128x1xi1>
    %c0_i32_65 = arith.constant 0 : i32
    %159 = vector.broadcast %c0_i32_65 : i32 to vector<128x128xi32>
    %160 = arith.addi %9, %159 : vector<128x128xi32>
    %161 = arith.cmpi eq, %10, %160 : vector<128x128xi32>
    %162 = vector.broadcast %158 : vector<128x1xi1> to vector<128x128xi1>
    %163 = arith.andi %162, %161 : vector<128x128xi1>
    %cst_66 = arith.constant 1.000000e+00 : f32
    %cst_67 = arith.constant 0.000000e+00 : f32
    %164 = vector.broadcast %cst_66 : f32 to vector<128x128xf32>
    %165 = vector.broadcast %cst_67 : f32 to vector<128x128xf32>
    %166 = arith.select %163, %164, %165 : vector<128x128xi1>, vector<128x128xf32>
    %c4 = arith.constant 4 : index
    %c0_68 = arith.constant 0 : index
    %c0_69 = arith.constant 0 : index
    %167 = vector.load %arg2[%c4, %c0_68, %c0_69] : memref<9x3x8xf32, #tpu.memory_space<vmem>>, vector<1x3x8xf32>
    %168 = vector.shape_cast %167 : vector<1x3x8xf32> to vector<3x8xf32>
    %cst_70 = arith.constant dense<0.000000e+00> : vector<128x8xf32>
    %169 = tpu.matmul %0, %168, %cst_70 {dimension_numbers = #tpu.dot_dimension_numbers<[1], [0], [0], [1], [0, 0, 1, 1], [], []>} : vector<128x3xf32>, vector<3x8xf32>, vector<128x8xf32> -> vector<128x8xf32>
    %cst_71 = arith.constant dense<0.000000e+00> : vector<128x8xf32>
    %170 = tpu.matmul %166, %169, %cst_71 {dimension_numbers = #tpu.dot_dimension_numbers<[1], [0], [0], [1], [0, 0, 1, 1], [], []>} : vector<128x128xf32>, vector<128x8xf32>, vector<128x8xf32> -> vector<128x8xf32>
    %171 = arith.addf %139, %170 : vector<128x8xf32>
    %c0_i32_72 = arith.constant 0 : i32
    %172 = vector.broadcast %c0_i32_72 : i32 to vector<128x1xi32>
    %173 = arith.addi %6, %172 : vector<128x1xi32>
    %c0_i32_73 = arith.constant 0 : i32
    %174 = vector.broadcast %c0_i32_73 : i32 to vector<128x1xi32>
    %175 = arith.cmpi sge, %173, %174 : vector<128x1xi32>
    %c0_i32_74 = arith.constant 0 : i32
    %176 = vector.broadcast %c0_i32_74 : i32 to vector<128x1xi32>
    %177 = arith.addi %6, %176 : vector<128x1xi32>
    %c8_i32_75 = arith.constant 8 : i32
    %178 = vector.broadcast %c8_i32_75 : i32 to vector<128x1xi32>
    %179 = arith.cmpi slt, %177, %178 : vector<128x1xi32>
    %180 = arith.andi %175, %179 : vector<128x1xi1>
    %c1_i32_76 = arith.constant 1 : i32
    %181 = vector.broadcast %c1_i32_76 : i32 to vector<128x1xi32>
    %182 = arith.addi %8, %181 : vector<128x1xi32>
    %c0_i32_77 = arith.constant 0 : i32
    %183 = vector.broadcast %c0_i32_77 : i32 to vector<128x1xi32>
    %184 = arith.cmpi sge, %182, %183 : vector<128x1xi32>
    %185 = arith.andi %180, %184 : vector<128x1xi1>
    %c1_i32_78 = arith.constant 1 : i32
    %186 = vector.broadcast %c1_i32_78 : i32 to vector<128x1xi32>
    %187 = arith.addi %8, %186 : vector<128x1xi32>
    %c8_i32_79 = arith.constant 8 : i32
    %188 = vector.broadcast %c8_i32_79 : i32 to vector<128x1xi32>
    %189 = arith.cmpi slt, %187, %188 : vector<128x1xi32>
    %190 = arith.andi %185, %189 : vector<128x1xi1>
    %c1_i32_80 = arith.constant 1 : i32
    %191 = vector.broadcast %c1_i32_80 : i32 to vector<128x128xi32>
    %192 = arith.addi %9, %191 : vector<128x128xi32>
    %193 = arith.cmpi eq, %10, %192 : vector<128x128xi32>
    %194 = vector.broadcast %190 : vector<128x1xi1> to vector<128x128xi1>
    %195 = arith.andi %194, %193 : vector<128x128xi1>
    %cst_81 = arith.constant 1.000000e+00 : f32
    %cst_82 = arith.constant 0.000000e+00 : f32
    %196 = vector.broadcast %cst_81 : f32 to vector<128x128xf32>
    %197 = vector.broadcast %cst_82 : f32 to vector<128x128xf32>
    %198 = arith.select %195, %196, %197 : vector<128x128xi1>, vector<128x128xf32>
    %c5 = arith.constant 5 : index
    %c0_83 = arith.constant 0 : index
    %c0_84 = arith.constant 0 : index
    %199 = vector.load %arg2[%c5, %c0_83, %c0_84] : memref<9x3x8xf32, #tpu.memory_space<vmem>>, vector<1x3x8xf32>
    %200 = vector.shape_cast %199 : vector<1x3x8xf32> to vector<3x8xf32>
    %cst_85 = arith.constant dense<0.000000e+00> : vector<128x8xf32>
    %201 = tpu.matmul %0, %200, %cst_85 {dimension_numbers = #tpu.dot_dimension_numbers<[1], [0], [0], [1], [0, 0, 1, 1], [], []>} : vector<128x3xf32>, vector<3x8xf32>, vector<128x8xf32> -> vector<128x8xf32>
    %cst_86 = arith.constant dense<0.000000e+00> : vector<128x8xf32>
    %202 = tpu.matmul %198, %201, %cst_86 {dimension_numbers = #tpu.dot_dimension_numbers<[1], [0], [0], [1], [0, 0, 1, 1], [], []>} : vector<128x128xf32>, vector<128x8xf32>, vector<128x8xf32> -> vector<128x8xf32>
    %203 = arith.addf %171, %202 : vector<128x8xf32>
    %c1_i32_87 = arith.constant 1 : i32
    %204 = vector.broadcast %c1_i32_87 : i32 to vector<128x1xi32>
    %205 = arith.addi %6, %204 : vector<128x1xi32>
    %c0_i32_88 = arith.constant 0 : i32
    %206 = vector.broadcast %c0_i32_88 : i32 to vector<128x1xi32>
    %207 = arith.cmpi sge, %205, %206 : vector<128x1xi32>
    %c1_i32_89 = arith.constant 1 : i32
    %208 = vector.broadcast %c1_i32_89 : i32 to vector<128x1xi32>
    %209 = arith.addi %6, %208 : vector<128x1xi32>
    %c8_i32_90 = arith.constant 8 : i32
    %210 = vector.broadcast %c8_i32_90 : i32 to vector<128x1xi32>
    %211 = arith.cmpi slt, %209, %210 : vector<128x1xi32>
    %212 = arith.andi %207, %211 : vector<128x1xi1>
    %c-1_i32_91 = arith.constant -1 : i32
    %213 = vector.broadcast %c-1_i32_91 : i32 to vector<128x1xi32>
    %214 = arith.addi %8, %213 : vector<128x1xi32>
    %c0_i32_92 = arith.constant 0 : i32
    %215 = vector.broadcast %c0_i32_92 : i32 to vector<128x1xi32>
    %216 = arith.cmpi sge, %214, %215 : vector<128x1xi32>
    %217 = arith.andi %212, %216 : vector<128x1xi1>
    %c-1_i32_93 = arith.constant -1 : i32
    %218 = vector.broadcast %c-1_i32_93 : i32 to vector<128x1xi32>
    %219 = arith.addi %8, %218 : vector<128x1xi32>
    %c8_i32_94 = arith.constant 8 : i32
    %220 = vector.broadcast %c8_i32_94 : i32 to vector<128x1xi32>
    %221 = arith.cmpi slt, %219, %220 : vector<128x1xi32>
    %222 = arith.andi %217, %221 : vector<128x1xi1>
    %c7_i32_95 = arith.constant 7 : i32
    %223 = vector.broadcast %c7_i32_95 : i32 to vector<128x128xi32>
    %224 = arith.addi %9, %223 : vector<128x128xi32>
    %225 = arith.cmpi eq, %10, %224 : vector<128x128xi32>
    %226 = vector.broadcast %222 : vector<128x1xi1> to vector<128x128xi1>
    %227 = arith.andi %226, %225 : vector<128x128xi1>
    %cst_96 = arith.constant 1.000000e+00 : f32
    %cst_97 = arith.constant 0.000000e+00 : f32
    %228 = vector.broadcast %cst_96 : f32 to vector<128x128xf32>
    %229 = vector.broadcast %cst_97 : f32 to vector<128x128xf32>
    %230 = arith.select %227, %228, %229 : vector<128x128xi1>, vector<128x128xf32>
    %c6 = arith.constant 6 : index
    %c0_98 = arith.constant 0 : index
    %c0_99 = arith.constant 0 : index
    %231 = vector.load %arg2[%c6, %c0_98, %c0_99] : memref<9x3x8xf32, #tpu.memory_space<vmem>>, vector<1x3x8xf32>
    %232 = vector.shape_cast %231 : vector<1x3x8xf32> to vector<3x8xf32>
    %cst_100 = arith.constant dense<0.000000e+00> : vector<128x8xf32>
    %233 = tpu.matmul %0, %232, %cst_100 {dimension_numbers = #tpu.dot_dimension_numbers<[1], [0], [0], [1], [0, 0, 1, 1], [], []>} : vector<128x3xf32>, vector<3x8xf32>, vector<128x8xf32> -> vector<128x8xf32>
    %cst_101 = arith.constant dense<0.000000e+00> : vector<128x8xf32>
    %234 = tpu.matmul %230, %233, %cst_101 {dimension_numbers = #tpu.dot_dimension_numbers<[1], [0], [0], [1], [0, 0, 1, 1], [], []>} : vector<128x128xf32>, vector<128x8xf32>, vector<128x8xf32> -> vector<128x8xf32>
    %235 = arith.addf %203, %234 : vector<128x8xf32>
    %c1_i32_102 = arith.constant 1 : i32
    %236 = vector.broadcast %c1_i32_102 : i32 to vector<128x1xi32>
    %237 = arith.addi %6, %236 : vector<128x1xi32>
    %c0_i32_103 = arith.constant 0 : i32
    %238 = vector.broadcast %c0_i32_103 : i32 to vector<128x1xi32>
    %239 = arith.cmpi sge, %237, %238 : vector<128x1xi32>
    %c1_i32_104 = arith.constant 1 : i32
    %240 = vector.broadcast %c1_i32_104 : i32 to vector<128x1xi32>
    %241 = arith.addi %6, %240 : vector<128x1xi32>
    %c8_i32_105 = arith.constant 8 : i32
    %242 = vector.broadcast %c8_i32_105 : i32 to vector<128x1xi32>
    %243 = arith.cmpi slt, %241, %242 : vector<128x1xi32>
    %244 = arith.andi %239, %243 : vector<128x1xi1>
    %c0_i32_106 = arith.constant 0 : i32
    %245 = vector.broadcast %c0_i32_106 : i32 to vector<128x1xi32>
    %246 = arith.addi %8, %245 : vector<128x1xi32>
    %c0_i32_107 = arith.constant 0 : i32
    %247 = vector.broadcast %c0_i32_107 : i32 to vector<128x1xi32>
    %248 = arith.cmpi sge, %246, %247 : vector<128x1xi32>
    %249 = arith.andi %244, %248 : vector<128x1xi1>
    %c0_i32_108 = arith.constant 0 : i32
    %250 = vector.broadcast %c0_i32_108 : i32 to vector<128x1xi32>
    %251 = arith.addi %8, %250 : vector<128x1xi32>
    %c8_i32_109 = arith.constant 8 : i32
    %252 = vector.broadcast %c8_i32_109 : i32 to vector<128x1xi32>
    %253 = arith.cmpi slt, %251, %252 : vector<128x1xi32>
    %254 = arith.andi %249, %253 : vector<128x1xi1>
    %c8_i32_110 = arith.constant 8 : i32
    %255 = vector.broadcast %c8_i32_110 : i32 to vector<128x128xi32>
    %256 = arith.addi %9, %255 : vector<128x128xi32>
    %257 = arith.cmpi eq, %10, %256 : vector<128x128xi32>
    %258 = vector.broadcast %254 : vector<128x1xi1> to vector<128x128xi1>
    %259 = arith.andi %258, %257 : vector<128x128xi1>
    %cst_111 = arith.constant 1.000000e+00 : f32
    %cst_112 = arith.constant 0.000000e+00 : f32
    %260 = vector.broadcast %cst_111 : f32 to vector<128x128xf32>
    %261 = vector.broadcast %cst_112 : f32 to vector<128x128xf32>
    %262 = arith.select %259, %260, %261 : vector<128x128xi1>, vector<128x128xf32>
    %c7 = arith.constant 7 : index
    %c0_113 = arith.constant 0 : index
    %c0_114 = arith.constant 0 : index
    %263 = vector.load %arg2[%c7, %c0_113, %c0_114] : memref<9x3x8xf32, #tpu.memory_space<vmem>>, vector<1x3x8xf32>
    %264 = vector.shape_cast %263 : vector<1x3x8xf32> to vector<3x8xf32>
    %cst_115 = arith.constant dense<0.000000e+00> : vector<128x8xf32>
    %265 = tpu.matmul %0, %264, %cst_115 {dimension_numbers = #tpu.dot_dimension_numbers<[1], [0], [0], [1], [0, 0, 1, 1], [], []>} : vector<128x3xf32>, vector<3x8xf32>, vector<128x8xf32> -> vector<128x8xf32>
    %cst_116 = arith.constant dense<0.000000e+00> : vector<128x8xf32>
    %266 = tpu.matmul %262, %265, %cst_116 {dimension_numbers = #tpu.dot_dimension_numbers<[1], [0], [0], [1], [0, 0, 1, 1], [], []>} : vector<128x128xf32>, vector<128x8xf32>, vector<128x8xf32> -> vector<128x8xf32>
    %267 = arith.addf %235, %266 : vector<128x8xf32>
    %c1_i32_117 = arith.constant 1 : i32
    %268 = vector.broadcast %c1_i32_117 : i32 to vector<128x1xi32>
    %269 = arith.addi %6, %268 : vector<128x1xi32>
    %c0_i32_118 = arith.constant 0 : i32
    %270 = vector.broadcast %c0_i32_118 : i32 to vector<128x1xi32>
    %271 = arith.cmpi sge, %269, %270 : vector<128x1xi32>
    %c1_i32_119 = arith.constant 1 : i32
    %272 = vector.broadcast %c1_i32_119 : i32 to vector<128x1xi32>
    %273 = arith.addi %6, %272 : vector<128x1xi32>
    %c8_i32_120 = arith.constant 8 : i32
    %274 = vector.broadcast %c8_i32_120 : i32 to vector<128x1xi32>
    %275 = arith.cmpi slt, %273, %274 : vector<128x1xi32>
    %276 = arith.andi %271, %275 : vector<128x1xi1>
    %c1_i32_121 = arith.constant 1 : i32
    %277 = vector.broadcast %c1_i32_121 : i32 to vector<128x1xi32>
    %278 = arith.addi %8, %277 : vector<128x1xi32>
    %c0_i32_122 = arith.constant 0 : i32
    %279 = vector.broadcast %c0_i32_122 : i32 to vector<128x1xi32>
    %280 = arith.cmpi sge, %278, %279 : vector<128x1xi32>
    %281 = arith.andi %276, %280 : vector<128x1xi1>
    %c1_i32_123 = arith.constant 1 : i32
    %282 = vector.broadcast %c1_i32_123 : i32 to vector<128x1xi32>
    %283 = arith.addi %8, %282 : vector<128x1xi32>
    %c8_i32_124 = arith.constant 8 : i32
    %284 = vector.broadcast %c8_i32_124 : i32 to vector<128x1xi32>
    %285 = arith.cmpi slt, %283, %284 : vector<128x1xi32>
    %286 = arith.andi %281, %285 : vector<128x1xi1>
    %c9_i32 = arith.constant 9 : i32
    %287 = vector.broadcast %c9_i32 : i32 to vector<128x128xi32>
    %288 = arith.addi %9, %287 : vector<128x128xi32>
    %289 = arith.cmpi eq, %10, %288 : vector<128x128xi32>
    %290 = vector.broadcast %286 : vector<128x1xi1> to vector<128x128xi1>
    %291 = arith.andi %290, %289 : vector<128x128xi1>
    %cst_125 = arith.constant 1.000000e+00 : f32
    %cst_126 = arith.constant 0.000000e+00 : f32
    %292 = vector.broadcast %cst_125 : f32 to vector<128x128xf32>
    %293 = vector.broadcast %cst_126 : f32 to vector<128x128xf32>
    %294 = arith.select %291, %292, %293 : vector<128x128xi1>, vector<128x128xf32>
    %c8 = arith.constant 8 : index
    %c0_127 = arith.constant 0 : index
    %c0_128 = arith.constant 0 : index
    %295 = vector.load %arg2[%c8, %c0_127, %c0_128] : memref<9x3x8xf32, #tpu.memory_space<vmem>>, vector<1x3x8xf32>
    %296 = vector.shape_cast %295 : vector<1x3x8xf32> to vector<3x8xf32>
    %cst_129 = arith.constant dense<0.000000e+00> : vector<128x8xf32>
    %297 = tpu.matmul %0, %296, %cst_129 {dimension_numbers = #tpu.dot_dimension_numbers<[1], [0], [0], [1], [0, 0, 1, 1], [], []>} : vector<128x3xf32>, vector<3x8xf32>, vector<128x8xf32> -> vector<128x8xf32>
    %cst_130 = arith.constant dense<0.000000e+00> : vector<128x8xf32>
    %298 = tpu.matmul %294, %297, %cst_130 {dimension_numbers = #tpu.dot_dimension_numbers<[1], [0], [0], [1], [0, 0, 1, 1], [], []>} : vector<128x128xf32>, vector<128x8xf32>, vector<128x8xf32> -> vector<128x8xf32>
    %299 = arith.addf %267, %298 : vector<128x8xf32>
    %300 = vector.broadcast %1 : vector<1x8xf32> to vector<128x8xf32>
    %301 = arith.addf %299, %300 : vector<128x8xf32>
    %cst_131 = arith.constant 0.000000e+00 : f32
    %302 = vector.broadcast %cst_131 : f32 to vector<128x8xf32>
    %303 = arith.cmpf ogt, %301, %302 : vector<128x8xf32>
    %cst_132 = arith.constant 0.00999999977 : f32
    %304 = vector.broadcast %cst_132 : f32 to vector<128x8xf32>
    %305 = arith.mulf %304, %301 : vector<128x8xf32>
    %306 = arith.select %303, %301, %305 : vector<128x8xi1>, vector<128x8xf32>
    %307 = tpu.iota {dimensions = array<i32: 0>} : vector<32x1xi32>
    %c4_i32 = arith.constant 4 : i32
    %308 = vector.broadcast %c4_i32 : i32 to vector<32x1xi32>
    %309 = arith.shrsi %307, %308 : vector<32x1xi32>
    %c15_i32 = arith.constant 15 : i32
    %310 = vector.broadcast %c15_i32 : i32 to vector<32x1xi32>
    %311 = arith.andi %307, %310 : vector<32x1xi32>
    %c2_i32 = arith.constant 2 : i32
    %312 = vector.broadcast %c2_i32 : i32 to vector<32x1xi32>
    %313 = arith.shrsi %311, %312 : vector<32x1xi32>
    %c3_i32_133 = arith.constant 3 : i32
    %314 = vector.broadcast %c3_i32_133 : i32 to vector<32x1xi32>
    %315 = arith.andi %307, %314 : vector<32x1xi32>
    %c64_i32 = arith.constant 64 : i32
    %316 = vector.broadcast %c64_i32 : i32 to vector<32x1xi32>
    %317 = arith.muli %309, %316 : vector<32x1xi32>
    %c16_i32 = arith.constant 16 : i32
    %318 = vector.broadcast %c16_i32 : i32 to vector<32x1xi32>
    %319 = arith.muli %313, %318 : vector<32x1xi32>
    %320 = arith.addi %317, %319 : vector<32x1xi32>
    %c2_i32_134 = arith.constant 2 : i32
    %321 = vector.broadcast %c2_i32_134 : i32 to vector<32x1xi32>
    %322 = arith.muli %315, %321 : vector<32x1xi32>
    %323 = arith.addi %320, %322 : vector<32x1xi32>
    %324 = tpu.iota {dimensions = array<i32: 1>} : vector<32x128xi32>
    %c0_i32_135 = arith.constant 0 : i32
    %325 = vector.broadcast %c0_i32_135 : i32 to vector<32x1xi32>
    %326 = arith.addi %323, %325 : vector<32x1xi32>
    %327 = vector.broadcast %326 : vector<32x1xi32> to vector<32x128xi32>
    %328 = arith.cmpi eq, %324, %327 : vector<32x128xi32>
    %cst_136 = arith.constant 1.000000e+00 : f32
    %cst_137 = arith.constant 0.000000e+00 : f32
    %329 = vector.broadcast %cst_136 : f32 to vector<32x128xf32>
    %330 = vector.broadcast %cst_137 : f32 to vector<32x128xf32>
    %331 = arith.select %328, %329, %330 : vector<32x128xi1>, vector<32x128xf32>
    %cst_138 = arith.constant dense<0.000000e+00> : vector<32x8xf32>
    %332 = tpu.matmul %331, %306, %cst_138 {dimension_numbers = #tpu.dot_dimension_numbers<[1], [0], [0], [1], [0, 0, 1, 1], [], []>} : vector<32x128xf32>, vector<128x8xf32>, vector<32x8xf32> -> vector<32x8xf32>
    %c1_i32_139 = arith.constant 1 : i32
    %333 = vector.broadcast %c1_i32_139 : i32 to vector<32x1xi32>
    %334 = arith.addi %323, %333 : vector<32x1xi32>
    %335 = vector.broadcast %334 : vector<32x1xi32> to vector<32x128xi32>
    %336 = arith.cmpi eq, %324, %335 : vector<32x128xi32>
    %cst_140 = arith.constant 1.000000e+00 : f32
    %cst_141 = arith.constant 0.000000e+00 : f32
    %337 = vector.broadcast %cst_140 : f32 to vector<32x128xf32>
    %338 = vector.broadcast %cst_141 : f32 to vector<32x128xf32>
    %339 = arith.select %336, %337, %338 : vector<32x128xi1>, vector<32x128xf32>
    %cst_142 = arith.constant dense<0.000000e+00> : vector<32x8xf32>
    %340 = tpu.matmul %339, %306, %cst_142 {dimension_numbers = #tpu.dot_dimension_numbers<[1], [0], [0], [1], [0, 0, 1, 1], [], []>} : vector<32x128xf32>, vector<128x8xf32>, vector<32x8xf32> -> vector<32x8xf32>
    %341 = arith.maximumf %332, %340 : vector<32x8xf32>
    %c8_i32_143 = arith.constant 8 : i32
    %342 = vector.broadcast %c8_i32_143 : i32 to vector<32x1xi32>
    %343 = arith.addi %323, %342 : vector<32x1xi32>
    %344 = vector.broadcast %343 : vector<32x1xi32> to vector<32x128xi32>
    %345 = arith.cmpi eq, %324, %344 : vector<32x128xi32>
    %cst_144 = arith.constant 1.000000e+00 : f32
    %cst_145 = arith.constant 0.000000e+00 : f32
    %346 = vector.broadcast %cst_144 : f32 to vector<32x128xf32>
    %347 = vector.broadcast %cst_145 : f32 to vector<32x128xf32>
    %348 = arith.select %345, %346, %347 : vector<32x128xi1>, vector<32x128xf32>
    %cst_146 = arith.constant dense<0.000000e+00> : vector<32x8xf32>
    %349 = tpu.matmul %348, %306, %cst_146 {dimension_numbers = #tpu.dot_dimension_numbers<[1], [0], [0], [1], [0, 0, 1, 1], [], []>} : vector<32x128xf32>, vector<128x8xf32>, vector<32x8xf32> -> vector<32x8xf32>
    %350 = arith.maximumf %341, %349 : vector<32x8xf32>
    %c9_i32_147 = arith.constant 9 : i32
    %351 = vector.broadcast %c9_i32_147 : i32 to vector<32x1xi32>
    %352 = arith.addi %323, %351 : vector<32x1xi32>
    %353 = vector.broadcast %352 : vector<32x1xi32> to vector<32x128xi32>
    %354 = arith.cmpi eq, %324, %353 : vector<32x128xi32>
    %cst_148 = arith.constant 1.000000e+00 : f32
    %cst_149 = arith.constant 0.000000e+00 : f32
    %355 = vector.broadcast %cst_148 : f32 to vector<32x128xf32>
    %356 = vector.broadcast %cst_149 : f32 to vector<32x128xf32>
    %357 = arith.select %354, %355, %356 : vector<32x128xi1>, vector<32x128xf32>
    %cst_150 = arith.constant dense<0.000000e+00> : vector<32x8xf32>
    %358 = tpu.matmul %357, %306, %cst_150 {dimension_numbers = #tpu.dot_dimension_numbers<[1], [0], [0], [1], [0, 0, 1, 1], [], []>} : vector<32x128xf32>, vector<128x8xf32>, vector<32x8xf32> -> vector<32x8xf32>
    %359 = arith.maximumf %350, %358 : vector<32x8xf32>
    %c0_151 = arith.constant 0 : index
    %c0_152 = arith.constant 0 : index
    %360 = vector.load %arg5[%c0_151, %c0_152] : memref<1x16xf32, #tpu.memory_space<vmem>>, vector<1x16xf32>
    %361 = tpu.iota {dimensions = array<i32: 0>} : vector<32x1xi32>
    %c15_i32_153 = arith.constant 15 : i32
    %362 = vector.broadcast %c15_i32_153 : i32 to vector<32x1xi32>
    %363 = arith.andi %361, %362 : vector<32x1xi32>
    %c2_i32_154 = arith.constant 2 : i32
    %364 = vector.broadcast %c2_i32_154 : i32 to vector<32x1xi32>
    %365 = arith.shrsi %363, %364 : vector<32x1xi32>
    %c3_i32_155 = arith.constant 3 : i32
    %366 = vector.broadcast %c3_i32_155 : i32 to vector<32x1xi32>
    %367 = arith.andi %361, %366 : vector<32x1xi32>
    %368 = tpu.iota {dimensions = array<i32: 0>} : vector<32x32xi32>
    %369 = tpu.iota {dimensions = array<i32: 1>} : vector<32x32xi32>
    %cst_156 = arith.constant 0.000000e+00 : f32
    %370 = vector.broadcast %cst_156 : f32 to vector<32x16xf32>
    %c-1_i32_157 = arith.constant -1 : i32
    %371 = vector.broadcast %c-1_i32_157 : i32 to vector<32x1xi32>
    %372 = arith.addi %365, %371 : vector<32x1xi32>
    %c0_i32_158 = arith.constant 0 : i32
    %373 = vector.broadcast %c0_i32_158 : i32 to vector<32x1xi32>
    %374 = arith.cmpi sge, %372, %373 : vector<32x1xi32>
    %c-1_i32_159 = arith.constant -1 : i32
    %375 = vector.broadcast %c-1_i32_159 : i32 to vector<32x1xi32>
    %376 = arith.addi %365, %375 : vector<32x1xi32>
    %c4_i32_160 = arith.constant 4 : i32
    %377 = vector.broadcast %c4_i32_160 : i32 to vector<32x1xi32>
    %378 = arith.cmpi slt, %376, %377 : vector<32x1xi32>
    %379 = arith.andi %374, %378 : vector<32x1xi1>
    %c-1_i32_161 = arith.constant -1 : i32
    %380 = vector.broadcast %c-1_i32_161 : i32 to vector<32x1xi32>
    %381 = arith.addi %367, %380 : vector<32x1xi32>
    %c0_i32_162 = arith.constant 0 : i32
    %382 = vector.broadcast %c0_i32_162 : i32 to vector<32x1xi32>
    %383 = arith.cmpi sge, %381, %382 : vector<32x1xi32>
    %384 = arith.andi %379, %383 : vector<32x1xi1>
    %c-1_i32_163 = arith.constant -1 : i32
    %385 = vector.broadcast %c-1_i32_163 : i32 to vector<32x1xi32>
    %386 = arith.addi %367, %385 : vector<32x1xi32>
    %c4_i32_164 = arith.constant 4 : i32
    %387 = vector.broadcast %c4_i32_164 : i32 to vector<32x1xi32>
    %388 = arith.cmpi slt, %386, %387 : vector<32x1xi32>
    %389 = arith.andi %384, %388 : vector<32x1xi1>
    %c-5_i32 = arith.constant -5 : i32
    %390 = vector.broadcast %c-5_i32 : i32 to vector<32x32xi32>
    %391 = arith.addi %368, %390 : vector<32x32xi32>
    %392 = arith.cmpi eq, %369, %391 : vector<32x32xi32>
    %393 = vector.broadcast %389 : vector<32x1xi1> to vector<32x32xi1>
    %394 = arith.andi %393, %392 : vector<32x32xi1>
    %cst_165 = arith.constant 1.000000e+00 : f32
    %cst_166 = arith.constant 0.000000e+00 : f32
    %395 = vector.broadcast %cst_165 : f32 to vector<32x32xf32>
    %396 = vector.broadcast %cst_166 : f32 to vector<32x32xf32>
    %397 = arith.select %394, %395, %396 : vector<32x32xi1>, vector<32x32xf32>
    %c0_167 = arith.constant 0 : index
    %c0_168 = arith.constant 0 : index
    %c0_169 = arith.constant 0 : index
    %398 = vector.load %arg4[%c0_167, %c0_168, %c0_169] : memref<9x8x16xf32, #tpu.memory_space<vmem>>, vector<1x8x16xf32>
    %399 = vector.shape_cast %398 : vector<1x8x16xf32> to vector<8x16xf32>
    %cst_170 = arith.constant dense<0.000000e+00> : vector<32x16xf32>
    %400 = tpu.matmul %359, %399, %cst_170 {dimension_numbers = #tpu.dot_dimension_numbers<[1], [0], [0], [1], [0, 0, 1, 1], [], []>} : vector<32x8xf32>, vector<8x16xf32>, vector<32x16xf32> -> vector<32x16xf32>
    %cst_171 = arith.constant dense<0.000000e+00> : vector<32x16xf32>
    %401 = tpu.matmul %397, %400, %cst_171 {dimension_numbers = #tpu.dot_dimension_numbers<[1], [0], [0], [1], [0, 0, 1, 1], [], []>} : vector<32x32xf32>, vector<32x16xf32>, vector<32x16xf32> -> vector<32x16xf32>
    %402 = arith.addf %370, %401 : vector<32x16xf32>
    %c-1_i32_172 = arith.constant -1 : i32
    %403 = vector.broadcast %c-1_i32_172 : i32 to vector<32x1xi32>
    %404 = arith.addi %365, %403 : vector<32x1xi32>
    %c0_i32_173 = arith.constant 0 : i32
    %405 = vector.broadcast %c0_i32_173 : i32 to vector<32x1xi32>
    %406 = arith.cmpi sge, %404, %405 : vector<32x1xi32>
    %c-1_i32_174 = arith.constant -1 : i32
    %407 = vector.broadcast %c-1_i32_174 : i32 to vector<32x1xi32>
    %408 = arith.addi %365, %407 : vector<32x1xi32>
    %c4_i32_175 = arith.constant 4 : i32
    %409 = vector.broadcast %c4_i32_175 : i32 to vector<32x1xi32>
    %410 = arith.cmpi slt, %408, %409 : vector<32x1xi32>
    %411 = arith.andi %406, %410 : vector<32x1xi1>
    %c0_i32_176 = arith.constant 0 : i32
    %412 = vector.broadcast %c0_i32_176 : i32 to vector<32x1xi32>
    %413 = arith.addi %367, %412 : vector<32x1xi32>
    %c0_i32_177 = arith.constant 0 : i32
    %414 = vector.broadcast %c0_i32_177 : i32 to vector<32x1xi32>
    %415 = arith.cmpi sge, %413, %414 : vector<32x1xi32>
    %416 = arith.andi %411, %415 : vector<32x1xi1>
    %c0_i32_178 = arith.constant 0 : i32
    %417 = vector.broadcast %c0_i32_178 : i32 to vector<32x1xi32>
    %418 = arith.addi %367, %417 : vector<32x1xi32>
    %c4_i32_179 = arith.constant 4 : i32
    %419 = vector.broadcast %c4_i32_179 : i32 to vector<32x1xi32>
    %420 = arith.cmpi slt, %418, %419 : vector<32x1xi32>
    %421 = arith.andi %416, %420 : vector<32x1xi1>
    %c-4_i32 = arith.constant -4 : i32
    %422 = vector.broadcast %c-4_i32 : i32 to vector<32x32xi32>
    %423 = arith.addi %368, %422 : vector<32x32xi32>
    %424 = arith.cmpi eq, %369, %423 : vector<32x32xi32>
    %425 = vector.broadcast %421 : vector<32x1xi1> to vector<32x32xi1>
    %426 = arith.andi %425, %424 : vector<32x32xi1>
    %cst_180 = arith.constant 1.000000e+00 : f32
    %cst_181 = arith.constant 0.000000e+00 : f32
    %427 = vector.broadcast %cst_180 : f32 to vector<32x32xf32>
    %428 = vector.broadcast %cst_181 : f32 to vector<32x32xf32>
    %429 = arith.select %426, %427, %428 : vector<32x32xi1>, vector<32x32xf32>
    %c1_182 = arith.constant 1 : index
    %c0_183 = arith.constant 0 : index
    %c0_184 = arith.constant 0 : index
    %430 = vector.load %arg4[%c1_182, %c0_183, %c0_184] : memref<9x8x16xf32, #tpu.memory_space<vmem>>, vector<1x8x16xf32>
    %431 = vector.shape_cast %430 : vector<1x8x16xf32> to vector<8x16xf32>
    %cst_185 = arith.constant dense<0.000000e+00> : vector<32x16xf32>
    %432 = tpu.matmul %359, %431, %cst_185 {dimension_numbers = #tpu.dot_dimension_numbers<[1], [0], [0], [1], [0, 0, 1, 1], [], []>} : vector<32x8xf32>, vector<8x16xf32>, vector<32x16xf32> -> vector<32x16xf32>
    %cst_186 = arith.constant dense<0.000000e+00> : vector<32x16xf32>
    %433 = tpu.matmul %429, %432, %cst_186 {dimension_numbers = #tpu.dot_dimension_numbers<[1], [0], [0], [1], [0, 0, 1, 1], [], []>} : vector<32x32xf32>, vector<32x16xf32>, vector<32x16xf32> -> vector<32x16xf32>
    %434 = arith.addf %402, %433 : vector<32x16xf32>
    %c-1_i32_187 = arith.constant -1 : i32
    %435 = vector.broadcast %c-1_i32_187 : i32 to vector<32x1xi32>
    %436 = arith.addi %365, %435 : vector<32x1xi32>
    %c0_i32_188 = arith.constant 0 : i32
    %437 = vector.broadcast %c0_i32_188 : i32 to vector<32x1xi32>
    %438 = arith.cmpi sge, %436, %437 : vector<32x1xi32>
    %c-1_i32_189 = arith.constant -1 : i32
    %439 = vector.broadcast %c-1_i32_189 : i32 to vector<32x1xi32>
    %440 = arith.addi %365, %439 : vector<32x1xi32>
    %c4_i32_190 = arith.constant 4 : i32
    %441 = vector.broadcast %c4_i32_190 : i32 to vector<32x1xi32>
    %442 = arith.cmpi slt, %440, %441 : vector<32x1xi32>
    %443 = arith.andi %438, %442 : vector<32x1xi1>
    %c1_i32_191 = arith.constant 1 : i32
    %444 = vector.broadcast %c1_i32_191 : i32 to vector<32x1xi32>
    %445 = arith.addi %367, %444 : vector<32x1xi32>
    %c0_i32_192 = arith.constant 0 : i32
    %446 = vector.broadcast %c0_i32_192 : i32 to vector<32x1xi32>
    %447 = arith.cmpi sge, %445, %446 : vector<32x1xi32>
    %448 = arith.andi %443, %447 : vector<32x1xi1>
    %c1_i32_193 = arith.constant 1 : i32
    %449 = vector.broadcast %c1_i32_193 : i32 to vector<32x1xi32>
    %450 = arith.addi %367, %449 : vector<32x1xi32>
    %c4_i32_194 = arith.constant 4 : i32
    %451 = vector.broadcast %c4_i32_194 : i32 to vector<32x1xi32>
    %452 = arith.cmpi slt, %450, %451 : vector<32x1xi32>
    %453 = arith.andi %448, %452 : vector<32x1xi1>
    %c-3_i32 = arith.constant -3 : i32
    %454 = vector.broadcast %c-3_i32 : i32 to vector<32x32xi32>
    %455 = arith.addi %368, %454 : vector<32x32xi32>
    %456 = arith.cmpi eq, %369, %455 : vector<32x32xi32>
    %457 = vector.broadcast %453 : vector<32x1xi1> to vector<32x32xi1>
    %458 = arith.andi %457, %456 : vector<32x32xi1>
    %cst_195 = arith.constant 1.000000e+00 : f32
    %cst_196 = arith.constant 0.000000e+00 : f32
    %459 = vector.broadcast %cst_195 : f32 to vector<32x32xf32>
    %460 = vector.broadcast %cst_196 : f32 to vector<32x32xf32>
    %461 = arith.select %458, %459, %460 : vector<32x32xi1>, vector<32x32xf32>
    %c2_197 = arith.constant 2 : index
    %c0_198 = arith.constant 0 : index
    %c0_199 = arith.constant 0 : index
    %462 = vector.load %arg4[%c2_197, %c0_198, %c0_199] : memref<9x8x16xf32, #tpu.memory_space<vmem>>, vector<1x8x16xf32>
    %463 = vector.shape_cast %462 : vector<1x8x16xf32> to vector<8x16xf32>
    %cst_200 = arith.constant dense<0.000000e+00> : vector<32x16xf32>
    %464 = tpu.matmul %359, %463, %cst_200 {dimension_numbers = #tpu.dot_dimension_numbers<[1], [0], [0], [1], [0, 0, 1, 1], [], []>} : vector<32x8xf32>, vector<8x16xf32>, vector<32x16xf32> -> vector<32x16xf32>
    %cst_201 = arith.constant dense<0.000000e+00> : vector<32x16xf32>
    %465 = tpu.matmul %461, %464, %cst_201 {dimension_numbers = #tpu.dot_dimension_numbers<[1], [0], [0], [1], [0, 0, 1, 1], [], []>} : vector<32x32xf32>, vector<32x16xf32>, vector<32x16xf32> -> vector<32x16xf32>
    %466 = arith.addf %434, %465 : vector<32x16xf32>
    %c0_i32_202 = arith.constant 0 : i32
    %467 = vector.broadcast %c0_i32_202 : i32 to vector<32x1xi32>
    %468 = arith.addi %365, %467 : vector<32x1xi32>
    %c0_i32_203 = arith.constant 0 : i32
    %469 = vector.broadcast %c0_i32_203 : i32 to vector<32x1xi32>
    %470 = arith.cmpi sge, %468, %469 : vector<32x1xi32>
    %c0_i32_204 = arith.constant 0 : i32
    %471 = vector.broadcast %c0_i32_204 : i32 to vector<32x1xi32>
    %472 = arith.addi %365, %471 : vector<32x1xi32>
    %c4_i32_205 = arith.constant 4 : i32
    %473 = vector.broadcast %c4_i32_205 : i32 to vector<32x1xi32>
    %474 = arith.cmpi slt, %472, %473 : vector<32x1xi32>
    %475 = arith.andi %470, %474 : vector<32x1xi1>
    %c-1_i32_206 = arith.constant -1 : i32
    %476 = vector.broadcast %c-1_i32_206 : i32 to vector<32x1xi32>
    %477 = arith.addi %367, %476 : vector<32x1xi32>
    %c0_i32_207 = arith.constant 0 : i32
    %478 = vector.broadcast %c0_i32_207 : i32 to vector<32x1xi32>
    %479 = arith.cmpi sge, %477, %478 : vector<32x1xi32>
    %480 = arith.andi %475, %479 : vector<32x1xi1>
    %c-1_i32_208 = arith.constant -1 : i32
    %481 = vector.broadcast %c-1_i32_208 : i32 to vector<32x1xi32>
    %482 = arith.addi %367, %481 : vector<32x1xi32>
    %c4_i32_209 = arith.constant 4 : i32
    %483 = vector.broadcast %c4_i32_209 : i32 to vector<32x1xi32>
    %484 = arith.cmpi slt, %482, %483 : vector<32x1xi32>
    %485 = arith.andi %480, %484 : vector<32x1xi1>
    %c-1_i32_210 = arith.constant -1 : i32
    %486 = vector.broadcast %c-1_i32_210 : i32 to vector<32x32xi32>
    %487 = arith.addi %368, %486 : vector<32x32xi32>
    %488 = arith.cmpi eq, %369, %487 : vector<32x32xi32>
    %489 = vector.broadcast %485 : vector<32x1xi1> to vector<32x32xi1>
    %490 = arith.andi %489, %488 : vector<32x32xi1>
    %cst_211 = arith.constant 1.000000e+00 : f32
    %cst_212 = arith.constant 0.000000e+00 : f32
    %491 = vector.broadcast %cst_211 : f32 to vector<32x32xf32>
    %492 = vector.broadcast %cst_212 : f32 to vector<32x32xf32>
    %493 = arith.select %490, %491, %492 : vector<32x32xi1>, vector<32x32xf32>
    %c3_213 = arith.constant 3 : index
    %c0_214 = arith.constant 0 : index
    %c0_215 = arith.constant 0 : index
    %494 = vector.load %arg4[%c3_213, %c0_214, %c0_215] : memref<9x8x16xf32, #tpu.memory_space<vmem>>, vector<1x8x16xf32>
    %495 = vector.shape_cast %494 : vector<1x8x16xf32> to vector<8x16xf32>
    %cst_216 = arith.constant dense<0.000000e+00> : vector<32x16xf32>
    %496 = tpu.matmul %359, %495, %cst_216 {dimension_numbers = #tpu.dot_dimension_numbers<[1], [0], [0], [1], [0, 0, 1, 1], [], []>} : vector<32x8xf32>, vector<8x16xf32>, vector<32x16xf32> -> vector<32x16xf32>
    %cst_217 = arith.constant dense<0.000000e+00> : vector<32x16xf32>
    %497 = tpu.matmul %493, %496, %cst_217 {dimension_numbers = #tpu.dot_dimension_numbers<[1], [0], [0], [1], [0, 0, 1, 1], [], []>} : vector<32x32xf32>, vector<32x16xf32>, vector<32x16xf32> -> vector<32x16xf32>
    %498 = arith.addf %466, %497 : vector<32x16xf32>
    %c0_i32_218 = arith.constant 0 : i32
    %499 = vector.broadcast %c0_i32_218 : i32 to vector<32x1xi32>
    %500 = arith.addi %365, %499 : vector<32x1xi32>
    %c0_i32_219 = arith.constant 0 : i32
    %501 = vector.broadcast %c0_i32_219 : i32 to vector<32x1xi32>
    %502 = arith.cmpi sge, %500, %501 : vector<32x1xi32>
    %c0_i32_220 = arith.constant 0 : i32
    %503 = vector.broadcast %c0_i32_220 : i32 to vector<32x1xi32>
    %504 = arith.addi %365, %503 : vector<32x1xi32>
    %c4_i32_221 = arith.constant 4 : i32
    %505 = vector.broadcast %c4_i32_221 : i32 to vector<32x1xi32>
    %506 = arith.cmpi slt, %504, %505 : vector<32x1xi32>
    %507 = arith.andi %502, %506 : vector<32x1xi1>
    %c0_i32_222 = arith.constant 0 : i32
    %508 = vector.broadcast %c0_i32_222 : i32 to vector<32x1xi32>
    %509 = arith.addi %367, %508 : vector<32x1xi32>
    %c0_i32_223 = arith.constant 0 : i32
    %510 = vector.broadcast %c0_i32_223 : i32 to vector<32x1xi32>
    %511 = arith.cmpi sge, %509, %510 : vector<32x1xi32>
    %512 = arith.andi %507, %511 : vector<32x1xi1>
    %c0_i32_224 = arith.constant 0 : i32
    %513 = vector.broadcast %c0_i32_224 : i32 to vector<32x1xi32>
    %514 = arith.addi %367, %513 : vector<32x1xi32>
    %c4_i32_225 = arith.constant 4 : i32
    %515 = vector.broadcast %c4_i32_225 : i32 to vector<32x1xi32>
    %516 = arith.cmpi slt, %514, %515 : vector<32x1xi32>
    %517 = arith.andi %512, %516 : vector<32x1xi1>
    %c0_i32_226 = arith.constant 0 : i32
    %518 = vector.broadcast %c0_i32_226 : i32 to vector<32x32xi32>
    %519 = arith.addi %368, %518 : vector<32x32xi32>
    %520 = arith.cmpi eq, %369, %519 : vector<32x32xi32>
    %521 = vector.broadcast %517 : vector<32x1xi1> to vector<32x32xi1>
    %522 = arith.andi %521, %520 : vector<32x32xi1>
    %cst_227 = arith.constant 1.000000e+00 : f32
    %cst_228 = arith.constant 0.000000e+00 : f32
    %523 = vector.broadcast %cst_227 : f32 to vector<32x32xf32>
    %524 = vector.broadcast %cst_228 : f32 to vector<32x32xf32>
    %525 = arith.select %522, %523, %524 : vector<32x32xi1>, vector<32x32xf32>
    %c4_229 = arith.constant 4 : index
    %c0_230 = arith.constant 0 : index
    %c0_231 = arith.constant 0 : index
    %526 = vector.load %arg4[%c4_229, %c0_230, %c0_231] : memref<9x8x16xf32, #tpu.memory_space<vmem>>, vector<1x8x16xf32>
    %527 = vector.shape_cast %526 : vector<1x8x16xf32> to vector<8x16xf32>
    %cst_232 = arith.constant dense<0.000000e+00> : vector<32x16xf32>
    %528 = tpu.matmul %359, %527, %cst_232 {dimension_numbers = #tpu.dot_dimension_numbers<[1], [0], [0], [1], [0, 0, 1, 1], [], []>} : vector<32x8xf32>, vector<8x16xf32>, vector<32x16xf32> -> vector<32x16xf32>
    %cst_233 = arith.constant dense<0.000000e+00> : vector<32x16xf32>
    %529 = tpu.matmul %525, %528, %cst_233 {dimension_numbers = #tpu.dot_dimension_numbers<[1], [0], [0], [1], [0, 0, 1, 1], [], []>} : vector<32x32xf32>, vector<32x16xf32>, vector<32x16xf32> -> vector<32x16xf32>
    %530 = arith.addf %498, %529 : vector<32x16xf32>
    %c0_i32_234 = arith.constant 0 : i32
    %531 = vector.broadcast %c0_i32_234 : i32 to vector<32x1xi32>
    %532 = arith.addi %365, %531 : vector<32x1xi32>
    %c0_i32_235 = arith.constant 0 : i32
    %533 = vector.broadcast %c0_i32_235 : i32 to vector<32x1xi32>
    %534 = arith.cmpi sge, %532, %533 : vector<32x1xi32>
    %c0_i32_236 = arith.constant 0 : i32
    %535 = vector.broadcast %c0_i32_236 : i32 to vector<32x1xi32>
    %536 = arith.addi %365, %535 : vector<32x1xi32>
    %c4_i32_237 = arith.constant 4 : i32
    %537 = vector.broadcast %c4_i32_237 : i32 to vector<32x1xi32>
    %538 = arith.cmpi slt, %536, %537 : vector<32x1xi32>
    %539 = arith.andi %534, %538 : vector<32x1xi1>
    %c1_i32_238 = arith.constant 1 : i32
    %540 = vector.broadcast %c1_i32_238 : i32 to vector<32x1xi32>
    %541 = arith.addi %367, %540 : vector<32x1xi32>
    %c0_i32_239 = arith.constant 0 : i32
    %542 = vector.broadcast %c0_i32_239 : i32 to vector<32x1xi32>
    %543 = arith.cmpi sge, %541, %542 : vector<32x1xi32>
    %544 = arith.andi %539, %543 : vector<32x1xi1>
    %c1_i32_240 = arith.constant 1 : i32
    %545 = vector.broadcast %c1_i32_240 : i32 to vector<32x1xi32>
    %546 = arith.addi %367, %545 : vector<32x1xi32>
    %c4_i32_241 = arith.constant 4 : i32
    %547 = vector.broadcast %c4_i32_241 : i32 to vector<32x1xi32>
    %548 = arith.cmpi slt, %546, %547 : vector<32x1xi32>
    %549 = arith.andi %544, %548 : vector<32x1xi1>
    %c1_i32_242 = arith.constant 1 : i32
    %550 = vector.broadcast %c1_i32_242 : i32 to vector<32x32xi32>
    %551 = arith.addi %368, %550 : vector<32x32xi32>
    %552 = arith.cmpi eq, %369, %551 : vector<32x32xi32>
    %553 = vector.broadcast %549 : vector<32x1xi1> to vector<32x32xi1>
    %554 = arith.andi %553, %552 : vector<32x32xi1>
    %cst_243 = arith.constant 1.000000e+00 : f32
    %cst_244 = arith.constant 0.000000e+00 : f32
    %555 = vector.broadcast %cst_243 : f32 to vector<32x32xf32>
    %556 = vector.broadcast %cst_244 : f32 to vector<32x32xf32>
    %557 = arith.select %554, %555, %556 : vector<32x32xi1>, vector<32x32xf32>
    %c5_245 = arith.constant 5 : index
    %c0_246 = arith.constant 0 : index
    %c0_247 = arith.constant 0 : index
    %558 = vector.load %arg4[%c5_245, %c0_246, %c0_247] : memref<9x8x16xf32, #tpu.memory_space<vmem>>, vector<1x8x16xf32>
    %559 = vector.shape_cast %558 : vector<1x8x16xf32> to vector<8x16xf32>
    %cst_248 = arith.constant dense<0.000000e+00> : vector<32x16xf32>
    %560 = tpu.matmul %359, %559, %cst_248 {dimension_numbers = #tpu.dot_dimension_numbers<[1], [0], [0], [1], [0, 0, 1, 1], [], []>} : vector<32x8xf32>, vector<8x16xf32>, vector<32x16xf32> -> vector<32x16xf32>
    %cst_249 = arith.constant dense<0.000000e+00> : vector<32x16xf32>
    %561 = tpu.matmul %557, %560, %cst_249 {dimension_numbers = #tpu.dot_dimension_numbers<[1], [0], [0], [1], [0, 0, 1, 1], [], []>} : vector<32x32xf32>, vector<32x16xf32>, vector<32x16xf32> -> vector<32x16xf32>
    %562 = arith.addf %530, %561 : vector<32x16xf32>
    %c1_i32_250 = arith.constant 1 : i32
    %563 = vector.broadcast %c1_i32_250 : i32 to vector<32x1xi32>
    %564 = arith.addi %365, %563 : vector<32x1xi32>
    %c0_i32_251 = arith.constant 0 : i32
    %565 = vector.broadcast %c0_i32_251 : i32 to vector<32x1xi32>
    %566 = arith.cmpi sge, %564, %565 : vector<32x1xi32>
    %c1_i32_252 = arith.constant 1 : i32
    %567 = vector.broadcast %c1_i32_252 : i32 to vector<32x1xi32>
    %568 = arith.addi %365, %567 : vector<32x1xi32>
    %c4_i32_253 = arith.constant 4 : i32
    %569 = vector.broadcast %c4_i32_253 : i32 to vector<32x1xi32>
    %570 = arith.cmpi slt, %568, %569 : vector<32x1xi32>
    %571 = arith.andi %566, %570 : vector<32x1xi1>
    %c-1_i32_254 = arith.constant -1 : i32
    %572 = vector.broadcast %c-1_i32_254 : i32 to vector<32x1xi32>
    %573 = arith.addi %367, %572 : vector<32x1xi32>
    %c0_i32_255 = arith.constant 0 : i32
    %574 = vector.broadcast %c0_i32_255 : i32 to vector<32x1xi32>
    %575 = arith.cmpi sge, %573, %574 : vector<32x1xi32>
    %576 = arith.andi %571, %575 : vector<32x1xi1>
    %c-1_i32_256 = arith.constant -1 : i32
    %577 = vector.broadcast %c-1_i32_256 : i32 to vector<32x1xi32>
    %578 = arith.addi %367, %577 : vector<32x1xi32>
    %c4_i32_257 = arith.constant 4 : i32
    %579 = vector.broadcast %c4_i32_257 : i32 to vector<32x1xi32>
    %580 = arith.cmpi slt, %578, %579 : vector<32x1xi32>
    %581 = arith.andi %576, %580 : vector<32x1xi1>
    %c3_i32_258 = arith.constant 3 : i32
    %582 = vector.broadcast %c3_i32_258 : i32 to vector<32x32xi32>
    %583 = arith.addi %368, %582 : vector<32x32xi32>
    %584 = arith.cmpi eq, %369, %583 : vector<32x32xi32>
    %585 = vector.broadcast %581 : vector<32x1xi1> to vector<32x32xi1>
    %586 = arith.andi %585, %584 : vector<32x32xi1>
    %cst_259 = arith.constant 1.000000e+00 : f32
    %cst_260 = arith.constant 0.000000e+00 : f32
    %587 = vector.broadcast %cst_259 : f32 to vector<32x32xf32>
    %588 = vector.broadcast %cst_260 : f32 to vector<32x32xf32>
    %589 = arith.select %586, %587, %588 : vector<32x32xi1>, vector<32x32xf32>
    %c6_261 = arith.constant 6 : index
    %c0_262 = arith.constant 0 : index
    %c0_263 = arith.constant 0 : index
    %590 = vector.load %arg4[%c6_261, %c0_262, %c0_263] : memref<9x8x16xf32, #tpu.memory_space<vmem>>, vector<1x8x16xf32>
    %591 = vector.shape_cast %590 : vector<1x8x16xf32> to vector<8x16xf32>
    %cst_264 = arith.constant dense<0.000000e+00> : vector<32x16xf32>
    %592 = tpu.matmul %359, %591, %cst_264 {dimension_numbers = #tpu.dot_dimension_numbers<[1], [0], [0], [1], [0, 0, 1, 1], [], []>} : vector<32x8xf32>, vector<8x16xf32>, vector<32x16xf32> -> vector<32x16xf32>
    %cst_265 = arith.constant dense<0.000000e+00> : vector<32x16xf32>
    %593 = tpu.matmul %589, %592, %cst_265 {dimension_numbers = #tpu.dot_dimension_numbers<[1], [0], [0], [1], [0, 0, 1, 1], [], []>} : vector<32x32xf32>, vector<32x16xf32>, vector<32x16xf32> -> vector<32x16xf32>
    %594 = arith.addf %562, %593 : vector<32x16xf32>
    %c1_i32_266 = arith.constant 1 : i32
    %595 = vector.broadcast %c1_i32_266 : i32 to vector<32x1xi32>
    %596 = arith.addi %365, %595 : vector<32x1xi32>
    %c0_i32_267 = arith.constant 0 : i32
    %597 = vector.broadcast %c0_i32_267 : i32 to vector<32x1xi32>
    %598 = arith.cmpi sge, %596, %597 : vector<32x1xi32>
    %c1_i32_268 = arith.constant 1 : i32
    %599 = vector.broadcast %c1_i32_268 : i32 to vector<32x1xi32>
    %600 = arith.addi %365, %599 : vector<32x1xi32>
    %c4_i32_269 = arith.constant 4 : i32
    %601 = vector.broadcast %c4_i32_269 : i32 to vector<32x1xi32>
    %602 = arith.cmpi slt, %600, %601 : vector<32x1xi32>
    %603 = arith.andi %598, %602 : vector<32x1xi1>
    %c0_i32_270 = arith.constant 0 : i32
    %604 = vector.broadcast %c0_i32_270 : i32 to vector<32x1xi32>
    %605 = arith.addi %367, %604 : vector<32x1xi32>
    %c0_i32_271 = arith.constant 0 : i32
    %606 = vector.broadcast %c0_i32_271 : i32 to vector<32x1xi32>
    %607 = arith.cmpi sge, %605, %606 : vector<32x1xi32>
    %608 = arith.andi %603, %607 : vector<32x1xi1>
    %c0_i32_272 = arith.constant 0 : i32
    %609 = vector.broadcast %c0_i32_272 : i32 to vector<32x1xi32>
    %610 = arith.addi %367, %609 : vector<32x1xi32>
    %c4_i32_273 = arith.constant 4 : i32
    %611 = vector.broadcast %c4_i32_273 : i32 to vector<32x1xi32>
    %612 = arith.cmpi slt, %610, %611 : vector<32x1xi32>
    %613 = arith.andi %608, %612 : vector<32x1xi1>
    %c4_i32_274 = arith.constant 4 : i32
    %614 = vector.broadcast %c4_i32_274 : i32 to vector<32x32xi32>
    %615 = arith.addi %368, %614 : vector<32x32xi32>
    %616 = arith.cmpi eq, %369, %615 : vector<32x32xi32>
    %617 = vector.broadcast %613 : vector<32x1xi1> to vector<32x32xi1>
    %618 = arith.andi %617, %616 : vector<32x32xi1>
    %cst_275 = arith.constant 1.000000e+00 : f32
    %cst_276 = arith.constant 0.000000e+00 : f32
    %619 = vector.broadcast %cst_275 : f32 to vector<32x32xf32>
    %620 = vector.broadcast %cst_276 : f32 to vector<32x32xf32>
    %621 = arith.select %618, %619, %620 : vector<32x32xi1>, vector<32x32xf32>
    %c7_277 = arith.constant 7 : index
    %c0_278 = arith.constant 0 : index
    %c0_279 = arith.constant 0 : index
    %622 = vector.load %arg4[%c7_277, %c0_278, %c0_279] : memref<9x8x16xf32, #tpu.memory_space<vmem>>, vector<1x8x16xf32>
    %623 = vector.shape_cast %622 : vector<1x8x16xf32> to vector<8x16xf32>
    %cst_280 = arith.constant dense<0.000000e+00> : vector<32x16xf32>
    %624 = tpu.matmul %359, %623, %cst_280 {dimension_numbers = #tpu.dot_dimension_numbers<[1], [0], [0], [1], [0, 0, 1, 1], [], []>} : vector<32x8xf32>, vector<8x16xf32>, vector<32x16xf32> -> vector<32x16xf32>
    %cst_281 = arith.constant dense<0.000000e+00> : vector<32x16xf32>
    %625 = tpu.matmul %621, %624, %cst_281 {dimension_numbers = #tpu.dot_dimension_numbers<[1], [0], [0], [1], [0, 0, 1, 1], [], []>} : vector<32x32xf32>, vector<32x16xf32>, vector<32x16xf32> -> vector<32x16xf32>
    %626 = arith.addf %594, %625 : vector<32x16xf32>
    %c1_i32_282 = arith.constant 1 : i32
    %627 = vector.broadcast %c1_i32_282 : i32 to vector<32x1xi32>
    %628 = arith.addi %365, %627 : vector<32x1xi32>
    %c0_i32_283 = arith.constant 0 : i32
    %629 = vector.broadcast %c0_i32_283 : i32 to vector<32x1xi32>
    %630 = arith.cmpi sge, %628, %629 : vector<32x1xi32>
    %c1_i32_284 = arith.constant 1 : i32
    %631 = vector.broadcast %c1_i32_284 : i32 to vector<32x1xi32>
    %632 = arith.addi %365, %631 : vector<32x1xi32>
    %c4_i32_285 = arith.constant 4 : i32
    %633 = vector.broadcast %c4_i32_285 : i32 to vector<32x1xi32>
    %634 = arith.cmpi slt, %632, %633 : vector<32x1xi32>
    %635 = arith.andi %630, %634 : vector<32x1xi1>
    %c1_i32_286 = arith.constant 1 : i32
    %636 = vector.broadcast %c1_i32_286 : i32 to vector<32x1xi32>
    %637 = arith.addi %367, %636 : vector<32x1xi32>
    %c0_i32_287 = arith.constant 0 : i32
    %638 = vector.broadcast %c0_i32_287 : i32 to vector<32x1xi32>
    %639 = arith.cmpi sge, %637, %638 : vector<32x1xi32>
    %640 = arith.andi %635, %639 : vector<32x1xi1>
    %c1_i32_288 = arith.constant 1 : i32
    %641 = vector.broadcast %c1_i32_288 : i32 to vector<32x1xi32>
    %642 = arith.addi %367, %641 : vector<32x1xi32>
    %c4_i32_289 = arith.constant 4 : i32
    %643 = vector.broadcast %c4_i32_289 : i32 to vector<32x1xi32>
    %644 = arith.cmpi slt, %642, %643 : vector<32x1xi32>
    %645 = arith.andi %640, %644 : vector<32x1xi1>
    %c5_i32 = arith.constant 5 : i32
    %646 = vector.broadcast %c5_i32 : i32 to vector<32x32xi32>
    %647 = arith.addi %368, %646 : vector<32x32xi32>
    %648 = arith.cmpi eq, %369, %647 : vector<32x32xi32>
    %649 = vector.broadcast %645 : vector<32x1xi1> to vector<32x32xi1>
    %650 = arith.andi %649, %648 : vector<32x32xi1>
    %cst_290 = arith.constant 1.000000e+00 : f32
    %cst_291 = arith.constant 0.000000e+00 : f32
    %651 = vector.broadcast %cst_290 : f32 to vector<32x32xf32>
    %652 = vector.broadcast %cst_291 : f32 to vector<32x32xf32>
    %653 = arith.select %650, %651, %652 : vector<32x32xi1>, vector<32x32xf32>
    %c8_292 = arith.constant 8 : index
    %c0_293 = arith.constant 0 : index
    %c0_294 = arith.constant 0 : index
    %654 = vector.load %arg4[%c8_292, %c0_293, %c0_294] : memref<9x8x16xf32, #tpu.memory_space<vmem>>, vector<1x8x16xf32>
    %655 = vector.shape_cast %654 : vector<1x8x16xf32> to vector<8x16xf32>
    %cst_295 = arith.constant dense<0.000000e+00> : vector<32x16xf32>
    %656 = tpu.matmul %359, %655, %cst_295 {dimension_numbers = #tpu.dot_dimension_numbers<[1], [0], [0], [1], [0, 0, 1, 1], [], []>} : vector<32x8xf32>, vector<8x16xf32>, vector<32x16xf32> -> vector<32x16xf32>
    %cst_296 = arith.constant dense<0.000000e+00> : vector<32x16xf32>
    %657 = tpu.matmul %653, %656, %cst_296 {dimension_numbers = #tpu.dot_dimension_numbers<[1], [0], [0], [1], [0, 0, 1, 1], [], []>} : vector<32x32xf32>, vector<32x16xf32>, vector<32x16xf32> -> vector<32x16xf32>
    %658 = arith.addf %626, %657 : vector<32x16xf32>
    %659 = vector.broadcast %360 : vector<1x16xf32> to vector<32x16xf32>
    %660 = arith.addf %658, %659 : vector<32x16xf32>
    %cst_297 = arith.constant 0.000000e+00 : f32
    %661 = vector.broadcast %cst_297 : f32 to vector<32x16xf32>
    %662 = arith.cmpf ogt, %660, %661 : vector<32x16xf32>
    %cst_298 = arith.constant 0.00999999977 : f32
    %663 = vector.broadcast %cst_298 : f32 to vector<32x16xf32>
    %664 = arith.mulf %663, %660 : vector<32x16xf32>
    %665 = arith.select %662, %660, %664 : vector<32x16xi1>, vector<32x16xf32>
    %666 = tpu.iota {dimensions = array<i32: 0>} : vector<8x1xi32>
    %c2_i32_299 = arith.constant 2 : i32
    %667 = vector.broadcast %c2_i32_299 : i32 to vector<8x1xi32>
    %668 = arith.shrsi %666, %667 : vector<8x1xi32>
    %c3_i32_300 = arith.constant 3 : i32
    %669 = vector.broadcast %c3_i32_300 : i32 to vector<8x1xi32>
    %670 = arith.andi %666, %669 : vector<8x1xi32>
    %c1_i32_301 = arith.constant 1 : i32
    %671 = vector.broadcast %c1_i32_301 : i32 to vector<8x1xi32>
    %672 = arith.shrsi %670, %671 : vector<8x1xi32>
    %c1_i32_302 = arith.constant 1 : i32
    %673 = vector.broadcast %c1_i32_302 : i32 to vector<8x1xi32>
    %674 = arith.andi %666, %673 : vector<8x1xi32>
    %c16_i32_303 = arith.constant 16 : i32
    %675 = vector.broadcast %c16_i32_303 : i32 to vector<8x1xi32>
    %676 = arith.muli %668, %675 : vector<8x1xi32>
    %c8_i32_304 = arith.constant 8 : i32
    %677 = vector.broadcast %c8_i32_304 : i32 to vector<8x1xi32>
    %678 = arith.muli %672, %677 : vector<8x1xi32>
    %679 = arith.addi %676, %678 : vector<8x1xi32>
    %c2_i32_305 = arith.constant 2 : i32
    %680 = vector.broadcast %c2_i32_305 : i32 to vector<8x1xi32>
    %681 = arith.muli %674, %680 : vector<8x1xi32>
    %682 = arith.addi %679, %681 : vector<8x1xi32>
    %683 = tpu.iota {dimensions = array<i32: 1>} : vector<8x32xi32>
    %c0_i32_306 = arith.constant 0 : i32
    %684 = vector.broadcast %c0_i32_306 : i32 to vector<8x1xi32>
    %685 = arith.addi %682, %684 : vector<8x1xi32>
    %686 = vector.broadcast %685 : vector<8x1xi32> to vector<8x32xi32>
    %687 = arith.cmpi eq, %683, %686 : vector<8x32xi32>
    %cst_307 = arith.constant 1.000000e+00 : f32
    %cst_308 = arith.constant 0.000000e+00 : f32
    %688 = vector.broadcast %cst_307 : f32 to vector<8x32xf32>
    %689 = vector.broadcast %cst_308 : f32 to vector<8x32xf32>
    %690 = arith.select %687, %688, %689 : vector<8x32xi1>, vector<8x32xf32>
    %cst_309 = arith.constant dense<0.000000e+00> : vector<8x16xf32>
    %691 = tpu.matmul %690, %665, %cst_309 {dimension_numbers = #tpu.dot_dimension_numbers<[1], [0], [0], [1], [0, 0, 1, 1], [], []>} : vector<8x32xf32>, vector<32x16xf32>, vector<8x16xf32> -> vector<8x16xf32>
    %c1_i32_310 = arith.constant 1 : i32
    %692 = vector.broadcast %c1_i32_310 : i32 to vector<8x1xi32>
    %693 = arith.addi %682, %692 : vector<8x1xi32>
    %694 = vector.broadcast %693 : vector<8x1xi32> to vector<8x32xi32>
    %695 = arith.cmpi eq, %683, %694 : vector<8x32xi32>
    %cst_311 = arith.constant 1.000000e+00 : f32
    %cst_312 = arith.constant 0.000000e+00 : f32
    %696 = vector.broadcast %cst_311 : f32 to vector<8x32xf32>
    %697 = vector.broadcast %cst_312 : f32 to vector<8x32xf32>
    %698 = arith.select %695, %696, %697 : vector<8x32xi1>, vector<8x32xf32>
    %cst_313 = arith.constant dense<0.000000e+00> : vector<8x16xf32>
    %699 = tpu.matmul %698, %665, %cst_313 {dimension_numbers = #tpu.dot_dimension_numbers<[1], [0], [0], [1], [0, 0, 1, 1], [], []>} : vector<8x32xf32>, vector<32x16xf32>, vector<8x16xf32> -> vector<8x16xf32>
    %700 = arith.maximumf %691, %699 : vector<8x16xf32>
    %c4_i32_314 = arith.constant 4 : i32
    %701 = vector.broadcast %c4_i32_314 : i32 to vector<8x1xi32>
    %702 = arith.addi %682, %701 : vector<8x1xi32>
    %703 = vector.broadcast %702 : vector<8x1xi32> to vector<8x32xi32>
    %704 = arith.cmpi eq, %683, %703 : vector<8x32xi32>
    %cst_315 = arith.constant 1.000000e+00 : f32
    %cst_316 = arith.constant 0.000000e+00 : f32
    %705 = vector.broadcast %cst_315 : f32 to vector<8x32xf32>
    %706 = vector.broadcast %cst_316 : f32 to vector<8x32xf32>
    %707 = arith.select %704, %705, %706 : vector<8x32xi1>, vector<8x32xf32>
    %cst_317 = arith.constant dense<0.000000e+00> : vector<8x16xf32>
    %708 = tpu.matmul %707, %665, %cst_317 {dimension_numbers = #tpu.dot_dimension_numbers<[1], [0], [0], [1], [0, 0, 1, 1], [], []>} : vector<8x32xf32>, vector<32x16xf32>, vector<8x16xf32> -> vector<8x16xf32>
    %709 = arith.maximumf %700, %708 : vector<8x16xf32>
    %c5_i32_318 = arith.constant 5 : i32
    %710 = vector.broadcast %c5_i32_318 : i32 to vector<8x1xi32>
    %711 = arith.addi %682, %710 : vector<8x1xi32>
    %712 = vector.broadcast %711 : vector<8x1xi32> to vector<8x32xi32>
    %713 = arith.cmpi eq, %683, %712 : vector<8x32xi32>
    %cst_319 = arith.constant 1.000000e+00 : f32
    %cst_320 = arith.constant 0.000000e+00 : f32
    %714 = vector.broadcast %cst_319 : f32 to vector<8x32xf32>
    %715 = vector.broadcast %cst_320 : f32 to vector<8x32xf32>
    %716 = arith.select %713, %714, %715 : vector<8x32xi1>, vector<8x32xf32>
    %cst_321 = arith.constant dense<0.000000e+00> : vector<8x16xf32>
    %717 = tpu.matmul %716, %665, %cst_321 {dimension_numbers = #tpu.dot_dimension_numbers<[1], [0], [0], [1], [0, 0, 1, 1], [], []>} : vector<8x32xf32>, vector<32x16xf32>, vector<8x16xf32> -> vector<8x16xf32>
    %718 = arith.maximumf %709, %717 : vector<8x16xf32>
    %c0_322 = arith.constant 0 : index
    %c0_323 = arith.constant 0 : index
    %719 = vector.load %arg7[%c0_322, %c0_323] : memref<1x32xf32, #tpu.memory_space<vmem>>, vector<1x32xf32>
    %720 = tpu.iota {dimensions = array<i32: 0>} : vector<8x1xi32>
    %c3_i32_324 = arith.constant 3 : i32
    %721 = vector.broadcast %c3_i32_324 : i32 to vector<8x1xi32>
    %722 = arith.andi %720, %721 : vector<8x1xi32>
    %c1_i32_325 = arith.constant 1 : i32
    %723 = vector.broadcast %c1_i32_325 : i32 to vector<8x1xi32>
    %724 = arith.shrsi %722, %723 : vector<8x1xi32>
    %c1_i32_326 = arith.constant 1 : i32
    %725 = vector.broadcast %c1_i32_326 : i32 to vector<8x1xi32>
    %726 = arith.andi %720, %725 : vector<8x1xi32>
    %727 = tpu.iota {dimensions = array<i32: 0>} : vector<8x8xi32>
    %728 = tpu.iota {dimensions = array<i32: 1>} : vector<8x8xi32>
    %cst_327 = arith.constant 0.000000e+00 : f32
    %729 = vector.broadcast %cst_327 : f32 to vector<8x32xf32>
    %c-1_i32_328 = arith.constant -1 : i32
    %730 = vector.broadcast %c-1_i32_328 : i32 to vector<8x1xi32>
    %731 = arith.addi %724, %730 : vector<8x1xi32>
    %c0_i32_329 = arith.constant 0 : i32
    %732 = vector.broadcast %c0_i32_329 : i32 to vector<8x1xi32>
    %733 = arith.cmpi sge, %731, %732 : vector<8x1xi32>
    %c-1_i32_330 = arith.constant -1 : i32
    %734 = vector.broadcast %c-1_i32_330 : i32 to vector<8x1xi32>
    %735 = arith.addi %724, %734 : vector<8x1xi32>
    %c2_i32_331 = arith.constant 2 : i32
    %736 = vector.broadcast %c2_i32_331 : i32 to vector<8x1xi32>
    %737 = arith.cmpi slt, %735, %736 : vector<8x1xi32>
    %738 = arith.andi %733, %737 : vector<8x1xi1>
    %c-1_i32_332 = arith.constant -1 : i32
    %739 = vector.broadcast %c-1_i32_332 : i32 to vector<8x1xi32>
    %740 = arith.addi %726, %739 : vector<8x1xi32>
    %c0_i32_333 = arith.constant 0 : i32
    %741 = vector.broadcast %c0_i32_333 : i32 to vector<8x1xi32>
    %742 = arith.cmpi sge, %740, %741 : vector<8x1xi32>
    %743 = arith.andi %738, %742 : vector<8x1xi1>
    %c-1_i32_334 = arith.constant -1 : i32
    %744 = vector.broadcast %c-1_i32_334 : i32 to vector<8x1xi32>
    %745 = arith.addi %726, %744 : vector<8x1xi32>
    %c2_i32_335 = arith.constant 2 : i32
    %746 = vector.broadcast %c2_i32_335 : i32 to vector<8x1xi32>
    %747 = arith.cmpi slt, %745, %746 : vector<8x1xi32>
    %748 = arith.andi %743, %747 : vector<8x1xi1>
    %c-3_i32_336 = arith.constant -3 : i32
    %749 = vector.broadcast %c-3_i32_336 : i32 to vector<8x8xi32>
    %750 = arith.addi %727, %749 : vector<8x8xi32>
    %751 = arith.cmpi eq, %728, %750 : vector<8x8xi32>
    %752 = vector.broadcast %748 : vector<8x1xi1> to vector<8x8xi1>
    %753 = arith.andi %752, %751 : vector<8x8xi1>
    %cst_337 = arith.constant 1.000000e+00 : f32
    %cst_338 = arith.constant 0.000000e+00 : f32
    %754 = vector.broadcast %cst_337 : f32 to vector<8x8xf32>
    %755 = vector.broadcast %cst_338 : f32 to vector<8x8xf32>
    %756 = arith.select %753, %754, %755 : vector<8x8xi1>, vector<8x8xf32>
    %c0_339 = arith.constant 0 : index
    %c0_340 = arith.constant 0 : index
    %c0_341 = arith.constant 0 : index
    %757 = vector.load %arg6[%c0_339, %c0_340, %c0_341] : memref<9x16x32xf32, #tpu.memory_space<vmem>>, vector<1x16x32xf32>
    %758 = vector.shape_cast %757 : vector<1x16x32xf32> to vector<16x32xf32>
    %cst_342 = arith.constant dense<0.000000e+00> : vector<8x32xf32>
    %759 = tpu.matmul %718, %758, %cst_342 {dimension_numbers = #tpu.dot_dimension_numbers<[1], [0], [0], [1], [0, 0, 1, 1], [], []>} : vector<8x16xf32>, vector<16x32xf32>, vector<8x32xf32> -> vector<8x32xf32>
    %cst_343 = arith.constant dense<0.000000e+00> : vector<8x32xf32>
    %760 = tpu.matmul %756, %759, %cst_343 {dimension_numbers = #tpu.dot_dimension_numbers<[1], [0], [0], [1], [0, 0, 1, 1], [], []>} : vector<8x8xf32>, vector<8x32xf32>, vector<8x32xf32> -> vector<8x32xf32>
    %761 = arith.addf %729, %760 : vector<8x32xf32>
    %c-1_i32_344 = arith.constant -1 : i32
    %762 = vector.broadcast %c-1_i32_344 : i32 to vector<8x1xi32>
    %763 = arith.addi %724, %762 : vector<8x1xi32>
    %c0_i32_345 = arith.constant 0 : i32
    %764 = vector.broadcast %c0_i32_345 : i32 to vector<8x1xi32>
    %765 = arith.cmpi sge, %763, %764 : vector<8x1xi32>
    %c-1_i32_346 = arith.constant -1 : i32
    %766 = vector.broadcast %c-1_i32_346 : i32 to vector<8x1xi32>
    %767 = arith.addi %724, %766 : vector<8x1xi32>
    %c2_i32_347 = arith.constant 2 : i32
    %768 = vector.broadcast %c2_i32_347 : i32 to vector<8x1xi32>
    %769 = arith.cmpi slt, %767, %768 : vector<8x1xi32>
    %770 = arith.andi %765, %769 : vector<8x1xi1>
    %c0_i32_348 = arith.constant 0 : i32
    %771 = vector.broadcast %c0_i32_348 : i32 to vector<8x1xi32>
    %772 = arith.addi %726, %771 : vector<8x1xi32>
    %c0_i32_349 = arith.constant 0 : i32
    %773 = vector.broadcast %c0_i32_349 : i32 to vector<8x1xi32>
    %774 = arith.cmpi sge, %772, %773 : vector<8x1xi32>
    %775 = arith.andi %770, %774 : vector<8x1xi1>
    %c0_i32_350 = arith.constant 0 : i32
    %776 = vector.broadcast %c0_i32_350 : i32 to vector<8x1xi32>
    %777 = arith.addi %726, %776 : vector<8x1xi32>
    %c2_i32_351 = arith.constant 2 : i32
    %778 = vector.broadcast %c2_i32_351 : i32 to vector<8x1xi32>
    %779 = arith.cmpi slt, %777, %778 : vector<8x1xi32>
    %780 = arith.andi %775, %779 : vector<8x1xi1>
    %c-2_i32 = arith.constant -2 : i32
    %781 = vector.broadcast %c-2_i32 : i32 to vector<8x8xi32>
    %782 = arith.addi %727, %781 : vector<8x8xi32>
    %783 = arith.cmpi eq, %728, %782 : vector<8x8xi32>
    %784 = vector.broadcast %780 : vector<8x1xi1> to vector<8x8xi1>
    %785 = arith.andi %784, %783 : vector<8x8xi1>
    %cst_352 = arith.constant 1.000000e+00 : f32
    %cst_353 = arith.constant 0.000000e+00 : f32
    %786 = vector.broadcast %cst_352 : f32 to vector<8x8xf32>
    %787 = vector.broadcast %cst_353 : f32 to vector<8x8xf32>
    %788 = arith.select %785, %786, %787 : vector<8x8xi1>, vector<8x8xf32>
    %c1_354 = arith.constant 1 : index
    %c0_355 = arith.constant 0 : index
    %c0_356 = arith.constant 0 : index
    %789 = vector.load %arg6[%c1_354, %c0_355, %c0_356] : memref<9x16x32xf32, #tpu.memory_space<vmem>>, vector<1x16x32xf32>
    %790 = vector.shape_cast %789 : vector<1x16x32xf32> to vector<16x32xf32>
    %cst_357 = arith.constant dense<0.000000e+00> : vector<8x32xf32>
    %791 = tpu.matmul %718, %790, %cst_357 {dimension_numbers = #tpu.dot_dimension_numbers<[1], [0], [0], [1], [0, 0, 1, 1], [], []>} : vector<8x16xf32>, vector<16x32xf32>, vector<8x32xf32> -> vector<8x32xf32>
    %cst_358 = arith.constant dense<0.000000e+00> : vector<8x32xf32>
    %792 = tpu.matmul %788, %791, %cst_358 {dimension_numbers = #tpu.dot_dimension_numbers<[1], [0], [0], [1], [0, 0, 1, 1], [], []>} : vector<8x8xf32>, vector<8x32xf32>, vector<8x32xf32> -> vector<8x32xf32>
    %793 = arith.addf %761, %792 : vector<8x32xf32>
    %c-1_i32_359 = arith.constant -1 : i32
    %794 = vector.broadcast %c-1_i32_359 : i32 to vector<8x1xi32>
    %795 = arith.addi %724, %794 : vector<8x1xi32>
    %c0_i32_360 = arith.constant 0 : i32
    %796 = vector.broadcast %c0_i32_360 : i32 to vector<8x1xi32>
    %797 = arith.cmpi sge, %795, %796 : vector<8x1xi32>
    %c-1_i32_361 = arith.constant -1 : i32
    %798 = vector.broadcast %c-1_i32_361 : i32 to vector<8x1xi32>
    %799 = arith.addi %724, %798 : vector<8x1xi32>
    %c2_i32_362 = arith.constant 2 : i32
    %800 = vector.broadcast %c2_i32_362 : i32 to vector<8x1xi32>
    %801 = arith.cmpi slt, %799, %800 : vector<8x1xi32>
    %802 = arith.andi %797, %801 : vector<8x1xi1>
    %c1_i32_363 = arith.constant 1 : i32
    %803 = vector.broadcast %c1_i32_363 : i32 to vector<8x1xi32>
    %804 = arith.addi %726, %803 : vector<8x1xi32>
    %c0_i32_364 = arith.constant 0 : i32
    %805 = vector.broadcast %c0_i32_364 : i32 to vector<8x1xi32>
    %806 = arith.cmpi sge, %804, %805 : vector<8x1xi32>
    %807 = arith.andi %802, %806 : vector<8x1xi1>
    %c1_i32_365 = arith.constant 1 : i32
    %808 = vector.broadcast %c1_i32_365 : i32 to vector<8x1xi32>
    %809 = arith.addi %726, %808 : vector<8x1xi32>
    %c2_i32_366 = arith.constant 2 : i32
    %810 = vector.broadcast %c2_i32_366 : i32 to vector<8x1xi32>
    %811 = arith.cmpi slt, %809, %810 : vector<8x1xi32>
    %812 = arith.andi %807, %811 : vector<8x1xi1>
    %c-1_i32_367 = arith.constant -1 : i32
    %813 = vector.broadcast %c-1_i32_367 : i32 to vector<8x8xi32>
    %814 = arith.addi %727, %813 : vector<8x8xi32>
    %815 = arith.cmpi eq, %728, %814 : vector<8x8xi32>
    %816 = vector.broadcast %812 : vector<8x1xi1> to vector<8x8xi1>
    %817 = arith.andi %816, %815 : vector<8x8xi1>
    %cst_368 = arith.constant 1.000000e+00 : f32
    %cst_369 = arith.constant 0.000000e+00 : f32
    %818 = vector.broadcast %cst_368 : f32 to vector<8x8xf32>
    %819 = vector.broadcast %cst_369 : f32 to vector<8x8xf32>
    %820 = arith.select %817, %818, %819 : vector<8x8xi1>, vector<8x8xf32>
    %c2_370 = arith.constant 2 : index
    %c0_371 = arith.constant 0 : index
    %c0_372 = arith.constant 0 : index
    %821 = vector.load %arg6[%c2_370, %c0_371, %c0_372] : memref<9x16x32xf32, #tpu.memory_space<vmem>>, vector<1x16x32xf32>
    %822 = vector.shape_cast %821 : vector<1x16x32xf32> to vector<16x32xf32>
    %cst_373 = arith.constant dense<0.000000e+00> : vector<8x32xf32>
    %823 = tpu.matmul %718, %822, %cst_373 {dimension_numbers = #tpu.dot_dimension_numbers<[1], [0], [0], [1], [0, 0, 1, 1], [], []>} : vector<8x16xf32>, vector<16x32xf32>, vector<8x32xf32> -> vector<8x32xf32>
    %cst_374 = arith.constant dense<0.000000e+00> : vector<8x32xf32>
    %824 = tpu.matmul %820, %823, %cst_374 {dimension_numbers = #tpu.dot_dimension_numbers<[1], [0], [0], [1], [0, 0, 1, 1], [], []>} : vector<8x8xf32>, vector<8x32xf32>, vector<8x32xf32> -> vector<8x32xf32>
    %825 = arith.addf %793, %824 : vector<8x32xf32>
    %c0_i32_375 = arith.constant 0 : i32
    %826 = vector.broadcast %c0_i32_375 : i32 to vector<8x1xi32>
    %827 = arith.addi %724, %826 : vector<8x1xi32>
    %c0_i32_376 = arith.constant 0 : i32
    %828 = vector.broadcast %c0_i32_376 : i32 to vector<8x1xi32>
    %829 = arith.cmpi sge, %827, %828 : vector<8x1xi32>
    %c0_i32_377 = arith.constant 0 : i32
    %830 = vector.broadcast %c0_i32_377 : i32 to vector<8x1xi32>
    %831 = arith.addi %724, %830 : vector<8x1xi32>
    %c2_i32_378 = arith.constant 2 : i32
    %832 = vector.broadcast %c2_i32_378 : i32 to vector<8x1xi32>
    %833 = arith.cmpi slt, %831, %832 : vector<8x1xi32>
    %834 = arith.andi %829, %833 : vector<8x1xi1>
    %c-1_i32_379 = arith.constant -1 : i32
    %835 = vector.broadcast %c-1_i32_379 : i32 to vector<8x1xi32>
    %836 = arith.addi %726, %835 : vector<8x1xi32>
    %c0_i32_380 = arith.constant 0 : i32
    %837 = vector.broadcast %c0_i32_380 : i32 to vector<8x1xi32>
    %838 = arith.cmpi sge, %836, %837 : vector<8x1xi32>
    %839 = arith.andi %834, %838 : vector<8x1xi1>
    %c-1_i32_381 = arith.constant -1 : i32
    %840 = vector.broadcast %c-1_i32_381 : i32 to vector<8x1xi32>
    %841 = arith.addi %726, %840 : vector<8x1xi32>
    %c2_i32_382 = arith.constant 2 : i32
    %842 = vector.broadcast %c2_i32_382 : i32 to vector<8x1xi32>
    %843 = arith.cmpi slt, %841, %842 : vector<8x1xi32>
    %844 = arith.andi %839, %843 : vector<8x1xi1>
    %c-1_i32_383 = arith.constant -1 : i32
    %845 = vector.broadcast %c-1_i32_383 : i32 to vector<8x8xi32>
    %846 = arith.addi %727, %845 : vector<8x8xi32>
    %847 = arith.cmpi eq, %728, %846 : vector<8x8xi32>
    %848 = vector.broadcast %844 : vector<8x1xi1> to vector<8x8xi1>
    %849 = arith.andi %848, %847 : vector<8x8xi1>
    %cst_384 = arith.constant 1.000000e+00 : f32
    %cst_385 = arith.constant 0.000000e+00 : f32
    %850 = vector.broadcast %cst_384 : f32 to vector<8x8xf32>
    %851 = vector.broadcast %cst_385 : f32 to vector<8x8xf32>
    %852 = arith.select %849, %850, %851 : vector<8x8xi1>, vector<8x8xf32>
    %c3_386 = arith.constant 3 : index
    %c0_387 = arith.constant 0 : index
    %c0_388 = arith.constant 0 : index
    %853 = vector.load %arg6[%c3_386, %c0_387, %c0_388] : memref<9x16x32xf32, #tpu.memory_space<vmem>>, vector<1x16x32xf32>
    %854 = vector.shape_cast %853 : vector<1x16x32xf32> to vector<16x32xf32>
    %cst_389 = arith.constant dense<0.000000e+00> : vector<8x32xf32>
    %855 = tpu.matmul %718, %854, %cst_389 {dimension_numbers = #tpu.dot_dimension_numbers<[1], [0], [0], [1], [0, 0, 1, 1], [], []>} : vector<8x16xf32>, vector<16x32xf32>, vector<8x32xf32> -> vector<8x32xf32>
    %cst_390 = arith.constant dense<0.000000e+00> : vector<8x32xf32>
    %856 = tpu.matmul %852, %855, %cst_390 {dimension_numbers = #tpu.dot_dimension_numbers<[1], [0], [0], [1], [0, 0, 1, 1], [], []>} : vector<8x8xf32>, vector<8x32xf32>, vector<8x32xf32> -> vector<8x32xf32>
    %857 = arith.addf %825, %856 : vector<8x32xf32>
    %c0_i32_391 = arith.constant 0 : i32
    %858 = vector.broadcast %c0_i32_391 : i32 to vector<8x1xi32>
    %859 = arith.addi %724, %858 : vector<8x1xi32>
    %c0_i32_392 = arith.constant 0 : i32
    %860 = vector.broadcast %c0_i32_392 : i32 to vector<8x1xi32>
    %861 = arith.cmpi sge, %859, %860 : vector<8x1xi32>
    %c0_i32_393 = arith.constant 0 : i32
    %862 = vector.broadcast %c0_i32_393 : i32 to vector<8x1xi32>
    %863 = arith.addi %724, %862 : vector<8x1xi32>
    %c2_i32_394 = arith.constant 2 : i32
    %864 = vector.broadcast %c2_i32_394 : i32 to vector<8x1xi32>
    %865 = arith.cmpi slt, %863, %864 : vector<8x1xi32>
    %866 = arith.andi %861, %865 : vector<8x1xi1>
    %c0_i32_395 = arith.constant 0 : i32
    %867 = vector.broadcast %c0_i32_395 : i32 to vector<8x1xi32>
    %868 = arith.addi %726, %867 : vector<8x1xi32>
    %c0_i32_396 = arith.constant 0 : i32
    %869 = vector.broadcast %c0_i32_396 : i32 to vector<8x1xi32>
    %870 = arith.cmpi sge, %868, %869 : vector<8x1xi32>
    %871 = arith.andi %866, %870 : vector<8x1xi1>
    %c0_i32_397 = arith.constant 0 : i32
    %872 = vector.broadcast %c0_i32_397 : i32 to vector<8x1xi32>
    %873 = arith.addi %726, %872 : vector<8x1xi32>
    %c2_i32_398 = arith.constant 2 : i32
    %874 = vector.broadcast %c2_i32_398 : i32 to vector<8x1xi32>
    %875 = arith.cmpi slt, %873, %874 : vector<8x1xi32>
    %876 = arith.andi %871, %875 : vector<8x1xi1>
    %c0_i32_399 = arith.constant 0 : i32
    %877 = vector.broadcast %c0_i32_399 : i32 to vector<8x8xi32>
    %878 = arith.addi %727, %877 : vector<8x8xi32>
    %879 = arith.cmpi eq, %728, %878 : vector<8x8xi32>
    %880 = vector.broadcast %876 : vector<8x1xi1> to vector<8x8xi1>
    %881 = arith.andi %880, %879 : vector<8x8xi1>
    %cst_400 = arith.constant 1.000000e+00 : f32
    %cst_401 = arith.constant 0.000000e+00 : f32
    %882 = vector.broadcast %cst_400 : f32 to vector<8x8xf32>
    %883 = vector.broadcast %cst_401 : f32 to vector<8x8xf32>
    %884 = arith.select %881, %882, %883 : vector<8x8xi1>, vector<8x8xf32>
    %c4_402 = arith.constant 4 : index
    %c0_403 = arith.constant 0 : index
    %c0_404 = arith.constant 0 : index
    %885 = vector.load %arg6[%c4_402, %c0_403, %c0_404] : memref<9x16x32xf32, #tpu.memory_space<vmem>>, vector<1x16x32xf32>
    %886 = vector.shape_cast %885 : vector<1x16x32xf32> to vector<16x32xf32>
    %cst_405 = arith.constant dense<0.000000e+00> : vector<8x32xf32>
    %887 = tpu.matmul %718, %886, %cst_405 {dimension_numbers = #tpu.dot_dimension_numbers<[1], [0], [0], [1], [0, 0, 1, 1], [], []>} : vector<8x16xf32>, vector<16x32xf32>, vector<8x32xf32> -> vector<8x32xf32>
    %cst_406 = arith.constant dense<0.000000e+00> : vector<8x32xf32>
    %888 = tpu.matmul %884, %887, %cst_406 {dimension_numbers = #tpu.dot_dimension_numbers<[1], [0], [0], [1], [0, 0, 1, 1], [], []>} : vector<8x8xf32>, vector<8x32xf32>, vector<8x32xf32> -> vector<8x32xf32>
    %889 = arith.addf %857, %888 : vector<8x32xf32>
    %c0_i32_407 = arith.constant 0 : i32
    %890 = vector.broadcast %c0_i32_407 : i32 to vector<8x1xi32>
    %891 = arith.addi %724, %890 : vector<8x1xi32>
    %c0_i32_408 = arith.constant 0 : i32
    %892 = vector.broadcast %c0_i32_408 : i32 to vector<8x1xi32>
    %893 = arith.cmpi sge, %891, %892 : vector<8x1xi32>
    %c0_i32_409 = arith.constant 0 : i32
    %894 = vector.broadcast %c0_i32_409 : i32 to vector<8x1xi32>
    %895 = arith.addi %724, %894 : vector<8x1xi32>
    %c2_i32_410 = arith.constant 2 : i32
    %896 = vector.broadcast %c2_i32_410 : i32 to vector<8x1xi32>
    %897 = arith.cmpi slt, %895, %896 : vector<8x1xi32>
    %898 = arith.andi %893, %897 : vector<8x1xi1>
    %c1_i32_411 = arith.constant 1 : i32
    %899 = vector.broadcast %c1_i32_411 : i32 to vector<8x1xi32>
    %900 = arith.addi %726, %899 : vector<8x1xi32>
    %c0_i32_412 = arith.constant 0 : i32
    %901 = vector.broadcast %c0_i32_412 : i32 to vector<8x1xi32>
    %902 = arith.cmpi sge, %900, %901 : vector<8x1xi32>
    %903 = arith.andi %898, %902 : vector<8x1xi1>
    %c1_i32_413 = arith.constant 1 : i32
    %904 = vector.broadcast %c1_i32_413 : i32 to vector<8x1xi32>
    %905 = arith.addi %726, %904 : vector<8x1xi32>
    %c2_i32_414 = arith.constant 2 : i32
    %906 = vector.broadcast %c2_i32_414 : i32 to vector<8x1xi32>
    %907 = arith.cmpi slt, %905, %906 : vector<8x1xi32>
    %908 = arith.andi %903, %907 : vector<8x1xi1>
    %c1_i32_415 = arith.constant 1 : i32
    %909 = vector.broadcast %c1_i32_415 : i32 to vector<8x8xi32>
    %910 = arith.addi %727, %909 : vector<8x8xi32>
    %911 = arith.cmpi eq, %728, %910 : vector<8x8xi32>
    %912 = vector.broadcast %908 : vector<8x1xi1> to vector<8x8xi1>
    %913 = arith.andi %912, %911 : vector<8x8xi1>
    %cst_416 = arith.constant 1.000000e+00 : f32
    %cst_417 = arith.constant 0.000000e+00 : f32
    %914 = vector.broadcast %cst_416 : f32 to vector<8x8xf32>
    %915 = vector.broadcast %cst_417 : f32 to vector<8x8xf32>
    %916 = arith.select %913, %914, %915 : vector<8x8xi1>, vector<8x8xf32>
    %c5_418 = arith.constant 5 : index
    %c0_419 = arith.constant 0 : index
    %c0_420 = arith.constant 0 : index
    %917 = vector.load %arg6[%c5_418, %c0_419, %c0_420] : memref<9x16x32xf32, #tpu.memory_space<vmem>>, vector<1x16x32xf32>
    %918 = vector.shape_cast %917 : vector<1x16x32xf32> to vector<16x32xf32>
    %cst_421 = arith.constant dense<0.000000e+00> : vector<8x32xf32>
    %919 = tpu.matmul %718, %918, %cst_421 {dimension_numbers = #tpu.dot_dimension_numbers<[1], [0], [0], [1], [0, 0, 1, 1], [], []>} : vector<8x16xf32>, vector<16x32xf32>, vector<8x32xf32> -> vector<8x32xf32>
    %cst_422 = arith.constant dense<0.000000e+00> : vector<8x32xf32>
    %920 = tpu.matmul %916, %919, %cst_422 {dimension_numbers = #tpu.dot_dimension_numbers<[1], [0], [0], [1], [0, 0, 1, 1], [], []>} : vector<8x8xf32>, vector<8x32xf32>, vector<8x32xf32> -> vector<8x32xf32>
    %921 = arith.addf %889, %920 : vector<8x32xf32>
    %c1_i32_423 = arith.constant 1 : i32
    %922 = vector.broadcast %c1_i32_423 : i32 to vector<8x1xi32>
    %923 = arith.addi %724, %922 : vector<8x1xi32>
    %c0_i32_424 = arith.constant 0 : i32
    %924 = vector.broadcast %c0_i32_424 : i32 to vector<8x1xi32>
    %925 = arith.cmpi sge, %923, %924 : vector<8x1xi32>
    %c1_i32_425 = arith.constant 1 : i32
    %926 = vector.broadcast %c1_i32_425 : i32 to vector<8x1xi32>
    %927 = arith.addi %724, %926 : vector<8x1xi32>
    %c2_i32_426 = arith.constant 2 : i32
    %928 = vector.broadcast %c2_i32_426 : i32 to vector<8x1xi32>
    %929 = arith.cmpi slt, %927, %928 : vector<8x1xi32>
    %930 = arith.andi %925, %929 : vector<8x1xi1>
    %c-1_i32_427 = arith.constant -1 : i32
    %931 = vector.broadcast %c-1_i32_427 : i32 to vector<8x1xi32>
    %932 = arith.addi %726, %931 : vector<8x1xi32>
    %c0_i32_428 = arith.constant 0 : i32
    %933 = vector.broadcast %c0_i32_428 : i32 to vector<8x1xi32>
    %934 = arith.cmpi sge, %932, %933 : vector<8x1xi32>
    %935 = arith.andi %930, %934 : vector<8x1xi1>
    %c-1_i32_429 = arith.constant -1 : i32
    %936 = vector.broadcast %c-1_i32_429 : i32 to vector<8x1xi32>
    %937 = arith.addi %726, %936 : vector<8x1xi32>
    %c2_i32_430 = arith.constant 2 : i32
    %938 = vector.broadcast %c2_i32_430 : i32 to vector<8x1xi32>
    %939 = arith.cmpi slt, %937, %938 : vector<8x1xi32>
    %940 = arith.andi %935, %939 : vector<8x1xi1>
    %c1_i32_431 = arith.constant 1 : i32
    %941 = vector.broadcast %c1_i32_431 : i32 to vector<8x8xi32>
    %942 = arith.addi %727, %941 : vector<8x8xi32>
    %943 = arith.cmpi eq, %728, %942 : vector<8x8xi32>
    %944 = vector.broadcast %940 : vector<8x1xi1> to vector<8x8xi1>
    %945 = arith.andi %944, %943 : vector<8x8xi1>
    %cst_432 = arith.constant 1.000000e+00 : f32
    %cst_433 = arith.constant 0.000000e+00 : f32
    %946 = vector.broadcast %cst_432 : f32 to vector<8x8xf32>
    %947 = vector.broadcast %cst_433 : f32 to vector<8x8xf32>
    %948 = arith.select %945, %946, %947 : vector<8x8xi1>, vector<8x8xf32>
    %c6_434 = arith.constant 6 : index
    %c0_435 = arith.constant 0 : index
    %c0_436 = arith.constant 0 : index
    %949 = vector.load %arg6[%c6_434, %c0_435, %c0_436] : memref<9x16x32xf32, #tpu.memory_space<vmem>>, vector<1x16x32xf32>
    %950 = vector.shape_cast %949 : vector<1x16x32xf32> to vector<16x32xf32>
    %cst_437 = arith.constant dense<0.000000e+00> : vector<8x32xf32>
    %951 = tpu.matmul %718, %950, %cst_437 {dimension_numbers = #tpu.dot_dimension_numbers<[1], [0], [0], [1], [0, 0, 1, 1], [], []>} : vector<8x16xf32>, vector<16x32xf32>, vector<8x32xf32> -> vector<8x32xf32>
    %cst_438 = arith.constant dense<0.000000e+00> : vector<8x32xf32>
    %952 = tpu.matmul %948, %951, %cst_438 {dimension_numbers = #tpu.dot_dimension_numbers<[1], [0], [0], [1], [0, 0, 1, 1], [], []>} : vector<8x8xf32>, vector<8x32xf32>, vector<8x32xf32> -> vector<8x32xf32>
    %953 = arith.addf %921, %952 : vector<8x32xf32>
    %c1_i32_439 = arith.constant 1 : i32
    %954 = vector.broadcast %c1_i32_439 : i32 to vector<8x1xi32>
    %955 = arith.addi %724, %954 : vector<8x1xi32>
    %c0_i32_440 = arith.constant 0 : i32
    %956 = vector.broadcast %c0_i32_440 : i32 to vector<8x1xi32>
    %957 = arith.cmpi sge, %955, %956 : vector<8x1xi32>
    %c1_i32_441 = arith.constant 1 : i32
    %958 = vector.broadcast %c1_i32_441 : i32 to vector<8x1xi32>
    %959 = arith.addi %724, %958 : vector<8x1xi32>
    %c2_i32_442 = arith.constant 2 : i32
    %960 = vector.broadcast %c2_i32_442 : i32 to vector<8x1xi32>
    %961 = arith.cmpi slt, %959, %960 : vector<8x1xi32>
    %962 = arith.andi %957, %961 : vector<8x1xi1>
    %c0_i32_443 = arith.constant 0 : i32
    %963 = vector.broadcast %c0_i32_443 : i32 to vector<8x1xi32>
    %964 = arith.addi %726, %963 : vector<8x1xi32>
    %c0_i32_444 = arith.constant 0 : i32
    %965 = vector.broadcast %c0_i32_444 : i32 to vector<8x1xi32>
    %966 = arith.cmpi sge, %964, %965 : vector<8x1xi32>
    %967 = arith.andi %962, %966 : vector<8x1xi1>
    %c0_i32_445 = arith.constant 0 : i32
    %968 = vector.broadcast %c0_i32_445 : i32 to vector<8x1xi32>
    %969 = arith.addi %726, %968 : vector<8x1xi32>
    %c2_i32_446 = arith.constant 2 : i32
    %970 = vector.broadcast %c2_i32_446 : i32 to vector<8x1xi32>
    %971 = arith.cmpi slt, %969, %970 : vector<8x1xi32>
    %972 = arith.andi %967, %971 : vector<8x1xi1>
    %c2_i32_447 = arith.constant 2 : i32
    %973 = vector.broadcast %c2_i32_447 : i32 to vector<8x8xi32>
    %974 = arith.addi %727, %973 : vector<8x8xi32>
    %975 = arith.cmpi eq, %728, %974 : vector<8x8xi32>
    %976 = vector.broadcast %972 : vector<8x1xi1> to vector<8x8xi1>
    %977 = arith.andi %976, %975 : vector<8x8xi1>
    %cst_448 = arith.constant 1.000000e+00 : f32
    %cst_449 = arith.constant 0.000000e+00 : f32
    %978 = vector.broadcast %cst_448 : f32 to vector<8x8xf32>
    %979 = vector.broadcast %cst_449 : f32 to vector<8x8xf32>
    %980 = arith.select %977, %978, %979 : vector<8x8xi1>, vector<8x8xf32>
    %c7_450 = arith.constant 7 : index
    %c0_451 = arith.constant 0 : index
    %c0_452 = arith.constant 0 : index
    %981 = vector.load %arg6[%c7_450, %c0_451, %c0_452] : memref<9x16x32xf32, #tpu.memory_space<vmem>>, vector<1x16x32xf32>
    %982 = vector.shape_cast %981 : vector<1x16x32xf32> to vector<16x32xf32>
    %cst_453 = arith.constant dense<0.000000e+00> : vector<8x32xf32>
    %983 = tpu.matmul %718, %982, %cst_453 {dimension_numbers = #tpu.dot_dimension_numbers<[1], [0], [0], [1], [0, 0, 1, 1], [], []>} : vector<8x16xf32>, vector<16x32xf32>, vector<8x32xf32> -> vector<8x32xf32>
    %cst_454 = arith.constant dense<0.000000e+00> : vector<8x32xf32>
    %984 = tpu.matmul %980, %983, %cst_454 {dimension_numbers = #tpu.dot_dimension_numbers<[1], [0], [0], [1], [0, 0, 1, 1], [], []>} : vector<8x8xf32>, vector<8x32xf32>, vector<8x32xf32> -> vector<8x32xf32>
    %985 = arith.addf %953, %984 : vector<8x32xf32>
    %c1_i32_455 = arith.constant 1 : i32
    %986 = vector.broadcast %c1_i32_455 : i32 to vector<8x1xi32>
    %987 = arith.addi %724, %986 : vector<8x1xi32>
    %c0_i32_456 = arith.constant 0 : i32
    %988 = vector.broadcast %c0_i32_456 : i32 to vector<8x1xi32>
    %989 = arith.cmpi sge, %987, %988 : vector<8x1xi32>
    %c1_i32_457 = arith.constant 1 : i32
    %990 = vector.broadcast %c1_i32_457 : i32 to vector<8x1xi32>
    %991 = arith.addi %724, %990 : vector<8x1xi32>
    %c2_i32_458 = arith.constant 2 : i32
    %992 = vector.broadcast %c2_i32_458 : i32 to vector<8x1xi32>
    %993 = arith.cmpi slt, %991, %992 : vector<8x1xi32>
    %994 = arith.andi %989, %993 : vector<8x1xi1>
    %c1_i32_459 = arith.constant 1 : i32
    %995 = vector.broadcast %c1_i32_459 : i32 to vector<8x1xi32>
    %996 = arith.addi %726, %995 : vector<8x1xi32>
    %c0_i32_460 = arith.constant 0 : i32
    %997 = vector.broadcast %c0_i32_460 : i32 to vector<8x1xi32>
    %998 = arith.cmpi sge, %996, %997 : vector<8x1xi32>
    %999 = arith.andi %994, %998 : vector<8x1xi1>
    %c1_i32_461 = arith.constant 1 : i32
    %1000 = vector.broadcast %c1_i32_461 : i32 to vector<8x1xi32>
    %1001 = arith.addi %726, %1000 : vector<8x1xi32>
    %c2_i32_462 = arith.constant 2 : i32
    %1002 = vector.broadcast %c2_i32_462 : i32 to vector<8x1xi32>
    %1003 = arith.cmpi slt, %1001, %1002 : vector<8x1xi32>
    %1004 = arith.andi %999, %1003 : vector<8x1xi1>
    %c3_i32_463 = arith.constant 3 : i32
    %1005 = vector.broadcast %c3_i32_463 : i32 to vector<8x8xi32>
    %1006 = arith.addi %727, %1005 : vector<8x8xi32>
    %1007 = arith.cmpi eq, %728, %1006 : vector<8x8xi32>
    %1008 = vector.broadcast %1004 : vector<8x1xi1> to vector<8x8xi1>
    %1009 = arith.andi %1008, %1007 : vector<8x8xi1>
    %cst_464 = arith.constant 1.000000e+00 : f32
    %cst_465 = arith.constant 0.000000e+00 : f32
    %1010 = vector.broadcast %cst_464 : f32 to vector<8x8xf32>
    %1011 = vector.broadcast %cst_465 : f32 to vector<8x8xf32>
    %1012 = arith.select %1009, %1010, %1011 : vector<8x8xi1>, vector<8x8xf32>
    %c8_466 = arith.constant 8 : index
    %c0_467 = arith.constant 0 : index
    %c0_468 = arith.constant 0 : index
    %1013 = vector.load %arg6[%c8_466, %c0_467, %c0_468] : memref<9x16x32xf32, #tpu.memory_space<vmem>>, vector<1x16x32xf32>
    %1014 = vector.shape_cast %1013 : vector<1x16x32xf32> to vector<16x32xf32>
    %cst_469 = arith.constant dense<0.000000e+00> : vector<8x32xf32>
    %1015 = tpu.matmul %718, %1014, %cst_469 {dimension_numbers = #tpu.dot_dimension_numbers<[1], [0], [0], [1], [0, 0, 1, 1], [], []>} : vector<8x16xf32>, vector<16x32xf32>, vector<8x32xf32> -> vector<8x32xf32>
    %cst_470 = arith.constant dense<0.000000e+00> : vector<8x32xf32>
    %1016 = tpu.matmul %1012, %1015, %cst_470 {dimension_numbers = #tpu.dot_dimension_numbers<[1], [0], [0], [1], [0, 0, 1, 1], [], []>} : vector<8x8xf32>, vector<8x32xf32>, vector<8x32xf32> -> vector<8x32xf32>
    %1017 = arith.addf %985, %1016 : vector<8x32xf32>
    %1018 = vector.broadcast %719 : vector<1x32xf32> to vector<8x32xf32>
    %1019 = arith.addf %1017, %1018 : vector<8x32xf32>
    %cst_471 = arith.constant 0.000000e+00 : f32
    %1020 = vector.broadcast %cst_471 : f32 to vector<8x32xf32>
    %1021 = arith.cmpf ogt, %1019, %1020 : vector<8x32xf32>
    %cst_472 = arith.constant 0.00999999977 : f32
    %1022 = vector.broadcast %cst_472 : f32 to vector<8x32xf32>
    %1023 = arith.mulf %1022, %1019 : vector<8x32xf32>
    %1024 = arith.select %1021, %1019, %1023 : vector<8x32xi1>, vector<8x32xf32>
    %1025 = tpu.iota {dimensions = array<i32: 0>} : vector<2x1xi32>
    %c0_i32_473 = arith.constant 0 : i32
    %1026 = vector.broadcast %c0_i32_473 : i32 to vector<2x1xi32>
    %1027 = arith.shrsi %1025, %1026 : vector<2x1xi32>
    %c0_i32_474 = arith.constant 0 : i32
    %1028 = vector.broadcast %c0_i32_474 : i32 to vector<2x1xi32>
    %1029 = arith.andi %1025, %1028 : vector<2x1xi32>
    %c0_i32_475 = arith.constant 0 : i32
    %1030 = vector.broadcast %c0_i32_475 : i32 to vector<2x1xi32>
    %1031 = arith.shrsi %1029, %1030 : vector<2x1xi32>
    %c0_i32_476 = arith.constant 0 : i32
    %1032 = vector.broadcast %c0_i32_476 : i32 to vector<2x1xi32>
    %1033 = arith.andi %1025, %1032 : vector<2x1xi32>
    %c4_i32_477 = arith.constant 4 : i32
    %1034 = vector.broadcast %c4_i32_477 : i32 to vector<2x1xi32>
    %1035 = arith.muli %1027, %1034 : vector<2x1xi32>
    %c4_i32_478 = arith.constant 4 : i32
    %1036 = vector.broadcast %c4_i32_478 : i32 to vector<2x1xi32>
    %1037 = arith.muli %1031, %1036 : vector<2x1xi32>
    %1038 = arith.addi %1035, %1037 : vector<2x1xi32>
    %c2_i32_479 = arith.constant 2 : i32
    %1039 = vector.broadcast %c2_i32_479 : i32 to vector<2x1xi32>
    %1040 = arith.muli %1033, %1039 : vector<2x1xi32>
    %1041 = arith.addi %1038, %1040 : vector<2x1xi32>
    %1042 = tpu.iota {dimensions = array<i32: 1>} : vector<2x8xi32>
    %c0_i32_480 = arith.constant 0 : i32
    %1043 = vector.broadcast %c0_i32_480 : i32 to vector<2x1xi32>
    %1044 = arith.addi %1041, %1043 : vector<2x1xi32>
    %1045 = vector.broadcast %1044 : vector<2x1xi32> to vector<2x8xi32>
    %1046 = arith.cmpi eq, %1042, %1045 : vector<2x8xi32>
    %cst_481 = arith.constant 1.000000e+00 : f32
    %cst_482 = arith.constant 0.000000e+00 : f32
    %1047 = vector.broadcast %cst_481 : f32 to vector<2x8xf32>
    %1048 = vector.broadcast %cst_482 : f32 to vector<2x8xf32>
    %1049 = arith.select %1046, %1047, %1048 : vector<2x8xi1>, vector<2x8xf32>
    %cst_483 = arith.constant dense<0.000000e+00> : vector<2x32xf32>
    %1050 = tpu.matmul %1049, %1024, %cst_483 {dimension_numbers = #tpu.dot_dimension_numbers<[1], [0], [0], [1], [0, 0, 1, 1], [], []>} : vector<2x8xf32>, vector<8x32xf32>, vector<2x32xf32> -> vector<2x32xf32>
    %c1_i32_484 = arith.constant 1 : i32
    %1051 = vector.broadcast %c1_i32_484 : i32 to vector<2x1xi32>
    %1052 = arith.addi %1041, %1051 : vector<2x1xi32>
    %1053 = vector.broadcast %1052 : vector<2x1xi32> to vector<2x8xi32>
    %1054 = arith.cmpi eq, %1042, %1053 : vector<2x8xi32>
    %cst_485 = arith.constant 1.000000e+00 : f32
    %cst_486 = arith.constant 0.000000e+00 : f32
    %1055 = vector.broadcast %cst_485 : f32 to vector<2x8xf32>
    %1056 = vector.broadcast %cst_486 : f32 to vector<2x8xf32>
    %1057 = arith.select %1054, %1055, %1056 : vector<2x8xi1>, vector<2x8xf32>
    %cst_487 = arith.constant dense<0.000000e+00> : vector<2x32xf32>
    %1058 = tpu.matmul %1057, %1024, %cst_487 {dimension_numbers = #tpu.dot_dimension_numbers<[1], [0], [0], [1], [0, 0, 1, 1], [], []>} : vector<2x8xf32>, vector<8x32xf32>, vector<2x32xf32> -> vector<2x32xf32>
    %1059 = arith.maximumf %1050, %1058 : vector<2x32xf32>
    %c2_i32_488 = arith.constant 2 : i32
    %1060 = vector.broadcast %c2_i32_488 : i32 to vector<2x1xi32>
    %1061 = arith.addi %1041, %1060 : vector<2x1xi32>
    %1062 = vector.broadcast %1061 : vector<2x1xi32> to vector<2x8xi32>
    %1063 = arith.cmpi eq, %1042, %1062 : vector<2x8xi32>
    %cst_489 = arith.constant 1.000000e+00 : f32
    %cst_490 = arith.constant 0.000000e+00 : f32
    %1064 = vector.broadcast %cst_489 : f32 to vector<2x8xf32>
    %1065 = vector.broadcast %cst_490 : f32 to vector<2x8xf32>
    %1066 = arith.select %1063, %1064, %1065 : vector<2x8xi1>, vector<2x8xf32>
    %cst_491 = arith.constant dense<0.000000e+00> : vector<2x32xf32>
    %1067 = tpu.matmul %1066, %1024, %cst_491 {dimension_numbers = #tpu.dot_dimension_numbers<[1], [0], [0], [1], [0, 0, 1, 1], [], []>} : vector<2x8xf32>, vector<8x32xf32>, vector<2x32xf32> -> vector<2x32xf32>
    %1068 = arith.maximumf %1059, %1067 : vector<2x32xf32>
    %c3_i32_492 = arith.constant 3 : i32
    %1069 = vector.broadcast %c3_i32_492 : i32 to vector<2x1xi32>
    %1070 = arith.addi %1041, %1069 : vector<2x1xi32>
    %1071 = vector.broadcast %1070 : vector<2x1xi32> to vector<2x8xi32>
    %1072 = arith.cmpi eq, %1042, %1071 : vector<2x8xi32>
    %cst_493 = arith.constant 1.000000e+00 : f32
    %cst_494 = arith.constant 0.000000e+00 : f32
    %1073 = vector.broadcast %cst_493 : f32 to vector<2x8xf32>
    %1074 = vector.broadcast %cst_494 : f32 to vector<2x8xf32>
    %1075 = arith.select %1072, %1073, %1074 : vector<2x8xi1>, vector<2x8xf32>
    %cst_495 = arith.constant dense<0.000000e+00> : vector<2x32xf32>
    %1076 = tpu.matmul %1075, %1024, %cst_495 {dimension_numbers = #tpu.dot_dimension_numbers<[1], [0], [0], [1], [0, 0, 1, 1], [], []>} : vector<2x8xf32>, vector<8x32xf32>, vector<2x32xf32> -> vector<2x32xf32>
    %1077 = arith.maximumf %1068, %1076 : vector<2x32xf32>
    %c0_496 = arith.constant 0 : index
    %c0_497 = arith.constant 0 : index
    %1078 = vector.load %arg8[%c0_496, %c0_497] : memref<32x128xf32, #tpu.memory_space<vmem>>, vector<32x128xf32>
    %cst_498 = arith.constant dense<0.000000e+00> : vector<2x128xf32>
    %1079 = tpu.matmul %1077, %1078, %cst_498 {dimension_numbers = #tpu.dot_dimension_numbers<[1], [0], [0], [1], [0, 0, 1, 1], [], []>} : vector<2x32xf32>, vector<32x128xf32>, vector<2x128xf32> -> vector<2x128xf32>
    %c0_499 = arith.constant 0 : index
    %c0_500 = arith.constant 0 : index
    %1080 = vector.load %arg9[%c0_499, %c0_500] : memref<1x128xf32, #tpu.memory_space<vmem>>, vector<1x128xf32>
    %1081 = vector.broadcast %1080 : vector<1x128xf32> to vector<2x128xf32>
    %1082 = arith.addf %1079, %1081 : vector<2x128xf32>
    %cst_501 = arith.constant 0.000000e+00 : f32
    %1083 = vector.broadcast %cst_501 : f32 to vector<2x128xf32>
    %1084 = arith.cmpf ogt, %1082, %1083 : vector<2x128xf32>
    %cst_502 = arith.constant 0.00999999977 : f32
    %1085 = vector.broadcast %cst_502 : f32 to vector<2x128xf32>
    %1086 = arith.mulf %1085, %1082 : vector<2x128xf32>
    %1087 = arith.select %1084, %1082, %1086 : vector<2x128xi1>, vector<2x128xf32>
    %c0_503 = arith.constant 0 : index
    %c0_504 = arith.constant 0 : index
    %1088 = vector.load %arg10[%c0_503, %c0_504] : memref<128x64xf32, #tpu.memory_space<vmem>>, vector<128x64xf32>
    %cst_505 = arith.constant dense<0.000000e+00> : vector<2x64xf32>
    %1089 = tpu.matmul %1087, %1088, %cst_505 {dimension_numbers = #tpu.dot_dimension_numbers<[1], [0], [0], [1], [0, 0, 1, 1], [], []>} : vector<2x128xf32>, vector<128x64xf32>, vector<2x64xf32> -> vector<2x64xf32>
    %c0_506 = arith.constant 0 : index
    %c0_507 = arith.constant 0 : index
    %1090 = vector.load %arg11[%c0_506, %c0_507] : memref<1x64xf32, #tpu.memory_space<vmem>>, vector<1x64xf32>
    %1091 = vector.broadcast %1090 : vector<1x64xf32> to vector<2x64xf32>
    %1092 = arith.addf %1089, %1091 : vector<2x64xf32>
    %cst_508 = arith.constant 0.000000e+00 : f32
    %1093 = vector.broadcast %cst_508 : f32 to vector<2x64xf32>
    %1094 = arith.cmpf ogt, %1092, %1093 : vector<2x64xf32>
    %cst_509 = arith.constant 0.00999999977 : f32
    %1095 = vector.broadcast %cst_509 : f32 to vector<2x64xf32>
    %1096 = arith.mulf %1095, %1092 : vector<2x64xf32>
    %1097 = arith.select %1094, %1092, %1096 : vector<2x64xi1>, vector<2x64xf32>
    %c0_510 = arith.constant 0 : index
    %c0_511 = arith.constant 0 : index
    %1098 = vector.load %arg12[%c0_510, %c0_511] : memref<64x32xf32, #tpu.memory_space<vmem>>, vector<64x32xf32>
    %cst_512 = arith.constant dense<0.000000e+00> : vector<2x32xf32>
    %1099 = tpu.matmul %1097, %1098, %cst_512 {dimension_numbers = #tpu.dot_dimension_numbers<[1], [0], [0], [1], [0, 0, 1, 1], [], []>} : vector<2x64xf32>, vector<64x32xf32>, vector<2x32xf32> -> vector<2x32xf32>
    %c0_513 = arith.constant 0 : index
    %c0_514 = arith.constant 0 : index
    %1100 = vector.load %arg13[%c0_513, %c0_514] : memref<1x32xf32, #tpu.memory_space<vmem>>, vector<1x32xf32>
    %1101 = vector.broadcast %1100 : vector<1x32xf32> to vector<2x32xf32>
    %1102 = arith.addf %1099, %1101 : vector<2x32xf32>
    %cst_515 = arith.constant 0.000000e+00 : f32
    %1103 = vector.broadcast %cst_515 : f32 to vector<2x32xf32>
    %1104 = arith.cmpf ogt, %1102, %1103 : vector<2x32xf32>
    %cst_516 = arith.constant 0.00999999977 : f32
    %1105 = vector.broadcast %cst_516 : f32 to vector<2x32xf32>
    %1106 = arith.mulf %1105, %1102 : vector<2x32xf32>
    %1107 = arith.select %1104, %1102, %1106 : vector<2x32xi1>, vector<2x32xf32>
    %c0_517 = arith.constant 0 : index
    %c0_518 = arith.constant 0 : index
    %1108 = vector.load %arg14[%c0_517, %c0_518] : memref<32x3xf32, #tpu.memory_space<vmem>>, vector<32x3xf32>
    %cst_519 = arith.constant dense<0.000000e+00> : vector<2x3xf32>
    %1109 = tpu.matmul %1107, %1108, %cst_519 {dimension_numbers = #tpu.dot_dimension_numbers<[1], [0], [0], [1], [0, 0, 1, 1], [], []>} : vector<2x32xf32>, vector<32x3xf32>, vector<2x3xf32> -> vector<2x3xf32>
    %c0_520 = arith.constant 0 : index
    %c0_521 = arith.constant 0 : index
    %1110 = vector.load %arg15[%c0_520, %c0_521] : memref<1x3xf32, #tpu.memory_space<vmem>>, vector<1x3xf32>
    %1111 = vector.broadcast %1110 : vector<1x3xf32> to vector<2x3xf32>
    %1112 = arith.addf %1109, %1111 : vector<2x3xf32>
    %c0_522 = arith.constant 0 : index
    %c0_523 = arith.constant 0 : index
    %1113 = vector.load %arg16[%c0_522, %c0_523] : memref<2x3xf32, #tpu.memory_space<vmem>>, vector<2x3xf32>
    tpu.vector_store %arg16[%c0_522, %c0_523], %1112 {strides = array<i32>} : memref<2x3xf32, #tpu.memory_space<vmem>>, vector<2x3xf32>,
    return
  }
  func.func @transform_0(%arg0: i32) -> (i32, i32) {
    %c0_i32 = arith.constant 0 : i32
    %c0_i32_0 = arith.constant 0 : i32
    return %arg0, %c0_i32 : i32, i32
  }
  func.func @transform_1(%arg0: i32) -> (i32, i32, i32) {
    %c0_i32 = arith.constant 0 : i32
    %c0_i32_0 = arith.constant 0 : i32
    %c0_i32_1 = arith.constant 0 : i32
    %c0_i32_2 = arith.constant 0 : i32
    return %c0_i32, %c0_i32_0, %c0_i32_1 : i32, i32, i32
  }
  func.func @transform_2(%arg0: i32) -> (i32, i32) {
    %c0_i32 = arith.constant 0 : i32
    %c0_i32_0 = arith.constant 0 : i32
    %c0_i32_1 = arith.constant 0 : i32
    return %c0_i32, %c0_i32_0 : i32, i32
  }
  func.func @transform_3(%arg0: i32) -> (i32, i32, i32) {
    %c0_i32 = arith.constant 0 : i32
    %c0_i32_0 = arith.constant 0 : i32
    %c0_i32_1 = arith.constant 0 : i32
    %c0_i32_2 = arith.constant 0 : i32
    return %c0_i32, %c0_i32_0, %c0_i32_1 : i32, i32, i32
  }
  func.func @transform_4(%arg0: i32) -> (i32, i32) {
    %c0_i32 = arith.constant 0 : i32
    %c0_i32_0 = arith.constant 0 : i32
    %c0_i32_1 = arith.constant 0 : i32
    return %c0_i32, %c0_i32_0 : i32, i32
  }
  func.func @transform_5(%arg0: i32) -> (i32, i32, i32) {
    %c0_i32 = arith.constant 0 : i32
    %c0_i32_0 = arith.constant 0 : i32
    %c0_i32_1 = arith.constant 0 : i32
    %c0_i32_2 = arith.constant 0 : i32
    return %c0_i32, %c0_i32_0, %c0_i32_1 : i32, i32, i32
  }
  func.func @transform_6(%arg0: i32) -> (i32, i32) {
    %c0_i32 = arith.constant 0 : i32
    %c0_i32_0 = arith.constant 0 : i32
    %c0_i32_1 = arith.constant 0 : i32
    return %c0_i32, %c0_i32_0 : i32, i32
  }
  func.func @transform_7(%arg0: i32) -> (i32, i32) {
    %c0_i32 = arith.constant 0 : i32
    %c0_i32_0 = arith.constant 0 : i32
    %c0_i32_1 = arith.constant 0 : i32
    return %c0_i32, %c0_i32_0 : i32, i32
  }
  func.func @transform_8(%arg0: i32) -> (i32, i32) {
    %c0_i32 = arith.constant 0 : i32
    %c0_i32_0 = arith.constant 0 : i32
    %c0_i32_1 = arith.constant 0 : i32
    return %c0_i32, %c0_i32_0 : i32, i32
  }
  func.func @transform_9(%arg0: i32) -> (i32, i32) {
    %c0_i32 = arith.constant 0 : i32
    %c0_i32_0 = arith.constant 0 : i32
    %c0_i32_1 = arith.constant 0 : i32
    return %c0_i32, %c0_i32_0 : i32, i32
  }
  func.func @transform_10(%arg0: i32) -> (i32, i32) {
    %c0_i32 = arith.constant 0 : i32
    %c0_i32_0 = arith.constant 0 : i32
    %c0_i32_1 = arith.constant 0 : i32
    return %c0_i32, %c0_i32_0 : i32, i32
  }
  func.func @transform_11(%arg0: i32) -> (i32, i32) {
    %c0_i32 = arith.constant 0 : i32
    %c0_i32_0 = arith.constant 0 : i32
    %c0_i32_1 = arith.constant 0 : i32
    return %c0_i32, %c0_i32_0 : i32, i32
  }
  func.func @transform_12(%arg0: i32) -> (i32, i32) {
    %c0_i32 = arith.constant 0 : i32
    %c0_i32_0 = arith.constant 0 : i32
    %c0_i32_1 = arith.constant 0 : i32
    return %c0_i32, %c0_i32_0 : i32, i32
  }
  func.func @transform_13(%arg0: i32) -> (i32, i32) {
    %c0_i32 = arith.constant 0 : i32
    %c0_i32_0 = arith.constant 0 : i32
    %c0_i32_1 = arith.constant 0 : i32
    return %c0_i32, %c0_i32_0 : i32, i32
  }
  func.func @transform_14(%arg0: i32) -> (i32, i32) {
    %c0_i32 = arith.constant 0 : i32
    %c0_i32_0 = arith.constant 0 : i32
    %c0_i32_1 = arith.constant 0 : i32
    return %c0_i32, %c0_i32_0 : i32, i32
  }
  func.func @transform_15(%arg0: i32) -> (i32, i32) {
    %c0_i32 = arith.constant 0 : i32
    %c0_i32_0 = arith.constant 0 : i32
    return %arg0, %c0_i32 : i32, i32
  }
}

</mosaic_0001>

<llo_original>
// kernel: qnet_forward.1
$region0: #{qnet_forward.1}
  #allocation0 [shape = 'u32[]', space=smem, size = 0x4, offset = 0x4, fixed_abs, tag = 'smem constant byte address 0x4 - core index']
  #allocation1 [shape = 'u32[72,128]{1,0:T(1,128)}', space=vmem, size = 0x9000, scoped, tag = 'internal scratch']
  %s0 = inlined_call_operand.vmem [shape: f32[128,3], index: 0, kind: input, shape index: {}]
  %s1 = inlined_call_operand.vmem [shape: f32[9,3,8], index: 1, kind: input, shape index: {}]
  %s2 = inlined_call_operand.vmem [shape: f32[1,8], index: 2, kind: input, shape index: {}]
  %s3 = inlined_call_operand.vmem [shape: f32[9,8,16], index: 3, kind: input, shape index: {}]
  %s4 = inlined_call_operand.vmem [shape: f32[1,16], index: 4, kind: input, shape index: {}]
  %s5 = inlined_call_operand.vmem [shape: f32[9,16,32], index: 5, kind: input, shape index: {}]
  %s6 = inlined_call_operand.vmem [shape: f32[1,32], index: 6, kind: input, shape index: {}]
  %s7 = inlined_call_operand.vmem [shape: f32[32,128], index: 7, kind: input, shape index: {}]
  %s8 = inlined_call_operand.vmem [shape: f32[1,128], index: 8, kind: input, shape index: {}]
  %s9 = inlined_call_operand.vmem [shape: f32[128,64], index: 9, kind: input, shape index: {}]
  %s10 = inlined_call_operand.vmem [shape: f32[1,64], index: 10, kind: input, shape index: {}]
  %s11 = inlined_call_operand.vmem [shape: f32[64,32], index: 11, kind: input, shape index: {}]
  %s12 = inlined_call_operand.vmem [shape: f32[1,32], index: 12, kind: input, shape index: {}]
  %s13 = inlined_call_operand.vmem [shape: f32[32,3], index: 13, kind: input, shape index: {}]
  %s14 = inlined_call_operand.vmem [shape: f32[1,3], index: 14, kind: input, shape index: {}]
  %s15 = inlined_call_operand.hbm [shape: f32[2,3], index: 15, kind: output, shape index: {}]
  %s16 = sld [smem:[#allocation0]]
  $region70: #{qnet_forward.1} parent=0
    _
  %s18 = ssub.s32 1, %s16
  %s19 = scalar_select 0, %s18, %s16
  $region1: #{qnet_forward.1} parent=0
    #allocation2 [shape = 'u8[1024]{0}', space=vmem, size = 0x400, scoped, tag = 'output window, operand 0, single buffered']
    #allocation3 [shape = 's32[1]{0}', space=sflag, size = 0x4, scoped, tag = 'scoped memory for qnet_forward.1']
    %20 = vsyncpa [#allocation3], 0
    // Predicated region
    $region2: #{qnet_forward.1} parent=1 // pred_check
      _
    $region3: #{qnet_forward.1} parent=1 // pred_check_branch
      %22 = sbr.rel (0) target = $region5
    $region4: #{qnet_forward.1} parent=1 // pred_region
      _
    $region5: #{qnet_forward.1} parent=1 // pred_fallthru
      _
    // Predicated region
    $region6: #{qnet_forward.1} parent=1 // pred_check
      _
    $region7: #{qnet_forward.1} parent=1 // pred_check_branch
      %24 = sbr.rel (0) target = $region9
    $region8: #{qnet_forward.1} parent=1 // pred_region
      _
    $region9: #{qnet_forward.1} parent=1 // pred_fallthru
      _
    // Predicated region
    $region10: #{qnet_forward.1} parent=1 // pred_check
      _
    $region11: #{qnet_forward.1} parent=1 // pred_check_branch
      %26 = sbr.rel (0) target = $region13
    $region12: #{qnet_forward.1} parent=1 // pred_region
      _
    $region13: #{qnet_forward.1} parent=1 // pred_fallthru
      _
    // Predicated region
    $region14: #{qnet_forward.1} parent=1 // pred_check
      _
    $region15: #{qnet_forward.1} parent=1 // pred_check_branch
      %28 = sbr.rel (0) target = $region17
    $region16: #{qnet_forward.1} parent=1 // pred_region
      _
    $region17: #{qnet_forward.1} parent=1 // pred_fallthru
      _
    // Predicated region
    $region18: #{qnet_forward.1} parent=1 // pred_check
      _
    $region19: #{qnet_forward.1} parent=1 // pred_check_branch
      %30 = sbr.rel (0) target = $region21
    $region20: #{qnet_forward.1} parent=1 // pred_region
      _
    $region21: #{qnet_forward.1} parent=1 // pred_fallthru
      _
    // Predicated region
    $region22: #{qnet_forward.1} parent=1 // pred_check
      _
    $region23: #{qnet_forward.1} parent=1 // pred_check_branch
      %32 = sbr.rel (0) target = $region25
    $region24: #{qnet_forward.1} parent=1 // pred_region
      _
    $region25: #{qnet_forward.1} parent=1 // pred_fallthru
      _
    // Predicated region
    $region26: #{qnet_forward.1} parent=1 // pred_check
      _
    $region27: #{qnet_forward.1} parent=1 // pred_check_branch
      %34 = sbr.rel (0) target = $region29
    $region28: #{qnet_forward.1} parent=1 // pred_region
      _
    $region29: #{qnet_forward.1} parent=1 // pred_fallthru
      _
    // Predicated region
    $region30: #{qnet_forward.1} parent=1 // pred_check
      _
    $region31: #{qnet_forward.1} parent=1 // pred_check_branch
      %36 = sbr.rel (0) target = $region33
    $region32: #{qnet_forward.1} parent=1 // pred_region
      _
    $region33: #{qnet_forward.1} parent=1 // pred_fallthru
      _
    // Predicated region
    $region34: #{qnet_forward.1} parent=1 // pred_check
      _
    $region35: #{qnet_forward.1} parent=1 // pred_check_branch
      %38 = sbr.rel (0) target = $region37
    $region36: #{qnet_forward.1} parent=1 // pred_region
      _
    $region37: #{qnet_forward.1} parent=1 // pred_fallthru
      _
    // Predicated region
    $region38: #{qnet_forward.1} parent=1 // pred_check
      _
    $region39: #{qnet_forward.1} parent=1 // pred_check_branch
      %40 = sbr.rel (0) target = $region41
    $region40: #{qnet_forward.1} parent=1 // pred_region
      _
    $region41: #{qnet_forward.1} parent=1 // pred_fallthru
      _
    // Predicated region
    $region42: #{qnet_forward.1} parent=1 // pred_check
      _
    $region43: #{qnet_forward.1} parent=1 // pred_check_branch
      %42 = sbr.rel (0) target = $region45
    $region44: #{qnet_forward.1} parent=1 // pred_region
      _
    $region45: #{qnet_forward.1} parent=1 // pred_fallthru
      _
    // Predicated region
    $region46: #{qnet_forward.1} parent=1 // pred_check
      _
    $region47: #{qnet_forward.1} parent=1 // pred_check_branch
      %44 = sbr.rel (0) target = $region49
    $region48: #{qnet_forward.1} parent=1 // pred_region
      _
    $region49: #{qnet_forward.1} parent=1 // pred_fallthru
      _
    // Predicated region
    $region50: #{qnet_forward.1} parent=1 // pred_check
      _
    $region51: #{qnet_forward.1} parent=1 // pred_check_branch
      %46 = sbr.rel (0) target = $region53
    $region52: #{qnet_forward.1} parent=1 // pred_region
      _
    $region53: #{qnet_forward.1} parent=1 // pred_fallthru
      _
    // Predicated region
    $region54: #{qnet_forward.1} parent=1 // pred_check
      _
    $region55: #{qnet_forward.1} parent=1 // pred_check_branch
      %48 = sbr.rel (0) target = $region57
    $region56: #{qnet_forward.1} parent=1 // pred_region
      _
    $region57: #{qnet_forward.1} parent=1 // pred_fallthru
      _
    // Predicated region
    $region58: #{qnet_forward.1} parent=1 // pred_check
      _
    $region59: #{qnet_forward.1} parent=1 // pred_check_branch
      %50 = sbr.rel (0) target = $region61
    $region60: #{qnet_forward.1} parent=1 // pred_region
      _
    $region61: #{qnet_forward.1} parent=1 // pred_fallthru
      _
    %v51 = vld [vmem:[%s0] sm:$0xff]
    %v52 = vld [vmem:[%s0 + $0x8] sm:$0xff]
    %v53 = vld [vmem:[%s0 + $0x10] sm:$0xff]
    %v54 = vld [vmem:[%s0 + $0x18] sm:$0xff]
    %v55 = vld [vmem:[%s0 + $0x20] sm:$0xff]
    %v56 = vld [vmem:[%s0 + $0x28] sm:$0xff]
    %v57 = vld [vmem:[%s0 + $0x30] sm:$0xff]
    %v58 = vld [vmem:[%s0 + $0x38] sm:$0xff]
    %v59 = vld [vmem:[%s0 + $0x40] sm:$0xff]
    %v60 = vld [vmem:[%s0 + $0x48] sm:$0xff]
    %v61 = vld [vmem:[%s0 + $0x50] sm:$0xff]
    %v62 = vld [vmem:[%s0 + $0x58] sm:$0xff]
    %v63 = vld [vmem:[%s0 + $0x60] sm:$0xff]
    %v64 = vld [vmem:[%s0 + $0x68] sm:$0xff]
    %v65 = vld [vmem:[%s0 + $0x70] sm:$0xff]
    %v66 = vld [vmem:[%s0 + $0x78] sm:$0xff]
    %v67 = vld [vmem:[%s2] sm:$0x1]
    %v68 = vlaneseq
    %v69 = vshrl.u32 %v68, 7
    %v70 = vadd.s32 %v69, 8
    %v71 = vadd.s32 %v69, 16
    %v72 = vadd.s32 %v69, 24
    %v73 = vadd.s32 %v69, 32
    %v74 = vadd.s32 %v69, 40
    %v75 = vadd.s32 %v69, 48
    %v76 = vadd.s32 %v69, 56
    %v77 = vadd.s32 %v69, 64
    %v78 = vadd.s32 %v69, 72
    %v79 = vadd.s32 %v69, 80
    %v80 = vadd.s32 %v69, 88
    %v81 = vadd.s32 %v69, 96
    %v82 = vadd.s32 %v69, 104
    %v83 = vadd.s32 %v69, 112
    %v84 = vadd.s32 %v69, 120
    %v85 = vand.u32 %v69, 63
    %v86 = vand.u32 %v70, 63
    %v87 = vand.u32 %v71, 63
    %v88 = vand.u32 %v72, 63
    %v89 = vand.u32 %v73, 63
    %v90 = vand.u32 %v74, 63
    %v91 = vand.u32 %v75, 63
    %v92 = vand.u32 %v76, 63
    %v93 = vand.u32 %v77, 63
    %v94 = vand.u32 %v78, 63
    %v95 = vand.u32 %v79, 63
    %v96 = vand.u32 %v80, 63
    %v97 = vand.u32 %v81, 63
    %v98 = vand.u32 %v82, 63
    %v99 = vand.u32 %v83, 63
    %v100 = vand.u32 %v84, 63
    %v101 = vshra.s32 %v85, 3
    %v102 = vshra.s32 %v86, 3
    %v103 = vshra.s32 %v87, 3
    %v104 = vshra.s32 %v88, 3
    %v105 = vshra.s32 %v89, 3
    %v106 = vshra.s32 %v90, 3
    %v107 = vshra.s32 %v91, 3
    %v108 = vshra.s32 %v92, 3
    %v109 = vshra.s32 %v93, 3
    %v110 = vshra.s32 %v94, 3
    %v111 = vshra.s32 %v95, 3
    %v112 = vshra.s32 %v96, 3
    %v113 = vshra.s32 %v97, 3
    %v114 = vshra.s32 %v98, 3
    %v115 = vshra.s32 %v99, 3
    %v116 = vshra.s32 %v100, 3
    %v117 = vand.u32 %v69, 7
    %v118 = vand.u32 %v70, 7
    %v119 = vand.u32 %v71, 7
    %v120 = vand.u32 %v72, 7
    %v121 = vand.u32 %v73, 7
    %v122 = vand.u32 %v74, 7
    %v123 = vand.u32 %v75, 7
    %v124 = vand.u32 %v76, 7
    %v125 = vand.u32 %v77, 7
    %v126 = vand.u32 %v78, 7
    %v127 = vand.u32 %v79, 7
    %v128 = vand.u32 %v80, 7
    %v129 = vand.u32 %v81, 7
    %v130 = vand.u32 %v82, 7
    %v131 = vand.u32 %v83, 7
    %v132 = vand.u32 %v84, 7
    %v133 = vlaneseq
    %v134 = vand.u32 %v133, 127
    %v135 = vadd.s32 %v101, 4294967295
    %v136 = vadd.s32 %v102, 4294967295
    %v137 = vadd.s32 %v103, 4294967295
    %v138 = vadd.s32 %v104, 4294967295
    %v139 = vadd.s32 %v105, 4294967295
    %v140 = vadd.s32 %v106, 4294967295
    %v141 = vadd.s32 %v107, 4294967295
    %v142 = vadd.s32 %v108, 4294967295
    %v143 = vadd.s32 %v109, 4294967295
    %v144 = vadd.s32 %v110, 4294967295
    %v145 = vadd.s32 %v111, 4294967295
    %v146 = vadd.s32 %v112, 4294967295
    %v147 = vadd.s32 %v113, 4294967295
    %v148 = vadd.s32 %v114, 4294967295
    %v149 = vadd.s32 %v115, 4294967295
    %v150 = vadd.s32 %v116, 4294967295
    %vm151 = vcmp.ge.s32.totalorder %v135, 0
    %vm152 = vcmp.ge.s32.totalorder %v136, 0
    %vm153 = vcmp.ge.s32.totalorder %v137, 0
    %vm154 = vcmp.ge.s32.totalorder %v138, 0
    %vm155 = vcmp.ge.s32.totalorder %v139, 0
    %vm156 = vcmp.ge.s32.totalorder %v140, 0
    %vm157 = vcmp.ge.s32.totalorder %v141, 0
    %vm158 = vcmp.ge.s32.totalorder %v142, 0
    %vm159 = vcmp.ge.s32.totalorder %v143, 0
    %vm160 = vcmp.ge.s32.totalorder %v144, 0
    %vm161 = vcmp.ge.s32.totalorder %v145, 0
    %vm162 = vcmp.ge.s32.totalorder %v146, 0
    %vm163 = vcmp.ge.s32.totalorder %v147, 0
    %vm164 = vcmp.ge.s32.totalorder %v148, 0
    %vm165 = vcmp.ge.s32.totalorder %v149, 0
    %vm166 = vcmp.ge.s32.totalorder %v150, 0
    %vm167 = vcmp.lt.s32.totalorder %v135, 8
    %vm168 = vcmp.lt.s32.totalorder %v136, 8
    %vm169 = vcmp.lt.s32.totalorder %v137, 8
    %vm170 = vcmp.lt.s32.totalorder %v138, 8
    %vm171 = vcmp.lt.s32.totalorder %v139, 8
    %vm172 = vcmp.lt.s32.totalorder %v140, 8
    %vm173 = vcmp.lt.s32.totalorder %v141, 8
    %vm174 = vcmp.lt.s32.totalorder %v142, 8
    %vm175 = vcmp.lt.s32.totalorder %v143, 8
    %vm176 = vcmp.lt.s32.totalorder %v144, 8
    %vm177 = vcmp.lt.s32.totalorder %v145, 8
    %vm178 = vcmp.lt.s32.totalorder %v146, 8
    %vm179 = vcmp.lt.s32.totalorder %v147, 8
    %vm180 = vcmp.lt.s32.totalorder %v148, 8
    %vm181 = vcmp.lt.s32.totalorder %v149, 8
    %vm182 = vcmp.lt.s32.totalorder %v150, 8
    %vm183 = vmand %vm151, %vm167
    %vm184 = vmand %vm152, %vm168
    %vm185 = vmand %vm153, %vm169
    %vm186 = vmand %vm154, %vm170
    %vm187 = vmand %vm155, %vm171
    %vm188 = vmand %vm156, %vm172
    %vm189 = vmand %vm157, %vm173
    %vm190 = vmand %vm158, %vm174
    %vm191 = vmand %vm159, %vm175
    %vm192 = vmand %vm160, %vm176
    %vm193 = vmand %vm161, %vm177
    %vm194 = vmand %vm162, %vm178
    %vm195 = vmand %vm163, %vm179
    %vm196 = vmand %vm164, %vm180
    %vm197 = vmand %vm165, %vm181
    %vm198 = vmand %vm166, %vm182
    %v199 = vadd.s32 %v117, 4294967295
    %v200 = vadd.s32 %v118, 4294967295
    %v201 = vadd.s32 %v119, 4294967295
    %v202 = vadd.s32 %v120, 4294967295
    %v203 = vadd.s32 %v121, 4294967295
    %v204 = vadd.s32 %v122, 4294967295
    %v205 = vadd.s32 %v123, 4294967295
    %v206 = vadd.s32 %v124, 4294967295
    %v207 = vadd.s32 %v125, 4294967295
    %v208 = vadd.s32 %v126, 4294967295
    %v209 = vadd.s32 %v127, 4294967295
    %v210 = vadd.s32 %v128, 4294967295
    %v211 = vadd.s32 %v129, 4294967295
    %v212 = vadd.s32 %v130, 4294967295
    %v213 = vadd.s32 %v131, 4294967295
    %v214 = vadd.s32 %v132, 4294967295
    %vm215 = vcmp.ge.s32.totalorder %v199, 0
    %vm216 = vcmp.ge.s32.totalorder %v200, 0
    %vm217 = vcmp.ge.s32.totalorder %v201, 0
    %vm218 = vcmp.ge.s32.totalorder %v202, 0
    %vm219 = vcmp.ge.s32.totalorder %v203, 0
    %vm220 = vcmp.ge.s32.totalorder %v204, 0
    %vm221 = vcmp.ge.s32.totalorder %v205, 0
    %vm222 = vcmp.ge.s32.totalorder %v206, 0
    %vm223 = vcmp.ge.s32.totalorder %v207, 0
    %vm224 = vcmp.ge.s32.totalorder %v208, 0
    %vm225 = vcmp.ge.s32.totalorder %v209, 0
    %vm226 = vcmp.ge.s32.totalorder %v210, 0
    %vm227 = vcmp.ge.s32.totalorder %v211, 0
    %vm228 = vcmp.ge.s32.totalorder %v212, 0
    %vm229 = vcmp.ge.s32.totalorder %v213, 0
    %vm230 = vcmp.ge.s32.totalorder %v214, 0
    %vm231 = vmand %vm183, %vm215
    %vm232 = vmand %vm184, %vm216
    %vm233 = vmand %vm185, %vm217
    %vm234 = vmand %vm186, %vm218
    %vm235 = vmand %vm187, %vm219
    %vm236 = vmand %vm188, %vm220
    %vm237 = vmand %vm189, %vm221
    %vm238 = vmand %vm190, %vm222
    %vm239 = vmand %vm191, %vm223
    %vm240 = vmand %vm192, %vm224
    %vm241 = vmand %vm193, %vm225
    %vm242 = vmand %vm194, %vm226
    %vm243 = vmand %vm195, %vm227
    %vm244 = vmand %vm196, %vm228
    %vm245 = vmand %vm197, %vm229
    %vm246 = vmand %vm198, %vm230
    %vm247 = vcmp.lt.s32.totalorder %v199, 8
    %vm248 = vcmp.lt.s32.totalorder %v200, 8
    %vm249 = vcmp.lt.s32.totalorder %v201, 8
    %vm250 = vcmp.lt.s32.totalorder %v202, 8
    %vm251 = vcmp.lt.s32.totalorder %v203, 8
    %vm252 = vcmp.lt.s32.totalorder %v204, 8
    %vm253 = vcmp.lt.s32.totalorder %v205, 8
    %vm254 = vcmp.lt.s32.totalorder %v206, 8
    %vm255 = vcmp.lt.s32.totalorder %v207, 8
    %vm256 = vcmp.lt.s32.totalorder %v208, 8
    %vm257 = vcmp.lt.s32.totalorder %v209, 8
    %vm258 = vcmp.lt.s32.totalorder %v210, 8
    %vm259 = vcmp.lt.s32.totalorder %v211, 8
    %vm260 = vcmp.lt.s32.totalorder %v212, 8
    %vm261 = vcmp.lt.s32.totalorder %v213, 8
    %vm262 = vcmp.lt.s32.totalorder %v214, 8
    %vm263 = vmand %vm231, %vm247
    %vm264 = vmand %vm232, %vm248
    %vm265 = vmand %vm233, %vm249
    %vm266 = vmand %vm234, %vm250
    %vm267 = vmand %vm235, %vm251
    %vm268 = vmand %vm236, %vm252
    %vm269 = vmand %vm237, %vm253
    %vm270 = vmand %vm238, %vm254
    %vm271 = vmand %vm239, %vm255
    %vm272 = vmand %vm240, %vm256
    %vm273 = vmand %vm241, %vm257
    %vm274 = vmand %vm242, %vm258
    %vm275 = vmand %vm243, %vm259
    %vm276 = vmand %vm244, %vm260
    %vm277 = vmand %vm245, %vm261
    %vm278 = vmand %vm246, %vm262
    %v279 = vadd.s32 %v69, 4294967287
    %v280 = vadd.s32 %v70, 4294967287
    %v281 = vadd.s32 %v71, 4294967287
    %v282 = vadd.s32 %v72, 4294967287
    %v283 = vadd.s32 %v73, 4294967287
    %v284 = vadd.s32 %v74, 4294967287
    %v285 = vadd.s32 %v75, 4294967287
    %v286 = vadd.s32 %v76, 4294967287
    %v287 = vadd.s32 %v77, 4294967287
    %v288 = vadd.s32 %v78, 4294967287
    %v289 = vadd.s32 %v79, 4294967287
    %v290 = vadd.s32 %v80, 4294967287
    %v291 = vadd.s32 %v81, 4294967287
    %v292 = vadd.s32 %v82, 4294967287
    %v293 = vadd.s32 %v83, 4294967287
    %v294 = vadd.s32 %v84, 4294967287
    %vm295 = vcmp.eq.s32.totalorder %v134, %v279
    %vm296 = vcmp.eq.s32.totalorder %v134, %v280
    %vm297 = vcmp.eq.s32.totalorder %v134, %v281
    %vm298 = vcmp.eq.s32.totalorder %v134, %v282
    %vm299 = vcmp.eq.s32.totalorder %v134, %v283
    %vm300 = vcmp.eq.s32.totalorder %v134, %v284
    %vm301 = vcmp.eq.s32.totalorder %v134, %v285
    %vm302 = vcmp.eq.s32.totalorder %v134, %v286
    %vm303 = vcmp.eq.s32.totalorder %v134, %v287
    %vm304 = vcmp.eq.s32.totalorder %v134, %v288
    %vm305 = vcmp.eq.s32.totalorder %v134, %v289
    %vm306 = vcmp.eq.s32.totalorder %v134, %v290
    %vm307 = vcmp.eq.s32.totalorder %v134, %v291
    %vm308 = vcmp.eq.s32.totalorder %v134, %v292
    %vm309 = vcmp.eq.s32.totalorder %v134, %v293
    %vm310 = vcmp.eq.s32.totalorder %v134, %v294
    %v311 = vsel %vm263, 1, 0
    %v312 = vsel %vm264, 1, 0
    %v313 = vsel %vm265, 1, 0
    %v314 = vsel %vm266, 1, 0
    %v315 = vsel %vm267, 1, 0
    %v316 = vsel %vm268, 1, 0
    %v317 = vsel %vm269, 1, 0
    %v318 = vsel %vm270, 1, 0
    %v319 = vsel %vm271, 1, 0
    %v320 = vsel %vm272, 1, 0
    %v321 = vsel %vm273, 1, 0
    %v322 = vsel %vm274, 1, 0
    %v323 = vsel %vm275, 1, 0
    %v324 = vsel %vm276, 1, 0
    %v325 = vsel %vm277, 1, 0
    %v326 = vsel %vm278, 1, 0
    %vm327 = vcmp.eq.s32.totalorder %v311, 1
    %vm328 = vcmp.eq.s32.totalorder %v312, 1
    %vm329 = vcmp.eq.s32.totalorder %v313, 1
    %vm330 = vcmp.eq.s32.totalorder %v314, 1
    %vm331 = vcmp.eq.s32.totalorder %v315, 1
    %vm332 = vcmp.eq.s32.totalorder %v316, 1
    %vm333 = vcmp.eq.s32.totalorder %v317, 1
    %vm334 = vcmp.eq.s32.totalorder %v318, 1
    %vm335 = vcmp.eq.s32.totalorder %v319, 1
    %vm336 = vcmp.eq.s32.totalorder %v320, 1
    %vm337 = vcmp.eq.s32.totalorder %v321, 1
    %vm338 = vcmp.eq.s32.totalorder %v322, 1
    %vm339 = vcmp.eq.s32.totalorder %v323, 1
    %vm340 = vcmp.eq.s32.totalorder %v324, 1
    %vm341 = vcmp.eq.s32.totalorder %v325, 1
    %vm342 = vcmp.eq.s32.totalorder %v326, 1
    %vm343 = vmand %vm327, %vm295
    %vm344 = vmand %vm328, %vm296
    %vm345 = vmand %vm329, %vm297
    %vm346 = vmand %vm330, %vm298
    %vm347 = vmand %vm331, %vm299
    %vm348 = vmand %vm332, %vm300
    %vm349 = vmand %vm333, %vm301
    %vm350 = vmand %vm334, %vm302
    %vm351 = vmand %vm335, %vm303
    %vm352 = vmand %vm336, %vm304
    %vm353 = vmand %vm337, %vm305
    %vm354 = vmand %vm338, %vm306
    %vm355 = vmand %vm339, %vm307
    %vm356 = vmand %vm340, %vm308
    %vm357 = vmand %vm341, %vm309
    %vm358 = vmand %vm342, %vm310
    %v359 = vsel %vm343, 1.0, 0.0
    %v360 = vsel %vm344, 1.0, 0.0
    %v361 = vsel %vm345, 1.0, 0.0
    %v362 = vsel %vm346, 1.0, 0.0
    %v363 = vsel %vm347, 1.0, 0.0
    %v364 = vsel %vm348, 1.0, 0.0
    %v365 = vsel %vm349, 1.0, 0.0
    %v366 = vsel %vm350, 1.0, 0.0
    %v367 = vsel %vm351, 1.0, 0.0
    %v368 = vsel %vm352, 1.0, 0.0
    %v369 = vsel %vm353, 1.0, 0.0
    %v370 = vsel %vm354, 1.0, 0.0
    %v371 = vsel %vm355, 1.0, 0.0
    %v372 = vsel %vm356, 1.0, 0.0
    %v373 = vsel %vm357, 1.0, 0.0
    %v374 = vsel %vm358, 1.0, 0.0
    %v375 = vld [vmem:[%s1] sm:$0x7]
    %vm376 = vcmask 23552
    %v378 = vsel %vm376, %v51, 0
    %v381 = vsel %vm376, %v52, 0
    %v384 = vsel %vm376, %v53, 0
    %v387 = vsel %vm376, %v54, 0
    %v390 = vsel %vm376, %v55, 0
    %v393 = vsel %vm376, %v56, 0
    %v396 = vsel %vm376, %v57, 0
    %v399 = vsel %vm376, %v58, 0
    %v402 = vsel %vm376, %v59, 0
    %v405 = vsel %vm376, %v60, 0
    %v408 = vsel %vm376, %v61, 0
    %v411 = vsel %vm376, %v62, 0
    %v414 = vsel %vm376, %v63, 0
    %v417 = vsel %vm376, %v64, 0
    %v420 = vsel %vm376, %v65, 0
    %v423 = vsel %vm376, %v66, 0
    %vm425 = vcmask 1042432
    %v427 = vsel %vm425, %v375, 0
    %429 = vmatpush.msra.mxu0 0.0
    %430 = vmatpush.msra.mxu0 0.0
    %431 = vmatpush.msra.mxu0 0.0
    %432 = vmatpush.msra.mxu0 0.0
    %433 = vmatpush.msra.mxu0 0.0
    %434 = vmatpush.msra.mxu0 0.0
    %435 = vmatpush.msra.mxu0 0.0
    %436 = vmatpush.msra.mxu0 0.0
    %437 = vmatpush.msra.mxu0 0.0
    %438 = vmatpush.msra.mxu0 0.0
    %439 = vmatpush.msra.mxu0 0.0
    %440 = vmatpush.msra.mxu0 0.0
    %441 = vmatpush.msra.mxu0 0.0
    %442 = vmatpush.msra.mxu0 0.0
    %443 = vmatpush.msra.mxu0 0.0
    %444 = vmatpush.msra.mxu0 %v427
    %445 = vmatmul.f32.gmra.mxu0 %v378
    %v446 = vpop.f32.mrf.mxu0
    %v447 = vadd.f32 0.0, %v446
    %448 = vmatmul.f32.gmra.mxu0 %v381
    %v449 = vpop.f32.mrf.mxu0
    %v450 = vadd.f32 0.0, %v449
    %451 = vmatmul.f32.gmra.mxu0 %v384
    %v452 = vpop.f32.mrf.mxu0
    %v453 = vadd.f32 0.0, %v452
    %454 = vmatmul.f32.gmra.mxu0 %v387
    %v455 = vpop.f32.mrf.mxu0
    %v456 = vadd.f32 0.0, %v455
    %457 = vmatmul.f32.gmra.mxu0 %v390
    %v458 = vpop.f32.mrf.mxu0
    %v459 = vadd.f32 0.0, %v458
    %460 = vmatmul.f32.gmra.mxu0 %v393
    %v461 = vpop.f32.mrf.mxu0
    %v462 = vadd.f32 0.0, %v461
    %463 = vmatmul.f32.gmra.mxu0 %v396
    %v464 = vpop.f32.mrf.mxu0
    %v465 = vadd.f32 0.0, %v464
    %466 = vmatmul.f32.gmra.mxu0 %v399
    %v467 = vpop.f32.mrf.mxu0
    %v468 = vadd.f32 0.0, %v467
    %469 = vmatmul.f32.gmra.mxu0 %v402
    %v470 = vpop.f32.mrf.mxu0
    %v471 = vadd.f32 0.0, %v470
    %472 = vmatmul.f32.gmra.mxu0 %v405
    %v473 = vpop.f32.mrf.mxu0
    %v474 = vadd.f32 0.0, %v473
    %475 = vmatmul.f32.gmra.mxu0 %v408
    %v476 = vpop.f32.mrf.mxu0
    %v477 = vadd.f32 0.0, %v476
    %478 = vmatmul.f32.gmra.mxu0 %v411
    %v479 = vpop.f32.mrf.mxu0
    %v480 = vadd.f32 0.0, %v479
    %481 = vmatmul.f32.gmra.mxu0 %v414
    %v482 = vpop.f32.mrf.mxu0
    %v483 = vadd.f32 0.0, %v482
    %484 = vmatmul.f32.gmra.mxu0 %v417
    %v485 = vpop.f32.mrf.mxu0
    %v486 = vadd.f32 0.0, %v485
    %487 = vmatmul.f32.gmra.mxu0 %v420
    %v488 = vpop.f32.mrf.mxu0
    %v489 = vadd.f32 0.0, %v488
    %490 = vmatmul.f32.gmra.mxu0 %v423
    %v491 = vpop.f32.mrf.mxu0
    %v492 = vadd.f32 0.0, %v491
    %493 = vdwg.mxu0
    %vm494 = vcmp.ge.s32.totalorder %v117, 0
    %vm495 = vcmp.ge.s32.totalorder %v118, 0
    %vm496 = vcmp.ge.s32.totalorder %v119, 0
    %vm497 = vcmp.ge.s32.totalorder %v120, 0
    %vm498 = vcmp.ge.s32.totalorder %v121, 0
    %vm499 = vcmp.ge.s32.totalorder %v122, 0
    %vm500 = vcmp.ge.s32.totalorder %v123, 0
    %vm501 = vcmp.ge.s32.totalorder %v124, 0
    %vm502 = vcmp.ge.s32.totalorder %v125, 0
    %vm503 = vcmp.ge.s32.totalorder %v126, 0
    %vm504 = vcmp.ge.s32.totalorder %v127, 0
    %vm505 = vcmp.ge.s32.totalorder %v128, 0
    %vm506 = vcmp.ge.s32.totalorder %v129, 0
    %vm507 = vcmp.ge.s32.totalorder %v130, 0
    %vm508 = vcmp.ge.s32.totalorder %v131, 0
    %vm509 = vcmp.ge.s32.totalorder %v132, 0
    %vm510 = vmand %vm183, %vm494
    %vm511 = vmand %vm184, %vm495
    %vm512 = vmand %vm185, %vm496
    %vm513 = vmand %vm186, %vm497
    %vm514 = vmand %vm187, %vm498
    %vm515 = vmand %vm188, %vm499
    %vm516 = vmand %vm189, %vm500
    %vm517 = vmand %vm190, %vm501
    %vm518 = vmand %vm191, %vm502
    %vm519 = vmand %vm192, %vm503
    %vm520 = vmand %vm193, %vm504
    %vm521 = vmand %vm194, %vm505
    %vm522 = vmand %vm195, %vm506
    %vm523 = vmand %vm196, %vm507
    %vm524 = vmand %vm197, %vm508
    %vm525 = vmand %vm198, %vm509
    %vm526 = vcmp.lt.s32.totalorder %v117, 8
    %vm527 = vcmp.lt.s32.totalorder %v118, 8
    %vm528 = vcmp.lt.s32.totalorder %v119, 8
    %vm529 = vcmp.lt.s32.totalorder %v120, 8
    %vm530 = vcmp.lt.s32.totalorder %v121, 8
    %vm531 = vcmp.lt.s32.totalorder %v122, 8
    %vm532 = vcmp.lt.s32.totalorder %v123, 8
    %vm533 = vcmp.lt.s32.totalorder %v124, 8
    %vm534 = vcmp.lt.s32.totalorder %v125, 8
    %vm535 = vcmp.lt.s32.totalorder %v126, 8
    %vm536 = vcmp.lt.s32.totalorder %v127, 8
    %vm537 = vcmp.lt.s32.totalorder %v128, 8
    %vm538 = vcmp.lt.s32.totalorder %v129, 8
    %vm539 = vcmp.lt.s32.totalorder %v130, 8
    %vm540 = vcmp.lt.s32.totalorder %v131, 8
    %vm541 = vcmp.lt.s32.totalorder %v132, 8
    %vm542 = vmand %vm510, %vm526
    %vm543 = vmand %vm511, %vm527
    %vm544 = vmand %vm512, %vm528
    %vm545 = vmand %vm513, %vm529
    %vm546 = vmand %vm514, %vm530
    %vm547 = vmand %vm515, %vm531
    %vm548 = vmand %vm516, %vm532
    %vm549 = vmand %vm517, %vm533
    %vm550 = vmand %vm518, %vm534
    %vm551 = vmand %vm519, %vm535
    %vm552 = vmand %vm520, %vm536
    %vm553 = vmand %vm521, %vm537
    %vm554 = vmand %vm522, %vm538
    %vm555 = vmand %vm523, %vm539
    %vm556 = vmand %vm524, %vm540
    %vm557 = vmand %vm525, %vm541
    %v558 = vadd.s32 %v69, 4294967288
    %v559 = vadd.s32 %v70, 4294967288
    %v560 = vadd.s32 %v71, 4294967288
    %v561 = vadd.s32 %v72, 4294967288
    %v562 = vadd.s32 %v73, 4294967288
    %v563 = vadd.s32 %v74, 4294967288
    %v564 = vadd.s32 %v75, 4294967288
    %v565 = vadd.s32 %v76, 4294967288
    %v566 = vadd.s32 %v77, 4294967288
    %v567 = vadd.s32 %v78, 4294967288
    %v568 = vadd.s32 %v79, 4294967288
    %v569 = vadd.s32 %v80, 4294967288
    %v570 = vadd.s32 %v81, 4294967288
    %v571 = vadd.s32 %v82, 4294967288
    %v572 = vadd.s32 %v83, 4294967288
    %v573 = vadd.s32 %v84, 4294967288
    %vm574 = vcmp.eq.s32.totalorder %v134, %v558
    %vm575 = vcmp.eq.s32.totalorder %v134, %v559
    %vm576 = vcmp.eq.s32.totalorder %v134, %v560
    %vm577 = vcmp.eq.s32.totalorder %v134, %v561
    %vm578 = vcmp.eq.s32.totalorder %v134, %v562
    %vm579 = vcmp.eq.s32.totalorder %v134, %v563
    %vm580 = vcmp.eq.s32.totalorder %v134, %v564
    %vm581 = vcmp.eq.s32.totalorder %v134, %v565
    %vm582 = vcmp.eq.s32.totalorder %v134, %v566
    %vm583 = vcmp.eq.s32.totalorder %v134, %v567
    %vm584 = vcmp.eq.s32.totalorder %v134, %v568
    %vm585 = vcmp.eq.s32.totalorder %v134, %v569
    %vm586 = vcmp.eq.s32.totalorder %v134, %v570
    %vm587 = vcmp.eq.s32.totalorder %v134, %v571
    %vm588 = vcmp.eq.s32.totalorder %v134, %v572
    %vm589 = vcmp.eq.s32.totalorder %v134, %v573
    %v590 = vsel %vm542, 1, 0
    %v591 = vsel %vm543, 1, 0
    %v592 = vsel %vm544, 1, 0
    %v593 = vsel %vm545, 1, 0
    %v594 = vsel %vm546, 1, 0
    %v595 = vsel %vm547, 1, 0
    %v596 = vsel %vm548, 1, 0
    %v597 = vsel %vm549, 1, 0
    %v598 = vsel %vm550, 1, 0
    %v599 = vsel %vm551, 1, 0
    %v600 = vsel %vm552, 1, 0
    %v601 = vsel %vm553, 1, 0
    %v602 = vsel %vm554, 1, 0
    %v603 = vsel %vm555, 1, 0
    %v604 = vsel %vm556, 1, 0
    %v605 = vsel %vm557, 1, 0
    %vm606 = vcmp.eq.s32.totalorder %v590, 1
    %vm607 = vcmp.eq.s32.totalorder %v591, 1
    %vm608 = vcmp.eq.s32.totalorder %v592, 1
    %vm609 = vcmp.eq.s32.totalorder %v593, 1
    %vm610 = vcmp.eq.s32.totalorder %v594, 1
    %vm611 = vcmp.eq.s32.totalorder %v595, 1
    %vm612 = vcmp.eq.s32.totalorder %v596, 1
    %vm613 = vcmp.eq.s32.totalorder %v597, 1
    %vm614 = vcmp.eq.s32.totalorder %v598, 1
    %vm615 = vcmp.eq.s32.totalorder %v599, 1
    %vm616 = vcmp.eq.s32.totalorder %v600, 1
    %vm617 = vcmp.eq.s32.totalorder %v601, 1
    %vm618 = vcmp.eq.s32.totalorder %v602, 1
    %vm619 = vcmp.eq.s32.totalorder %v603, 1
    %vm620 = vcmp.eq.s32.totalorder %v604, 1
    %vm621 = vcmp.eq.s32.totalorder %v605, 1
    %vm622 = vmand %vm606, %vm574
    %vm623 = vmand %vm607, %vm575
    %vm624 = vmand %vm608, %vm576
    %vm625 = vmand %vm609, %vm577
    %vm626 = vmand %vm610, %vm578
    %vm627 = vmand %vm611, %vm579
    %vm628 = vmand %vm612, %vm580
    %vm629 = vmand %vm613, %vm581
    %vm630 = vmand %vm614, %vm582
    %vm631 = vmand %vm615, %vm583
    %vm632 = vmand %vm616, %vm584
    %vm633 = vmand %vm617, %vm585
    %vm634 = vmand %vm618, %vm586
    %vm635 = vmand %vm619, %vm587
    %vm636 = vmand %vm620, %vm588
    %vm637 = vmand %vm621, %vm589
    %v638 = vsel %vm622, 1.0, 0.0
    %v639 = vsel %vm623, 1.0, 0.0
    %v640 = vsel %vm624, 1.0, 0.0
    %v641 = vsel %vm625, 1.0, 0.0
    %v642 = vsel %vm626, 1.0, 0.0
    %v643 = vsel %vm627, 1.0, 0.0
    %v644 = vsel %vm628, 1.0, 0.0
    %v645 = vsel %vm629, 1.0, 0.0
    %v646 = vsel %vm630, 1.0, 0.0
    %v647 = vsel %vm631, 1.0, 0.0
    %v648 = vsel %vm632, 1.0, 0.0
    %v649 = vsel %vm633, 1.0, 0.0
    %v650 = vsel %vm634, 1.0, 0.0
    %v651 = vsel %vm635, 1.0, 0.0
    %v652 = vsel %vm636, 1.0, 0.0
    %v653 = vsel %vm637, 1.0, 0.0
    %s654 = scalar_lea.vmem %s1, 4
    %v655 = vld [vmem:[%s654] sm:$0x7]
    %v657 = vsel %vm425, %v655, 0
    %659 = vmatpush.msra.mxu0 0.0
    %660 = vmatpush.msra.mxu0 0.0
    %661 = vmatpush.msra.mxu0 0.0
    %662 = vmatpush.msra.mxu0 0.0
    %663 = vmatpush.msra.mxu0 0.0
    %664 = vmatpush.msra.mxu0 0.0
    %665 = vmatpush.msra.mxu0 0.0
    %666 = vmatpush.msra.mxu0 0.0
    %667 = vmatpush.msra.mxu0 0.0
    %668 = vmatpush.msra.mxu0 0.0
    %669 = vmatpush.msra.mxu0 0.0
    %670 = vmatpush.msra.mxu0 0.0
    %671 = vmatpush.msra.mxu0 0.0
    %672 = vmatpush.msra.mxu0 0.0
    %673 = vmatpush.msra.mxu0 0.0
    %674 = vmatpush.msra.mxu0 %v657
    %675 = vmatmul.f32.gmra.mxu0 %v378
    %v676 = vpop.f32.mrf.mxu0
    %v677 = vadd.f32 0.0, %v676
    %678 = vmatmul.f32.gmra.mxu0 %v381
    %v679 = vpop.f32.mrf.mxu0
    %v680 = vadd.f32 0.0, %v679
    %681 = vmatmul.f32.gmra.mxu0 %v384
    %v682 = vpop.f32.mrf.mxu0
    %v683 = vadd.f32 0.0, %v682
    %684 = vmatmul.f32.gmra.mxu0 %v387
    %v685 = vpop.f32.mrf.mxu0
    %v686 = vadd.f32 0.0, %v685
    %687 = vmatmul.f32.gmra.mxu0 %v390
    %v688 = vpop.f32.mrf.mxu0
    %v689 = vadd.f32 0.0, %v688
    %690 = vmatmul.f32.gmra.mxu0 %v393
    %v691 = vpop.f32.mrf.mxu0
    %v692 = vadd.f32 0.0, %v691
    %693 = vmatmul.f32.gmra.mxu0 %v396
    %v694 = vpop.f32.mrf.mxu0
    %v695 = vadd.f32 0.0, %v694
    %696 = vmatmul.f32.gmra.mxu0 %v399
    %v697 = vpop.f32.mrf.mxu0
    %v698 = vadd.f32 0.0, %v697
    %699 = vmatmul.f32.gmra.mxu0 %v402
    %v700 = vpop.f32.mrf.mxu0
    %v701 = vadd.f32 0.0, %v700
    %702 = vmatmul.f32.gmra.mxu0 %v405
    %v703 = vpop.f32.mrf.mxu0
    %v704 = vadd.f32 0.0, %v703
    %705 = vmatmul.f32.gmra.mxu0 %v408
    %v706 = vpop.f32.mrf.mxu0
    %v707 = vadd.f32 0.0, %v706
    %708 = vmatmul.f32.gmra.mxu0 %v411
    %v709 = vpop.f32.mrf.mxu0
    %v710 = vadd.f32 0.0, %v709
    %711 = vmatmul.f32.gmra.mxu0 %v414
    %v712 = vpop.f32.mrf.mxu0
    %v713 = vadd.f32 0.0, %v712
    %714 = vmatmul.f32.gmra.mxu0 %v417
    %v715 = vpop.f32.mrf.mxu0
    %v716 = vadd.f32 0.0, %v715
    %717 = vmatmul.f32.gmra.mxu0 %v420
    %v718 = vpop.f32.mrf.mxu0
    %v719 = vadd.f32 0.0, %v718
    %720 = vmatmul.f32.gmra.mxu0 %v423
    %v721 = vpop.f32.mrf.mxu0
    %v722 = vadd.f32 0.0, %v721
    %723 = vdwg.mxu0
    %724 = vmatpush.msra.mxu0 %v722
    %725 = vmatpush.msra.mxu0 %v719
    %726 = vmatpush.msra.mxu0 %v716
    %727 = vmatpush.msra.mxu0 %v713
    %728 = vmatpush.msra.mxu0 %v710
    %729 = vmatpush.msra.mxu0 %v707
    %730 = vmatpush.msra.mxu0 %v704
    %731 = vmatpush.msra.mxu0 %v701
    %732 = vmatpush.msra.mxu0 %v698
    %733 = vmatpush.msra.mxu0 %v695
    %734 = vmatpush.msra.mxu0 %v692
    %735 = vmatpush.msra.mxu0 %v689
    %736 = vmatpush.msra.mxu0 %v686
    %737 = vmatpush.msra.mxu0 %v683
    %738 = vmatpush.msra.mxu0 %v680
    %739 = vmatpush.msra.mxu0 %v677
    %740 = vmatmul.f32.gmra.mxu0 %v638
    %v741 = vpop.f32.mrf.mxu0
    %v742 = vadd.f32 0.0, %v741
    %743 = vmatmul.f32.gmra.mxu0 %v639
    %v744 = vpop.f32.mrf.mxu0
    %v745 = vadd.f32 0.0, %v744
    %746 = vmatmul.f32.gmra.mxu0 %v640
    %v747 = vpop.f32.mrf.mxu0
    %v748 = vadd.f32 0.0, %v747
    %749 = vmatmul.f32.gmra.mxu0 %v641
    %v750 = vpop.f32.mrf.mxu0
    %v751 = vadd.f32 0.0, %v750
    %752 = vmatmul.f32.gmra.mxu0 %v642
    %v753 = vpop.f32.mrf.mxu0
    %v754 = vadd.f32 0.0, %v753
    %755 = vmatmul.f32.gmra.mxu0 %v643
    %v756 = vpop.f32.mrf.mxu0
    %v757 = vadd.f32 0.0, %v756
    %758 = vmatmul.f32.gmra.mxu0 %v644
    %v759 = vpop.f32.mrf.mxu0
    %v760 = vadd.f32 0.0, %v759
    %761 = vmatmul.f32.gmra.mxu0 %v645
    %v762 = vpop.f32.mrf.mxu0
    %v763 = vadd.f32 0.0, %v762
    %764 = vmatmul.f32.gmra.mxu0 %v646
    %v765 = vpop.f32.mrf.mxu0
    %v766 = vadd.f32 0.0, %v765
    %767 = vmatmul.f32.gmra.mxu0 %v647
    %v768 = vpop.f32.mrf.mxu0
    %v769 = vadd.f32 0.0, %v768
    %770 = vmatmul.f32.gmra.mxu0 %v648
    %v771 = vpop.f32.mrf.mxu0
    %v772 = vadd.f32 0.0, %v771
    %773 = vmatmul.f32.gmra.mxu0 %v649
    %v774 = vpop.f32.mrf.mxu0
    %v775 = vadd.f32 0.0, %v774
    %776 = vmatmul.f32.gmra.mxu0 %v650
    %v777 = vpop.f32.mrf.mxu0
    %v778 = vadd.f32 0.0, %v777
    %779 = vmatmul.f32.gmra.mxu0 %v651
    %v780 = vpop.f32.mrf.mxu0
    %v781 = vadd.f32 0.0, %v780
    %782 = vmatmul.f32.gmra.mxu0 %v652
    %v783 = vpop.f32.mrf.mxu0
    %v784 = vadd.f32 0.0, %v783
    %785 = vmatmul.f32.gmra.mxu0 %v653
    %v786 = vpop.f32.mrf.mxu0
    %v787 = vadd.f32 0.0, %v786
    %788 = vdwg.mxu0
    %789 = vmatpush.msra.mxu0 %v492
    %790 = vmatpush.msra.mxu0 %v489
    %791 = vmatpush.msra.mxu0 %v486
    %792 = vmatpush.msra.mxu0 %v483
    %793 = vmatpush.msra.mxu0 %v480
    %794 = vmatpush.msra.mxu0 %v477
    %795 = vmatpush.msra.mxu0 %v474
    %796 = vmatpush.msra.mxu0 %v471
    %797 = vmatpush.msra.mxu0 %v468
    %798 = vmatpush.msra.mxu0 %v465
    %799 = vmatpush.msra.mxu0 %v462
    %800 = vmatpush.msra.mxu0 %v459
    %801 = vmatpush.msra.mxu0 %v456
    %802 = vmatpush.msra.mxu0 %v453
    %803 = vmatpush.msra.mxu0 %v450
    %804 = vmatpush.msra.mxu0 %v447
    %805 = vmatmul.f32.gmra.mxu0 %v359
    %v806 = vpop.f32.mrf.mxu0
    %v807 = vadd.f32 %v742, %v806
    %808 = vmatmul.f32.gmra.mxu0 %v360
    %v809 = vpop.f32.mrf.mxu0
    %v810 = vadd.f32 %v745, %v809
    %811 = vmatmul.f32.gmra.mxu0 %v361
    %v812 = vpop.f32.mrf.mxu0
    %v813 = vadd.f32 %v748, %v812
    %814 = vmatmul.f32.gmra.mxu0 %v362
    %v815 = vpop.f32.mrf.mxu0
    %v816 = vadd.f32 %v751, %v815
    %817 = vmatmul.f32.gmra.mxu0 %v363
    %v818 = vpop.f32.mrf.mxu0
    %v819 = vadd.f32 %v754, %v818
    %820 = vmatmul.f32.gmra.mxu0 %v364
    %v821 = vpop.f32.mrf.mxu0
    %v822 = vadd.f32 %v757, %v821
    %823 = vmatmul.f32.gmra.mxu0 %v365
    %v824 = vpop.f32.mrf.mxu0
    %v825 = vadd.f32 %v760, %v824
    %826 = vmatmul.f32.gmra.mxu0 %v366
    %v827 = vpop.f32.mrf.mxu0
    %v828 = vadd.f32 %v763, %v827
    %829 = vmatmul.f32.gmra.mxu0 %v367
    %v830 = vpop.f32.mrf.mxu0
    %v831 = vadd.f32 %v766, %v830
    %832 = vmatmul.f32.gmra.mxu0 %v368
    %v833 = vpop.f32.mrf.mxu0
    %v834 = vadd.f32 %v769, %v833
    %835 = vmatmul.f32.gmra.mxu0 %v369
    %v836 = vpop.f32.mrf.mxu0
    %v837 = vadd.f32 %v772, %v836
    %838 = vmatmul.f32.gmra.mxu0 %v370
    %v839 = vpop.f32.mrf.mxu0
    %v840 = vadd.f32 %v775, %v839
    %841 = vmatmul.f32.gmra.mxu0 %v371
    %v842 = vpop.f32.mrf.mxu0
    %v843 = vadd.f32 %v778, %v842
    %844 = vmatmul.f32.gmra.mxu0 %v372
    %v845 = vpop.f32.mrf.mxu0
    %v846 = vadd.f32 %v781, %v845
    %847 = vmatmul.f32.gmra.mxu0 %v373
    %v848 = vpop.f32.mrf.mxu0
    %v849 = vadd.f32 %v784, %v848
    %850 = vmatmul.f32.gmra.mxu0 %v374
    %v851 = vpop.f32.mrf.mxu0
    %v852 = vadd.f32 %v787, %v851
    %853 = vdwg.mxu0
    %v854 = vadd.s32 %v117, 1
    %v855 = vadd.s32 %v118, 1
    %v856 = vadd.s32 %v119, 1
    %v857 = vadd.s32 %v120, 1
    %v858 = vadd.s32 %v121, 1
    %v859 = vadd.s32 %v122, 1
    %v860 = vadd.s32 %v123, 1
    %v861 = vadd.s32 %v124, 1
    %v862 = vadd.s32 %v125, 1
    %v863 = vadd.s32 %v126, 1
    %v864 = vadd.s32 %v127, 1
    %v865 = vadd.s32 %v128, 1
    %v866 = vadd.s32 %v129, 1
    %v867 = vadd.s32 %v130, 1
    %v868 = vadd.s32 %v131, 1
    %v869 = vadd.s32 %v132, 1
    %vm870 = vcmp.ge.s32.totalorder %v854, 0
    %vm871 = vcmp.ge.s32.totalorder %v855, 0
    %vm872 = vcmp.ge.s32.totalorder %v856, 0
    %vm873 = vcmp.ge.s32.totalorder %v857, 0
    %vm874 = vcmp.ge.s32.totalorder %v858, 0
    %vm875 = vcmp.ge.s32.totalorder %v859, 0
    %vm876 = vcmp.ge.s32.totalorder %v860, 0
    %vm877 = vcmp.ge.s32.totalorder %v861, 0
    %vm878 = vcmp.ge.s32.totalorder %v862, 0
    %vm879 = vcmp.ge.s32.totalorder %v863, 0
    %vm880 = vcmp.ge.s32.totalorder %v864, 0
    %vm881 = vcmp.ge.s32.totalorder %v865, 0
    %vm882 = vcmp.ge.s32.totalorder %v866, 0
    %vm883 = vcmp.ge.s32.totalorder %v867, 0
    %vm884 = vcmp.ge.s32.totalorder %v868, 0
    %vm885 = vcmp.ge.s32.totalorder %v869, 0
    %vm886 = vmand %vm183, %vm870
    %vm887 = vmand %vm184, %vm871
    %vm888 = vmand %vm185, %vm872
    %vm889 = vmand %vm186, %vm873
    %vm890 = vmand %vm187, %vm874
    %vm891 = vmand %vm188, %vm875
    %vm892 = vmand %vm189, %vm876
    %vm893 = vmand %vm190, %vm877
    %vm894 = vmand %vm191, %vm878
    %vm895 = vmand %vm192, %vm879
    %vm896 = vmand %vm193, %vm880
    %vm897 = vmand %vm194, %vm881
    %vm898 = vmand %vm195, %vm882
    %vm899 = vmand %vm196, %vm883
    %vm900 = vmand %vm197, %vm884
    %vm901 = vmand %vm198, %vm885
    %vm902 = vcmp.lt.s32.totalorder %v854, 8
    %vm903 = vcmp.lt.s32.totalorder %v855, 8
    %vm904 = vcmp.lt.s32.totalorder %v856, 8
    %vm905 = vcmp.lt.s32.totalorder %v857, 8
    %vm906 = vcmp.lt.s32.totalorder %v858, 8
    %vm907 = vcmp.lt.s32.totalorder %v859, 8
    %vm908 = vcmp.lt.s32.totalorder %v860, 8
    %vm909 = vcmp.lt.s32.totalorder %v861, 8
    %vm910 = vcmp.lt.s32.totalorder %v862, 8
    %vm911 = vcmp.lt.s32.totalorder %v863, 8
    %vm912 = vcmp.lt.s32.totalorder %v864, 8
    %vm913 = vcmp.lt.s32.totalorder %v865, 8
    %vm914 = vcmp.lt.s32.totalorder %v866, 8
    %vm915 = vcmp.lt.s32.totalorder %v867, 8
    %vm916 = vcmp.lt.s32.totalorder %v868, 8
    %vm917 = vcmp.lt.s32.totalorder %v869, 8
    %vm918 = vmand %vm886, %vm902
    %vm919 = vmand %vm887, %vm903
    %vm920 = vmand %vm888, %vm904
    %vm921 = vmand %vm889, %vm905
    %vm922 = vmand %vm890, %vm906
    %vm923 = vmand %vm891, %vm907
    %vm924 = vmand %vm892, %vm908
    %vm925 = vmand %vm893, %vm909
    %vm926 = vmand %vm894, %vm910
    %vm927 = vmand %vm895, %vm911
    %vm928 = vmand %vm896, %vm912
    %vm929 = vmand %vm897, %vm913
    %vm930 = vmand %vm898, %vm914
    %vm931 = vmand %vm899, %vm915
    %vm932 = vmand %vm900, %vm916
    %vm933 = vmand %vm901, %vm917
    %v934 = vadd.s32 %v69, 4294967289
    %v935 = vadd.s32 %v70, 4294967289
    %v936 = vadd.s32 %v71, 4294967289
    %v937 = vadd.s32 %v72, 4294967289
    %v938 = vadd.s32 %v73, 4294967289
    %v939 = vadd.s32 %v74, 4294967289
    %v940 = vadd.s32 %v75, 4294967289
    %v941 = vadd.s32 %v76, 4294967289
    %v942 = vadd.s32 %v77, 4294967289
    %v943 = vadd.s32 %v78, 4294967289
    %v944 = vadd.s32 %v79, 4294967289
    %v945 = vadd.s32 %v80, 4294967289
    %v946 = vadd.s32 %v81, 4294967289
    %v947 = vadd.s32 %v82, 4294967289
    %v948 = vadd.s32 %v83, 4294967289
    %v949 = vadd.s32 %v84, 4294967289
    %vm950 = vcmp.eq.s32.totalorder %v134, %v934
    %vm951 = vcmp.eq.s32.totalorder %v134, %v935
    %vm952 = vcmp.eq.s32.totalorder %v134, %v936
    %vm953 = vcmp.eq.s32.totalorder %v134, %v937
    %vm954 = vcmp.eq.s32.totalorder %v134, %v938
    %vm955 = vcmp.eq.s32.totalorder %v134, %v939
    %vm956 = vcmp.eq.s32.totalorder %v134, %v940
    %vm957 = vcmp.eq.s32.totalorder %v134, %v941
    %vm958 = vcmp.eq.s32.totalorder %v134, %v942
    %vm959 = vcmp.eq.s32.totalorder %v134, %v943
    %vm960 = vcmp.eq.s32.totalorder %v134, %v944
    %vm961 = vcmp.eq.s32.totalorder %v134, %v945
    %vm962 = vcmp.eq.s32.totalorder %v134, %v946
    %vm963 = vcmp.eq.s32.totalorder %v134, %v947
    %vm964 = vcmp.eq.s32.totalorder %v134, %v948
    %vm965 = vcmp.eq.s32.totalorder %v134, %v949
    %v966 = vsel %vm918, 1, 0
    %v967 = vsel %vm919, 1, 0
    %v968 = vsel %vm920, 1, 0
    %v969 = vsel %vm921, 1, 0
    %v970 = vsel %vm922, 1, 0
    %v971 = vsel %vm923, 1, 0
    %v972 = vsel %vm924, 1, 0
    %v973 = vsel %vm925, 1, 0
    %v974 = vsel %vm926, 1, 0
    %v975 = vsel %vm927, 1, 0
    %v976 = vsel %vm928, 1, 0
    %v977 = vsel %vm929, 1, 0
    %v978 = vsel %vm930, 1, 0
    %v979 = vsel %vm931, 1, 0
    %v980 = vsel %vm932, 1, 0
    %v981 = vsel %vm933, 1, 0
    %vm982 = vcmp.eq.s32.totalorder %v966, 1
    %vm983 = vcmp.eq.s32.totalorder %v967, 1
    %vm984 = vcmp.eq.s32.totalorder %v968, 1
    %vm985 = vcmp.eq.s32.totalorder %v969, 1
    %vm986 = vcmp.eq.s32.totalorder %v970, 1
    %vm987 = vcmp.eq.s32.totalorder %v971, 1
    %vm988 = vcmp.eq.s32.totalorder %v972, 1
    %vm989 = vcmp.eq.s32.totalorder %v973, 1
    %vm990 = vcmp.eq.s32.totalorder %v974, 1
    %vm991 = vcmp.eq.s32.totalorder %v975, 1
    %vm992 = vcmp.eq.s32.totalorder %v976, 1
    %vm993 = vcmp.eq.s32.totalorder %v977, 1
    %vm994 = vcmp.eq.s32.totalorder %v978, 1
    %vm995 = vcmp.eq.s32.totalorder %v979, 1
    %vm996 = vcmp.eq.s32.totalorder %v980, 1
    %vm997 = vcmp.eq.s32.totalorder %v981, 1
    %vm998 = vmand %vm982, %vm950
    %vm999 = vmand %vm983, %vm951
    %vm1000 = vmand %vm984, %vm952
    %vm1001 = vmand %vm985, %vm953
    %vm1002 = vmand %vm986, %vm954
    %vm1003 = vmand %vm987, %vm955
    %vm1004 = vmand %vm988, %vm956
    %vm1005 = vmand %vm989, %vm957
    %vm1006 = vmand %vm990, %vm958
    %vm1007 = vmand %vm991, %vm959
    %vm1008 = vmand %vm992, %vm960
    %vm1009 = vmand %vm993, %vm961
    %vm1010 = vmand %vm994, %vm962
    %vm1011 = vmand %vm995, %vm963
    %vm1012 = vmand %vm996, %vm964
    %vm1013 = vmand %vm997, %vm965
    %v1014 = vsel %vm998, 1.0, 0.0
    %v1015 = vsel %vm999, 1.0, 0.0
    %v1016 = vsel %vm1000, 1.0, 0.0
    %v1017 = vsel %vm1001, 1.0, 0.0
    %v1018 = vsel %vm1002, 1.0, 0.0
    %v1019 = vsel %vm1003, 1.0, 0.0
    %v1020 = vsel %vm1004, 1.0, 0.0
    %v1021 = vsel %vm1005, 1.0, 0.0
    %v1022 = vsel %vm1006, 1.0, 0.0
    %v1023 = vsel %vm1007, 1.0, 0.0
    %v1024 = vsel %vm1008, 1.0, 0.0
    %v1025 = vsel %vm1009, 1.0, 0.0
    %v1026 = vsel %vm1010, 1.0, 0.0
    %v1027 = vsel %vm1011, 1.0, 0.0
    %v1028 = vsel %vm1012, 1.0, 0.0
    %v1029 = vsel %vm1013, 1.0, 0.0
    %s1030 = scalar_lea.vmem %s1, 8
    %v1031 = vld [vmem:[%s1030] sm:$0x7]
    %v1033 = vsel %vm425, %v1031, 0
    %1035 = vmatpush.msra.mxu0 0.0
    %1036 = vmatpush.msra.mxu0 0.0
    %1037 = vmatpush.msra.mxu0 0.0
    %1038 = vmatpush.msra.mxu0 0.0
    %1039 = vmatpush.msra.mxu0 0.0
    %1040 = vmatpush.msra.mxu0 0.0
    %1041 = vmatpush.msra.mxu0 0.0
    %1042 = vmatpush.msra.mxu0 0.0
    %1043 = vmatpush.msra.mxu0 0.0
    %1044 = vmatpush.msra.mxu0 0.0
    %1045 = vmatpush.msra.mxu0 0.0
    %1046 = vmatpush.msra.mxu0 0.0
    %1047 = vmatpush.msra.mxu0 0.0
    %1048 = vmatpush.msra.mxu0 0.0
    %1049 = vmatpush.msra.mxu0 0.0
    %1050 = vmatpush.msra.mxu0 %v1033
    %1051 = vmatmul.f32.gmra.mxu0 %v378
    %v1052 = vpop.f32.mrf.mxu0
    %v1053 = vadd.f32 0.0, %v1052
    %1054 = vmatmul.f32.gmra.mxu0 %v381
    %v1055 = vpop.f32.mrf.mxu0
    %v1056 = vadd.f32 0.0, %v1055
    %1057 = vmatmul.f32.gmra.mxu0 %v384
    %v1058 = vpop.f32.mrf.mxu0
    %v1059 = vadd.f32 0.0, %v1058
    %1060 = vmatmul.f32.gmra.mxu0 %v387
    %v1061 = vpop.f32.mrf.mxu0
    %v1062 = vadd.f32 0.0, %v1061
    %1063 = vmatmul.f32.gmra.mxu0 %v390
    %v1064 = vpop.f32.mrf.mxu0
    %v1065 = vadd.f32 0.0, %v1064
    %1066 = vmatmul.f32.gmra.mxu0 %v393
    %v1067 = vpop.f32.mrf.mxu0
    %v1068 = vadd.f32 0.0, %v1067
    %1069 = vmatmul.f32.gmra.mxu0 %v396
    %v1070 = vpop.f32.mrf.mxu0
    %v1071 = vadd.f32 0.0, %v1070
    %1072 = vmatmul.f32.gmra.mxu0 %v399
    %v1073 = vpop.f32.mrf.mxu0
    %v1074 = vadd.f32 0.0, %v1073
    %1075 = vmatmul.f32.gmra.mxu0 %v402
    %v1076 = vpop.f32.mrf.mxu0
    %v1077 = vadd.f32 0.0, %v1076
    %1078 = vmatmul.f32.gmra.mxu0 %v405
    %v1079 = vpop.f32.mrf.mxu0
    %v1080 = vadd.f32 0.0, %v1079
    %1081 = vmatmul.f32.gmra.mxu0 %v408
    %v1082 = vpop.f32.mrf.mxu0
    %v1083 = vadd.f32 0.0, %v1082
    %1084 = vmatmul.f32.gmra.mxu0 %v411
    %v1085 = vpop.f32.mrf.mxu0
    %v1086 = vadd.f32 0.0, %v1085
    %1087 = vmatmul.f32.gmra.mxu0 %v414
    %v1088 = vpop.f32.mrf.mxu0
    %v1089 = vadd.f32 0.0, %v1088
    %1090 = vmatmul.f32.gmra.mxu0 %v417
    %v1091 = vpop.f32.mrf.mxu0
    %v1092 = vadd.f32 0.0, %v1091
    %1093 = vmatmul.f32.gmra.mxu0 %v420
    %v1094 = vpop.f32.mrf.mxu0
    %v1095 = vadd.f32 0.0, %v1094
    %1096 = vmatmul.f32.gmra.mxu0 %v423
    %v1097 = vpop.f32.mrf.mxu0
    %v1098 = vadd.f32 0.0, %v1097
    %1099 = vdwg.mxu0
    %1100 = vmatpush.msra.mxu0 %v1098
    %1101 = vmatpush.msra.mxu0 %v1095
    %1102 = vmatpush.msra.mxu0 %v1092
    %1103 = vmatpush.msra.mxu0 %v1089
    %1104 = vmatpush.msra.mxu0 %v1086
    %1105 = vmatpush.msra.mxu0 %v1083
    %1106 = vmatpush.msra.mxu0 %v1080
    %1107 = vmatpush.msra.mxu0 %v1077
    %1108 = vmatpush.msra.mxu0 %v1074
    %1109 = vmatpush.msra.mxu0 %v1071
    %1110 = vmatpush.msra.mxu0 %v1068
    %1111 = vmatpush.msra.mxu0 %v1065
    %1112 = vmatpush.msra.mxu0 %v1062
    %1113 = vmatpush.msra.mxu0 %v1059
    %1114 = vmatpush.msra.mxu0 %v1056
    %1115 = vmatpush.msra.mxu0 %v1053
    %1116 = vmatmul.f32.gmra.mxu0 %v1014
    %v1117 = vpop.f32.mrf.mxu0
    %v1118 = vadd.f32 0.0, %v1117
    %1119 = vmatmul.f32.gmra.mxu0 %v1015
    %v1120 = vpop.f32.mrf.mxu0
    %v1121 = vadd.f32 0.0, %v1120
    %1122 = vmatmul.f32.gmra.mxu0 %v1016
    %v1123 = vpop.f32.mrf.mxu0
    %v1124 = vadd.f32 0.0, %v1123
    %1125 = vmatmul.f32.gmra.mxu0 %v1017
    %v1126 = vpop.f32.mrf.mxu0
    %v1127 = vadd.f32 0.0, %v1126
    %1128 = vmatmul.f32.gmra.mxu0 %v1018
    %v1129 = vpop.f32.mrf.mxu0
    %v1130 = vadd.f32 0.0, %v1129
    %1131 = vmatmul.f32.gmra.mxu0 %v1019
    %v1132 = vpop.f32.mrf.mxu0
    %v1133 = vadd.f32 0.0, %v1132
    %1134 = vmatmul.f32.gmra.mxu0 %v1020
    %v1135 = vpop.f32.mrf.mxu0
    %v1136 = vadd.f32 0.0, %v1135
    %1137 = vmatmul.f32.gmra.mxu0 %v1021
    %v1138 = vpop.f32.mrf.mxu0
    %v1139 = vadd.f32 0.0, %v1138
    %1140 = vmatmul.f32.gmra.mxu0 %v1022
    %v1141 = vpop.f32.mrf.mxu0
    %v1142 = vadd.f32 0.0, %v1141
    %1143 = vmatmul.f32.gmra.mxu0 %v1023
    %v1144 = vpop.f32.mrf.mxu0
    %v1145 = vadd.f32 0.0, %v1144
    %1146 = vmatmul.f32.gmra.mxu0 %v1024
    %v1147 = vpop.f32.mrf.mxu0
    %v1148 = vadd.f32 0.0, %v1147
    %1149 = vmatmul.f32.gmra.mxu0 %v1025
    %v1150 = vpop.f32.mrf.mxu0
    %v1151 = vadd.f32 0.0, %v1150
    %1152 = vmatmul.f32.gmra.mxu0 %v1026
    %v1153 = vpop.f32.mrf.mxu0
    %v1154 = vadd.f32 0.0, %v1153
    %1155 = vmatmul.f32.gmra.mxu0 %v1027
    %v1156 = vpop.f32.mrf.mxu0
    %v1157 = vadd.f32 0.0, %v1156
    %1158 = vmatmul.f32.gmra.mxu0 %v1028
    %v1159 = vpop.f32.mrf.mxu0
    %v1160 = vadd.f32 0.0, %v1159
    %1161 = vmatmul.f32.gmra.mxu0 %v1029
    %v1162 = vpop.f32.mrf.mxu0
    %v1163 = vadd.f32 0.0, %v1162
    %1164 = vdwg.mxu0
    %v1165 = vadd.f32 %v807, %v1118
    %v1166 = vadd.f32 %v810, %v1121
    %v1167 = vadd.f32 %v813, %v1124
    %v1168 = vadd.f32 %v816, %v1127
    %v1169 = vadd.f32 %v819, %v1130
    %v1170 = vadd.f32 %v822, %v1133
    %v1171 = vadd.f32 %v825, %v1136
    %v1172 = vadd.f32 %v828, %v1139
    %v1173 = vadd.f32 %v831, %v1142
    %v1174 = vadd.f32 %v834, %v1145
    %v1175 = vadd.f32 %v837, %v1148
    %v1176 = vadd.f32 %v840, %v1151
    %v1177 = vadd.f32 %v843, %v1154
    %v1178 = vadd.f32 %v846, %v1157
    %v1179 = vadd.f32 %v849, %v1160
    %v1180 = vadd.f32 %v852, %v1163
    %vm1181 = vcmp.ge.s32.totalorder %v101, 0
    %vm1182 = vcmp.ge.s32.totalorder %v102, 0
    %vm1183 = vcmp.ge.s32.totalorder %v103, 0
    %vm1184 = vcmp.ge.s32.totalorder %v104, 0
    %vm1185 = vcmp.ge.s32.totalorder %v105, 0
    %vm1186 = vcmp.ge.s32.totalorder %v106, 0
    %vm1187 = vcmp.ge.s32.totalorder %v107, 0
    %vm1188 = vcmp.ge.s32.totalorder %v108, 0
    %vm1189 = vcmp.ge.s32.totalorder %v109, 0
    %vm1190 = vcmp.ge.s32.totalorder %v110, 0
    %vm1191 = vcmp.ge.s32.totalorder %v111, 0
    %vm1192 = vcmp.ge.s32.totalorder %v112, 0
    %vm1193 = vcmp.ge.s32.totalorder %v113, 0
    %vm1194 = vcmp.ge.s32.totalorder %v114, 0
    %vm1195 = vcmp.ge.s32.totalorder %v115, 0
    %vm1196 = vcmp.ge.s32.totalorder %v116, 0
    %vm1197 = vcmp.lt.s32.totalorder %v101, 8
    %vm1198 = vcmp.lt.s32.totalorder %v102, 8
    %vm1199 = vcmp.lt.s32.totalorder %v103, 8
    %vm1200 = vcmp.lt.s32.totalorder %v104, 8
    %vm1201 = vcmp.lt.s32.totalorder %v105, 8
    %vm1202 = vcmp.lt.s32.totalorder %v106, 8
    %vm1203 = vcmp.lt.s32.totalorder %v107, 8
    %vm1204 = vcmp.lt.s32.totalorder %v108, 8
    %vm1205 = vcmp.lt.s32.totalorder %v109, 8
    %vm1206 = vcmp.lt.s32.totalorder %v110, 8
    %vm1207 = vcmp.lt.s32.totalorder %v111, 8
    %vm1208 = vcmp.lt.s32.totalorder %v112, 8
    %vm1209 = vcmp.lt.s32.totalorder %v113, 8
    %vm1210 = vcmp.lt.s32.totalorder %v114, 8
    %vm1211 = vcmp.lt.s32.totalorder %v115, 8
    %vm1212 = vcmp.lt.s32.totalorder %v116, 8
    %vm1213 = vmand %vm1181, %vm1197
    %vm1214 = vmand %vm1182, %vm1198
    %vm1215 = vmand %vm1183, %vm1199
    %vm1216 = vmand %vm1184, %vm1200
    %vm1217 = vmand %vm1185, %vm1201
    %vm1218 = vmand %vm1186, %vm1202
    %vm1219 = vmand %vm1187, %vm1203
    %vm1220 = vmand %vm1188, %vm1204
    %vm1221 = vmand %vm1189, %vm1205
    %vm1222 = vmand %vm1190, %vm1206
    %vm1223 = vmand %vm1191, %vm1207
    %vm1224 = vmand %vm1192, %vm1208
    %vm1225 = vmand %vm1193, %vm1209
    %vm1226 = vmand %vm1194, %vm1210
    %vm1227 = vmand %vm1195, %vm1211
    %vm1228 = vmand %vm1196, %vm1212
    %vm1229 = vmand %vm1213, %vm215
    %vm1230 = vmand %vm1214, %vm216
    %vm1231 = vmand %vm1215, %vm217
    %vm1232 = vmand %vm1216, %vm218
    %vm1233 = vmand %vm1217, %vm219
    %vm1234 = vmand %vm1218, %vm220
    %vm1235 = vmand %vm1219, %vm221
    %vm1236 = vmand %vm1220, %vm222
    %vm1237 = vmand %vm1221, %vm223
    %vm1238 = vmand %vm1222, %vm224
    %vm1239 = vmand %vm1223, %vm225
    %vm1240 = vmand %vm1224, %vm226
    %vm1241 = vmand %vm1225, %vm227
    %vm1242 = vmand %vm1226, %vm228
    %vm1243 = vmand %vm1227, %vm229
    %vm1244 = vmand %vm1228, %vm230
    %vm1245 = vmand %vm1229, %vm247
    %vm1246 = vmand %vm1230, %vm248
    %vm1247 = vmand %vm1231, %vm249
    %vm1248 = vmand %vm1232, %vm250
    %vm1249 = vmand %vm1233, %vm251
    %vm1250 = vmand %vm1234, %vm252
    %vm1251 = vmand %vm1235, %vm253
    %vm1252 = vmand %vm1236, %vm254
    %vm1253 = vmand %vm1237, %vm255
    %vm1254 = vmand %vm1238, %vm256
    %vm1255 = vmand %vm1239, %vm257
    %vm1256 = vmand %vm1240, %vm258
    %vm1257 = vmand %vm1241, %vm259
    %vm1258 = vmand %vm1242, %vm260
    %vm1259 = vmand %vm1243, %vm261
    %vm1260 = vmand %vm1244, %vm262
    %v1261 = vadd.s32 %v69, 4294967295
    %v1262 = vadd.s32 %v70, 4294967295
    %v1263 = vadd.s32 %v71, 4294967295
    %v1264 = vadd.s32 %v72, 4294967295
    %v1265 = vadd.s32 %v73, 4294967295
    %v1266 = vadd.s32 %v74, 4294967295
    %v1267 = vadd.s32 %v75, 4294967295
    %v1268 = vadd.s32 %v76, 4294967295
    %v1269 = vadd.s32 %v77, 4294967295
    %v1270 = vadd.s32 %v78, 4294967295
    %v1271 = vadd.s32 %v79, 4294967295
    %v1272 = vadd.s32 %v80, 4294967295
    %v1273 = vadd.s32 %v81, 4294967295
    %v1274 = vadd.s32 %v82, 4294967295
    %v1275 = vadd.s32 %v83, 4294967295
    %v1276 = vadd.s32 %v84, 4294967295
    %vm1277 = vcmp.eq.s32.totalorder %v134, %v1261
    %vm1278 = vcmp.eq.s32.totalorder %v134, %v1262
    %vm1279 = vcmp.eq.s32.totalorder %v134, %v1263
    %vm1280 = vcmp.eq.s32.totalorder %v134, %v1264
    %vm1281 = vcmp.eq.s32.totalorder %v134, %v1265
    %vm1282 = vcmp.eq.s32.totalorder %v134, %v1266
    %vm1283 = vcmp.eq.s32.totalorder %v134, %v1267
    %vm1284 = vcmp.eq.s32.totalorder %v134, %v1268
    %vm1285 = vcmp.eq.s32.totalorder %v134, %v1269
    %vm1286 = vcmp.eq.s32.totalorder %v134, %v1270
    %vm1287 = vcmp.eq.s32.totalorder %v134, %v1271
    %vm1288 = vcmp.eq.s32.totalorder %v134, %v1272
    %vm1289 = vcmp.eq.s32.totalorder %v134, %v1273
    %vm1290 = vcmp.eq.s32.totalorder %v134, %v1274
    %vm1291 = vcmp.eq.s32.totalorder %v134, %v1275
    %vm1292 = vcmp.eq.s32.totalorder %v134, %v1276
    %v1293 = vsel %vm1245, 1, 0
    %v1294 = vsel %vm1246, 1, 0
    %v1295 = vsel %vm1247, 1, 0
    %v1296 = vsel %vm1248, 1, 0
    %v1297 = vsel %vm1249, 1, 0
    %v1298 = vsel %vm1250, 1, 0
    %v1299 = vsel %vm1251, 1, 0
    %v1300 = vsel %vm1252, 1, 0
    %v1301 = vsel %vm1253, 1, 0
    %v1302 = vsel %vm1254, 1, 0
    %v1303 = vsel %vm1255, 1, 0
    %v1304 = vsel %vm1256, 1, 0
    %v1305 = vsel %vm1257, 1, 0
    %v1306 = vsel %vm1258, 1, 0
    %v1307 = vsel %vm1259, 1, 0
    %v1308 = vsel %vm1260, 1, 0
    %vm1309 = vcmp.eq.s32.totalorder %v1293, 1
    %vm1310 = vcmp.eq.s32.totalorder %v1294, 1
    %vm1311 = vcmp.eq.s32.totalorder %v1295, 1
    %vm1312 = vcmp.eq.s32.totalorder %v1296, 1
    %vm1313 = vcmp.eq.s32.totalorder %v1297, 1
    %vm1314 = vcmp.eq.s32.totalorder %v1298, 1
    %vm1315 = vcmp.eq.s32.totalorder %v1299, 1
    %vm1316 = vcmp.eq.s32.totalorder %v1300, 1
    %vm1317 = vcmp.eq.s32.totalorder %v1301, 1
    %vm1318 = vcmp.eq.s32.totalorder %v1302, 1
    %vm1319 = vcmp.eq.s32.totalorder %v1303, 1
    %vm1320 = vcmp.eq.s32.totalorder %v1304, 1
    %vm1321 = vcmp.eq.s32.totalorder %v1305, 1
    %vm1322 = vcmp.eq.s32.totalorder %v1306, 1
    %vm1323 = vcmp.eq.s32.totalorder %v1307, 1
    %vm1324 = vcmp.eq.s32.totalorder %v1308, 1
    %vm1325 = vmand %vm1309, %vm1277
    %vm1326 = vmand %vm1310, %vm1278
    %vm1327 = vmand %vm1311, %vm1279
    %vm1328 = vmand %vm1312, %vm1280
    %vm1329 = vmand %vm1313, %vm1281
    %vm1330 = vmand %vm1314, %vm1282
    %vm1331 = vmand %vm1315, %vm1283
    %vm1332 = vmand %vm1316, %vm1284
    %vm1333 = vmand %vm1317, %vm1285
    %vm1334 = vmand %vm1318, %vm1286
    %vm1335 = vmand %vm1319, %vm1287
    %vm1336 = vmand %vm1320, %vm1288
    %vm1337 = vmand %vm1321, %vm1289
    %vm1338 = vmand %vm1322, %vm1290
    %vm1339 = vmand %vm1323, %vm1291
    %vm1340 = vmand %vm1324, %vm1292
    %v1341 = vsel %vm1325, 1.0, 0.0
    %v1342 = vsel %vm1326, 1.0, 0.0
    %v1343 = vsel %vm1327, 1.0, 0.0
    %v1344 = vsel %vm1328, 1.0, 0.0
    %v1345 = vsel %vm1329, 1.0, 0.0
    %v1346 = vsel %vm1330, 1.0, 0.0
    %v1347 = vsel %vm1331, 1.0, 0.0
    %v1348 = vsel %vm1332, 1.0, 0.0
    %v1349 = vsel %vm1333, 1.0, 0.0
    %v1350 = vsel %vm1334, 1.0, 0.0
    %v1351 = vsel %vm1335, 1.0, 0.0
    %v1352 = vsel %vm1336, 1.0, 0.0
    %v1353 = vsel %vm1337, 1.0, 0.0
    %v1354 = vsel %vm1338, 1.0, 0.0
    %v1355 = vsel %vm1339, 1.0, 0.0
    %v1356 = vsel %vm1340, 1.0, 0.0
    %s1357 = scalar_lea.vmem %s1, 12
    %v1358 = vld [vmem:[%s1357] sm:$0x7]
    %v1360 = vsel %vm425, %v1358, 0
    %1362 = vmatpush.msra.mxu0 0.0
    %1363 = vmatpush.msra.mxu0 0.0
    %1364 = vmatpush.msra.mxu0 0.0
    %1365 = vmatpush.msra.mxu0 0.0
    %1366 = vmatpush.msra.mxu0 0.0
    %1367 = vmatpush.msra.mxu0 0.0
    %1368 = vmatpush.msra.mxu0 0.0
    %1369 = vmatpush.msra.mxu0 0.0
    %1370 = vmatpush.msra.mxu0 0.0
    %1371 = vmatpush.msra.mxu0 0.0
    %1372 = vmatpush.msra.mxu0 0.0
    %1373 = vmatpush.msra.mxu0 0.0
    %1374 = vmatpush.msra.mxu0 0.0
    %1375 = vmatpush.msra.mxu0 0.0
    %1376 = vmatpush.msra.mxu0 0.0
    %1377 = vmatpush.msra.mxu0 %v1360
    %1378 = vmatmul.f32.gmra.mxu0 %v378
    %v1379 = vpop.f32.mrf.mxu0
    %v1380 = vadd.f32 0.0, %v1379
    %1381 = vmatmul.f32.gmra.mxu0 %v381
    %v1382 = vpop.f32.mrf.mxu0
    %v1383 = vadd.f32 0.0, %v1382
    %1384 = vmatmul.f32.gmra.mxu0 %v384
    %v1385 = vpop.f32.mrf.mxu0
    %v1386 = vadd.f32 0.0, %v1385
    %1387 = vmatmul.f32.gmra.mxu0 %v387
    %v1388 = vpop.f32.mrf.mxu0
    %v1389 = vadd.f32 0.0, %v1388
    %1390 = vmatmul.f32.gmra.mxu0 %v390
    %v1391 = vpop.f32.mrf.mxu0
    %v1392 = vadd.f32 0.0, %v1391
    %1393 = vmatmul.f32.gmra.mxu0 %v393
    %v1394 = vpop.f32.mrf.mxu0
    %v1395 = vadd.f32 0.0, %v1394
    %1396 = vmatmul.f32.gmra.mxu0 %v396
    %v1397 = vpop.f32.mrf.mxu0
    %v1398 = vadd.f32 0.0, %v1397
    %1399 = vmatmul.f32.gmra.mxu0 %v399
    %v1400 = vpop.f32.mrf.mxu0
    %v1401 = vadd.f32 0.0, %v1400
    %1402 = vmatmul.f32.gmra.mxu0 %v402
    %v1403 = vpop.f32.mrf.mxu0
    %v1404 = vadd.f32 0.0, %v1403
    %1405 = vmatmul.f32.gmra.mxu0 %v405
    %v1406 = vpop.f32.mrf.mxu0
    %v1407 = vadd.f32 0.0, %v1406
    %1408 = vmatmul.f32.gmra.mxu0 %v408
    %v1409 = vpop.f32.mrf.mxu0
    %v1410 = vadd.f32 0.0, %v1409
    %1411 = vmatmul.f32.gmra.mxu0 %v411
    %v1412 = vpop.f32.mrf.mxu0
    %v1413 = vadd.f32 0.0, %v1412
    %1414 = vmatmul.f32.gmra.mxu0 %v414
    %v1415 = vpop.f32.mrf.mxu0
    %v1416 = vadd.f32 0.0, %v1415
    %1417 = vmatmul.f32.gmra.mxu0 %v417
    %v1418 = vpop.f32.mrf.mxu0
    %v1419 = vadd.f32 0.0, %v1418
    %1420 = vmatmul.f32.gmra.mxu0 %v420
    %v1421 = vpop.f32.mrf.mxu0
    %v1422 = vadd.f32 0.0, %v1421
    %1423 = vmatmul.f32.gmra.mxu0 %v423
    %v1424 = vpop.f32.mrf.mxu0
    %v1425 = vadd.f32 0.0, %v1424
    %1426 = vdwg.mxu0
    %1427 = vmatpush.msra.mxu0 %v1425
    %1428 = vmatpush.msra.mxu0 %v1422
    %1429 = vmatpush.msra.mxu0 %v1419
    %1430 = vmatpush.msra.mxu0 %v1416
    %1431 = vmatpush.msra.mxu0 %v1413
    %1432 = vmatpush.msra.mxu0 %v1410
    %1433 = vmatpush.msra.mxu0 %v1407
    %1434 = vmatpush.msra.mxu0 %v1404
    %1435 = vmatpush.msra.mxu0 %v1401
    %1436 = vmatpush.msra.mxu0 %v1398
    %1437 = vmatpush.msra.mxu0 %v1395
    %1438 = vmatpush.msra.mxu0 %v1392
    %1439 = vmatpush.msra.mxu0 %v1389
    %1440 = vmatpush.msra.mxu0 %v1386
    %1441 = vmatpush.msra.mxu0 %v1383
    %1442 = vmatpush.msra.mxu0 %v1380
    %1443 = vmatmul.f32.gmra.mxu0 %v1341
    %v1444 = vpop.f32.mrf.mxu0
    %v1445 = vadd.f32 0.0, %v1444
    %1446 = vmatmul.f32.gmra.mxu0 %v1342
    %v1447 = vpop.f32.mrf.mxu0
    %v1448 = vadd.f32 0.0, %v1447
    %1449 = vmatmul.f32.gmra.mxu0 %v1343
    %v1450 = vpop.f32.mrf.mxu0
    %v1451 = vadd.f32 0.0, %v1450
    %1452 = vmatmul.f32.gmra.mxu0 %v1344
    %v1453 = vpop.f32.mrf.mxu0
    %v1454 = vadd.f32 0.0, %v1453
    %1455 = vmatmul.f32.gmra.mxu0 %v1345
    %v1456 = vpop.f32.mrf.mxu0
    %v1457 = vadd.f32 0.0, %v1456
    %1458 = vmatmul.f32.gmra.mxu0 %v1346
    %v1459 = vpop.f32.mrf.mxu0
    %v1460 = vadd.f32 0.0, %v1459
    %1461 = vmatmul.f32.gmra.mxu0 %v1347
    %v1462 = vpop.f32.mrf.mxu0
    %v1463 = vadd.f32 0.0, %v1462
    %1464 = vmatmul.f32.gmra.mxu0 %v1348
    %v1465 = vpop.f32.mrf.mxu0
    %v1466 = vadd.f32 0.0, %v1465
    %1467 = vmatmul.f32.gmra.mxu0 %v1349
    %v1468 = vpop.f32.mrf.mxu0
    %v1469 = vadd.f32 0.0, %v1468
    %1470 = vmatmul.f32.gmra.mxu0 %v1350
    %v1471 = vpop.f32.mrf.mxu0
    %v1472 = vadd.f32 0.0, %v1471
    %1473 = vmatmul.f32.gmra.mxu0 %v1351
    %v1474 = vpop.f32.mrf.mxu0
    %v1475 = vadd.f32 0.0, %v1474
    %1476 = vmatmul.f32.gmra.mxu0 %v1352
    %v1477 = vpop.f32.mrf.mxu0
    %v1478 = vadd.f32 0.0, %v1477
    %1479 = vmatmul.f32.gmra.mxu0 %v1353
    %v1480 = vpop.f32.mrf.mxu0
    %v1481 = vadd.f32 0.0, %v1480
    %1482 = vmatmul.f32.gmra.mxu0 %v1354
    %v1483 = vpop.f32.mrf.mxu0
    %v1484 = vadd.f32 0.0, %v1483
    %1485 = vmatmul.f32.gmra.mxu0 %v1355
    %v1486 = vpop.f32.mrf.mxu0
    %v1487 = vadd.f32 0.0, %v1486
    %1488 = vmatmul.f32.gmra.mxu0 %v1356
    %v1489 = vpop.f32.mrf.mxu0
    %v1490 = vadd.f32 0.0, %v1489
    %1491 = vdwg.mxu0
    %v1492 = vadd.f32 %v1165, %v1445
    %v1493 = vadd.f32 %v1166, %v1448
    %v1494 = vadd.f32 %v1167, %v1451
    %v1495 = vadd.f32 %v1168, %v1454
    %v1496 = vadd.f32 %v1169, %v1457
    %v1497 = vadd.f32 %v1170, %v1460
    %v1498 = vadd.f32 %v1171, %v1463
    %v1499 = vadd.f32 %v1172, %v1466
    %v1500 = vadd.f32 %v1173, %v1469
    %v1501 = vadd.f32 %v1174, %v1472
    %v1502 = vadd.f32 %v1175, %v1475
    %v1503 = vadd.f32 %v1176, %v1478
    %v1504 = vadd.f32 %v1177, %v1481
    %v1505 = vadd.f32 %v1178, %v1484
    %v1506 = vadd.f32 %v1179, %v1487
    %v1507 = vadd.f32 %v1180, %v1490
    %vm1508 = vmand %vm1213, %vm494
    %vm1509 = vmand %vm1214, %vm495
    %vm1510 = vmand %vm1215, %vm496
    %vm1511 = vmand %vm1216, %vm497
    %vm1512 = vmand %vm1217, %vm498
    %vm1513 = vmand %vm1218, %vm499
    %vm1514 = vmand %vm1219, %vm500
    %vm1515 = vmand %vm1220, %vm501
    %vm1516 = vmand %vm1221, %vm502
    %vm1517 = vmand %vm1222, %vm503
    %vm1518 = vmand %vm1223, %vm504
    %vm1519 = vmand %vm1224, %vm505
    %vm1520 = vmand %vm1225, %vm506
    %vm1521 = vmand %vm1226, %vm507
    %vm1522 = vmand %vm1227, %vm508
    %vm1523 = vmand %vm1228, %vm509
    %vm1524 = vmand %vm1508, %vm526
    %vm1525 = vmand %vm1509, %vm527
    %vm1526 = vmand %vm1510, %vm528
    %vm1527 = vmand %vm1511, %vm529
    %vm1528 = vmand %vm1512, %vm530
    %vm1529 = vmand %vm1513, %vm531
    %vm1530 = vmand %vm1514, %vm532
    %vm1531 = vmand %vm1515, %vm533
    %vm1532 = vmand %vm1516, %vm534
    %vm1533 = vmand %vm1517, %vm535
    %vm1534 = vmand %vm1518, %vm536
    %vm1535 = vmand %vm1519, %vm537
    %vm1536 = vmand %vm1520, %vm538
    %vm1537 = vmand %vm1521, %vm539
    %vm1538 = vmand %vm1522, %vm540
    %vm1539 = vmand %vm1523, %vm541
    %vm1540 = vcmp.eq.s32.totalorder %v134, %v69
    %vm1541 = vcmp.eq.s32.totalorder %v134, %v70
    %vm1542 = vcmp.eq.s32.totalorder %v134, %v71
    %vm1543 = vcmp.eq.s32.totalorder %v134, %v72
    %vm1544 = vcmp.eq.s32.totalorder %v134, %v73
    %vm1545 = vcmp.eq.s32.totalorder %v134, %v74
    %vm1546 = vcmp.eq.s32.totalorder %v134, %v75
    %vm1547 = vcmp.eq.s32.totalorder %v134, %v76
    %vm1548 = vcmp.eq.s32.totalorder %v134, %v77
    %vm1549 = vcmp.eq.s32.totalorder %v134, %v78
    %vm1550 = vcmp.eq.s32.totalorder %v134, %v79
    %vm1551 = vcmp.eq.s32.totalorder %v134, %v80
    %vm1552 = vcmp.eq.s32.totalorder %v134, %v81
    %vm1553 = vcmp.eq.s32.totalorder %v134, %v82
    %vm1554 = vcmp.eq.s32.totalorder %v134, %v83
    %vm1555 = vcmp.eq.s32.totalorder %v134, %v84
    %v1556 = vsel %vm1524, 1, 0
    %v1557 = vsel %vm1525, 1, 0
    %v1558 = vsel %vm1526, 1, 0
    %v1559 = vsel %vm1527, 1, 0
    %v1560 = vsel %vm1528, 1, 0
    %v1561 = vsel %vm1529, 1, 0
    %v1562 = vsel %vm1530, 1, 0
    %v1563 = vsel %vm1531, 1, 0
    %v1564 = vsel %vm1532, 1, 0
    %v1565 = vsel %vm1533, 1, 0
    %v1566 = vsel %vm1534, 1, 0
    %v1567 = vsel %vm1535, 1, 0
    %v1568 = vsel %vm1536, 1, 0
    %v1569 = vsel %vm1537, 1, 0
    %v1570 = vsel %vm1538, 1, 0
    %v1571 = vsel %vm1539, 1, 0
    %vm1572 = vcmp.eq.s32.totalorder %v1556, 1
    %vm1573 = vcmp.eq.s32.totalorder %v1557, 1
    %vm1574 = vcmp.eq.s32.totalorder %v1558, 1
    %vm1575 = vcmp.eq.s32.totalorder %v1559, 1
    %vm1576 = vcmp.eq.s32.totalorder %v1560, 1
    %vm1577 = vcmp.eq.s32.totalorder %v1561, 1
    %vm1578 = vcmp.eq.s32.totalorder %v1562, 1
    %vm1579 = vcmp.eq.s32.totalorder %v1563, 1
    %vm1580 = vcmp.eq.s32.totalorder %v1564, 1
    %vm1581 = vcmp.eq.s32.totalorder %v1565, 1
    %vm1582 = vcmp.eq.s32.totalorder %v1566, 1
    %vm1583 = vcmp.eq.s32.totalorder %v1567, 1
    %vm1584 = vcmp.eq.s32.totalorder %v1568, 1
    %vm1585 = vcmp.eq.s32.totalorder %v1569, 1
    %vm1586 = vcmp.eq.s32.totalorder %v1570, 1
    %vm1587 = vcmp.eq.s32.totalorder %v1571, 1
    %vm1588 = vmand %vm1572, %vm1540
    %vm1589 = vmand %vm1573, %vm1541
    %vm1590 = vmand %vm1574, %vm1542
    %vm1591 = vmand %vm1575, %vm1543
    %vm1592 = vmand %vm1576, %vm1544
    %vm1593 = vmand %vm1577, %vm1545
    %vm1594 = vmand %vm1578, %vm1546
    %vm1595 = vmand %vm1579, %vm1547
    %vm1596 = vmand %vm1580, %vm1548
    %vm1597 = vmand %vm1581, %vm1549
    %vm1598 = vmand %vm1582, %vm1550
    %vm1599 = vmand %vm1583, %vm1551
    %vm1600 = vmand %vm1584, %vm1552
    %vm1601 = vmand %vm1585, %vm1553
    %vm1602 = vmand %vm1586, %vm1554
    %vm1603 = vmand %vm1587, %vm1555
    %v1604 = vsel %vm1588, 1.0, 0.0
    %v1605 = vsel %vm1589, 1.0, 0.0
    %v1606 = vsel %vm1590, 1.0, 0.0
    %v1607 = vsel %vm1591, 1.0, 0.0
    %v1608 = vsel %vm1592, 1.0, 0.0
    %v1609 = vsel %vm1593, 1.0, 0.0
    %v1610 = vsel %vm1594, 1.0, 0.0
    %v1611 = vsel %vm1595, 1.0, 0.0
    %v1612 = vsel %vm1596, 1.0, 0.0
    %v1613 = vsel %vm1597, 1.0, 0.0
    %v1614 = vsel %vm1598, 1.0, 0.0
    %v1615 = vsel %vm1599, 1.0, 0.0
    %v1616 = vsel %vm1600, 1.0, 0.0
    %v1617 = vsel %vm1601, 1.0, 0.0
    %v1618 = vsel %vm1602, 1.0, 0.0
    %v1619 = vsel %vm1603, 1.0, 0.0
    %s1620 = scalar_lea.vmem %s1, 16
    %v1621 = vld [vmem:[%s1620] sm:$0x7]
    %v1623 = vsel %vm425, %v1621, 0
    %1625 = vmatpush.msra.mxu0 0.0
    %1626 = vmatpush.msra.mxu0 0.0
    %1627 = vmatpush.msra.mxu0 0.0
    %1628 = vmatpush.msra.mxu0 0.0
    %1629 = vmatpush.msra.mxu0 0.0
    %1630 = vmatpush.msra.mxu0 0.0
    %1631 = vmatpush.msra.mxu0 0.0
    %1632 = vmatpush.msra.mxu0 0.0
    %1633 = vmatpush.msra.mxu0 0.0
    %1634 = vmatpush.msra.mxu0 0.0
    %1635 = vmatpush.msra.mxu0 0.0
    %1636 = vmatpush.msra.mxu0 0.0
    %1637 = vmatpush.msra.mxu0 0.0
    %1638 = vmatpush.msra.mxu0 0.0
    %1639 = vmatpush.msra.mxu0 0.0
    %1640 = vmatpush.msra.mxu0 %v1623
    %1641 = vmatmul.f32.gmra.mxu0 %v378
    %v1642 = vpop.f32.mrf.mxu0
    %v1643 = vadd.f32 0.0, %v1642
    %1644 = vmatmul.f32.gmra.mxu0 %v381
    %v1645 = vpop.f32.mrf.mxu0
    %v1646 = vadd.f32 0.0, %v1645
    %1647 = vmatmul.f32.gmra.mxu0 %v384
    %v1648 = vpop.f32.mrf.mxu0
    %v1649 = vadd.f32 0.0, %v1648
    %1650 = vmatmul.f32.gmra.mxu0 %v387
    %v1651 = vpop.f32.mrf.mxu0
    %v1652 = vadd.f32 0.0, %v1651
    %1653 = vmatmul.f32.gmra.mxu0 %v390
    %v1654 = vpop.f32.mrf.mxu0
    %v1655 = vadd.f32 0.0, %v1654
    %1656 = vmatmul.f32.gmra.mxu0 %v393
    %v1657 = vpop.f32.mrf.mxu0
    %v1658 = vadd.f32 0.0, %v1657
    %1659 = vmatmul.f32.gmra.mxu0 %v396
    %v1660 = vpop.f32.mrf.mxu0
    %v1661 = vadd.f32 0.0, %v1660
    %1662 = vmatmul.f32.gmra.mxu0 %v399
    %v1663 = vpop.f32.mrf.mxu0
    %v1664 = vadd.f32 0.0, %v1663
    %1665 = vmatmul.f32.gmra.mxu0 %v402
    %v1666 = vpop.f32.mrf.mxu0
    %v1667 = vadd.f32 0.0, %v1666
    %1668 = vmatmul.f32.gmra.mxu0 %v405
    %v1669 = vpop.f32.mrf.mxu0
    %v1670 = vadd.f32 0.0, %v1669
    %1671 = vmatmul.f32.gmra.mxu0 %v408
    %v1672 = vpop.f32.mrf.mxu0
    %v1673 = vadd.f32 0.0, %v1672
    %1674 = vmatmul.f32.gmra.mxu0 %v411
    %v1675 = vpop.f32.mrf.mxu0
    %v1676 = vadd.f32 0.0, %v1675
    %1677 = vmatmul.f32.gmra.mxu0 %v414
    %v1678 = vpop.f32.mrf.mxu0
    %v1679 = vadd.f32 0.0, %v1678
    %1680 = vmatmul.f32.gmra.mxu0 %v417
    %v1681 = vpop.f32.mrf.mxu0
    %v1682 = vadd.f32 0.0, %v1681
    %1683 = vmatmul.f32.gmra.mxu0 %v420
    %v1684 = vpop.f32.mrf.mxu0
    %v1685 = vadd.f32 0.0, %v1684
    %1686 = vmatmul.f32.gmra.mxu0 %v423
    %v1687 = vpop.f32.mrf.mxu0
    %v1688 = vadd.f32 0.0, %v1687
    %1689 = vdwg.mxu0
    %1690 = vmatpush.msra.mxu0 %v1688
    %1691 = vmatpush.msra.mxu0 %v1685
    %1692 = vmatpush.msra.mxu0 %v1682
    %1693 = vmatpush.msra.mxu0 %v1679
    %1694 = vmatpush.msra.mxu0 %v1676
    %1695 = vmatpush.msra.mxu0 %v1673
    %1696 = vmatpush.msra.mxu0 %v1670
    %1697 = vmatpush.msra.mxu0 %v1667
    %1698 = vmatpush.msra.mxu0 %v1664
    %1699 = vmatpush.msra.mxu0 %v1661
    %1700 = vmatpush.msra.mxu0 %v1658
    %1701 = vmatpush.msra.mxu0 %v1655
    %1702 = vmatpush.msra.mxu0 %v1652
    %1703 = vmatpush.msra.mxu0 %v1649
    %1704 = vmatpush.msra.mxu0 %v1646
    %1705 = vmatpush.msra.mxu0 %v1643
    %1706 = vmatmul.f32.gmra.mxu0 %v1604
    %v1707 = vpop.f32.mrf.mxu0
    %v1708 = vadd.f32 0.0, %v1707
    %1709 = vmatmul.f32.gmra.mxu0 %v1605
    %v1710 = vpop.f32.mrf.mxu0
    %v1711 = vadd.f32 0.0, %v1710
    %1712 = vmatmul.f32.gmra.mxu0 %v1606
    %v1713 = vpop.f32.mrf.mxu0
    %v1714 = vadd.f32 0.0, %v1713
    %1715 = vmatmul.f32.gmra.mxu0 %v1607
    %v1716 = vpop.f32.mrf.mxu0
    %v1717 = vadd.f32 0.0, %v1716
    %1718 = vmatmul.f32.gmra.mxu0 %v1608
    %v1719 = vpop.f32.mrf.mxu0
    %v1720 = vadd.f32 0.0, %v1719
    %1721 = vmatmul.f32.gmra.mxu0 %v1609
    %v1722 = vpop.f32.mrf.mxu0
    %v1723 = vadd.f32 0.0, %v1722
    %1724 = vmatmul.f32.gmra.mxu0 %v1610
    %v1725 = vpop.f32.mrf.mxu0
    %v1726 = vadd.f32 0.0, %v1725
    %1727 = vmatmul.f32.gmra.mxu0 %v1611
    %v1728 = vpop.f32.mrf.mxu0
    %v1729 = vadd.f32 0.0, %v1728
    %1730 = vmatmul.f32.gmra.mxu0 %v1612
    %v1731 = vpop.f32.mrf.mxu0
    %v1732 = vadd.f32 0.0, %v1731
    %1733 = vmatmul.f32.gmra.mxu0 %v1613
    %v1734 = vpop.f32.mrf.mxu0
    %v1735 = vadd.f32 0.0, %v1734
    %1736 = vmatmul.f32.gmra.mxu0 %v1614
    %v1737 = vpop.f32.mrf.mxu0
    %v1738 = vadd.f32 0.0, %v1737
    %1739 = vmatmul.f32.gmra.mxu0 %v1615
    %v1740 = vpop.f32.mrf.mxu0
    %v1741 = vadd.f32 0.0, %v1740
    %1742 = vmatmul.f32.gmra.mxu0 %v1616
    %v1743 = vpop.f32.mrf.mxu0
    %v1744 = vadd.f32 0.0, %v1743
    %1745 = vmatmul.f32.gmra.mxu0 %v1617
    %v1746 = vpop.f32.mrf.mxu0
    %v1747 = vadd.f32 0.0, %v1746
    %1748 = vmatmul.f32.gmra.mxu0 %v1618
    %v1749 = vpop.f32.mrf.mxu0
    %v1750 = vadd.f32 0.0, %v1749
    %1751 = vmatmul.f32.gmra.mxu0 %v1619
    %v1752 = vpop.f32.mrf.mxu0
    %v1753 = vadd.f32 0.0, %v1752
    %1754 = vdwg.mxu0
    %v1755 = vadd.f32 %v1492, %v1708
    %v1756 = vadd.f32 %v1493, %v1711
    %v1757 = vadd.f32 %v1494, %v1714
    %v1758 = vadd.f32 %v1495, %v1717
    %v1759 = vadd.f32 %v1496, %v1720
    %v1760 = vadd.f32 %v1497, %v1723
    %v1761 = vadd.f32 %v1498, %v1726
    %v1762 = vadd.f32 %v1499, %v1729
    %v1763 = vadd.f32 %v1500, %v1732
    %v1764 = vadd.f32 %v1501, %v1735
    %v1765 = vadd.f32 %v1502, %v1738
    %v1766 = vadd.f32 %v1503, %v1741
    %v1767 = vadd.f32 %v1504, %v1744
    %v1768 = vadd.f32 %v1505, %v1747
    %v1769 = vadd.f32 %v1506, %v1750
    %v1770 = vadd.f32 %v1507, %v1753
    %vm1771 = vmand %vm1213, %vm870
    %vm1772 = vmand %vm1214, %vm871
    %vm1773 = vmand %vm1215, %vm872
    %vm1774 = vmand %vm1216, %vm873
    %vm1775 = vmand %vm1217, %vm874
    %vm1776 = vmand %vm1218, %vm875
    %vm1777 = vmand %vm1219, %vm876
    %vm1778 = vmand %vm1220, %vm877
    %vm1779 = vmand %vm1221, %vm878
    %vm1780 = vmand %vm1222, %vm879
    %vm1781 = vmand %vm1223, %vm880
    %vm1782 = vmand %vm1224, %vm881
    %vm1783 = vmand %vm1225, %vm882
    %vm1784 = vmand %vm1226, %vm883
    %vm1785 = vmand %vm1227, %vm884
    %vm1786 = vmand %vm1228, %vm885
    %vm1787 = vmand %vm1771, %vm902
    %vm1788 = vmand %vm1772, %vm903
    %vm1789 = vmand %vm1773, %vm904
    %vm1790 = vmand %vm1774, %vm905
    %vm1791 = vmand %vm1775, %vm906
    %vm1792 = vmand %vm1776, %vm907
    %vm1793 = vmand %vm1777, %vm908
    %vm1794 = vmand %vm1778, %vm909
    %vm1795 = vmand %vm1779, %vm910
    %vm1796 = vmand %vm1780, %vm911
    %vm1797 = vmand %vm1781, %vm912
    %vm1798 = vmand %vm1782, %vm913
    %vm1799 = vmand %vm1783, %vm914
    %vm1800 = vmand %vm1784, %vm915
    %vm1801 = vmand %vm1785, %vm916
    %vm1802 = vmand %vm1786, %vm917
    %v1803 = vadd.s32 %v69, 1
    %v1804 = vadd.s32 %v70, 1
    %v1805 = vadd.s32 %v71, 1
    %v1806 = vadd.s32 %v72, 1
    %v1807 = vadd.s32 %v73, 1
    %v1808 = vadd.s32 %v74, 1
    %v1809 = vadd.s32 %v75, 1
    %v1810 = vadd.s32 %v76, 1
    %v1811 = vadd.s32 %v77, 1
    %v1812 = vadd.s32 %v78, 1
    %v1813 = vadd.s32 %v79, 1
    %v1814 = vadd.s32 %v80, 1
    %v1815 = vadd.s32 %v81, 1
    %v1816 = vadd.s32 %v82, 1
    %v1817 = vadd.s32 %v83, 1
    %v1818 = vadd.s32 %v84, 1
    %vm1819 = vcmp.eq.s32.totalorder %v134, %v1803
    %vm1820 = vcmp.eq.s32.totalorder %v134, %v1804
    %vm1821 = vcmp.eq.s32.totalorder %v134, %v1805
    %vm1822 = vcmp.eq.s32.totalorder %v134, %v1806
    %vm1823 = vcmp.eq.s32.totalorder %v134, %v1807
    %vm1824 = vcmp.eq.s32.totalorder %v134, %v1808
    %vm1825 = vcmp.eq.s32.totalorder %v134, %v1809
    %vm1826 = vcmp.eq.s32.totalorder %v134, %v1810
    %vm1827 = vcmp.eq.s32.totalorder %v134, %v1811
    %vm1828 = vcmp.eq.s32.totalorder %v134, %v1812
    %vm1829 = vcmp.eq.s32.totalorder %v134, %v1813
    %vm1830 = vcmp.eq.s32.totalorder %v134, %v1814
    %vm1831 = vcmp.eq.s32.totalorder %v134, %v1815
    %vm1832 = vcmp.eq.s32.totalorder %v134, %v1816
    %vm1833 = vcmp.eq.s32.totalorder %v134, %v1817
    %vm1834 = vcmp.eq.s32.totalorder %v134, %v1818
    %v1835 = vsel %vm1787, 1, 0
    %v1836 = vsel %vm1788, 1, 0
    %v1837 = vsel %vm1789, 1, 0
    %v1838 = vsel %vm1790, 1, 0
    %v1839 = vsel %vm1791, 1, 0
    %v1840 = vsel %vm1792, 1, 0
    %v1841 = vsel %vm1793, 1, 0
    %v1842 = vsel %vm1794, 1, 0
    %v1843 = vsel %vm1795, 1, 0
    %v1844 = vsel %vm1796, 1, 0
    %v1845 = vsel %vm1797, 1, 0
    %v1846 = vsel %vm1798, 1, 0
    %v1847 = vsel %vm1799, 1, 0
    %v1848 = vsel %vm1800, 1, 0
    %v1849 = vsel %vm1801, 1, 0
    %v1850 = vsel %vm1802, 1, 0
    %vm1851 = vcmp.eq.s32.totalorder %v1835, 1
    %vm1852 = vcmp.eq.s32.totalorder %v1836, 1
    %vm1853 = vcmp.eq.s32.totalorder %v1837, 1
    %vm1854 = vcmp.eq.s32.totalorder %v1838, 1
    %vm1855 = vcmp.eq.s32.totalorder %v1839, 1
    %vm1856 = vcmp.eq.s32.totalorder %v1840, 1
    %vm1857 = vcmp.eq.s32.totalorder %v1841, 1
    %vm1858 = vcmp.eq.s32.totalorder %v1842, 1
    %vm1859 = vcmp.eq.s32.totalorder %v1843, 1
    %vm1860 = vcmp.eq.s32.totalorder %v1844, 1
    %vm1861 = vcmp.eq.s32.totalorder %v1845, 1
    %vm1862 = vcmp.eq.s32.totalorder %v1846, 1
    %vm1863 = vcmp.eq.s32.totalorder %v1847, 1
    %vm1864 = vcmp.eq.s32.totalorder %v1848, 1
    %vm1865 = vcmp.eq.s32.totalorder %v1849, 1
    %vm1866 = vcmp.eq.s32.totalorder %v1850, 1
    %vm1867 = vmand %vm1851, %vm1819
    %vm1868 = vmand %vm1852, %vm1820
    %vm1869 = vmand %vm1853, %vm1821
    %vm1870 = vmand %vm1854, %vm1822
    %vm1871 = vmand %vm1855, %vm1823
    %vm1872 = vmand %vm1856, %vm1824
    %vm1873 = vmand %vm1857, %vm1825
    %vm1874 = vmand %vm1858, %vm1826
    %vm1875 = vmand %vm1859, %vm1827
    %vm1876 = vmand %vm1860, %vm1828
    %vm1877 = vmand %vm1861, %vm1829
    %vm1878 = vmand %vm1862, %vm1830
    %vm1879 = vmand %vm1863, %vm1831
    %vm1880 = vmand %vm1864, %vm1832
    %vm1881 = vmand %vm1865, %vm1833
    %vm1882 = vmand %vm1866, %vm1834
    %v1883 = vsel %vm1867, 1.0, 0.0
    %v1884 = vsel %vm1868, 1.0, 0.0
    %v1885 = vsel %vm1869, 1.0, 0.0
    %v1886 = vsel %vm1870, 1.0, 0.0
    %v1887 = vsel %vm1871, 1.0, 0.0
    %v1888 = vsel %vm1872, 1.0, 0.0
    %v1889 = vsel %vm1873, 1.0, 0.0
    %v1890 = vsel %vm1874, 1.0, 0.0
    %v1891 = vsel %vm1875, 1.0, 0.0
    %v1892 = vsel %vm1876, 1.0, 0.0
    %v1893 = vsel %vm1877, 1.0, 0.0
    %v1894 = vsel %vm1878, 1.0, 0.0
    %v1895 = vsel %vm1879, 1.0, 0.0
    %v1896 = vsel %vm1880, 1.0, 0.0
    %v1897 = vsel %vm1881, 1.0, 0.0
    %v1898 = vsel %vm1882, 1.0, 0.0
    %s1899 = scalar_lea.vmem %s1, 20
    %v1900 = vld [vmem:[%s1899] sm:$0x7]
    %v1902 = vsel %vm425, %v1900, 0
    %1904 = vmatpush.msra.mxu0 0.0
    %1905 = vmatpush.msra.mxu0 0.0
    %1906 = vmatpush.msra.mxu0 0.0
    %1907 = vmatpush.msra.mxu0 0.0
    %1908 = vmatpush.msra.mxu0 0.0
    %1909 = vmatpush.msra.mxu0 0.0
    %1910 = vmatpush.msra.mxu0 0.0
    %1911 = vmatpush.msra.mxu0 0.0
    %1912 = vmatpush.msra.mxu0 0.0
    %1913 = vmatpush.msra.mxu0 0.0
    %1914 = vmatpush.msra.mxu0 0.0
    %1915 = vmatpush.msra.mxu0 0.0
    %1916 = vmatpush.msra.mxu0 0.0
    %1917 = vmatpush.msra.mxu0 0.0
    %1918 = vmatpush.msra.mxu0 0.0
    %1919 = vmatpush.msra.mxu0 %v1902
    %1920 = vmatmul.f32.gmra.mxu0 %v378
    %v1921 = vpop.f32.mrf.mxu0
    %v1922 = vadd.f32 0.0, %v1921
    %1923 = vmatmul.f32.gmra.mxu0 %v381
    %v1924 = vpop.f32.mrf.mxu0
    %v1925 = vadd.f32 0.0, %v1924
    %1926 = vmatmul.f32.gmra.mxu0 %v384
    %v1927 = vpop.f32.mrf.mxu0
    %v1928 = vadd.f32 0.0, %v1927
    %1929 = vmatmul.f32.gmra.mxu0 %v387
    %v1930 = vpop.f32.mrf.mxu0
    %v1931 = vadd.f32 0.0, %v1930
    %1932 = vmatmul.f32.gmra.mxu0 %v390
    %v1933 = vpop.f32.mrf.mxu0
    %v1934 = vadd.f32 0.0, %v1933
    %1935 = vmatmul.f32.gmra.mxu0 %v393
    %v1936 = vpop.f32.mrf.mxu0
    %v1937 = vadd.f32 0.0, %v1936
    %1938 = vmatmul.f32.gmra.mxu0 %v396
    %v1939 = vpop.f32.mrf.mxu0
    %v1940 = vadd.f32 0.0, %v1939
    %1941 = vmatmul.f32.gmra.mxu0 %v399
    %v1942 = vpop.f32.mrf.mxu0
    %v1943 = vadd.f32 0.0, %v1942
    %1944 = vmatmul.f32.gmra.mxu0 %v402
    %v1945 = vpop.f32.mrf.mxu0
    %v1946 = vadd.f32 0.0, %v1945
    %1947 = vmatmul.f32.gmra.mxu0 %v405
    %v1948 = vpop.f32.mrf.mxu0
    %v1949 = vadd.f32 0.0, %v1948
    %1950 = vmatmul.f32.gmra.mxu0 %v408
    %v1951 = vpop.f32.mrf.mxu0
    %v1952 = vadd.f32 0.0, %v1951
    %1953 = vmatmul.f32.gmra.mxu0 %v411
    %v1954 = vpop.f32.mrf.mxu0
    %v1955 = vadd.f32 0.0, %v1954
    %1956 = vmatmul.f32.gmra.mxu0 %v414
    %v1957 = vpop.f32.mrf.mxu0
    %v1958 = vadd.f32 0.0, %v1957
    %1959 = vmatmul.f32.gmra.mxu0 %v417
    %v1960 = vpop.f32.mrf.mxu0
    %v1961 = vadd.f32 0.0, %v1960
    %1962 = vmatmul.f32.gmra.mxu0 %v420
    %v1963 = vpop.f32.mrf.mxu0
    %v1964 = vadd.f32 0.0, %v1963
    %1965 = vmatmul.f32.gmra.mxu0 %v423
    %v1966 = vpop.f32.mrf.mxu0
    %v1967 = vadd.f32 0.0, %v1966
    %1968 = vdwg.mxu0
    %1969 = vmatpush.msra.mxu0 %v1967
    %1970 = vmatpush.msra.mxu0 %v1964
    %1971 = vmatpush.msra.mxu0 %v1961
    %1972 = vmatpush.msra.mxu0 %v1958
    %1973 = vmatpush.msra.mxu0 %v1955
    %1974 = vmatpush.msra.mxu0 %v1952
    %1975 = vmatpush.msra.mxu0 %v1949
    %1976 = vmatpush.msra.mxu0 %v1946
    %1977 = vmatpush.msra.mxu0 %v1943
    %1978 = vmatpush.msra.mxu0 %v1940
    %1979 = vmatpush.msra.mxu0 %v1937
    %1980 = vmatpush.msra.mxu0 %v1934
    %1981 = vmatpush.msra.mxu0 %v1931
    %1982 = vmatpush.msra.mxu0 %v1928
    %1983 = vmatpush.msra.mxu0 %v1925
    %1984 = vmatpush.msra.mxu0 %v1922
    %1985 = vmatmul.f32.gmra.mxu0 %v1883
    %v1986 = vpop.f32.mrf.mxu0
    %v1987 = vadd.f32 0.0, %v1986
    %1988 = vmatmul.f32.gmra.mxu0 %v1884
    %v1989 = vpop.f32.mrf.mxu0
    %v1990 = vadd.f32 0.0, %v1989
    %1991 = vmatmul.f32.gmra.mxu0 %v1885
    %v1992 = vpop.f32.mrf.mxu0
    %v1993 = vadd.f32 0.0, %v1992
    %1994 = vmatmul.f32.gmra.mxu0 %v1886
    %v1995 = vpop.f32.mrf.mxu0
    %v1996 = vadd.f32 0.0, %v1995
    %1997 = vmatmul.f32.gmra.mxu0 %v1887
    %v1998 = vpop.f32.mrf.mxu0
    %v1999 = vadd.f32 0.0, %v1998
    %2000 = vmatmul.f32.gmra.mxu0 %v1888
    %v2001 = vpop.f32.mrf.mxu0
    %v2002 = vadd.f32 0.0, %v2001
    %2003 = vmatmul.f32.gmra.mxu0 %v1889
    %v2004 = vpop.f32.mrf.mxu0
    %v2005 = vadd.f32 0.0, %v2004
    %2006 = vmatmul.f32.gmra.mxu0 %v1890
    %v2007 = vpop.f32.mrf.mxu0
    %v2008 = vadd.f32 0.0, %v2007
    %2009 = vmatmul.f32.gmra.mxu0 %v1891
    %v2010 = vpop.f32.mrf.mxu0
    %v2011 = vadd.f32 0.0, %v2010
    %2012 = vmatmul.f32.gmra.mxu0 %v1892
    %v2013 = vpop.f32.mrf.mxu0
    %v2014 = vadd.f32 0.0, %v2013
    %2015 = vmatmul.f32.gmra.mxu0 %v1893
    %v2016 = vpop.f32.mrf.mxu0
    %v2017 = vadd.f32 0.0, %v2016
    %2018 = vmatmul.f32.gmra.mxu0 %v1894
    %v2019 = vpop.f32.mrf.mxu0
    %v2020 = vadd.f32 0.0, %v2019
    %2021 = vmatmul.f32.gmra.mxu0 %v1895
    %v2022 = vpop.f32.mrf.mxu0
    %v2023 = vadd.f32 0.0, %v2022
    %2024 = vmatmul.f32.gmra.mxu0 %v1896
    %v2025 = vpop.f32.mrf.mxu0
    %v2026 = vadd.f32 0.0, %v2025
    %2027 = vmatmul.f32.gmra.mxu0 %v1897
    %v2028 = vpop.f32.mrf.mxu0
    %v2029 = vadd.f32 0.0, %v2028
    %2030 = vmatmul.f32.gmra.mxu0 %v1898
    %v2031 = vpop.f32.mrf.mxu0
    %v2032 = vadd.f32 0.0, %v2031
    %2033 = vdwg.mxu0
    %v2034 = vadd.f32 %v1755, %v1987
    %v2035 = vadd.f32 %v1756, %v1990
    %v2036 = vadd.f32 %v1757, %v1993
    %v2037 = vadd.f32 %v1758, %v1996
    %v2038 = vadd.f32 %v1759, %v1999
    %v2039 = vadd.f32 %v1760, %v2002
    %v2040 = vadd.f32 %v1761, %v2005
    %v2041 = vadd.f32 %v1762, %v2008
    %v2042 = vadd.f32 %v1763, %v2011
    %v2043 = vadd.f32 %v1764, %v2014
    %v2044 = vadd.f32 %v1765, %v2017
    %v2045 = vadd.f32 %v1766, %v2020
    %v2046 = vadd.f32 %v1767, %v2023
    %v2047 = vadd.f32 %v1768, %v2026
    %v2048 = vadd.f32 %v1769, %v2029
    %v2049 = vadd.f32 %v1770, %v2032
    %v2050 = vadd.s32 %v101, 1
    %v2051 = vadd.s32 %v102, 1
    %v2052 = vadd.s32 %v103, 1
    %v2053 = vadd.s32 %v104, 1
    %v2054 = vadd.s32 %v105, 1
    %v2055 = vadd.s32 %v106, 1
    %v2056 = vadd.s32 %v107, 1
    %v2057 = vadd.s32 %v108, 1
    %v2058 = vadd.s32 %v109, 1
    %v2059 = vadd.s32 %v110, 1
    %v2060 = vadd.s32 %v111, 1
    %v2061 = vadd.s32 %v112, 1
    %v2062 = vadd.s32 %v113, 1
    %v2063 = vadd.s32 %v114, 1
    %v2064 = vadd.s32 %v115, 1
    %v2065 = vadd.s32 %v116, 1
    %vm2066 = vcmp.ge.s32.totalorder %v2050, 0
    %vm2067 = vcmp.ge.s32.totalorder %v2051, 0
    %vm2068 = vcmp.ge.s32.totalorder %v2052, 0
    %vm2069 = vcmp.ge.s32.totalorder %v2053, 0
    %vm2070 = vcmp.ge.s32.totalorder %v2054, 0
    %vm2071 = vcmp.ge.s32.totalorder %v2055, 0
    %vm2072 = vcmp.ge.s32.totalorder %v2056, 0
    %vm2073 = vcmp.ge.s32.totalorder %v2057, 0
    %vm2074 = vcmp.ge.s32.totalorder %v2058, 0
    %vm2075 = vcmp.ge.s32.totalorder %v2059, 0
    %vm2076 = vcmp.ge.s32.totalorder %v2060, 0
    %vm2077 = vcmp.ge.s32.totalorder %v2061, 0
    %vm2078 = vcmp.ge.s32.totalorder %v2062, 0
    %vm2079 = vcmp.ge.s32.totalorder %v2063, 0
    %vm2080 = vcmp.ge.s32.totalorder %v2064, 0
    %vm2081 = vcmp.ge.s32.totalorder %v2065, 0
    %vm2082 = vcmp.lt.s32.totalorder %v2050, 8
    %vm2083 = vcmp.lt.s32.totalorder %v2051, 8
    %vm2084 = vcmp.lt.s32.totalorder %v2052, 8
    %vm2085 = vcmp.lt.s32.totalorder %v2053, 8
    %vm2086 = vcmp.lt.s32.totalorder %v2054, 8
    %vm2087 = vcmp.lt.s32.totalorder %v2055, 8
    %vm2088 = vcmp.lt.s32.totalorder %v2056, 8
    %vm2089 = vcmp.lt.s32.totalorder %v2057, 8
    %vm2090 = vcmp.lt.s32.totalorder %v2058, 8
    %vm2091 = vcmp.lt.s32.totalorder %v2059, 8
    %vm2092 = vcmp.lt.s32.totalorder %v2060, 8
    %vm2093 = vcmp.lt.s32.totalorder %v2061, 8
    %vm2094 = vcmp.lt.s32.totalorder %v2062, 8
    %vm2095 = vcmp.lt.s32.totalorder %v2063, 8
    %vm2096 = vcmp.lt.s32.totalorder %v2064, 8
    %vm2097 = vcmp.lt.s32.totalorder %v2065, 8
    %vm2098 = vmand %vm2066, %vm2082
    %vm2099 = vmand %vm2067, %vm2083
    %vm2100 = vmand %vm2068, %vm2084
    %vm2101 = vmand %vm2069, %vm2085
    %vm2102 = vmand %vm2070, %vm2086
    %vm2103 = vmand %vm2071, %vm2087
    %vm2104 = vmand %vm2072, %vm2088
    %vm2105 = vmand %vm2073, %vm2089
    %vm2106 = vmand %vm2074, %vm2090
    %vm2107 = vmand %vm2075, %vm2091
    %vm2108 = vmand %vm2076, %vm2092
    %vm2109 = vmand %vm2077, %vm2093
    %vm2110 = vmand %vm2078, %vm2094
    %vm2111 = vmand %vm2079, %vm2095
    %vm2112 = vmand %vm2080, %vm2096
    %vm2113 = vmand %vm2081, %vm2097
    %vm2114 = vmand %vm2098, %vm215
    %vm2115 = vmand %vm2099, %vm216
    %vm2116 = vmand %vm2100, %vm217
    %vm2117 = vmand %vm2101, %vm218
    %vm2118 = vmand %vm2102, %vm219
    %vm2119 = vmand %vm2103, %vm220
    %vm2120 = vmand %vm2104, %vm221
    %vm2121 = vmand %vm2105, %vm222
    %vm2122 = vmand %vm2106, %vm223
    %vm2123 = vmand %vm2107, %vm224
    %vm2124 = vmand %vm2108, %vm225
    %vm2125 = vmand %vm2109, %vm226
    %vm2126 = vmand %vm2110, %vm227
    %vm2127 = vmand %vm2111, %vm228
    %vm2128 = vmand %vm2112, %vm229
    %vm2129 = vmand %vm2113, %vm230
    %vm2130 = vmand %vm2114, %vm247
    %vm2131 = vmand %vm2115, %vm248
    %vm2132 = vmand %vm2116, %vm249
    %vm2133 = vmand %vm2117, %vm250
    %vm2134 = vmand %vm2118, %vm251
    %vm2135 = vmand %vm2119, %vm252
    %vm2136 = vmand %vm2120, %vm253
    %vm2137 = vmand %vm2121, %vm254
    %vm2138 = vmand %vm2122, %vm255
    %vm2139 = vmand %vm2123, %vm256
    %vm2140 = vmand %vm2124, %vm257
    %vm2141 = vmand %vm2125, %vm258
    %vm2142 = vmand %vm2126, %vm259
    %vm2143 = vmand %vm2127, %vm260
    %vm2144 = vmand %vm2128, %vm261
    %vm2145 = vmand %vm2129, %vm262
    %v2146 = vadd.s32 %v69, 7
    %v2147 = vadd.s32 %v70, 7
    %v2148 = vadd.s32 %v71, 7
    %v2149 = vadd.s32 %v72, 7
    %v2150 = vadd.s32 %v73, 7
    %v2151 = vadd.s32 %v74, 7
    %v2152 = vadd.s32 %v75, 7
    %v2153 = vadd.s32 %v76, 7
    %v2154 = vadd.s32 %v77, 7
    %v2155 = vadd.s32 %v78, 7
    %v2156 = vadd.s32 %v79, 7
    %v2157 = vadd.s32 %v80, 7
    %v2158 = vadd.s32 %v81, 7
    %v2159 = vadd.s32 %v82, 7
    %v2160 = vadd.s32 %v83, 7
    %v2161 = vadd.s32 %v84, 7
    %vm2162 = vcmp.eq.s32.totalorder %v134, %v2146
    %vm2163 = vcmp.eq.s32.totalorder %v134, %v2147
    %vm2164 = vcmp.eq.s32.totalorder %v134, %v2148
    %vm2165 = vcmp.eq.s32.totalorder %v134, %v2149
    %vm2166 = vcmp.eq.s32.totalorder %v134, %v2150
    %vm2167 = vcmp.eq.s32.totalorder %v134, %v2151
    %vm2168 = vcmp.eq.s32.totalorder %v134, %v2152
    %vm2169 = vcmp.eq.s32.totalorder %v134, %v2153
    %vm2170 = vcmp.eq.s32.totalorder %v134, %v2154
    %vm2171 = vcmp.eq.s32.totalorder %v134, %v2155
    %vm2172 = vcmp.eq.s32.totalorder %v134, %v2156
    %vm2173 = vcmp.eq.s32.totalorder %v134, %v2157
    %vm2174 = vcmp.eq.s32.totalorder %v134, %v2158
    %vm2175 = vcmp.eq.s32.totalorder %v134, %v2159
    %vm2176 = vcmp.eq.s32.totalorder %v134, %v2160
    %vm2177 = vcmp.eq.s32.totalorder %v134, %v2161
    %v2178 = vsel %vm2130, 1, 0
    %v2179 = vsel %vm2131, 1, 0
    %v2180 = vsel %vm2132, 1, 0
    %v2181 = vsel %vm2133, 1, 0
    %v2182 = vsel %vm2134, 1, 0
    %v2183 = vsel %vm2135, 1, 0
    %v2184 = vsel %vm2136, 1, 0
    %v2185 = vsel %vm2137, 1, 0
    %v2186 = vsel %vm2138, 1, 0
    %v2187 = vsel %vm2139, 1, 0
    %v2188 = vsel %vm2140, 1, 0
    %v2189 = vsel %vm2141, 1, 0
    %v2190 = vsel %vm2142, 1, 0
    %v2191 = vsel %vm2143, 1, 0
    %v2192 = vsel %vm2144, 1, 0
    %v2193 = vsel %vm2145, 1, 0
    %vm2194 = vcmp.eq.s32.totalorder %v2178, 1
    %vm2195 = vcmp.eq.s32.totalorder %v2179, 1
    %vm2196 = vcmp.eq.s32.totalorder %v2180, 1
    %vm2197 = vcmp.eq.s32.totalorder %v2181, 1
    %vm2198 = vcmp.eq.s32.totalorder %v2182, 1
    %vm2199 = vcmp.eq.s32.totalorder %v2183, 1
    %vm2200 = vcmp.eq.s32.totalorder %v2184, 1
    %vm2201 = vcmp.eq.s32.totalorder %v2185, 1
    %vm2202 = vcmp.eq.s32.totalorder %v2186, 1
    %vm2203 = vcmp.eq.s32.totalorder %v2187, 1
    %vm2204 = vcmp.eq.s32.totalorder %v2188, 1
    %vm2205 = vcmp.eq.s32.totalorder %v2189, 1
    %vm2206 = vcmp.eq.s32.totalorder %v2190, 1
    %vm2207 = vcmp.eq.s32.totalorder %v2191, 1
    %vm2208 = vcmp.eq.s32.totalorder %v2192, 1
    %vm2209 = vcmp.eq.s32.totalorder %v2193, 1
    %vm2210 = vmand %vm2194, %vm2162
    %vm2211 = vmand %vm2195, %vm2163
    %vm2212 = vmand %vm2196, %vm2164
    %vm2213 = vmand %vm2197, %vm2165
    %vm2214 = vmand %vm2198, %vm2166
    %vm2215 = vmand %vm2199, %vm2167
    %vm2216 = vmand %vm2200, %vm2168
    %vm2217 = vmand %vm2201, %vm2169
    %vm2218 = vmand %vm2202, %vm2170
    %vm2219 = vmand %vm2203, %vm2171
    %vm2220 = vmand %vm2204, %vm2172
    %vm2221 = vmand %vm2205, %vm2173
    %vm2222 = vmand %vm2206, %vm2174
    %vm2223 = vmand %vm2207, %vm2175
    %vm2224 = vmand %vm2208, %vm2176
    %vm2225 = vmand %vm2209, %vm2177
    %v2226 = vsel %vm2210, 1.0, 0.0
    %v2227 = vsel %vm2211, 1.0, 0.0
    %v2228 = vsel %vm2212, 1.0, 0.0
    %v2229 = vsel %vm2213, 1.0, 0.0
    %v2230 = vsel %vm2214, 1.0, 0.0
    %v2231 = vsel %vm2215, 1.0, 0.0
    %v2232 = vsel %vm2216, 1.0, 0.0
    %v2233 = vsel %vm2217, 1.0, 0.0
    %v2234 = vsel %vm2218, 1.0, 0.0
    %v2235 = vsel %vm2219, 1.0, 0.0
    %v2236 = vsel %vm2220, 1.0, 0.0
    %v2237 = vsel %vm2221, 1.0, 0.0
    %v2238 = vsel %vm2222, 1.0, 0.0
    %v2239 = vsel %vm2223, 1.0, 0.0
    %v2240 = vsel %vm2224, 1.0, 0.0
    %v2241 = vsel %vm2225, 1.0, 0.0
    %s2242 = scalar_lea.vmem %s1, 24
    %v2243 = vld [vmem:[%s2242] sm:$0x7]
    %v2245 = vsel %vm425, %v2243, 0
    %2247 = vmatpush.msra.mxu0 0.0
    %2248 = vmatpush.msra.mxu0 0.0
    %2249 = vmatpush.msra.mxu0 0.0
    %2250 = vmatpush.msra.mxu0 0.0
    %2251 = vmatpush.msra.mxu0 0.0
    %2252 = vmatpush.msra.mxu0 0.0
    %2253 = vmatpush.msra.mxu0 0.0
    %2254 = vmatpush.msra.mxu0 0.0
    %2255 = vmatpush.msra.mxu0 0.0
    %2256 = vmatpush.msra.mxu0 0.0
    %2257 = vmatpush.msra.mxu0 0.0
    %2258 = vmatpush.msra.mxu0 0.0
    %2259 = vmatpush.msra.mxu0 0.0
    %2260 = vmatpush.msra.mxu0 0.0
    %2261 = vmatpush.msra.mxu0 0.0
    %2262 = vmatpush.msra.mxu0 %v2245
    %2263 = vmatmul.f32.gmra.mxu0 %v378
    %v2264 = vpop.f32.mrf.mxu0
    %v2265 = vadd.f32 0.0, %v2264
    %2266 = vmatmul.f32.gmra.mxu0 %v381
    %v2267 = vpop.f32.mrf.mxu0
    %v2268 = vadd.f32 0.0, %v2267
    %2269 = vmatmul.f32.gmra.mxu0 %v384
    %v2270 = vpop.f32.mrf.mxu0
    %v2271 = vadd.f32 0.0, %v2270
    %2272 = vmatmul.f32.gmra.mxu0 %v387
    %v2273 = vpop.f32.mrf.mxu0
    %v2274 = vadd.f32 0.0, %v2273
    %2275 = vmatmul.f32.gmra.mxu0 %v390
    %v2276 = vpop.f32.mrf.mxu0
    %v2277 = vadd.f32 0.0, %v2276
    %2278 = vmatmul.f32.gmra.mxu0 %v393
    %v2279 = vpop.f32.mrf.mxu0
    %v2280 = vadd.f32 0.0, %v2279
    %2281 = vmatmul.f32.gmra.mxu0 %v396
    %v2282 = vpop.f32.mrf.mxu0
    %v2283 = vadd.f32 0.0, %v2282
    %2284 = vmatmul.f32.gmra.mxu0 %v399
    %v2285 = vpop.f32.mrf.mxu0
    %v2286 = vadd.f32 0.0, %v2285
    %2287 = vmatmul.f32.gmra.mxu0 %v402
    %v2288 = vpop.f32.mrf.mxu0
    %v2289 = vadd.f32 0.0, %v2288
    %2290 = vmatmul.f32.gmra.mxu0 %v405
    %v2291 = vpop.f32.mrf.mxu0
    %v2292 = vadd.f32 0.0, %v2291
    %2293 = vmatmul.f32.gmra.mxu0 %v408
    %v2294 = vpop.f32.mrf.mxu0
    %v2295 = vadd.f32 0.0, %v2294
    %2296 = vmatmul.f32.gmra.mxu0 %v411
    %v2297 = vpop.f32.mrf.mxu0
    %v2298 = vadd.f32 0.0, %v2297
    %2299 = vmatmul.f32.gmra.mxu0 %v414
    %v2300 = vpop.f32.mrf.mxu0
    %v2301 = vadd.f32 0.0, %v2300
    %2302 = vmatmul.f32.gmra.mxu0 %v417
    %v2303 = vpop.f32.mrf.mxu0
    %v2304 = vadd.f32 0.0, %v2303
    %2305 = vmatmul.f32.gmra.mxu0 %v420
    %v2306 = vpop.f32.mrf.mxu0
    %v2307 = vadd.f32 0.0, %v2306
    %2308 = vmatmul.f32.gmra.mxu0 %v423
    %v2309 = vpop.f32.mrf.mxu0
    %v2310 = vadd.f32 0.0, %v2309
    %2311 = vdwg.mxu0
    %2312 = vmatpush.msra.mxu0 %v2310
    %2313 = vmatpush.msra.mxu0 %v2307
    %2314 = vmatpush.msra.mxu0 %v2304
    %2315 = vmatpush.msra.mxu0 %v2301
    %2316 = vmatpush.msra.mxu0 %v2298
    %2317 = vmatpush.msra.mxu0 %v2295
    %2318 = vmatpush.msra.mxu0 %v2292
    %2319 = vmatpush.msra.mxu0 %v2289
    %2320 = vmatpush.msra.mxu0 %v2286
    %2321 = vmatpush.msra.mxu0 %v2283
    %2322 = vmatpush.msra.mxu0 %v2280
    %2323 = vmatpush.msra.mxu0 %v2277
    %2324 = vmatpush.msra.mxu0 %v2274
    %2325 = vmatpush.msra.mxu0 %v2271
    %2326 = vmatpush.msra.mxu0 %v2268
    %2327 = vmatpush.msra.mxu0 %v2265
    %2328 = vmatmul.f32.gmra.mxu0 %v2226
    %v2329 = vpop.f32.mrf.mxu0
    %v2330 = vadd.f32 0.0, %v2329
    %2331 = vmatmul.f32.gmra.mxu0 %v2227
    %v2332 = vpop.f32.mrf.mxu0
    %v2333 = vadd.f32 0.0, %v2332
    %2334 = vmatmul.f32.gmra.mxu0 %v2228
    %v2335 = vpop.f32.mrf.mxu0
    %v2336 = vadd.f32 0.0, %v2335
    %2337 = vmatmul.f32.gmra.mxu0 %v2229
    %v2338 = vpop.f32.mrf.mxu0
    %v2339 = vadd.f32 0.0, %v2338
    %2340 = vmatmul.f32.gmra.mxu0 %v2230
    %v2341 = vpop.f32.mrf.mxu0
    %v2342 = vadd.f32 0.0, %v2341
    %2343 = vmatmul.f32.gmra.mxu0 %v2231
    %v2344 = vpop.f32.mrf.mxu0
    %v2345 = vadd.f32 0.0, %v2344
    %2346 = vmatmul.f32.gmra.mxu0 %v2232
    %v2347 = vpop.f32.mrf.mxu0
    %v2348 = vadd.f32 0.0, %v2347
    %2349 = vmatmul.f32.gmra.mxu0 %v2233
    %v2350 = vpop.f32.mrf.mxu0
    %v2351 = vadd.f32 0.0, %v2350
    %2352 = vmatmul.f32.gmra.mxu0 %v2234
    %v2353 = vpop.f32.mrf.mxu0
    %v2354 = vadd.f32 0.0, %v2353
    %2355 = vmatmul.f32.gmra.mxu0 %v2235
    %v2356 = vpop.f32.mrf.mxu0
    %v2357 = vadd.f32 0.0, %v2356
    %2358 = vmatmul.f32.gmra.mxu0 %v2236
    %v2359 = vpop.f32.mrf.mxu0
    %v2360 = vadd.f32 0.0, %v2359
    %2361 = vmatmul.f32.gmra.mxu0 %v2237
    %v2362 = vpop.f32.mrf.mxu0
    %v2363 = vadd.f32 0.0, %v2362
    %2364 = vmatmul.f32.gmra.mxu0 %v2238
    %v2365 = vpop.f32.mrf.mxu0
    %v2366 = vadd.f32 0.0, %v2365
    %2367 = vmatmul.f32.gmra.mxu0 %v2239
    %v2368 = vpop.f32.mrf.mxu0
    %v2369 = vadd.f32 0.0, %v2368
    %2370 = vmatmul.f32.gmra.mxu0 %v2240
    %v2371 = vpop.f32.mrf.mxu0
    %v2372 = vadd.f32 0.0, %v2371
    %2373 = vmatmul.f32.gmra.mxu0 %v2241
    %v2374 = vpop.f32.mrf.mxu0
    %v2375 = vadd.f32 0.0, %v2374
    %2376 = vdwg.mxu0
    %v2377 = vadd.f32 %v2034, %v2330
    %v2378 = vadd.f32 %v2035, %v2333
    %v2379 = vadd.f32 %v2036, %v2336
    %v2380 = vadd.f32 %v2037, %v2339
    %v2381 = vadd.f32 %v2038, %v2342
    %v2382 = vadd.f32 %v2039, %v2345
    %v2383 = vadd.f32 %v2040, %v2348
    %v2384 = vadd.f32 %v2041, %v2351
    %v2385 = vadd.f32 %v2042, %v2354
    %v2386 = vadd.f32 %v2043, %v2357
    %v2387 = vadd.f32 %v2044, %v2360
    %v2388 = vadd.f32 %v2045, %v2363
    %v2389 = vadd.f32 %v2046, %v2366
    %v2390 = vadd.f32 %v2047, %v2369
    %v2391 = vadd.f32 %v2048, %v2372
    %v2392 = vadd.f32 %v2049, %v2375
    %vm2393 = vmand %vm2098, %vm494
    %vm2394 = vmand %vm2099, %vm495
    %vm2395 = vmand %vm2100, %vm496
    %vm2396 = vmand %vm2101, %vm497
    %vm2397 = vmand %vm2102, %vm498
    %vm2398 = vmand %vm2103, %vm499
    %vm2399 = vmand %vm2104, %vm500
    %vm2400 = vmand %vm2105, %vm501
    %vm2401 = vmand %vm2106, %vm502
    %vm2402 = vmand %vm2107, %vm503
    %vm2403 = vmand %vm2108, %vm504
    %vm2404 = vmand %vm2109, %vm505
    %vm2405 = vmand %vm2110, %vm506
    %vm2406 = vmand %vm2111, %vm507
    %vm2407 = vmand %vm2112, %vm508
    %vm2408 = vmand %vm2113, %vm509
    %vm2409 = vmand %vm2393, %vm526
    %vm2410 = vmand %vm2394, %vm527
    %vm2411 = vmand %vm2395, %vm528
    %vm2412 = vmand %vm2396, %vm529
    %vm2413 = vmand %vm2397, %vm530
    %vm2414 = vmand %vm2398, %vm531
    %vm2415 = vmand %vm2399, %vm532
    %vm2416 = vmand %vm2400, %vm533
    %vm2417 = vmand %vm2401, %vm534
    %vm2418 = vmand %vm2402, %vm535
    %vm2419 = vmand %vm2403, %vm536
    %vm2420 = vmand %vm2404, %vm537
    %vm2421 = vmand %vm2405, %vm538
    %vm2422 = vmand %vm2406, %vm539
    %vm2423 = vmand %vm2407, %vm540
    %vm2424 = vmand %vm2408, %vm541
    %v2425 = vadd.s32 %v70, 8
    %v2426 = vadd.s32 %v71, 8
    %v2427 = vadd.s32 %v72, 8
    %v2428 = vadd.s32 %v73, 8
    %v2429 = vadd.s32 %v74, 8
    %v2430 = vadd.s32 %v75, 8
    %v2431 = vadd.s32 %v76, 8
    %v2432 = vadd.s32 %v77, 8
    %v2433 = vadd.s32 %v78, 8
    %v2434 = vadd.s32 %v79, 8
    %v2435 = vadd.s32 %v80, 8
    %v2436 = vadd.s32 %v81, 8
    %v2437 = vadd.s32 %v82, 8
    %v2438 = vadd.s32 %v83, 8
    %v2439 = vadd.s32 %v84, 8
    %vm2440 = vcmp.eq.s32.totalorder %v134, %v2425
    %vm2441 = vcmp.eq.s32.totalorder %v134, %v2426
    %vm2442 = vcmp.eq.s32.totalorder %v134, %v2427
    %vm2443 = vcmp.eq.s32.totalorder %v134, %v2428
    %vm2444 = vcmp.eq.s32.totalorder %v134, %v2429
    %vm2445 = vcmp.eq.s32.totalorder %v134, %v2430
    %vm2446 = vcmp.eq.s32.totalorder %v134, %v2431
    %vm2447 = vcmp.eq.s32.totalorder %v134, %v2432
    %vm2448 = vcmp.eq.s32.totalorder %v134, %v2433
    %vm2449 = vcmp.eq.s32.totalorder %v134, %v2434
    %vm2450 = vcmp.eq.s32.totalorder %v134, %v2435
    %vm2451 = vcmp.eq.s32.totalorder %v134, %v2436
    %vm2452 = vcmp.eq.s32.totalorder %v134, %v2437
    %vm2453 = vcmp.eq.s32.totalorder %v134, %v2438
    %vm2454 = vcmp.eq.s32.totalorder %v134, %v2439
    %v2455 = vsel %vm2409, 1, 0
    %v2456 = vsel %vm2410, 1, 0
    %v2457 = vsel %vm2411, 1, 0
    %v2458 = vsel %vm2412, 1, 0
    %v2459 = vsel %vm2413, 1, 0
    %v2460 = vsel %vm2414, 1, 0
    %v2461 = vsel %vm2415, 1, 0
    %v2462 = vsel %vm2416, 1, 0
    %v2463 = vsel %vm2417, 1, 0
    %v2464 = vsel %vm2418, 1, 0
    %v2465 = vsel %vm2419, 1, 0
    %v2466 = vsel %vm2420, 1, 0
    %v2467 = vsel %vm2421, 1, 0
    %v2468 = vsel %vm2422, 1, 0
    %v2469 = vsel %vm2423, 1, 0
    %v2470 = vsel %vm2424, 1, 0
    %vm2471 = vcmp.eq.s32.totalorder %v2455, 1
    %vm2472 = vcmp.eq.s32.totalorder %v2456, 1
    %vm2473 = vcmp.eq.s32.totalorder %v2457, 1
    %vm2474 = vcmp.eq.s32.totalorder %v2458, 1
    %vm2475 = vcmp.eq.s32.totalorder %v2459, 1
    %vm2476 = vcmp.eq.s32.totalorder %v2460, 1
    %vm2477 = vcmp.eq.s32.totalorder %v2461, 1
    %vm2478 = vcmp.eq.s32.totalorder %v2462, 1
    %vm2479 = vcmp.eq.s32.totalorder %v2463, 1
    %vm2480 = vcmp.eq.s32.totalorder %v2464, 1
    %vm2481 = vcmp.eq.s32.totalorder %v2465, 1
    %vm2482 = vcmp.eq.s32.totalorder %v2466, 1
    %vm2483 = vcmp.eq.s32.totalorder %v2467, 1
    %vm2484 = vcmp.eq.s32.totalorder %v2468, 1
    %vm2485 = vcmp.eq.s32.totalorder %v2469, 1
    %vm2486 = vcmp.eq.s32.totalorder %v2470, 1
    %vm2487 = vmand %vm2471, %vm1541
    %vm2488 = vmand %vm2472, %vm2440
    %vm2489 = vmand %vm2473, %vm2441
    %vm2490 = vmand %vm2474, %vm2442
    %vm2491 = vmand %vm2475, %vm2443
    %vm2492 = vmand %vm2476, %vm2444
    %vm2493 = vmand %vm2477, %vm2445
    %vm2494 = vmand %vm2478, %vm2446
    %vm2495 = vmand %vm2479, %vm2447
    %vm2496 = vmand %vm2480, %vm2448
    %vm2497 = vmand %vm2481, %vm2449
    %vm2498 = vmand %vm2482, %vm2450
    %vm2499 = vmand %vm2483, %vm2451
    %vm2500 = vmand %vm2484, %vm2452
    %vm2501 = vmand %vm2485, %vm2453
    %vm2502 = vmand %vm2486, %vm2454
    %v2503 = vsel %vm2487, 1.0, 0.0
    %v2504 = vsel %vm2488, 1.0, 0.0
    %v2505 = vsel %vm2489, 1.0, 0.0
    %v2506 = vsel %vm2490, 1.0, 0.0
    %v2507 = vsel %vm2491, 1.0, 0.0
    %v2508 = vsel %vm2492, 1.0, 0.0
    %v2509 = vsel %vm2493, 1.0, 0.0
    %v2510 = vsel %vm2494, 1.0, 0.0
    %v2511 = vsel %vm2495, 1.0, 0.0
    %v2512 = vsel %vm2496, 1.0, 0.0
    %v2513 = vsel %vm2497, 1.0, 0.0
    %v2514 = vsel %vm2498, 1.0, 0.0
    %v2515 = vsel %vm2499, 1.0, 0.0
    %v2516 = vsel %vm2500, 1.0, 0.0
    %v2517 = vsel %vm2501, 1.0, 0.0
    %v2518 = vsel %vm2502, 1.0, 0.0
    %s2519 = scalar_lea.vmem %s1, 28
    %v2520 = vld [vmem:[%s2519] sm:$0x7]
    %v2522 = vsel %vm425, %v2520, 0
    %2524 = vmatpush.msra.mxu0 0.0
    %2525 = vmatpush.msra.mxu0 0.0
    %2526 = vmatpush.msra.mxu0 0.0
    %2527 = vmatpush.msra.mxu0 0.0
    %2528 = vmatpush.msra.mxu0 0.0
    %2529 = vmatpush.msra.mxu0 0.0
    %2530 = vmatpush.msra.mxu0 0.0
    %2531 = vmatpush.msra.mxu0 0.0
    %2532 = vmatpush.msra.mxu0 0.0
    %2533 = vmatpush.msra.mxu0 0.0
    %2534 = vmatpush.msra.mxu0 0.0
    %2535 = vmatpush.msra.mxu0 0.0
    %2536 = vmatpush.msra.mxu0 0.0
    %2537 = vmatpush.msra.mxu0 0.0
    %2538 = vmatpush.msra.mxu0 0.0
    %2539 = vmatpush.msra.mxu0 %v2522
    %2540 = vmatmul.f32.gmra.mxu0 %v378
    %v2541 = vpop.f32.mrf.mxu0
    %v2542 = vadd.f32 0.0, %v2541
    %2543 = vmatmul.f32.gmra.mxu0 %v381
    %v2544 = vpop.f32.mrf.mxu0
    %v2545 = vadd.f32 0.0, %v2544
    %2546 = vmatmul.f32.gmra.mxu0 %v384
    %v2547 = vpop.f32.mrf.mxu0
    %v2548 = vadd.f32 0.0, %v2547
    %2549 = vmatmul.f32.gmra.mxu0 %v387
    %v2550 = vpop.f32.mrf.mxu0
    %v2551 = vadd.f32 0.0, %v2550
    %2552 = vmatmul.f32.gmra.mxu0 %v390
    %v2553 = vpop.f32.mrf.mxu0
    %v2554 = vadd.f32 0.0, %v2553
    %2555 = vmatmul.f32.gmra.mxu0 %v393
    %v2556 = vpop.f32.mrf.mxu0
    %v2557 = vadd.f32 0.0, %v2556
    %2558 = vmatmul.f32.gmra.mxu0 %v396
    %v2559 = vpop.f32.mrf.mxu0
    %v2560 = vadd.f32 0.0, %v2559
    %2561 = vmatmul.f32.gmra.mxu0 %v399
    %v2562 = vpop.f32.mrf.mxu0
    %v2563 = vadd.f32 0.0, %v2562
    %2564 = vmatmul.f32.gmra.mxu0 %v402
    %v2565 = vpop.f32.mrf.mxu0
    %v2566 = vadd.f32 0.0, %v2565
    %2567 = vmatmul.f32.gmra.mxu0 %v405
    %v2568 = vpop.f32.mrf.mxu0
    %v2569 = vadd.f32 0.0, %v2568
    %2570 = vmatmul.f32.gmra.mxu0 %v408
    %v2571 = vpop.f32.mrf.mxu0
    %v2572 = vadd.f32 0.0, %v2571
    %2573 = vmatmul.f32.gmra.mxu0 %v411
    %v2574 = vpop.f32.mrf.mxu0
    %v2575 = vadd.f32 0.0, %v2574
    %2576 = vmatmul.f32.gmra.mxu0 %v414
    %v2577 = vpop.f32.mrf.mxu0
    %v2578 = vadd.f32 0.0, %v2577
    %2579 = vmatmul.f32.gmra.mxu0 %v417
    %v2580 = vpop.f32.mrf.mxu0
    %v2581 = vadd.f32 0.0, %v2580
    %2582 = vmatmul.f32.gmra.mxu0 %v420
    %v2583 = vpop.f32.mrf.mxu0
    %v2584 = vadd.f32 0.0, %v2583
    %2585 = vmatmul.f32.gmra.mxu0 %v423
    %v2586 = vpop.f32.mrf.mxu0
    %v2587 = vadd.f32 0.0, %v2586
    %2588 = vdwg.mxu0
    %2589 = vmatpush.msra.mxu0 %v2587
    %2590 = vmatpush.msra.mxu0 %v2584
    %2591 = vmatpush.msra.mxu0 %v2581
    %2592 = vmatpush.msra.mxu0 %v2578
    %2593 = vmatpush.msra.mxu0 %v2575
    %2594 = vmatpush.msra.mxu0 %v2572
    %2595 = vmatpush.msra.mxu0 %v2569
    %2596 = vmatpush.msra.mxu0 %v2566
    %2597 = vmatpush.msra.mxu0 %v2563
    %2598 = vmatpush.msra.mxu0 %v2560
    %2599 = vmatpush.msra.mxu0 %v2557
    %2600 = vmatpush.msra.mxu0 %v2554
    %2601 = vmatpush.msra.mxu0 %v2551
    %2602 = vmatpush.msra.mxu0 %v2548
    %2603 = vmatpush.msra.mxu0 %v2545
    %2604 = vmatpush.msra.mxu0 %v2542
    %2605 = vmatmul.f32.gmra.mxu0 %v2503
    %v2606 = vpop.f32.mrf.mxu0
    %v2607 = vadd.f32 0.0, %v2606
    %2608 = vmatmul.f32.gmra.mxu0 %v2504
    %v2609 = vpop.f32.mrf.mxu0
    %v2610 = vadd.f32 0.0, %v2609
    %2611 = vmatmul.f32.gmra.mxu0 %v2505
    %v2612 = vpop.f32.mrf.mxu0
    %v2613 = vadd.f32 0.0, %v2612
    %2614 = vmatmul.f32.gmra.mxu0 %v2506
    %v2615 = vpop.f32.mrf.mxu0
    %v2616 = vadd.f32 0.0, %v2615
    %2617 = vmatmul.f32.gmra.mxu0 %v2507
    %v2618 = vpop.f32.mrf.mxu0
    %v2619 = vadd.f32 0.0, %v2618
    %2620 = vmatmul.f32.gmra.mxu0 %v2508
    %v2621 = vpop.f32.mrf.mxu0
    %v2622 = vadd.f32 0.0, %v2621
    %2623 = vmatmul.f32.gmra.mxu0 %v2509
    %v2624 = vpop.f32.mrf.mxu0
    %v2625 = vadd.f32 0.0, %v2624
    %2626 = vmatmul.f32.gmra.mxu0 %v2510
    %v2627 = vpop.f32.mrf.mxu0
    %v2628 = vadd.f32 0.0, %v2627
    %2629 = vmatmul.f32.gmra.mxu0 %v2511
    %v2630 = vpop.f32.mrf.mxu0
    %v2631 = vadd.f32 0.0, %v2630
    %2632 = vmatmul.f32.gmra.mxu0 %v2512
    %v2633 = vpop.f32.mrf.mxu0
    %v2634 = vadd.f32 0.0, %v2633
    %2635 = vmatmul.f32.gmra.mxu0 %v2513
    %v2636 = vpop.f32.mrf.mxu0
    %v2637 = vadd.f32 0.0, %v2636
    %2638 = vmatmul.f32.gmra.mxu0 %v2514
    %v2639 = vpop.f32.mrf.mxu0
    %v2640 = vadd.f32 0.0, %v2639
    %2641 = vmatmul.f32.gmra.mxu0 %v2515
    %v2642 = vpop.f32.mrf.mxu0
    %v2643 = vadd.f32 0.0, %v2642
    %2644 = vmatmul.f32.gmra.mxu0 %v2516
    %v2645 = vpop.f32.mrf.mxu0
    %v2646 = vadd.f32 0.0, %v2645
    %2647 = vmatmul.f32.gmra.mxu0 %v2517
    %v2648 = vpop.f32.mrf.mxu0
    %v2649 = vadd.f32 0.0, %v2648
    %2650 = vmatmul.f32.gmra.mxu0 %v2518
    %v2651 = vpop.f32.mrf.mxu0
    %v2652 = vadd.f32 0.0, %v2651
    %2653 = vdwg.mxu0
    %v2654 = vadd.f32 %v2377, %v2607
    %v2655 = vadd.f32 %v2378, %v2610
    %v2656 = vadd.f32 %v2379, %v2613
    %v2657 = vadd.f32 %v2380, %v2616
    %v2658 = vadd.f32 %v2381, %v2619
    %v2659 = vadd.f32 %v2382, %v2622
    %v2660 = vadd.f32 %v2383, %v2625
    %v2661 = vadd.f32 %v2384, %v2628
    %v2662 = vadd.f32 %v2385, %v2631
    %v2663 = vadd.f32 %v2386, %v2634
    %v2664 = vadd.f32 %v2387, %v2637
    %v2665 = vadd.f32 %v2388, %v2640
    %v2666 = vadd.f32 %v2389, %v2643
    %v2667 = vadd.f32 %v2390, %v2646
    %v2668 = vadd.f32 %v2391, %v2649
    %v2669 = vadd.f32 %v2392, %v2652
    %vm2670 = vmand %vm2098, %vm870
    %vm2671 = vmand %vm2099, %vm871
    %vm2672 = vmand %vm2100, %vm872
    %vm2673 = vmand %vm2101, %vm873
    %vm2674 = vmand %vm2102, %vm874
    %vm2675 = vmand %vm2103, %vm875
    %vm2676 = vmand %vm2104, %vm876
    %vm2677 = vmand %vm2105, %vm877
    %vm2678 = vmand %vm2106, %vm878
    %vm2679 = vmand %vm2107, %vm879
    %vm2680 = vmand %vm2108, %vm880
    %vm2681 = vmand %vm2109, %vm881
    %vm2682 = vmand %vm2110, %vm882
    %vm2683 = vmand %vm2111, %vm883
    %vm2684 = vmand %vm2112, %vm884
    %vm2685 = vmand %vm2113, %vm885
    %vm2686 = vmand %vm2670, %vm902
    %vm2687 = vmand %vm2671, %vm903
    %vm2688 = vmand %vm2672, %vm904
    %vm2689 = vmand %vm2673, %vm905
    %vm2690 = vmand %vm2674, %vm906
    %vm2691 = vmand %vm2675, %vm907
    %vm2692 = vmand %vm2676, %vm908
    %vm2693 = vmand %vm2677, %vm909
    %vm2694 = vmand %vm2678, %vm910
    %vm2695 = vmand %vm2679, %vm911
    %vm2696 = vmand %vm2680, %vm912
    %vm2697 = vmand %vm2681, %vm913
    %vm2698 = vmand %vm2682, %vm914
    %vm2699 = vmand %vm2683, %vm915
    %vm2700 = vmand %vm2684, %vm916
    %vm2701 = vmand %vm2685, %vm917
    %v2702 = vadd.s32 %v69, 9
    %v2703 = vadd.s32 %v70, 9
    %v2704 = vadd.s32 %v71, 9
    %v2705 = vadd.s32 %v72, 9
    %v2706 = vadd.s32 %v73, 9
    %v2707 = vadd.s32 %v74, 9
    %v2708 = vadd.s32 %v75, 9
    %v2709 = vadd.s32 %v76, 9
    %v2710 = vadd.s32 %v77, 9
    %v2711 = vadd.s32 %v78, 9
    %v2712 = vadd.s32 %v79, 9
    %v2713 = vadd.s32 %v80, 9
    %v2714 = vadd.s32 %v81, 9
    %v2715 = vadd.s32 %v82, 9
    %v2716 = vadd.s32 %v83, 9
    %v2717 = vadd.s32 %v84, 9
    %vm2718 = vcmp.eq.s32.totalorder %v134, %v2702
    %vm2719 = vcmp.eq.s32.totalorder %v134, %v2703
    %vm2720 = vcmp.eq.s32.totalorder %v134, %v2704
    %vm2721 = vcmp.eq.s32.totalorder %v134, %v2705
    %vm2722 = vcmp.eq.s32.totalorder %v134, %v2706
    %vm2723 = vcmp.eq.s32.totalorder %v134, %v2707
    %vm2724 = vcmp.eq.s32.totalorder %v134, %v2708
    %vm2725 = vcmp.eq.s32.totalorder %v134, %v2709
    %vm2726 = vcmp.eq.s32.totalorder %v134, %v2710
    %vm2727 = vcmp.eq.s32.totalorder %v134, %v2711
    %vm2728 = vcmp.eq.s32.totalorder %v134, %v2712
    %vm2729 = vcmp.eq.s32.totalorder %v134, %v2713
    %vm2730 = vcmp.eq.s32.totalorder %v134, %v2714
    %vm2731 = vcmp.eq.s32.totalorder %v134, %v2715
    %vm2732 = vcmp.eq.s32.totalorder %v134, %v2716
    %vm2733 = vcmp.eq.s32.totalorder %v134, %v2717
    %v2734 = vsel %vm2686, 1, 0
    %v2735 = vsel %vm2687, 1, 0
    %v2736 = vsel %vm2688, 1, 0
    %v2737 = vsel %vm2689, 1, 0
    %v2738 = vsel %vm2690, 1, 0
    %v2739 = vsel %vm2691, 1, 0
    %v2740 = vsel %vm2692, 1, 0
    %v2741 = vsel %vm2693, 1, 0
    %v2742 = vsel %vm2694, 1, 0
    %v2743 = vsel %vm2695, 1, 0
    %v2744 = vsel %vm2696, 1, 0
    %v2745 = vsel %vm2697, 1, 0
    %v2746 = vsel %vm2698, 1, 0
    %v2747 = vsel %vm2699, 1, 0
    %v2748 = vsel %vm2700, 1, 0
    %v2749 = vsel %vm2701, 1, 0
    %vm2750 = vcmp.eq.s32.totalorder %v2734, 1
    %vm2751 = vcmp.eq.s32.totalorder %v2735, 1
    %vm2752 = vcmp.eq.s32.totalorder %v2736, 1
    %vm2753 = vcmp.eq.s32.totalorder %v2737, 1
    %vm2754 = vcmp.eq.s32.totalorder %v2738, 1
    %vm2755 = vcmp.eq.s32.totalorder %v2739, 1
    %vm2756 = vcmp.eq.s32.totalorder %v2740, 1
    %vm2757 = vcmp.eq.s32.totalorder %v2741, 1
    %vm2758 = vcmp.eq.s32.totalorder %v2742, 1
    %vm2759 = vcmp.eq.s32.totalorder %v2743, 1
    %vm2760 = vcmp.eq.s32.totalorder %v2744, 1
    %vm2761 = vcmp.eq.s32.totalorder %v2745, 1
    %vm2762 = vcmp.eq.s32.totalorder %v2746, 1
    %vm2763 = vcmp.eq.s32.totalorder %v2747, 1
    %vm2764 = vcmp.eq.s32.totalorder %v2748, 1
    %vm2765 = vcmp.eq.s32.totalorder %v2749, 1
    %vm2766 = vmand %vm2750, %vm2718
    %vm2767 = vmand %vm2751, %vm2719
    %vm2768 = vmand %vm2752, %vm2720
    %vm2769 = vmand %vm2753, %vm2721
    %vm2770 = vmand %vm2754, %vm2722
    %vm2771 = vmand %vm2755, %vm2723
    %vm2772 = vmand %vm2756, %vm2724
    %vm2773 = vmand %vm2757, %vm2725
    %vm2774 = vmand %vm2758, %vm2726
    %vm2775 = vmand %vm2759, %vm2727
    %vm2776 = vmand %vm2760, %vm2728
    %vm2777 = vmand %vm2761, %vm2729
    %vm2778 = vmand %vm2762, %vm2730
    %vm2779 = vmand %vm2763, %vm2731
    %vm2780 = vmand %vm2764, %vm2732
    %vm2781 = vmand %vm2765, %vm2733
    %v2782 = vsel %vm2766, 1.0, 0.0
    %v2783 = vsel %vm2767, 1.0, 0.0
    %v2784 = vsel %vm2768, 1.0, 0.0
    %v2785 = vsel %vm2769, 1.0, 0.0
    %v2786 = vsel %vm2770, 1.0, 0.0
    %v2787 = vsel %vm2771, 1.0, 0.0
    %v2788 = vsel %vm2772, 1.0, 0.0
    %v2789 = vsel %vm2773, 1.0, 0.0
    %v2790 = vsel %vm2774, 1.0, 0.0
    %v2791 = vsel %vm2775, 1.0, 0.0
    %v2792 = vsel %vm2776, 1.0, 0.0
    %v2793 = vsel %vm2777, 1.0, 0.0
    %v2794 = vsel %vm2778, 1.0, 0.0
    %v2795 = vsel %vm2779, 1.0, 0.0
    %v2796 = vsel %vm2780, 1.0, 0.0
    %v2797 = vsel %vm2781, 1.0, 0.0
    %s2798 = scalar_lea.vmem %s1, 32
    %v2799 = vld [vmem:[%s2798] sm:$0x7]
    %v2801 = vsel %vm425, %v2799, 0
    %2803 = vmatpush.msra.mxu0 0.0
    %2804 = vmatpush.msra.mxu0 0.0
    %2805 = vmatpush.msra.mxu0 0.0
    %2806 = vmatpush.msra.mxu0 0.0
    %2807 = vmatpush.msra.mxu0 0.0
    %2808 = vmatpush.msra.mxu0 0.0
    %2809 = vmatpush.msra.mxu0 0.0
    %2810 = vmatpush.msra.mxu0 0.0
    %2811 = vmatpush.msra.mxu0 0.0
    %2812 = vmatpush.msra.mxu0 0.0
    %2813 = vmatpush.msra.mxu0 0.0
    %2814 = vmatpush.msra.mxu0 0.0
    %2815 = vmatpush.msra.mxu0 0.0
    %2816 = vmatpush.msra.mxu0 0.0
    %2817 = vmatpush.msra.mxu0 0.0
    %2818 = vmatpush.msra.mxu0 %v2801
    %2819 = vmatmul.f32.gmra.mxu0 %v378
    %v2820 = vpop.f32.mrf.mxu0
    %v2821 = vadd.f32 0.0, %v2820
    %2822 = vmatmul.f32.gmra.mxu0 %v381
    %v2823 = vpop.f32.mrf.mxu0
    %v2824 = vadd.f32 0.0, %v2823
    %2825 = vmatmul.f32.gmra.mxu0 %v384
    %v2826 = vpop.f32.mrf.mxu0
    %v2827 = vadd.f32 0.0, %v2826
    %2828 = vmatmul.f32.gmra.mxu0 %v387
    %v2829 = vpop.f32.mrf.mxu0
    %v2830 = vadd.f32 0.0, %v2829
    %2831 = vmatmul.f32.gmra.mxu0 %v390
    %v2832 = vpop.f32.mrf.mxu0
    %v2833 = vadd.f32 0.0, %v2832
    %2834 = vmatmul.f32.gmra.mxu0 %v393
    %v2835 = vpop.f32.mrf.mxu0
    %v2836 = vadd.f32 0.0, %v2835
    %2837 = vmatmul.f32.gmra.mxu0 %v396
    %v2838 = vpop.f32.mrf.mxu0
    %v2839 = vadd.f32 0.0, %v2838
    %2840 = vmatmul.f32.gmra.mxu0 %v399
    %v2841 = vpop.f32.mrf.mxu0
    %v2842 = vadd.f32 0.0, %v2841
    %2843 = vmatmul.f32.gmra.mxu0 %v402
    %v2844 = vpop.f32.mrf.mxu0
    %v2845 = vadd.f32 0.0, %v2844
    %2846 = vmatmul.f32.gmra.mxu0 %v405
    %v2847 = vpop.f32.mrf.mxu0
    %v2848 = vadd.f32 0.0, %v2847
    %2849 = vmatmul.f32.gmra.mxu0 %v408
    %v2850 = vpop.f32.mrf.mxu0
    %v2851 = vadd.f32 0.0, %v2850
    %2852 = vmatmul.f32.gmra.mxu0 %v411
    %v2853 = vpop.f32.mrf.mxu0
    %v2854 = vadd.f32 0.0, %v2853
    %2855 = vmatmul.f32.gmra.mxu0 %v414
    %v2856 = vpop.f32.mrf.mxu0
    %v2857 = vadd.f32 0.0, %v2856
    %2858 = vmatmul.f32.gmra.mxu0 %v417
    %v2859 = vpop.f32.mrf.mxu0
    %v2860 = vadd.f32 0.0, %v2859
    %2861 = vmatmul.f32.gmra.mxu0 %v420
    %v2862 = vpop.f32.mrf.mxu0
    %v2863 = vadd.f32 0.0, %v2862
    %2864 = vmatmul.f32.gmra.mxu0 %v423
    %v2865 = vpop.f32.mrf.mxu0
    %v2866 = vadd.f32 0.0, %v2865
    %2867 = vdwg.mxu0
    %2868 = vmatpush.msra.mxu0 %v2866
    %2869 = vmatpush.msra.mxu0 %v2863
    %2870 = vmatpush.msra.mxu0 %v2860
    %2871 = vmatpush.msra.mxu0 %v2857
    %2872 = vmatpush.msra.mxu0 %v2854
    %2873 = vmatpush.msra.mxu0 %v2851
    %2874 = vmatpush.msra.mxu0 %v2848
    %2875 = vmatpush.msra.mxu0 %v2845
    %2876 = vmatpush.msra.mxu0 %v2842
    %2877 = vmatpush.msra.mxu0 %v2839
    %2878 = vmatpush.msra.mxu0 %v2836
    %2879 = vmatpush.msra.mxu0 %v2833
    %2880 = vmatpush.msra.mxu0 %v2830
    %2881 = vmatpush.msra.mxu0 %v2827
    %2882 = vmatpush.msra.mxu0 %v2824
    %2883 = vmatpush.msra.mxu0 %v2821
    %2884 = vmatmul.f32.gmra.mxu0 %v2782
    %v2885 = vpop.f32.mrf.mxu0
    %v2886 = vadd.f32 0.0, %v2885
    %2887 = vmatmul.f32.gmra.mxu0 %v2783
    %v2888 = vpop.f32.mrf.mxu0
    %v2889 = vadd.f32 0.0, %v2888
    %2890 = vmatmul.f32.gmra.mxu0 %v2784
    %v2891 = vpop.f32.mrf.mxu0
    %v2892 = vadd.f32 0.0, %v2891
    %2893 = vmatmul.f32.gmra.mxu0 %v2785
    %v2894 = vpop.f32.mrf.mxu0
    %v2895 = vadd.f32 0.0, %v2894
    %2896 = vmatmul.f32.gmra.mxu0 %v2786
    %v2897 = vpop.f32.mrf.mxu0
    %v2898 = vadd.f32 0.0, %v2897
    %2899 = vmatmul.f32.gmra.mxu0 %v2787
    %v2900 = vpop.f32.mrf.mxu0
    %v2901 = vadd.f32 0.0, %v2900
    %2902 = vmatmul.f32.gmra.mxu0 %v2788
    %v2903 = vpop.f32.mrf.mxu0
    %v2904 = vadd.f32 0.0, %v2903
    %2905 = vmatmul.f32.gmra.mxu0 %v2789
    %v2906 = vpop.f32.mrf.mxu0
    %v2907 = vadd.f32 0.0, %v2906
    %2908 = vmatmul.f32.gmra.mxu0 %v2790
    %v2909 = vpop.f32.mrf.mxu0
    %v2910 = vadd.f32 0.0, %v2909
    %2911 = vmatmul.f32.gmra.mxu0 %v2791
    %v2912 = vpop.f32.mrf.mxu0
    %v2913 = vadd.f32 0.0, %v2912
    %2914 = vmatmul.f32.gmra.mxu0 %v2792
    %v2915 = vpop.f32.mrf.mxu0
    %v2916 = vadd.f32 0.0, %v2915
    %2917 = vmatmul.f32.gmra.mxu0 %v2793
    %v2918 = vpop.f32.mrf.mxu0
    %v2919 = vadd.f32 0.0, %v2918
    %2920 = vmatmul.f32.gmra.mxu0 %v2794
    %v2921 = vpop.f32.mrf.mxu0
    %v2922 = vadd.f32 0.0, %v2921
    %2923 = vmatmul.f32.gmra.mxu0 %v2795
    %v2924 = vpop.f32.mrf.mxu0
    %v2925 = vadd.f32 0.0, %v2924
    %2926 = vmatmul.f32.gmra.mxu0 %v2796
    %v2927 = vpop.f32.mrf.mxu0
    %v2928 = vadd.f32 0.0, %v2927
    %2929 = vmatmul.f32.gmra.mxu0 %v2797
    %v2930 = vpop.f32.mrf.mxu0
    %v2931 = vadd.f32 0.0, %v2930
    %2932 = vdwg.mxu0
    %v2933 = vadd.f32 %v2654, %v2886
    %v2934 = vadd.f32 %v2655, %v2889
    %v2935 = vadd.f32 %v2656, %v2892
    %v2936 = vadd.f32 %v2657, %v2895
    %v2937 = vadd.f32 %v2658, %v2898
    %v2938 = vadd.f32 %v2659, %v2901
    %v2939 = vadd.f32 %v2660, %v2904
    %v2940 = vadd.f32 %v2661, %v2907
    %v2941 = vadd.f32 %v2662, %v2910
    %v2942 = vadd.f32 %v2663, %v2913
    %v2943 = vadd.f32 %v2664, %v2916
    %v2944 = vadd.f32 %v2665, %v2919
    %v2945 = vadd.f32 %v2666, %v2922
    %v2946 = vadd.f32 %v2667, %v2925
    %v2947 = vadd.f32 %v2668, %v2928
    %v2948 = vadd.f32 %v2669, %v2931
    %v2950 = vperm.slane %v67, 0
    %v2952 = vadd.f32 %v2933, %v2950
    %v2953 = vadd.f32 %v2934, %v2950
    %v2954 = vadd.f32 %v2935, %v2950
    %v2955 = vadd.f32 %v2936, %v2950
    %v2956 = vadd.f32 %v2937, %v2950
    %v2957 = vadd.f32 %v2938, %v2950
    %v2958 = vadd.f32 %v2939, %v2950
    %v2959 = vadd.f32 %v2940, %v2950
    %v2960 = vadd.f32 %v2941, %v2950
    %v2961 = vadd.f32 %v2942, %v2950
    %v2962 = vadd.f32 %v2943, %v2950
    %v2963 = vadd.f32 %v2944, %v2950
    %v2964 = vadd.f32 %v2945, %v2950
    %v2965 = vadd.f32 %v2946, %v2950
    %v2966 = vadd.f32 %v2947, %v2950
    %v2967 = vadd.f32 %v2948, %v2950
    %vm2968 = vcmp.gt.f32.partialorder %v2952, 0.0
    %vm2969 = vcmp.gt.f32.partialorder %v2953, 0.0
    %vm2970 = vcmp.gt.f32.partialorder %v2954, 0.0
    %vm2971 = vcmp.gt.f32.partialorder %v2955, 0.0
    %vm2972 = vcmp.gt.f32.partialorder %v2956, 0.0
    %vm2973 = vcmp.gt.f32.partialorder %v2957, 0.0
    %vm2974 = vcmp.gt.f32.partialorder %v2958, 0.0
    %vm2975 = vcmp.gt.f32.partialorder %v2959, 0.0
    %vm2976 = vcmp.gt.f32.partialorder %v2960, 0.0
    %vm2977 = vcmp.gt.f32.partialorder %v2961, 0.0
    %vm2978 = vcmp.gt.f32.partialorder %v2962, 0.0
    %vm2979 = vcmp.gt.f32.partialorder %v2963, 0.0
    %vm2980 = vcmp.gt.f32.partialorder %v2964, 0.0
    %vm2981 = vcmp.gt.f32.partialorder %v2965, 0.0
    %vm2982 = vcmp.gt.f32.partialorder %v2966, 0.0
    %vm2983 = vcmp.gt.f32.partialorder %v2967, 0.0
    %v2984 = vmul.f32 %v2952, 0.01
    %v2985 = vmul.f32 %v2953, 0.01
    %v2986 = vmul.f32 %v2954, 0.01
    %v2987 = vmul.f32 %v2955, 0.01
    %v2988 = vmul.f32 %v2956, 0.01
    %v2989 = vmul.f32 %v2957, 0.01
    %v2990 = vmul.f32 %v2958, 0.01
    %v2991 = vmul.f32 %v2959, 0.01
    %v2992 = vmul.f32 %v2960, 0.01
    %v2993 = vmul.f32 %v2961, 0.01
    %v2994 = vmul.f32 %v2962, 0.01
    %v2995 = vmul.f32 %v2963, 0.01
    %v2996 = vmul.f32 %v2964, 0.01
    %v2997 = vmul.f32 %v2965, 0.01
    %v2998 = vmul.f32 %v2966, 0.01
    %v2999 = vmul.f32 %v2967, 0.01
    %v3000 = vsel %vm2968, %v2952, %v2984
    %v3001 = vsel %vm2969, %v2953, %v2985
    %v3002 = vsel %vm2970, %v2954, %v2986
    %v3003 = vsel %vm2971, %v2955, %v2987
    %v3004 = vsel %vm2972, %v2956, %v2988
    %v3005 = vsel %vm2973, %v2957, %v2989
    %v3006 = vsel %vm2974, %v2958, %v2990
    %v3007 = vsel %vm2975, %v2959, %v2991
    %v3008 = vsel %vm2976, %v2960, %v2992
    %v3009 = vsel %vm2977, %v2961, %v2993
    %v3010 = vsel %vm2978, %v2962, %v2994
    %v3011 = vsel %vm2979, %v2963, %v2995
    %v3012 = vsel %vm2980, %v2964, %v2996
    %v3013 = vsel %vm2981, %v2965, %v2997
    %v3014 = vsel %vm2982, %v2966, %v2998
    %v3015 = vsel %vm2983, %v2967, %v2999
    %v3016 = vshra.s32 %v69, 4
    %v3017 = vshra.s32 %v70, 4
    %v3018 = vshra.s32 %v71, 4
    %v3019 = vshra.s32 %v72, 4
    %v3020 = vand.u32 %v69, 15
    %v3021 = vand.u32 %v70, 15
    %v3022 = vand.u32 %v71, 15
    %v3023 = vand.u32 %v72, 15
    %v3024 = vshra.s32 %v3020, 2
    %v3025 = vshra.s32 %v3021, 2
    %v3026 = vshra.s32 %v3022, 2
    %v3027 = vshra.s32 %v3023, 2
    %v3028 = vand.u32 %v69, 3
    %v3029 = vand.u32 %v70, 3
    %v3030 = vand.u32 %v71, 3
    %v3031 = vand.u32 %v72, 3
    %v3032 = vmul.u32 %v3016, 64
    %v3033 = vmul.u32 %v3017, 64
    %v3034 = vmul.u32 %v3018, 64
    %v3035 = vmul.u32 %v3019, 64
    %v3036 = vmul.u32 %v3024, 16
    %v3037 = vmul.u32 %v3025, 16
    %v3038 = vmul.u32 %v3026, 16
    %v3039 = vmul.u32 %v3027, 16
    %v3040 = vadd.s32 %v3032, %v3036
    %v3041 = vadd.s32 %v3033, %v3037
    %v3042 = vadd.s32 %v3034, %v3038
    %v3043 = vadd.s32 %v3035, %v3039
    %v3044 = vmul.u32 %v3028, 2
    %v3045 = vmul.u32 %v3029, 2
    %v3046 = vmul.u32 %v3030, 2
    %v3047 = vmul.u32 %v3031, 2
    %v3048 = vadd.s32 %v3040, %v3044
    %v3049 = vadd.s32 %v3041, %v3045
    %v3050 = vadd.s32 %v3042, %v3046
    %v3051 = vadd.s32 %v3043, %v3047
    %vm3052 = vcmp.eq.s32.totalorder %v134, %v3048
    %vm3053 = vcmp.eq.s32.totalorder %v134, %v3049
    %vm3054 = vcmp.eq.s32.totalorder %v134, %v3050
    %vm3055 = vcmp.eq.s32.totalorder %v134, %v3051
    %v3056 = vsel %vm3052, 1.0, 0.0
    %v3057 = vsel %vm3053, 1.0, 0.0
    %v3058 = vsel %vm3054, 1.0, 0.0
    %v3059 = vsel %vm3055, 1.0, 0.0
    %3060 = vmatpush.msra.mxu0 %v3015
    %3061 = vmatpush.msra.mxu0 %v3014
    %3062 = vmatpush.msra.mxu0 %v3013
    %3063 = vmatpush.msra.mxu0 %v3012
    %3064 = vmatpush.msra.mxu0 %v3011
    %3065 = vmatpush.msra.mxu0 %v3010
    %3066 = vmatpush.msra.mxu0 %v3009
    %3067 = vmatpush.msra.mxu0 %v3008
    %3068 = vmatpush.msra.mxu0 %v3007
    %3069 = vmatpush.msra.mxu0 %v3006
    %3070 = vmatpush.msra.mxu0 %v3005
    %3071 = vmatpush.msra.mxu0 %v3004
    %3072 = vmatpush.msra.mxu0 %v3003
    %3073 = vmatpush.msra.mxu0 %v3002
    %3074 = vmatpush.msra.mxu0 %v3001
    %3075 = vmatpush.msra.mxu0 %v3000
    %3076 = vmatmul.f32.gmra.mxu0 %v3056
    %v3077 = vpop.f32.mrf.mxu0
    %v3078 = vadd.f32 0.0, %v3077
    %3079 = vmatmul.f32.gmra.mxu0 %v3057
    %v3080 = vpop.f32.mrf.mxu0
    %v3081 = vadd.f32 0.0, %v3080
    %3082 = vmatmul.f32.gmra.mxu0 %v3058
    %v3083 = vpop.f32.mrf.mxu0
    %v3084 = vadd.f32 0.0, %v3083
    %3085 = vmatmul.f32.gmra.mxu0 %v3059
    %v3086 = vpop.f32.mrf.mxu0
    %v3087 = vadd.f32 0.0, %v3086
    %3088 = vdwg.mxu0
    %v3089 = vadd.s32 %v3048, 1
    %v3090 = vadd.s32 %v3049, 1
    %v3091 = vadd.s32 %v3050, 1
    %v3092 = vadd.s32 %v3051, 1
    %vm3093 = vcmp.eq.s32.totalorder %v134, %v3089
    %vm3094 = vcmp.eq.s32.totalorder %v134, %v3090
    %vm3095 = vcmp.eq.s32.totalorder %v134, %v3091
    %vm3096 = vcmp.eq.s32.totalorder %v134, %v3092
    %v3097 = vsel %vm3093, 1.0, 0.0
    %v3098 = vsel %vm3094, 1.0, 0.0
    %v3099 = vsel %vm3095, 1.0, 0.0
    %v3100 = vsel %vm3096, 1.0, 0.0
    %3101 = vmatpush.msra.mxu0 %v3015
    %3102 = vmatpush.msra.mxu0 %v3014
    %3103 = vmatpush.msra.mxu0 %v3013
    %3104 = vmatpush.msra.mxu0 %v3012
    %3105 = vmatpush.msra.mxu0 %v3011
    %3106 = vmatpush.msra.mxu0 %v3010
    %3107 = vmatpush.msra.mxu0 %v3009
    %3108 = vmatpush.msra.mxu0 %v3008
    %3109 = vmatpush.msra.mxu0 %v3007
    %3110 = vmatpush.msra.mxu0 %v3006
    %3111 = vmatpush.msra.mxu0 %v3005
    %3112 = vmatpush.msra.mxu0 %v3004
    %3113 = vmatpush.msra.mxu0 %v3003
    %3114 = vmatpush.msra.mxu0 %v3002
    %3115 = vmatpush.msra.mxu0 %v3001
    %3116 = vmatpush.msra.mxu0 %v3000
    %3117 = vmatmul.f32.gmra.mxu0 %v3097
    %v3118 = vpop.f32.mrf.mxu0
    %v3119 = vadd.f32 0.0, %v3118
    %3120 = vmatmul.f32.gmra.mxu0 %v3098
    %v3121 = vpop.f32.mrf.mxu0
    %v3122 = vadd.f32 0.0, %v3121
    %3123 = vmatmul.f32.gmra.mxu0 %v3099
    %v3124 = vpop.f32.mrf.mxu0
    %v3125 = vadd.f32 0.0, %v3124
    %3126 = vmatmul.f32.gmra.mxu0 %v3100
    %v3127 = vpop.f32.mrf.mxu0
    %v3128 = vadd.f32 0.0, %v3127
    %3129 = vdwg.mxu0
    %v3130 = vmax.f32 %v3078, %v3119
    %v3131 = vmax.f32 %v3081, %v3122
    %v3132 = vmax.f32 %v3084, %v3125
    %v3133 = vmax.f32 %v3087, %v3128
    %v3134 = vadd.s32 %v3048, 8
    %v3135 = vadd.s32 %v3049, 8
    %v3136 = vadd.s32 %v3050, 8
    %v3137 = vadd.s32 %v3051, 8
    %vm3138 = vcmp.eq.s32.totalorder %v134, %v3134
    %vm3139 = vcmp.eq.s32.totalorder %v134, %v3135
    %vm3140 = vcmp.eq.s32.totalorder %v134, %v3136
    %vm3141 = vcmp.eq.s32.totalorder %v134, %v3137
    %v3142 = vsel %vm3138, 1.0, 0.0
    %v3143 = vsel %vm3139, 1.0, 0.0
    %v3144 = vsel %vm3140, 1.0, 0.0
    %v3145 = vsel %vm3141, 1.0, 0.0
    %3146 = vmatpush.msra.mxu0 %v3015
    %3147 = vmatpush.msra.mxu0 %v3014
    %3148 = vmatpush.msra.mxu0 %v3013
    %3149 = vmatpush.msra.mxu0 %v3012
    %3150 = vmatpush.msra.mxu0 %v3011
    %3151 = vmatpush.msra.mxu0 %v3010
    %3152 = vmatpush.msra.mxu0 %v3009
    %3153 = vmatpush.msra.mxu0 %v3008
    %3154 = vmatpush.msra.mxu0 %v3007
    %3155 = vmatpush.msra.mxu0 %v3006
    %3156 = vmatpush.msra.mxu0 %v3005
    %3157 = vmatpush.msra.mxu0 %v3004
    %3158 = vmatpush.msra.mxu0 %v3003
    %3159 = vmatpush.msra.mxu0 %v3002
    %3160 = vmatpush.msra.mxu0 %v3001
    %3161 = vmatpush.msra.mxu0 %v3000
    %3162 = vmatmul.f32.gmra.mxu0 %v3142
    %v3163 = vpop.f32.mrf.mxu0
    %v3164 = vadd.f32 0.0, %v3163
    %3165 = vmatmul.f32.gmra.mxu0 %v3143
    %v3166 = vpop.f32.mrf.mxu0
    %v3167 = vadd.f32 0.0, %v3166
    %3168 = vmatmul.f32.gmra.mxu0 %v3144
    %v3169 = vpop.f32.mrf.mxu0
    %v3170 = vadd.f32 0.0, %v3169
    %3171 = vmatmul.f32.gmra.mxu0 %v3145
    %v3172 = vpop.f32.mrf.mxu0
    %v3173 = vadd.f32 0.0, %v3172
    %3174 = vdwg.mxu0
    %v3175 = vmax.f32 %v3130, %v3164
    %v3176 = vmax.f32 %v3131, %v3167
    %v3177 = vmax.f32 %v3132, %v3170
    %v3178 = vmax.f32 %v3133, %v3173
    %v3179 = vadd.s32 %v3048, 9
    %v3180 = vadd.s32 %v3049, 9
    %v3181 = vadd.s32 %v3050, 9
    %v3182 = vadd.s32 %v3051, 9
    %vm3183 = vcmp.eq.s32.totalorder %v134, %v3179
    %vm3184 = vcmp.eq.s32.totalorder %v134, %v3180
    %vm3185 = vcmp.eq.s32.totalorder %v134, %v3181
    %vm3186 = vcmp.eq.s32.totalorder %v134, %v3182
    %v3187 = vsel %vm3183, 1.0, 0.0
    %v3188 = vsel %vm3184, 1.0, 0.0
    %v3189 = vsel %vm3185, 1.0, 0.0
    %v3190 = vsel %vm3186, 1.0, 0.0
    %3191 = vmatpush.msra.mxu0 %v3015
    %3192 = vmatpush.msra.mxu0 %v3014
    %3193 = vmatpush.msra.mxu0 %v3013
    %3194 = vmatpush.msra.mxu0 %v3012
    %3195 = vmatpush.msra.mxu0 %v3011
    %3196 = vmatpush.msra.mxu0 %v3010
    %3197 = vmatpush.msra.mxu0 %v3009
    %3198 = vmatpush.msra.mxu0 %v3008
    %3199 = vmatpush.msra.mxu0 %v3007
    %3200 = vmatpush.msra.mxu0 %v3006
    %3201 = vmatpush.msra.mxu0 %v3005
    %3202 = vmatpush.msra.mxu0 %v3004
    %3203 = vmatpush.msra.mxu0 %v3003
    %3204 = vmatpush.msra.mxu0 %v3002
    %3205 = vmatpush.msra.mxu0 %v3001
    %3206 = vmatpush.msra.mxu0 %v3000
    %3207 = vmatmul.f32.gmra.mxu0 %v3187
    %v3208 = vpop.f32.mrf.mxu0
    %v3209 = vadd.f32 0.0, %v3208
    %3210 = vmatmul.f32.gmra.mxu0 %v3188
    %v3211 = vpop.f32.mrf.mxu0
    %v3212 = vadd.f32 0.0, %v3211
    %3213 = vmatmul.f32.gmra.mxu0 %v3189
    %v3214 = vpop.f32.mrf.mxu0
    %v3215 = vadd.f32 0.0, %v3214
    %3216 = vmatmul.f32.gmra.mxu0 %v3190
    %v3217 = vpop.f32.mrf.mxu0
    %v3218 = vadd.f32 0.0, %v3217
    %3219 = vdwg.mxu0
    %v3220 = vmax.f32 %v3175, %v3209
    %v3221 = vmax.f32 %v3176, %v3212
    %v3222 = vmax.f32 %v3177, %v3215
    %v3223 = vmax.f32 %v3178, %v3218
    %v3224 = vld [vmem:[%s4] sm:$0x1]
    %v3225 = vadd.s32 %v3024, 4294967295
    %v3226 = vadd.s32 %v3025, 4294967295
    %v3227 = vadd.s32 %v3026, 4294967295
    %v3228 = vadd.s32 %v3027, 4294967295
    %vm3229 = vcmp.ge.s32.totalorder %v3225, 0
    %vm3230 = vcmp.ge.s32.totalorder %v3226, 0
    %vm3231 = vcmp.ge.s32.totalorder %v3227, 0
    %vm3232 = vcmp.ge.s32.totalorder %v3228, 0
    %vm3233 = vcmp.lt.s32.totalorder %v3225, 4
    %vm3234 = vcmp.lt.s32.totalorder %v3226, 4
    %vm3235 = vcmp.lt.s32.totalorder %v3227, 4
    %vm3236 = vcmp.lt.s32.totalorder %v3228, 4
    %vm3237 = vmand %vm3229, %vm3233
    %vm3238 = vmand %vm3230, %vm3234
    %vm3239 = vmand %vm3231, %vm3235
    %vm3240 = vmand %vm3232, %vm3236
    %v3241 = vadd.s32 %v3028, 4294967295
    %v3242 = vadd.s32 %v3029, 4294967295
    %v3243 = vadd.s32 %v3030, 4294967295
    %v3244 = vadd.s32 %v3031, 4294967295
    %vm3245 = vcmp.ge.s32.totalorder %v3241, 0
    %vm3246 = vcmp.ge.s32.totalorder %v3242, 0
    %vm3247 = vcmp.ge.s32.totalorder %v3243, 0
    %vm3248 = vcmp.ge.s32.totalorder %v3244, 0
    %vm3249 = vmand %vm3237, %vm3245
    %vm3250 = vmand %vm3238, %vm3246
    %vm3251 = vmand %vm3239, %vm3247
    %vm3252 = vmand %vm3240, %vm3248
    %vm3253 = vcmp.lt.s32.totalorder %v3241, 4
    %vm3254 = vcmp.lt.s32.totalorder %v3242, 4
    %vm3255 = vcmp.lt.s32.totalorder %v3243, 4
    %vm3256 = vcmp.lt.s32.totalorder %v3244, 4
    %vm3257 = vmand %vm3249, %vm3253
    %vm3258 = vmand %vm3250, %vm3254
    %vm3259 = vmand %vm3251, %vm3255
    %vm3260 = vmand %vm3252, %vm3256
    %v3261 = vadd.s32 %v69, 4294967291
    %v3262 = vadd.s32 %v70, 4294967291
    %v3263 = vadd.s32 %v71, 4294967291
    %v3264 = vadd.s32 %v72, 4294967291
    %vm3265 = vcmp.eq.s32.totalorder %v134, %v3261
    %vm3266 = vcmp.eq.s32.totalorder %v134, %v3262
    %vm3267 = vcmp.eq.s32.totalorder %v134, %v3263
    %vm3268 = vcmp.eq.s32.totalorder %v134, %v3264
    %v3269 = vsel %vm3257, 1, 0
    %v3270 = vsel %vm3258, 1, 0
    %v3271 = vsel %vm3259, 1, 0
    %v3272 = vsel %vm3260, 1, 0
    %vm3273 = vcmp.eq.s32.totalorder %v3269, 1
    %vm3274 = vcmp.eq.s32.totalorder %v3270, 1
    %vm3275 = vcmp.eq.s32.totalorder %v3271, 1
    %vm3276 = vcmp.eq.s32.totalorder %v3272, 1
    %vm3277 = vmand %vm3273, %vm3265
    %vm3278 = vmand %vm3274, %vm3266
    %vm3279 = vmand %vm3275, %vm3267
    %vm3280 = vmand %vm3276, %vm3268
    %v3281 = vsel %vm3277, 1.0, 0.0
    %v3282 = vsel %vm3278, 1.0, 0.0
    %v3283 = vsel %vm3279, 1.0, 0.0
    %v3284 = vsel %vm3280, 1.0, 0.0
    %v3285 = vld [vmem:[%s3] sm:$0xff]
    %vm3286 = vcmask 64512
    %v3288 = vsel %vm3286, %v3220, 0
    %v3291 = vsel %vm3286, %v3221, 0
    %v3294 = vsel %vm3286, %v3222, 0
    %v3297 = vsel %vm3286, %v3223, 0
    %3299 = vmatpush.msra.mxu0 0.0
    %3300 = vmatpush.msra.mxu0 0.0
    %3301 = vmatpush.msra.mxu0 0.0
    %3302 = vmatpush.msra.mxu0 0.0
    %3303 = vmatpush.msra.mxu0 0.0
    %3304 = vmatpush.msra.mxu0 0.0
    %3305 = vmatpush.msra.mxu0 0.0
    %3306 = vmatpush.msra.mxu0 0.0
    %3307 = vmatpush.msra.mxu0 0.0
    %3308 = vmatpush.msra.mxu0 0.0
    %3309 = vmatpush.msra.mxu0 0.0
    %3310 = vmatpush.msra.mxu0 0.0
    %3311 = vmatpush.msra.mxu0 0.0
    %3312 = vmatpush.msra.mxu0 0.0
    %3313 = vmatpush.msra.mxu0 0.0
    %3314 = vmatpush.msra.mxu0 %v3285
    %3315 = vmatmul.f32.gmra.mxu0 %v3288
    %v3316 = vpop.f32.mrf.mxu0
    %v3317 = vadd.f32 0.0, %v3316
    %3318 = vmatmul.f32.gmra.mxu0 %v3291
    %v3319 = vpop.f32.mrf.mxu0
    %v3320 = vadd.f32 0.0, %v3319
    %3321 = vmatmul.f32.gmra.mxu0 %v3294
    %v3322 = vpop.f32.mrf.mxu0
    %v3323 = vadd.f32 0.0, %v3322
    %3324 = vmatmul.f32.gmra.mxu0 %v3297
    %v3325 = vpop.f32.mrf.mxu0
    %v3326 = vadd.f32 0.0, %v3325
    %3327 = vdwg.mxu0
    %vm3328 = vcmp.ge.s32.totalorder %v3028, 0
    %vm3329 = vcmp.ge.s32.totalorder %v3029, 0
    %vm3330 = vcmp.ge.s32.totalorder %v3030, 0
    %vm3331 = vcmp.ge.s32.totalorder %v3031, 0
    %vm3332 = vmand %vm3237, %vm3328
    %vm3333 = vmand %vm3238, %vm3329
    %vm3334 = vmand %vm3239, %vm3330
    %vm3335 = vmand %vm3240, %vm3331
    %vm3336 = vcmp.lt.s32.totalorder %v3028, 4
    %vm3337 = vcmp.lt.s32.totalorder %v3029, 4
    %vm3338 = vcmp.lt.s32.totalorder %v3030, 4
    %vm3339 = vcmp.lt.s32.totalorder %v3031, 4
    %vm3340 = vmand %vm3332, %vm3336
    %vm3341 = vmand %vm3333, %vm3337
    %vm3342 = vmand %vm3334, %vm3338
    %vm3343 = vmand %vm3335, %vm3339
    %v3344 = vadd.s32 %v69, 4294967292
    %v3345 = vadd.s32 %v70, 4294967292
    %v3346 = vadd.s32 %v71, 4294967292
    %v3347 = vadd.s32 %v72, 4294967292
    %vm3348 = vcmp.eq.s32.totalorder %v134, %v3344
    %vm3349 = vcmp.eq.s32.totalorder %v134, %v3345
    %vm3350 = vcmp.eq.s32.totalorder %v134, %v3346
    %vm3351 = vcmp.eq.s32.totalorder %v134, %v3347
    %v3352 = vsel %vm3340, 1, 0
    %v3353 = vsel %vm3341, 1, 0
    %v3354 = vsel %vm3342, 1, 0
    %v3355 = vsel %vm3343, 1, 0
    %vm3356 = vcmp.eq.s32.totalorder %v3352, 1
    %vm3357 = vcmp.eq.s32.totalorder %v3353, 1
    %vm3358 = vcmp.eq.s32.totalorder %v3354, 1
    %vm3359 = vcmp.eq.s32.totalorder %v3355, 1
    %vm3360 = vmand %vm3356, %vm3348
    %vm3361 = vmand %vm3357, %vm3349
    %vm3362 = vmand %vm3358, %vm3350
    %vm3363 = vmand %vm3359, %vm3351
    %v3364 = vsel %vm3360, 1.0, 0.0
    %v3365 = vsel %vm3361, 1.0, 0.0
    %v3366 = vsel %vm3362, 1.0, 0.0
    %v3367 = vsel %vm3363, 1.0, 0.0
    %s3368 = scalar_lea.vmem %s3, 8
    %v3369 = vld [vmem:[%s3368] sm:$0xff]
    %3370 = vmatpush.msra.mxu0 0.0
    %3371 = vmatpush.msra.mxu0 0.0
    %3372 = vmatpush.msra.mxu0 0.0
    %3373 = vmatpush.msra.mxu0 0.0
    %3374 = vmatpush.msra.mxu0 0.0
    %3375 = vmatpush.msra.mxu0 0.0
    %3376 = vmatpush.msra.mxu0 0.0
    %3377 = vmatpush.msra.mxu0 0.0
    %3378 = vmatpush.msra.mxu0 0.0
    %3379 = vmatpush.msra.mxu0 0.0
    %3380 = vmatpush.msra.mxu0 0.0
    %3381 = vmatpush.msra.mxu0 0.0
    %3382 = vmatpush.msra.mxu0 0.0
    %3383 = vmatpush.msra.mxu0 0.0
    %3384 = vmatpush.msra.mxu0 0.0
    %3385 = vmatpush.msra.mxu0 %v3369
    %3386 = vmatmul.f32.gmra.mxu0 %v3288
    %v3387 = vpop.f32.mrf.mxu0
    %v3388 = vadd.f32 0.0, %v3387
    %3389 = vmatmul.f32.gmra.mxu0 %v3291
    %v3390 = vpop.f32.mrf.mxu0
    %v3391 = vadd.f32 0.0, %v3390
    %3392 = vmatmul.f32.gmra.mxu0 %v3294
    %v3393 = vpop.f32.mrf.mxu0
    %v3394 = vadd.f32 0.0, %v3393
    %3395 = vmatmul.f32.gmra.mxu0 %v3297
    %v3396 = vpop.f32.mrf.mxu0
    %v3397 = vadd.f32 0.0, %v3396
    %3398 = vdwg.mxu0
    %vm3399 = vcmask 261120
    %v3401 = vsel %vm3399, %v3364, 0
    %v3404 = vsel %vm3399, %v3365, 0
    %v3407 = vsel %vm3399, %v3366, 0
    %v3410 = vsel %vm3399, %v3367, 0
    %3412 = vmatpush.msra.mxu0 0.0
    %3413 = vmatpush.msra.mxu0 0.0
    %3414 = vmatpush.msra.mxu0 0.0
    %3415 = vmatpush.msra.mxu0 0.0
    %3416 = vmatpush.msra.mxu0 0.0
    %3417 = vmatpush.msra.mxu0 0.0
    %3418 = vmatpush.msra.mxu0 0.0
    %3419 = vmatpush.msra.mxu0 0.0
    %3420 = vmatpush.msra.mxu0 0.0
    %3421 = vmatpush.msra.mxu0 0.0
    %3422 = vmatpush.msra.mxu0 0.0
    %3423 = vmatpush.msra.mxu0 0.0
    %3424 = vmatpush.msra.mxu0 %v3397
    %3425 = vmatpush.msra.mxu0 %v3394
    %3426 = vmatpush.msra.mxu0 %v3391
    %3427 = vmatpush.msra.mxu0 %v3388
    %3428 = vmatmul.f32.gmra.mxu0 %v3401
    %v3429 = vpop.f32.mrf.mxu0
    %v3430 = vadd.f32 0.0, %v3429
    %3431 = vmatmul.f32.gmra.mxu0 %v3404
    %v3432 = vpop.f32.mrf.mxu0
    %v3433 = vadd.f32 0.0, %v3432
    %3434 = vmatmul.f32.gmra.mxu0 %v3407
    %v3435 = vpop.f32.mrf.mxu0
    %v3436 = vadd.f32 0.0, %v3435
    %3437 = vmatmul.f32.gmra.mxu0 %v3410
    %v3438 = vpop.f32.mrf.mxu0
    %v3439 = vadd.f32 0.0, %v3438
    %3440 = vdwg.mxu0
    %v3442 = vsel %vm3399, %v3281, 0
    %v3445 = vsel %vm3399, %v3282, 0
    %v3448 = vsel %vm3399, %v3283, 0
    %v3451 = vsel %vm3399, %v3284, 0
    %3453 = vmatpush.msra.mxu0 0.0
    %3454 = vmatpush.msra.mxu0 0.0
    %3455 = vmatpush.msra.mxu0 0.0
    %3456 = vmatpush.msra.mxu0 0.0
    %3457 = vmatpush.msra.mxu0 0.0
    %3458 = vmatpush.msra.mxu0 0.0
    %3459 = vmatpush.msra.mxu0 0.0
    %3460 = vmatpush.msra.mxu0 0.0
    %3461 = vmatpush.msra.mxu0 0.0
    %3462 = vmatpush.msra.mxu0 0.0
    %3463 = vmatpush.msra.mxu0 0.0
    %3464 = vmatpush.msra.mxu0 0.0
    %3465 = vmatpush.msra.mxu0 %v3326
    %3466 = vmatpush.msra.mxu0 %v3323
    %3467 = vmatpush.msra.mxu0 %v3320
    %3468 = vmatpush.msra.mxu0 %v3317
    %3469 = vmatmul.f32.gmra.mxu0 %v3442
    %v3470 = vpop.f32.mrf.mxu0
    %v3471 = vadd.f32 %v3430, %v3470
    %3472 = vmatmul.f32.gmra.mxu0 %v3445
    %v3473 = vpop.f32.mrf.mxu0
    %v3474 = vadd.f32 %v3433, %v3473
    %3475 = vmatmul.f32.gmra.mxu0 %v3448
    %v3476 = vpop.f32.mrf.mxu0
    %v3477 = vadd.f32 %v3436, %v3476
    %3478 = vmatmul.f32.gmra.mxu0 %v3451
    %v3479 = vpop.f32.mrf.mxu0
    %v3480 = vadd.f32 %v3439, %v3479
    %3481 = vdwg.mxu0
    %v3482 = vadd.s32 %v3028, 1
    %v3483 = vadd.s32 %v3029, 1
    %v3484 = vadd.s32 %v3030, 1
    %v3485 = vadd.s32 %v3031, 1
    %vm3486 = vcmp.ge.s32.totalorder %v3482, 0
    %vm3487 = vcmp.ge.s32.totalorder %v3483, 0
    %vm3488 = vcmp.ge.s32.totalorder %v3484, 0
    %vm3489 = vcmp.ge.s32.totalorder %v3485, 0
    %vm3490 = vmand %vm3237, %vm3486
    %vm3491 = vmand %vm3238, %vm3487
    %vm3492 = vmand %vm3239, %vm3488
    %vm3493 = vmand %vm3240, %vm3489
    %vm3494 = vcmp.lt.s32.totalorder %v3482, 4
    %vm3495 = vcmp.lt.s32.totalorder %v3483, 4
    %vm3496 = vcmp.lt.s32.totalorder %v3484, 4
    %vm3497 = vcmp.lt.s32.totalorder %v3485, 4
    %vm3498 = vmand %vm3490, %vm3494
    %vm3499 = vmand %vm3491, %vm3495
    %vm3500 = vmand %vm3492, %vm3496
    %vm3501 = vmand %vm3493, %vm3497
    %v3502 = vadd.s32 %v69, 4294967293
    %v3503 = vadd.s32 %v70, 4294967293
    %v3504 = vadd.s32 %v71, 4294967293
    %v3505 = vadd.s32 %v72, 4294967293
    %vm3506 = vcmp.eq.s32.totalorder %v134, %v3502
    %vm3507 = vcmp.eq.s32.totalorder %v134, %v3503
    %vm3508 = vcmp.eq.s32.totalorder %v134, %v3504
    %vm3509 = vcmp.eq.s32.totalorder %v134, %v3505
    %v3510 = vsel %vm3498, 1, 0
    %v3511 = vsel %vm3499, 1, 0
    %v3512 = vsel %vm3500, 1, 0
    %v3513 = vsel %vm3501, 1, 0
    %vm3514 = vcmp.eq.s32.totalorder %v3510, 1
    %vm3515 = vcmp.eq.s32.totalorder %v3511, 1
    %vm3516 = vcmp.eq.s32.totalorder %v3512, 1
    %vm3517 = vcmp.eq.s32.totalorder %v3513, 1
    %vm3518 = vmand %vm3514, %vm3506
    %vm3519 = vmand %vm3515, %vm3507
    %vm3520 = vmand %vm3516, %vm3508
    %vm3521 = vmand %vm3517, %vm3509
    %v3522 = vsel %vm3518, 1.0, 0.0
    %v3523 = vsel %vm3519, 1.0, 0.0
    %v3524 = vsel %vm3520, 1.0, 0.0
    %v3525 = vsel %vm3521, 1.0, 0.0
    %s3526 = scalar_lea.vmem %s3, 16
    %v3527 = vld [vmem:[%s3526] sm:$0xff]
    %3528 = vmatpush.msra.mxu0 0.0
    %3529 = vmatpush.msra.mxu0 0.0
    %3530 = vmatpush.msra.mxu0 0.0
    %3531 = vmatpush.msra.mxu0 0.0
    %3532 = vmatpush.msra.mxu0 0.0
    %3533 = vmatpush.msra.mxu0 0.0
    %3534 = vmatpush.msra.mxu0 0.0
    %3535 = vmatpush.msra.mxu0 0.0
    %3536 = vmatpush.msra.mxu0 0.0
    %3537 = vmatpush.msra.mxu0 0.0
    %3538 = vmatpush.msra.mxu0 0.0
    %3539 = vmatpush.msra.mxu0 0.0
    %3540 = vmatpush.msra.mxu0 0.0
    %3541 = vmatpush.msra.mxu0 0.0
    %3542 = vmatpush.msra.mxu0 0.0
    %3543 = vmatpush.msra.mxu0 %v3527
    %3544 = vmatmul.f32.gmra.mxu0 %v3288
    %v3545 = vpop.f32.mrf.mxu0
    %v3546 = vadd.f32 0.0, %v3545
    %3547 = vmatmul.f32.gmra.mxu0 %v3291
    %v3548 = vpop.f32.mrf.mxu0
    %v3549 = vadd.f32 0.0, %v3548
    %3550 = vmatmul.f32.gmra.mxu0 %v3294
    %v3551 = vpop.f32.mrf.mxu0
    %v3552 = vadd.f32 0.0, %v3551
    %3553 = vmatmul.f32.gmra.mxu0 %v3297
    %v3554 = vpop.f32.mrf.mxu0
    %v3555 = vadd.f32 0.0, %v3554
    %3556 = vdwg.mxu0
    %v3558 = vsel %vm3399, %v3522, 0
    %v3561 = vsel %vm3399, %v3523, 0
    %v3564 = vsel %vm3399, %v3524, 0
    %v3567 = vsel %vm3399, %v3525, 0
    %3569 = vmatpush.msra.mxu0 0.0
    %3570 = vmatpush.msra.mxu0 0.0
    %3571 = vmatpush.msra.mxu0 0.0
    %3572 = vmatpush.msra.mxu0 0.0
    %3573 = vmatpush.msra.mxu0 0.0
    %3574 = vmatpush.msra.mxu0 0.0
    %3575 = vmatpush.msra.mxu0 0.0
    %3576 = vmatpush.msra.mxu0 0.0
    %3577 = vmatpush.msra.mxu0 0.0
    %3578 = vmatpush.msra.mxu0 0.0
    %3579 = vmatpush.msra.mxu0 0.0
    %3580 = vmatpush.msra.mxu0 0.0
    %3581 = vmatpush.msra.mxu0 %v3555
    %3582 = vmatpush.msra.mxu0 %v3552
    %3583 = vmatpush.msra.mxu0 %v3549
    %3584 = vmatpush.msra.mxu0 %v3546
    %3585 = vmatmul.f32.gmra.mxu0 %v3558
    %v3586 = vpop.f32.mrf.mxu0
    %v3587 = vadd.f32 0.0, %v3586
    %3588 = vmatmul.f32.gmra.mxu0 %v3561
    %v3589 = vpop.f32.mrf.mxu0
    %v3590 = vadd.f32 0.0, %v3589
    %3591 = vmatmul.f32.gmra.mxu0 %v3564
    %v3592 = vpop.f32.mrf.mxu0
    %v3593 = vadd.f32 0.0, %v3592
    %3594 = vmatmul.f32.gmra.mxu0 %v3567
    %v3595 = vpop.f32.mrf.mxu0
    %v3596 = vadd.f32 0.0, %v3595
    %3597 = vdwg.mxu0
    %v3598 = vadd.f32 %v3471, %v3587
    %v3599 = vadd.f32 %v3474, %v3590
    %v3600 = vadd.f32 %v3477, %v3593
    %v3601 = vadd.f32 %v3480, %v3596
    %vm3602 = vcmp.ge.s32.totalorder %v3024, 0
    %vm3603 = vcmp.ge.s32.totalorder %v3025, 0
    %vm3604 = vcmp.ge.s32.totalorder %v3026, 0
    %vm3605 = vcmp.ge.s32.totalorder %v3027, 0
    %vm3606 = vcmp.lt.s32.totalorder %v3024, 4
    %vm3607 = vcmp.lt.s32.totalorder %v3025, 4
    %vm3608 = vcmp.lt.s32.totalorder %v3026, 4
    %vm3609 = vcmp.lt.s32.totalorder %v3027, 4
    %vm3610 = vmand %vm3602, %vm3606
    %vm3611 = vmand %vm3603, %vm3607
    %vm3612 = vmand %vm3604, %vm3608
    %vm3613 = vmand %vm3605, %vm3609
    %vm3614 = vmand %vm3610, %vm3245
    %vm3615 = vmand %vm3611, %vm3246
    %vm3616 = vmand %vm3612, %vm3247
    %vm3617 = vmand %vm3613, %vm3248
    %vm3618 = vmand %vm3614, %vm3253
    %vm3619 = vmand %vm3615, %vm3254
    %vm3620 = vmand %vm3616, %vm3255
    %vm3621 = vmand %vm3617, %vm3256
    %v3622 = vsel %vm3618, 1, 0
    %v3623 = vsel %vm3619, 1, 0
    %v3624 = vsel %vm3620, 1, 0
    %v3625 = vsel %vm3621, 1, 0
    %vm3626 = vcmp.eq.s32.totalorder %v3622, 1
    %vm3627 = vcmp.eq.s32.totalorder %v3623, 1
    %vm3628 = vcmp.eq.s32.totalorder %v3624, 1
    %vm3629 = vcmp.eq.s32.totalorder %v3625, 1
    %vm3630 = vmand %vm3626, %vm1277
    %vm3631 = vmand %vm3627, %vm1278
    %vm3632 = vmand %vm3628, %vm1279
    %vm3633 = vmand %vm3629, %vm1280
    %v3634 = vsel %vm3630, 1.0, 0.0
    %v3635 = vsel %vm3631, 1.0, 0.0
    %v3636 = vsel %vm3632, 1.0, 0.0
    %v3637 = vsel %vm3633, 1.0, 0.0
    %s3638 = scalar_lea.vmem %s3, 24
    %v3639 = vld [vmem:[%s3638] sm:$0xff]
    %3640 = vmatpush.msra.mxu0 0.0
    %3641 = vmatpush.msra.mxu0 0.0
    %3642 = vmatpush.msra.mxu0 0.0
    %3643 = vmatpush.msra.mxu0 0.0
    %3644 = vmatpush.msra.mxu0 0.0
    %3645 = vmatpush.msra.mxu0 0.0
    %3646 = vmatpush.msra.mxu0 0.0
    %3647 = vmatpush.msra.mxu0 0.0
    %3648 = vmatpush.msra.mxu0 0.0
    %3649 = vmatpush.msra.mxu0 0.0
    %3650 = vmatpush.msra.mxu0 0.0
    %3651 = vmatpush.msra.mxu0 0.0
    %3652 = vmatpush.msra.mxu0 0.0
    %3653 = vmatpush.msra.mxu0 0.0
    %3654 = vmatpush.msra.mxu0 0.0
    %3655 = vmatpush.msra.mxu0 %v3639
    %3656 = vmatmul.f32.gmra.mxu0 %v3288
    %v3657 = vpop.f32.mrf.mxu0
    %v3658 = vadd.f32 0.0, %v3657
    %3659 = vmatmul.f32.gmra.mxu0 %v3291
    %v3660 = vpop.f32.mrf.mxu0
    %v3661 = vadd.f32 0.0, %v3660
    %3662 = vmatmul.f32.gmra.mxu0 %v3294
    %v3663 = vpop.f32.mrf.mxu0
    %v3664 = vadd.f32 0.0, %v3663
    %3665 = vmatmul.f32.gmra.mxu0 %v3297
    %v3666 = vpop.f32.mrf.mxu0
    %v3667 = vadd.f32 0.0, %v3666
    %3668 = vdwg.mxu0
    %v3670 = vsel %vm3399, %v3634, 0
    %v3673 = vsel %vm3399, %v3635, 0
    %v3676 = vsel %vm3399, %v3636, 0
    %v3679 = vsel %vm3399, %v3637, 0
    %3681 = vmatpush.msra.mxu0 0.0
    %3682 = vmatpush.msra.mxu0 0.0
    %3683 = vmatpush.msra.mxu0 0.0
    %3684 = vmatpush.msra.mxu0 0.0
    %3685 = vmatpush.msra.mxu0 0.0
    %3686 = vmatpush.msra.mxu0 0.0
    %3687 = vmatpush.msra.mxu0 0.0
    %3688 = vmatpush.msra.mxu0 0.0
    %3689 = vmatpush.msra.mxu0 0.0
    %3690 = vmatpush.msra.mxu0 0.0
    %3691 = vmatpush.msra.mxu0 0.0
    %3692 = vmatpush.msra.mxu0 0.0
    %3693 = vmatpush.msra.mxu0 %v3667
    %3694 = vmatpush.msra.mxu0 %v3664
    %3695 = vmatpush.msra.mxu0 %v3661
    %3696 = vmatpush.msra.mxu0 %v3658
    %3697 = vmatmul.f32.gmra.mxu0 %v3670
    %v3698 = vpop.f32.mrf.mxu0
    %v3699 = vadd.f32 0.0, %v3698
    %3700 = vmatmul.f32.gmra.mxu0 %v3673
    %v3701 = vpop.f32.mrf.mxu0
    %v3702 = vadd.f32 0.0, %v3701
    %3703 = vmatmul.f32.gmra.mxu0 %v3676
    %v3704 = vpop.f32.mrf.mxu0
    %v3705 = vadd.f32 0.0, %v3704
    %3706 = vmatmul.f32.gmra.mxu0 %v3679
    %v3707 = vpop.f32.mrf.mxu0
    %v3708 = vadd.f32 0.0, %v3707
    %3709 = vdwg.mxu0
    %v3710 = vadd.f32 %v3598, %v3699
    %v3711 = vadd.f32 %v3599, %v3702
    %v3712 = vadd.f32 %v3600, %v3705
    %v3713 = vadd.f32 %v3601, %v3708
    %vm3714 = vmand %vm3610, %vm3328
    %vm3715 = vmand %vm3611, %vm3329
    %vm3716 = vmand %vm3612, %vm3330
    %vm3717 = vmand %vm3613, %vm3331
    %vm3718 = vmand %vm3714, %vm3336
    %vm3719 = vmand %vm3715, %vm3337
    %vm3720 = vmand %vm3716, %vm3338
    %vm3721 = vmand %vm3717, %vm3339
    %v3722 = vsel %vm3718, 1, 0
    %v3723 = vsel %vm3719, 1, 0
    %v3724 = vsel %vm3720, 1, 0
    %v3725 = vsel %vm3721, 1, 0
    %vm3726 = vcmp.eq.s32.totalorder %v3722, 1
    %vm3727 = vcmp.eq.s32.totalorder %v3723, 1
    %vm3728 = vcmp.eq.s32.totalorder %v3724, 1
    %vm3729 = vcmp.eq.s32.totalorder %v3725, 1
    %vm3730 = vmand %vm3726, %vm1540
    %vm3731 = vmand %vm3727, %vm1541
    %vm3732 = vmand %vm3728, %vm1542
    %vm3733 = vmand %vm3729, %vm1543
    %v3734 = vsel %vm3730, 1.0, 0.0
    %v3735 = vsel %vm3731, 1.0, 0.0
    %v3736 = vsel %vm3732, 1.0, 0.0
    %v3737 = vsel %vm3733, 1.0, 0.0
    %s3738 = scalar_lea.vmem %s3, 32
    %v3739 = vld [vmem:[%s3738] sm:$0xff]
    %3740 = vmatpush.msra.mxu0 0.0
    %3741 = vmatpush.msra.mxu0 0.0
    %3742 = vmatpush.msra.mxu0 0.0
    %3743 = vmatpush.msra.mxu0 0.0
    %3744 = vmatpush.msra.mxu0 0.0
    %3745 = vmatpush.msra.mxu0 0.0
    %3746 = vmatpush.msra.mxu0 0.0
    %3747 = vmatpush.msra.mxu0 0.0
    %3748 = vmatpush.msra.mxu0 0.0
    %3749 = vmatpush.msra.mxu0 0.0
    %3750 = vmatpush.msra.mxu0 0.0
    %3751 = vmatpush.msra.mxu0 0.0
    %3752 = vmatpush.msra.mxu0 0.0
    %3753 = vmatpush.msra.mxu0 0.0
    %3754 = vmatpush.msra.mxu0 0.0
    %3755 = vmatpush.msra.mxu0 %v3739
    %3756 = vmatmul.f32.gmra.mxu0 %v3288
    %v3757 = vpop.f32.mrf.mxu0
    %v3758 = vadd.f32 0.0, %v3757
    %3759 = vmatmul.f32.gmra.mxu0 %v3291
    %v3760 = vpop.f32.mrf.mxu0
    %v3761 = vadd.f32 0.0, %v3760
    %3762 = vmatmul.f32.gmra.mxu0 %v3294
    %v3763 = vpop.f32.mrf.mxu0
    %v3764 = vadd.f32 0.0, %v3763
    %3765 = vmatmul.f32.gmra.mxu0 %v3297
    %v3766 = vpop.f32.mrf.mxu0
    %v3767 = vadd.f32 0.0, %v3766
    %3768 = vdwg.mxu0
    %v3770 = vsel %vm3399, %v3734, 0
    %v3773 = vsel %vm3399, %v3735, 0
    %v3776 = vsel %vm3399, %v3736, 0
    %v3779 = vsel %vm3399, %v3737, 0
    %3781 = vmatpush.msra.mxu0 0.0
    %3782 = vmatpush.msra.mxu0 0.0
    %3783 = vmatpush.msra.mxu0 0.0
    %3784 = vmatpush.msra.mxu0 0.0
    %3785 = vmatpush.msra.mxu0 0.0
    %3786 = vmatpush.msra.mxu0 0.0
    %3787 = vmatpush.msra.mxu0 0.0
    %3788 = vmatpush.msra.mxu0 0.0
    %3789 = vmatpush.msra.mxu0 0.0
    %3790 = vmatpush.msra.mxu0 0.0
    %3791 = vmatpush.msra.mxu0 0.0
    %3792 = vmatpush.msra.mxu0 0.0
    %3793 = vmatpush.msra.mxu0 %v3767
    %3794 = vmatpush.msra.mxu0 %v3764
    %3795 = vmatpush.msra.mxu0 %v3761
    %3796 = vmatpush.msra.mxu0 %v3758
    %3797 = vmatmul.f32.gmra.mxu0 %v3770
    %v3798 = vpop.f32.mrf.mxu0
    %v3799 = vadd.f32 0.0, %v3798
    %3800 = vmatmul.f32.gmra.mxu0 %v3773
    %v3801 = vpop.f32.mrf.mxu0
    %v3802 = vadd.f32 0.0, %v3801
    %3803 = vmatmul.f32.gmra.mxu0 %v3776
    %v3804 = vpop.f32.mrf.mxu0
    %v3805 = vadd.f32 0.0, %v3804
    %3806 = vmatmul.f32.gmra.mxu0 %v3779
    %v3807 = vpop.f32.mrf.mxu0
    %v3808 = vadd.f32 0.0, %v3807
    %3809 = vdwg.mxu0
    %v3810 = vadd.f32 %v3710, %v3799
    %v3811 = vadd.f32 %v3711, %v3802
    %v3812 = vadd.f32 %v3712, %v3805
    %v3813 = vadd.f32 %v3713, %v3808
    %vm3814 = vmand %vm3610, %vm3486
    %vm3815 = vmand %vm3611, %vm3487
    %vm3816 = vmand %vm3612, %vm3488
    %vm3817 = vmand %vm3613, %vm3489
    %vm3818 = vmand %vm3814, %vm3494
    %vm3819 = vmand %vm3815, %vm3495
    %vm3820 = vmand %vm3816, %vm3496
    %vm3821 = vmand %vm3817, %vm3497
    %v3822 = vsel %vm3818, 1, 0
    %v3823 = vsel %vm3819, 1, 0
    %v3824 = vsel %vm3820, 1, 0
    %v3825 = vsel %vm3821, 1, 0
    %vm3826 = vcmp.eq.s32.totalorder %v3822, 1
    %vm3827 = vcmp.eq.s32.totalorder %v3823, 1
    %vm3828 = vcmp.eq.s32.totalorder %v3824, 1
    %vm3829 = vcmp.eq.s32.totalorder %v3825, 1
    %vm3830 = vmand %vm3826, %vm1819
    %vm3831 = vmand %vm3827, %vm1820
    %vm3832 = vmand %vm3828, %vm1821
    %vm3833 = vmand %vm3829, %vm1822
    %v3834 = vsel %vm3830, 1.0, 0.0
    %v3835 = vsel %vm3831, 1.0, 0.0
    %v3836 = vsel %vm3832, 1.0, 0.0
    %v3837 = vsel %vm3833, 1.0, 0.0
    %s3838 = scalar_lea.vmem %s3, 40
    %v3839 = vld [vmem:[%s3838] sm:$0xff]
    %3840 = vmatpush.msra.mxu0 0.0
    %3841 = vmatpush.msra.mxu0 0.0
    %3842 = vmatpush.msra.mxu0 0.0
    %3843 = vmatpush.msra.mxu0 0.0
    %3844 = vmatpush.msra.mxu0 0.0
    %3845 = vmatpush.msra.mxu0 0.0
    %3846 = vmatpush.msra.mxu0 0.0
    %3847 = vmatpush.msra.mxu0 0.0
    %3848 = vmatpush.msra.mxu0 0.0
    %3849 = vmatpush.msra.mxu0 0.0
    %3850 = vmatpush.msra.mxu0 0.0
    %3851 = vmatpush.msra.mxu0 0.0
    %3852 = vmatpush.msra.mxu0 0.0
    %3853 = vmatpush.msra.mxu0 0.0
    %3854 = vmatpush.msra.mxu0 0.0
    %3855 = vmatpush.msra.mxu0 %v3839
    %3856 = vmatmul.f32.gmra.mxu0 %v3288
    %v3857 = vpop.f32.mrf.mxu0
    %v3858 = vadd.f32 0.0, %v3857
    %3859 = vmatmul.f32.gmra.mxu0 %v3291
    %v3860 = vpop.f32.mrf.mxu0
    %v3861 = vadd.f32 0.0, %v3860
    %3862 = vmatmul.f32.gmra.mxu0 %v3294
    %v3863 = vpop.f32.mrf.mxu0
    %v3864 = vadd.f32 0.0, %v3863
    %3865 = vmatmul.f32.gmra.mxu0 %v3297
    %v3866 = vpop.f32.mrf.mxu0
    %v3867 = vadd.f32 0.0, %v3866
    %3868 = vdwg.mxu0
    %v3870 = vsel %vm3399, %v3834, 0
    %v3873 = vsel %vm3399, %v3835, 0
    %v3876 = vsel %vm3399, %v3836, 0
    %v3879 = vsel %vm3399, %v3837, 0
    %3881 = vmatpush.msra.mxu0 0.0
    %3882 = vmatpush.msra.mxu0 0.0
    %3883 = vmatpush.msra.mxu0 0.0
    %3884 = vmatpush.msra.mxu0 0.0
    %3885 = vmatpush.msra.mxu0 0.0
    %3886 = vmatpush.msra.mxu0 0.0
    %3887 = vmatpush.msra.mxu0 0.0
    %3888 = vmatpush.msra.mxu0 0.0
    %3889 = vmatpush.msra.mxu0 0.0
    %3890 = vmatpush.msra.mxu0 0.0
    %3891 = vmatpush.msra.mxu0 0.0
    %3892 = vmatpush.msra.mxu0 0.0
    %3893 = vmatpush.msra.mxu0 %v3867
    %3894 = vmatpush.msra.mxu0 %v3864
    %3895 = vmatpush.msra.mxu0 %v3861
    %3896 = vmatpush.msra.mxu0 %v3858
    %3897 = vmatmul.f32.gmra.mxu0 %v3870
    %v3898 = vpop.f32.mrf.mxu0
    %v3899 = vadd.f32 0.0, %v3898
    %3900 = vmatmul.f32.gmra.mxu0 %v3873
    %v3901 = vpop.f32.mrf.mxu0
    %v3902 = vadd.f32 0.0, %v3901
    %3903 = vmatmul.f32.gmra.mxu0 %v3876
    %v3904 = vpop.f32.mrf.mxu0
    %v3905 = vadd.f32 0.0, %v3904
    %3906 = vmatmul.f32.gmra.mxu0 %v3879
    %v3907 = vpop.f32.mrf.mxu0
    %v3908 = vadd.f32 0.0, %v3907
    %3909 = vdwg.mxu0
    %v3910 = vadd.f32 %v3810, %v3899
    %v3911 = vadd.f32 %v3811, %v3902
    %v3912 = vadd.f32 %v3812, %v3905
    %v3913 = vadd.f32 %v3813, %v3908
    %v3914 = vadd.s32 %v3024, 1
    %v3915 = vadd.s32 %v3025, 1
    %v3916 = vadd.s32 %v3026, 1
    %v3917 = vadd.s32 %v3027, 1
    %vm3918 = vcmp.ge.s32.totalorder %v3914, 0
    %vm3919 = vcmp.ge.s32.totalorder %v3915, 0
    %vm3920 = vcmp.ge.s32.totalorder %v3916, 0
    %vm3921 = vcmp.ge.s32.totalorder %v3917, 0
    %vm3922 = vcmp.lt.s32.totalorder %v3914, 4
    %vm3923 = vcmp.lt.s32.totalorder %v3915, 4
    %vm3924 = vcmp.lt.s32.totalorder %v3916, 4
    %vm3925 = vcmp.lt.s32.totalorder %v3917, 4
    %vm3926 = vmand %vm3918, %vm3922
    %vm3927 = vmand %vm3919, %vm3923
    %vm3928 = vmand %vm3920, %vm3924
    %vm3929 = vmand %vm3921, %vm3925
    %vm3930 = vmand %vm3926, %vm3245
    %vm3931 = vmand %vm3927, %vm3246
    %vm3932 = vmand %vm3928, %vm3247
    %vm3933 = vmand %vm3929, %vm3248
    %vm3934 = vmand %vm3930, %vm3253
    %vm3935 = vmand %vm3931, %vm3254
    %vm3936 = vmand %vm3932, %vm3255
    %vm3937 = vmand %vm3933, %vm3256
    %v3938 = vadd.s32 %v69, 3
    %v3939 = vadd.s32 %v70, 3
    %v3940 = vadd.s32 %v71, 3
    %v3941 = vadd.s32 %v72, 3
    %vm3942 = vcmp.eq.s32.totalorder %v134, %v3938
    %vm3943 = vcmp.eq.s32.totalorder %v134, %v3939
    %vm3944 = vcmp.eq.s32.totalorder %v134, %v3940
    %vm3945 = vcmp.eq.s32.totalorder %v134, %v3941
    %v3946 = vsel %vm3934, 1, 0
    %v3947 = vsel %vm3935, 1, 0
    %v3948 = vsel %vm3936, 1, 0
    %v3949 = vsel %vm3937, 1, 0
    %vm3950 = vcmp.eq.s32.totalorder %v3946, 1
    %vm3951 = vcmp.eq.s32.totalorder %v3947, 1
    %vm3952 = vcmp.eq.s32.totalorder %v3948, 1
    %vm3953 = vcmp.eq.s32.totalorder %v3949, 1
    %vm3954 = vmand %vm3950, %vm3942
    %vm3955 = vmand %vm3951, %vm3943
    %vm3956 = vmand %vm3952, %vm3944
    %vm3957 = vmand %vm3953, %vm3945
    %v3958 = vsel %vm3954, 1.0, 0.0
    %v3959 = vsel %vm3955, 1.0, 0.0
    %v3960 = vsel %vm3956, 1.0, 0.0
    %v3961 = vsel %vm3957, 1.0, 0.0
    %s3962 = scalar_lea.vmem %s3, 48
    %v3963 = vld [vmem:[%s3962] sm:$0xff]
    %3964 = vmatpush.msra.mxu0 0.0
    %3965 = vmatpush.msra.mxu0 0.0
    %3966 = vmatpush.msra.mxu0 0.0
    %3967 = vmatpush.msra.mxu0 0.0
    %3968 = vmatpush.msra.mxu0 0.0
    %3969 = vmatpush.msra.mxu0 0.0
    %3970 = vmatpush.msra.mxu0 0.0
    %3971 = vmatpush.msra.mxu0 0.0
    %3972 = vmatpush.msra.mxu0 0.0
    %3973 = vmatpush.msra.mxu0 0.0
    %3974 = vmatpush.msra.mxu0 0.0
    %3975 = vmatpush.msra.mxu0 0.0
    %3976 = vmatpush.msra.mxu0 0.0
    %3977 = vmatpush.msra.mxu0 0.0
    %3978 = vmatpush.msra.mxu0 0.0
    %3979 = vmatpush.msra.mxu0 %v3963
    %3980 = vmatmul.f32.gmra.mxu0 %v3288
    %v3981 = vpop.f32.mrf.mxu0
    %v3982 = vadd.f32 0.0, %v3981
    %3983 = vmatmul.f32.gmra.mxu0 %v3291
    %v3984 = vpop.f32.mrf.mxu0
    %v3985 = vadd.f32 0.0, %v3984
    %3986 = vmatmul.f32.gmra.mxu0 %v3294
    %v3987 = vpop.f32.mrf.mxu0
    %v3988 = vadd.f32 0.0, %v3987
    %3989 = vmatmul.f32.gmra.mxu0 %v3297
    %v3990 = vpop.f32.mrf.mxu0
    %v3991 = vadd.f32 0.0, %v3990
    %3992 = vdwg.mxu0
    %v3994 = vsel %vm3399, %v3958, 0
    %v3997 = vsel %vm3399, %v3959, 0
    %v4000 = vsel %vm3399, %v3960, 0
    %v4003 = vsel %vm3399, %v3961, 0
    %4005 = vmatpush.msra.mxu0 0.0
    %4006 = vmatpush.msra.mxu0 0.0
    %4007 = vmatpush.msra.mxu0 0.0
    %4008 = vmatpush.msra.mxu0 0.0
    %4009 = vmatpush.msra.mxu0 0.0
    %4010 = vmatpush.msra.mxu0 0.0
    %4011 = vmatpush.msra.mxu0 0.0
    %4012 = vmatpush.msra.mxu0 0.0
    %4013 = vmatpush.msra.mxu0 0.0
    %4014 = vmatpush.msra.mxu0 0.0
    %4015 = vmatpush.msra.mxu0 0.0
    %4016 = vmatpush.msra.mxu0 0.0
    %4017 = vmatpush.msra.mxu0 %v3991
    %4018 = vmatpush.msra.mxu0 %v3988
    %4019 = vmatpush.msra.mxu0 %v3985
    %4020 = vmatpush.msra.mxu0 %v3982
    %4021 = vmatmul.f32.gmra.mxu0 %v3994
    %v4022 = vpop.f32.mrf.mxu0
    %v4023 = vadd.f32 0.0, %v4022
    %4024 = vmatmul.f32.gmra.mxu0 %v3997
    %v4025 = vpop.f32.mrf.mxu0
    %v4026 = vadd.f32 0.0, %v4025
    %4027 = vmatmul.f32.gmra.mxu0 %v4000
    %v4028 = vpop.f32.mrf.mxu0
    %v4029 = vadd.f32 0.0, %v4028
    %4030 = vmatmul.f32.gmra.mxu0 %v4003
    %v4031 = vpop.f32.mrf.mxu0
    %v4032 = vadd.f32 0.0, %v4031
    %4033 = vdwg.mxu0
    %v4034 = vadd.f32 %v3910, %v4023
    %v4035 = vadd.f32 %v3911, %v4026
    %v4036 = vadd.f32 %v3912, %v4029
    %v4037 = vadd.f32 %v3913, %v4032
    %vm4038 = vmand %vm3926, %vm3328
    %vm4039 = vmand %vm3927, %vm3329
    %vm4040 = vmand %vm3928, %vm3330
    %vm4041 = vmand %vm3929, %vm3331
    %vm4042 = vmand %vm4038, %vm3336
    %vm4043 = vmand %vm4039, %vm3337
    %vm4044 = vmand %vm4040, %vm3338
    %vm4045 = vmand %vm4041, %vm3339
    %v4046 = vadd.s32 %v69, 4
    %v4047 = vadd.s32 %v70, 4
    %v4048 = vadd.s32 %v71, 4
    %v4049 = vadd.s32 %v72, 4
    %vm4050 = vcmp.eq.s32.totalorder %v134, %v4046
    %vm4051 = vcmp.eq.s32.totalorder %v134, %v4047
    %vm4052 = vcmp.eq.s32.totalorder %v134, %v4048
    %vm4053 = vcmp.eq.s32.totalorder %v134, %v4049
    %v4054 = vsel %vm4042, 1, 0
    %v4055 = vsel %vm4043, 1, 0
    %v4056 = vsel %vm4044, 1, 0
    %v4057 = vsel %vm4045, 1, 0
    %vm4058 = vcmp.eq.s32.totalorder %v4054, 1
    %vm4059 = vcmp.eq.s32.totalorder %v4055, 1
    %vm4060 = vcmp.eq.s32.totalorder %v4056, 1
    %vm4061 = vcmp.eq.s32.totalorder %v4057, 1
    %vm4062 = vmand %vm4058, %vm4050
    %vm4063 = vmand %vm4059, %vm4051
    %vm4064 = vmand %vm4060, %vm4052
    %vm4065 = vmand %vm4061, %vm4053
    %v4066 = vsel %vm4062, 1.0, 0.0
    %v4067 = vsel %vm4063, 1.0, 0.0
    %v4068 = vsel %vm4064, 1.0, 0.0
    %v4069 = vsel %vm4065, 1.0, 0.0
    %s4070 = scalar_lea.vmem %s3, 56
    %v4071 = vld [vmem:[%s4070] sm:$0xff]
    %4072 = vmatpush.msra.mxu0 0.0
    %4073 = vmatpush.msra.mxu0 0.0
    %4074 = vmatpush.msra.mxu0 0.0
    %4075 = vmatpush.msra.mxu0 0.0
    %4076 = vmatpush.msra.mxu0 0.0
    %4077 = vmatpush.msra.mxu0 0.0
    %4078 = vmatpush.msra.mxu0 0.0
    %4079 = vmatpush.msra.mxu0 0.0
    %4080 = vmatpush.msra.mxu0 0.0
    %4081 = vmatpush.msra.mxu0 0.0
    %4082 = vmatpush.msra.mxu0 0.0
    %4083 = vmatpush.msra.mxu0 0.0
    %4084 = vmatpush.msra.mxu0 0.0
    %4085 = vmatpush.msra.mxu0 0.0
    %4086 = vmatpush.msra.mxu0 0.0
    %4087 = vmatpush.msra.mxu0 %v4071
    %4088 = vmatmul.f32.gmra.mxu0 %v3288
    %v4089 = vpop.f32.mrf.mxu0
    %v4090 = vadd.f32 0.0, %v4089
    %4091 = vmatmul.f32.gmra.mxu0 %v3291
    %v4092 = vpop.f32.mrf.mxu0
    %v4093 = vadd.f32 0.0, %v4092
    %4094 = vmatmul.f32.gmra.mxu0 %v3294
    %v4095 = vpop.f32.mrf.mxu0
    %v4096 = vadd.f32 0.0, %v4095
    %4097 = vmatmul.f32.gmra.mxu0 %v3297
    %v4098 = vpop.f32.mrf.mxu0
    %v4099 = vadd.f32 0.0, %v4098
    %4100 = vdwg.mxu0
    %v4102 = vsel %vm3399, %v4066, 0
    %v4105 = vsel %vm3399, %v4067, 0
    %v4108 = vsel %vm3399, %v4068, 0
    %v4111 = vsel %vm3399, %v4069, 0
    %4113 = vmatpush.msra.mxu0 0.0
    %4114 = vmatpush.msra.mxu0 0.0
    %4115 = vmatpush.msra.mxu0 0.0
    %4116 = vmatpush.msra.mxu0 0.0
    %4117 = vmatpush.msra.mxu0 0.0
    %4118 = vmatpush.msra.mxu0 0.0
    %4119 = vmatpush.msra.mxu0 0.0
    %4120 = vmatpush.msra.mxu0 0.0
    %4121 = vmatpush.msra.mxu0 0.0
    %4122 = vmatpush.msra.mxu0 0.0
    %4123 = vmatpush.msra.mxu0 0.0
    %4124 = vmatpush.msra.mxu0 0.0
    %4125 = vmatpush.msra.mxu0 %v4099
    %4126 = vmatpush.msra.mxu0 %v4096
    %4127 = vmatpush.msra.mxu0 %v4093
    %4128 = vmatpush.msra.mxu0 %v4090
    %4129 = vmatmul.f32.gmra.mxu0 %v4102
    %v4130 = vpop.f32.mrf.mxu0
    %v4131 = vadd.f32 0.0, %v4130
    %4132 = vmatmul.f32.gmra.mxu0 %v4105
    %v4133 = vpop.f32.mrf.mxu0
    %v4134 = vadd.f32 0.0, %v4133
    %4135 = vmatmul.f32.gmra.mxu0 %v4108
    %v4136 = vpop.f32.mrf.mxu0
    %v4137 = vadd.f32 0.0, %v4136
    %4138 = vmatmul.f32.gmra.mxu0 %v4111
    %v4139 = vpop.f32.mrf.mxu0
    %v4140 = vadd.f32 0.0, %v4139
    %4141 = vdwg.mxu0
    %v4142 = vadd.f32 %v4034, %v4131
    %v4143 = vadd.f32 %v4035, %v4134
    %v4144 = vadd.f32 %v4036, %v4137
    %v4145 = vadd.f32 %v4037, %v4140
    %vm4146 = vmand %vm3926, %vm3486
    %vm4147 = vmand %vm3927, %vm3487
    %vm4148 = vmand %vm3928, %vm3488
    %vm4149 = vmand %vm3929, %vm3489
    %vm4150 = vmand %vm4146, %vm3494
    %vm4151 = vmand %vm4147, %vm3495
    %vm4152 = vmand %vm4148, %vm3496
    %vm4153 = vmand %vm4149, %vm3497
    %v4154 = vadd.s32 %v69, 5
    %v4155 = vadd.s32 %v70, 5
    %v4156 = vadd.s32 %v71, 5
    %v4157 = vadd.s32 %v72, 5
    %vm4158 = vcmp.eq.s32.totalorder %v134, %v4154
    %vm4159 = vcmp.eq.s32.totalorder %v134, %v4155
    %vm4160 = vcmp.eq.s32.totalorder %v134, %v4156
    %vm4161 = vcmp.eq.s32.totalorder %v134, %v4157
    %v4162 = vsel %vm4150, 1, 0
    %v4163 = vsel %vm4151, 1, 0
    %v4164 = vsel %vm4152, 1, 0
    %v4165 = vsel %vm4153, 1, 0
    %vm4166 = vcmp.eq.s32.totalorder %v4162, 1
    %vm4167 = vcmp.eq.s32.totalorder %v4163, 1
    %vm4168 = vcmp.eq.s32.totalorder %v4164, 1
    %vm4169 = vcmp.eq.s32.totalorder %v4165, 1
    %vm4170 = vmand %vm4166, %vm4158
    %vm4171 = vmand %vm4167, %vm4159
    %vm4172 = vmand %vm4168, %vm4160
    %vm4173 = vmand %vm4169, %vm4161
    %v4174 = vsel %vm4170, 1.0, 0.0
    %v4175 = vsel %vm4171, 1.0, 0.0
    %v4176 = vsel %vm4172, 1.0, 0.0
    %v4177 = vsel %vm4173, 1.0, 0.0
    %s4178 = scalar_lea.vmem %s3, 64
    %v4179 = vld [vmem:[%s4178] sm:$0xff]
    %4180 = vmatpush.msra.mxu0 0.0
    %4181 = vmatpush.msra.mxu0 0.0
    %4182 = vmatpush.msra.mxu0 0.0
    %4183 = vmatpush.msra.mxu0 0.0
    %4184 = vmatpush.msra.mxu0 0.0
    %4185 = vmatpush.msra.mxu0 0.0
    %4186 = vmatpush.msra.mxu0 0.0
    %4187 = vmatpush.msra.mxu0 0.0
    %4188 = vmatpush.msra.mxu0 0.0
    %4189 = vmatpush.msra.mxu0 0.0
    %4190 = vmatpush.msra.mxu0 0.0
    %4191 = vmatpush.msra.mxu0 0.0
    %4192 = vmatpush.msra.mxu0 0.0
    %4193 = vmatpush.msra.mxu0 0.0
    %4194 = vmatpush.msra.mxu0 0.0
    %4195 = vmatpush.msra.mxu0 %v4179
    %4196 = vmatmul.f32.gmra.mxu0 %v3288
    %v4197 = vpop.f32.mrf.mxu0
    %v4198 = vadd.f32 0.0, %v4197
    %4199 = vmatmul.f32.gmra.mxu0 %v3291
    %v4200 = vpop.f32.mrf.mxu0
    %v4201 = vadd.f32 0.0, %v4200
    %4202 = vmatmul.f32.gmra.mxu0 %v3294
    %v4203 = vpop.f32.mrf.mxu0
    %v4204 = vadd.f32 0.0, %v4203
    %4205 = vmatmul.f32.gmra.mxu0 %v3297
    %v4206 = vpop.f32.mrf.mxu0
    %v4207 = vadd.f32 0.0, %v4206
    %4208 = vdwg.mxu0
    %v4210 = vsel %vm3399, %v4174, 0
    %v4213 = vsel %vm3399, %v4175, 0
    %v4216 = vsel %vm3399, %v4176, 0
    %v4219 = vsel %vm3399, %v4177, 0
    %4221 = vmatpush.msra.mxu0 0.0
    %4222 = vmatpush.msra.mxu0 0.0
    %4223 = vmatpush.msra.mxu0 0.0
    %4224 = vmatpush.msra.mxu0 0.0
    %4225 = vmatpush.msra.mxu0 0.0
    %4226 = vmatpush.msra.mxu0 0.0
    %4227 = vmatpush.msra.mxu0 0.0
    %4228 = vmatpush.msra.mxu0 0.0
    %4229 = vmatpush.msra.mxu0 0.0
    %4230 = vmatpush.msra.mxu0 0.0
    %4231 = vmatpush.msra.mxu0 0.0
    %4232 = vmatpush.msra.mxu0 0.0
    %4233 = vmatpush.msra.mxu0 %v4207
    %4234 = vmatpush.msra.mxu0 %v4204
    %4235 = vmatpush.msra.mxu0 %v4201
    %4236 = vmatpush.msra.mxu0 %v4198
    %4237 = vmatmul.f32.gmra.mxu0 %v4210
    %v4238 = vpop.f32.mrf.mxu0
    %v4239 = vadd.f32 0.0, %v4238
    %4240 = vmatmul.f32.gmra.mxu0 %v4213
    %v4241 = vpop.f32.mrf.mxu0
    %v4242 = vadd.f32 0.0, %v4241
    %4243 = vmatmul.f32.gmra.mxu0 %v4216
    %v4244 = vpop.f32.mrf.mxu0
    %v4245 = vadd.f32 0.0, %v4244
    %4246 = vmatmul.f32.gmra.mxu0 %v4219
    %v4247 = vpop.f32.mrf.mxu0
    %v4248 = vadd.f32 0.0, %v4247
    %4249 = vdwg.mxu0
    %v4250 = vadd.f32 %v4142, %v4239
    %v4251 = vadd.f32 %v4143, %v4242
    %v4252 = vadd.f32 %v4144, %v4245
    %v4253 = vadd.f32 %v4145, %v4248
    %v4255 = vperm.slane %v3224, 0
    %v4257 = vadd.f32 %v4250, %v4255
    %v4258 = vadd.f32 %v4251, %v4255
    %v4259 = vadd.f32 %v4252, %v4255
    %v4260 = vadd.f32 %v4253, %v4255
    %vm4261 = vcmp.gt.f32.partialorder %v4257, 0.0
    %vm4262 = vcmp.gt.f32.partialorder %v4258, 0.0
    %vm4263 = vcmp.gt.f32.partialorder %v4259, 0.0
    %vm4264 = vcmp.gt.f32.partialorder %v4260, 0.0
    %v4265 = vmul.f32 %v4257, 0.01
    %v4266 = vmul.f32 %v4258, 0.01
    %v4267 = vmul.f32 %v4259, 0.01
    %v4268 = vmul.f32 %v4260, 0.01
    %v4269 = vsel %vm4261, %v4257, %v4265
    %v4270 = vsel %vm4262, %v4258, %v4266
    %v4271 = vsel %vm4263, %v4259, %v4267
    %v4272 = vsel %vm4264, %v4260, %v4268
    %v4273 = vshra.s32 %v69, 2
    %v4274 = vshra.s32 %v3028, 1
    %v4275 = vand.u32 %v69, 1
    %v4276 = vmul.u32 %v4273, 16
    %v4277 = vmul.u32 %v4274, 8
    %v4278 = vadd.s32 %v4276, %v4277
    %v4279 = vmul.u32 %v4275, 2
    %v4280 = vadd.s32 %v4278, %v4279
    %vm4281 = vcmp.eq.s32.totalorder %v134, %v4280
    %v4282 = vsel %vm4281, 1.0, 0.0
    %v4284 = vsel %vm3399, %v4282, 0
    %4286 = vmatpush.msra.mxu0 0.0
    %4287 = vmatpush.msra.mxu0 0.0
    %4288 = vmatpush.msra.mxu0 0.0
    %4289 = vmatpush.msra.mxu0 0.0
    %4290 = vmatpush.msra.mxu0 0.0
    %4291 = vmatpush.msra.mxu0 0.0
    %4292 = vmatpush.msra.mxu0 0.0
    %4293 = vmatpush.msra.mxu0 0.0
    %4294 = vmatpush.msra.mxu0 0.0
    %4295 = vmatpush.msra.mxu0 0.0
    %4296 = vmatpush.msra.mxu0 0.0
    %4297 = vmatpush.msra.mxu0 0.0
    %4298 = vmatpush.msra.mxu0 %v4272
    %4299 = vmatpush.msra.mxu0 %v4271
    %4300 = vmatpush.msra.mxu0 %v4270
    %4301 = vmatpush.msra.mxu0 %v4269
    %4302 = vmatmul.f32.gmra.mxu0 %v4284
    %v4303 = vpop.f32.mrf.mxu0
    %v4304 = vadd.f32 0.0, %v4303
    %4305 = vdwg.mxu0
    %v4306 = vadd.s32 %v4280, 1
    %vm4307 = vcmp.eq.s32.totalorder %v134, %v4306
    %v4308 = vsel %vm4307, 1.0, 0.0
    %v4310 = vsel %vm3399, %v4308, 0
    %4312 = vmatpush.msra.mxu0 0.0
    %4313 = vmatpush.msra.mxu0 0.0
    %4314 = vmatpush.msra.mxu0 0.0
    %4315 = vmatpush.msra.mxu0 0.0
    %4316 = vmatpush.msra.mxu0 0.0
    %4317 = vmatpush.msra.mxu0 0.0
    %4318 = vmatpush.msra.mxu0 0.0
    %4319 = vmatpush.msra.mxu0 0.0
    %4320 = vmatpush.msra.mxu0 0.0
    %4321 = vmatpush.msra.mxu0 0.0
    %4322 = vmatpush.msra.mxu0 0.0
    %4323 = vmatpush.msra.mxu0 0.0
    %4324 = vmatpush.msra.mxu0 %v4272
    %4325 = vmatpush.msra.mxu0 %v4271
    %4326 = vmatpush.msra.mxu0 %v4270
    %4327 = vmatpush.msra.mxu0 %v4269
    %4328 = vmatmul.f32.gmra.mxu0 %v4310
    %v4329 = vpop.f32.mrf.mxu0
    %v4330 = vadd.f32 0.0, %v4329
    %4331 = vdwg.mxu0
    %v4332 = vmax.f32 %v4304, %v4330
    %v4333 = vadd.s32 %v4280, 4
    %vm4334 = vcmp.eq.s32.totalorder %v134, %v4333
    %v4335 = vsel %vm4334, 1.0, 0.0
    %v4337 = vsel %vm3399, %v4335, 0
    %4339 = vmatpush.msra.mxu0 0.0
    %4340 = vmatpush.msra.mxu0 0.0
    %4341 = vmatpush.msra.mxu0 0.0
    %4342 = vmatpush.msra.mxu0 0.0
    %4343 = vmatpush.msra.mxu0 0.0
    %4344 = vmatpush.msra.mxu0 0.0
    %4345 = vmatpush.msra.mxu0 0.0
    %4346 = vmatpush.msra.mxu0 0.0
    %4347 = vmatpush.msra.mxu0 0.0
    %4348 = vmatpush.msra.mxu0 0.0
    %4349 = vmatpush.msra.mxu0 0.0
    %4350 = vmatpush.msra.mxu0 0.0
    %4351 = vmatpush.msra.mxu0 %v4272
    %4352 = vmatpush.msra.mxu0 %v4271
    %4353 = vmatpush.msra.mxu0 %v4270
    %4354 = vmatpush.msra.mxu0 %v4269
    %4355 = vmatmul.f32.gmra.mxu0 %v4337
    %v4356 = vpop.f32.mrf.mxu0
    %v4357 = vadd.f32 0.0, %v4356
    %4358 = vdwg.mxu0
    %v4359 = vmax.f32 %v4332, %v4357
    %v4360 = vadd.s32 %v4280, 5
    %vm4361 = vcmp.eq.s32.totalorder %v134, %v4360
    %v4362 = vsel %vm4361, 1.0, 0.0
    %v4364 = vsel %vm3399, %v4362, 0
    %4366 = vmatpush.msra.mxu0 0.0
    %4367 = vmatpush.msra.mxu0 0.0
    %4368 = vmatpush.msra.mxu0 0.0
    %4369 = vmatpush.msra.mxu0 0.0
    %4370 = vmatpush.msra.mxu0 0.0
    %4371 = vmatpush.msra.mxu0 0.0
    %4372 = vmatpush.msra.mxu0 0.0
    %4373 = vmatpush.msra.mxu0 0.0
    %4374 = vmatpush.msra.mxu0 0.0
    %4375 = vmatpush.msra.mxu0 0.0
    %4376 = vmatpush.msra.mxu0 0.0
    %4377 = vmatpush.msra.mxu0 0.0
    %4378 = vmatpush.msra.mxu0 %v4272
    %4379 = vmatpush.msra.mxu0 %v4271
    %4380 = vmatpush.msra.mxu0 %v4270
    %4381 = vmatpush.msra.mxu0 %v4269
    %4382 = vmatmul.f32.gmra.mxu0 %v4364
    %v4383 = vpop.f32.mrf.mxu0
    %v4384 = vadd.f32 0.0, %v4383
    %4385 = vdwg.mxu0
    %v4386 = vmax.f32 %v4359, %v4384
    %v4387 = vld [vmem:[%s6] sm:$0x1]
    %v4388 = vadd.s32 %v4274, 4294967295
    %vm4389 = vcmp.ge.s32.totalorder %v4388, 0
    %vm4390 = vcmp.lt.s32.totalorder %v4388, 2
    %vm4391 = vmand %vm4389, %vm4390
    %v4392 = vadd.s32 %v4275, 4294967295
    %vm4393 = vcmp.ge.s32.totalorder %v4392, 0
    %vm4394 = vmand %vm4391, %vm4393
    %vm4395 = vcmp.lt.s32.totalorder %v4392, 2
    %vm4396 = vmand %vm4394, %vm4395
    %v4397 = vsel %vm4396, 1, 0
    %vm4398 = vcmp.eq.s32.totalorder %v4397, 1
    %vm4399 = vmand %vm4398, %vm3506
    %v4400 = vsel %vm4399, 1.0, 0.0
    %v4401 = vld [vmem:[%s5] sm:$0xff]
    %v4402 = vld [vmem:[%s5 + $0x8] sm:$0xff]
    %vm4403 = vcmask 130048
    %v4405 = vsel %vm4403, %v4386, 0
    %4407 = vmatpush.msra.mxu0 0.0
    %4408 = vmatpush.msra.mxu0 0.0
    %4409 = vmatpush.msra.mxu0 0.0
    %4410 = vmatpush.msra.mxu0 0.0
    %4411 = vmatpush.msra.mxu0 0.0
    %4412 = vmatpush.msra.mxu0 0.0
    %4413 = vmatpush.msra.mxu0 0.0
    %4414 = vmatpush.msra.mxu0 0.0
    %4415 = vmatpush.msra.mxu0 0.0
    %4416 = vmatpush.msra.mxu0 0.0
    %4417 = vmatpush.msra.mxu0 0.0
    %4418 = vmatpush.msra.mxu0 0.0
    %4419 = vmatpush.msra.mxu0 0.0
    %4420 = vmatpush.msra.mxu0 0.0
    %4421 = vmatpush.msra.mxu0 %v4402
    %4422 = vmatpush.msra.mxu0 %v4401
    %4423 = vmatmul.f32.gmra.mxu0 %v4405
    %v4424 = vpop.f32.mrf.mxu0
    %v4425 = vadd.f32 0.0, %v4424
    %4426 = vdwg.mxu0
    %vm4427 = vcmp.ge.s32.totalorder %v4275, 0
    %vm4428 = vmand %vm4391, %vm4427
    %vm4429 = vcmp.lt.s32.totalorder %v4275, 2
    %vm4430 = vmand %vm4428, %vm4429
    %v4431 = vadd.s32 %v69, 4294967294
    %vm4432 = vcmp.eq.s32.totalorder %v134, %v4431
    %v4433 = vsel %vm4430, 1, 0
    %vm4434 = vcmp.eq.s32.totalorder %v4433, 1
    %vm4435 = vmand %vm4434, %vm4432
    %v4436 = vsel %vm4435, 1.0, 0.0
    %s4437 = scalar_lea.vmem %s5, 16
    %v4438 = vld [vmem:[%s4437] sm:$0xff]
    %v4439 = vld [vmem:[%s4437 + $0x8] sm:$0xff]
    %4440 = vmatpush.msra.mxu0 0.0
    %4441 = vmatpush.msra.mxu0 0.0
    %4442 = vmatpush.msra.mxu0 0.0
    %4443 = vmatpush.msra.mxu0 0.0
    %4444 = vmatpush.msra.mxu0 0.0
    %4445 = vmatpush.msra.mxu0 0.0
    %4446 = vmatpush.msra.mxu0 0.0
    %4447 = vmatpush.msra.mxu0 0.0
    %4448 = vmatpush.msra.mxu0 0.0
    %4449 = vmatpush.msra.mxu0 0.0
    %4450 = vmatpush.msra.mxu0 0.0
    %4451 = vmatpush.msra.mxu0 0.0
    %4452 = vmatpush.msra.mxu0 0.0
    %4453 = vmatpush.msra.mxu0 0.0
    %4454 = vmatpush.msra.mxu0 %v4439
    %4455 = vmatpush.msra.mxu0 %v4438
    %4456 = vmatmul.f32.gmra.mxu0 %v4405
    %v4457 = vpop.f32.mrf.mxu0
    %v4458 = vadd.f32 0.0, %v4457
    %4459 = vdwg.mxu0
    %v4461 = vsel %vm3286, %v4436, 0
    %4463 = vmatpush.msra.mxu0 0.0
    %4464 = vmatpush.msra.mxu0 0.0
    %4465 = vmatpush.msra.mxu0 0.0
    %4466 = vmatpush.msra.mxu0 0.0
    %4467 = vmatpush.msra.mxu0 0.0
    %4468 = vmatpush.msra.mxu0 0.0
    %4469 = vmatpush.msra.mxu0 0.0
    %4470 = vmatpush.msra.mxu0 0.0
    %4471 = vmatpush.msra.mxu0 0.0
    %4472 = vmatpush.msra.mxu0 0.0
    %4473 = vmatpush.msra.mxu0 0.0
    %4474 = vmatpush.msra.mxu0 0.0
    %4475 = vmatpush.msra.mxu0 0.0
    %4476 = vmatpush.msra.mxu0 0.0
    %4477 = vmatpush.msra.mxu0 0.0
    %4478 = vmatpush.msra.mxu0 %v4458
    %4479 = vmatmul.f32.gmra.mxu0 %v4461
    %v4480 = vpop.f32.mrf.mxu0
    %v4481 = vadd.f32 0.0, %v4480
    %4482 = vdwg.mxu0
    %v4484 = vsel %vm3286, %v4400, 0
    %4486 = vmatpush.msra.mxu0 0.0
    %4487 = vmatpush.msra.mxu0 0.0
    %4488 = vmatpush.msra.mxu0 0.0
    %4489 = vmatpush.msra.mxu0 0.0
    %4490 = vmatpush.msra.mxu0 0.0
    %4491 = vmatpush.msra.mxu0 0.0
    %4492 = vmatpush.msra.mxu0 0.0
    %4493 = vmatpush.msra.mxu0 0.0
    %4494 = vmatpush.msra.mxu0 0.0
    %4495 = vmatpush.msra.mxu0 0.0
    %4496 = vmatpush.msra.mxu0 0.0
    %4497 = vmatpush.msra.mxu0 0.0
    %4498 = vmatpush.msra.mxu0 0.0
    %4499 = vmatpush.msra.mxu0 0.0
    %4500 = vmatpush.msra.mxu0 0.0
    %4501 = vmatpush.msra.mxu0 %v4425
    %4502 = vmatmul.f32.gmra.mxu0 %v4484
    %v4503 = vpop.f32.mrf.mxu0
    %v4504 = vadd.f32 %v4481, %v4503
    %4505 = vdwg.mxu0
    %v4506 = vadd.s32 %v4275, 1
    %vm4507 = vcmp.ge.s32.totalorder %v4506, 0
    %vm4508 = vmand %vm4391, %vm4507
    %vm4509 = vcmp.lt.s32.totalorder %v4506, 2
    %vm4510 = vmand %vm4508, %vm4509
    %v4511 = vsel %vm4510, 1, 0
    %vm4512 = vcmp.eq.s32.totalorder %v4511, 1
    %vm4513 = vmand %vm4512, %vm1277
    %v4514 = vsel %vm4513, 1.0, 0.0
    %s4515 = scalar_lea.vmem %s5, 32
    %v4516 = vld [vmem:[%s4515] sm:$0xff]
    %v4517 = vld [vmem:[%s4515 + $0x8] sm:$0xff]
    %4518 = vmatpush.msra.mxu0 0.0
    %4519 = vmatpush.msra.mxu0 0.0
    %4520 = vmatpush.msra.mxu0 0.0
    %4521 = vmatpush.msra.mxu0 0.0
    %4522 = vmatpush.msra.mxu0 0.0
    %4523 = vmatpush.msra.mxu0 0.0
    %4524 = vmatpush.msra.mxu0 0.0
    %4525 = vmatpush.msra.mxu0 0.0
    %4526 = vmatpush.msra.mxu0 0.0
    %4527 = vmatpush.msra.mxu0 0.0
    %4528 = vmatpush.msra.mxu0 0.0
    %4529 = vmatpush.msra.mxu0 0.0
    %4530 = vmatpush.msra.mxu0 0.0
    %4531 = vmatpush.msra.mxu0 0.0
    %4532 = vmatpush.msra.mxu0 %v4517
    %4533 = vmatpush.msra.mxu0 %v4516
    %4534 = vmatmul.f32.gmra.mxu0 %v4405
    %v4535 = vpop.f32.mrf.mxu0
    %v4536 = vadd.f32 0.0, %v4535
    %4537 = vdwg.mxu0
    %v4539 = vsel %vm3286, %v4514, 0
    %4541 = vmatpush.msra.mxu0 0.0
    %4542 = vmatpush.msra.mxu0 0.0
    %4543 = vmatpush.msra.mxu0 0.0
    %4544 = vmatpush.msra.mxu0 0.0
    %4545 = vmatpush.msra.mxu0 0.0
    %4546 = vmatpush.msra.mxu0 0.0
    %4547 = vmatpush.msra.mxu0 0.0
    %4548 = vmatpush.msra.mxu0 0.0
    %4549 = vmatpush.msra.mxu0 0.0
    %4550 = vmatpush.msra.mxu0 0.0
    %4551 = vmatpush.msra.mxu0 0.0
    %4552 = vmatpush.msra.mxu0 0.0
    %4553 = vmatpush.msra.mxu0 0.0
    %4554 = vmatpush.msra.mxu0 0.0
    %4555 = vmatpush.msra.mxu0 0.0
    %4556 = vmatpush.msra.mxu0 %v4536
    %4557 = vmatmul.f32.gmra.mxu0 %v4539
    %v4558 = vpop.f32.mrf.mxu0
    %v4559 = vadd.f32 0.0, %v4558
    %4560 = vdwg.mxu0
    %v4561 = vadd.f32 %v4504, %v4559
    %vm4562 = vcmp.ge.s32.totalorder %v4274, 0
    %vm4563 = vcmp.lt.s32.totalorder %v4274, 2
    %vm4564 = vmand %vm4562, %vm4563
    %vm4565 = vmand %vm4564, %vm4393
    %vm4566 = vmand %vm4565, %vm4395
    %v4567 = vsel %vm4566, 1, 0
    %vm4568 = vcmp.eq.s32.totalorder %v4567, 1
    %vm4569 = vmand %vm4568, %vm1277
    %v4570 = vsel %vm4569, 1.0, 0.0
    %s4571 = scalar_lea.vmem %s5, 48
    %v4572 = vld [vmem:[%s4571] sm:$0xff]
    %v4573 = vld [vmem:[%s4571 + $0x8] sm:$0xff]
    %4574 = vmatpush.msra.mxu0 0.0
    %4575 = vmatpush.msra.mxu0 0.0
    %4576 = vmatpush.msra.mxu0 0.0
    %4577 = vmatpush.msra.mxu0 0.0
    %4578 = vmatpush.msra.mxu0 0.0
    %4579 = vmatpush.msra.mxu0 0.0
    %4580 = vmatpush.msra.mxu0 0.0
    %4581 = vmatpush.msra.mxu0 0.0
    %4582 = vmatpush.msra.mxu0 0.0
    %4583 = vmatpush.msra.mxu0 0.0
    %4584 = vmatpush.msra.mxu0 0.0
    %4585 = vmatpush.msra.mxu0 0.0
    %4586 = vmatpush.msra.mxu0 0.0
    %4587 = vmatpush.msra.mxu0 0.0
    %4588 = vmatpush.msra.mxu0 %v4573
    %4589 = vmatpush.msra.mxu0 %v4572
    %4590 = vmatmul.f32.gmra.mxu0 %v4405
    %v4591 = vpop.f32.mrf.mxu0
    %v4592 = vadd.f32 0.0, %v4591
    %4593 = vdwg.mxu0
    %v4595 = vsel %vm3286, %v4570, 0
    %4597 = vmatpush.msra.mxu0 0.0
    %4598 = vmatpush.msra.mxu0 0.0
    %4599 = vmatpush.msra.mxu0 0.0
    %4600 = vmatpush.msra.mxu0 0.0
    %4601 = vmatpush.msra.mxu0 0.0
    %4602 = vmatpush.msra.mxu0 0.0
    %4603 = vmatpush.msra.mxu0 0.0
    %4604 = vmatpush.msra.mxu0 0.0
    %4605 = vmatpush.msra.mxu0 0.0
    %4606 = vmatpush.msra.mxu0 0.0
    %4607 = vmatpush.msra.mxu0 0.0
    %4608 = vmatpush.msra.mxu0 0.0
    %4609 = vmatpush.msra.mxu0 0.0
    %4610 = vmatpush.msra.mxu0 0.0
    %4611 = vmatpush.msra.mxu0 0.0
    %4612 = vmatpush.msra.mxu0 %v4592
    %4613 = vmatmul.f32.gmra.mxu0 %v4595
    %v4614 = vpop.f32.mrf.mxu0
    %v4615 = vadd.f32 0.0, %v4614
    %4616 = vdwg.mxu0
    %v4617 = vadd.f32 %v4561, %v4615
    %vm4618 = vmand %vm4564, %vm4427
    %vm4619 = vmand %vm4618, %vm4429
    %v4620 = vsel %vm4619, 1, 0
    %vm4621 = vcmp.eq.s32.totalorder %v4620, 1
    %vm4622 = vmand %vm4621, %vm1540
    %v4623 = vsel %vm4622, 1.0, 0.0
    %s4624 = scalar_lea.vmem %s5, 64
    %v4625 = vld [vmem:[%s4624] sm:$0xff]
    %v4626 = vld [vmem:[%s4624 + $0x8] sm:$0xff]
    %4627 = vmatpush.msra.mxu0 0.0
    %4628 = vmatpush.msra.mxu0 0.0
    %4629 = vmatpush.msra.mxu0 0.0
    %4630 = vmatpush.msra.mxu0 0.0
    %4631 = vmatpush.msra.mxu0 0.0
    %4632 = vmatpush.msra.mxu0 0.0
    %4633 = vmatpush.msra.mxu0 0.0
    %4634 = vmatpush.msra.mxu0 0.0
    %4635 = vmatpush.msra.mxu0 0.0
    %4636 = vmatpush.msra.mxu0 0.0
    %4637 = vmatpush.msra.mxu0 0.0
    %4638 = vmatpush.msra.mxu0 0.0
    %4639 = vmatpush.msra.mxu0 0.0
    %4640 = vmatpush.msra.mxu0 0.0
    %4641 = vmatpush.msra.mxu0 %v4626
    %4642 = vmatpush.msra.mxu0 %v4625
    %4643 = vmatmul.f32.gmra.mxu0 %v4405
    %v4644 = vpop.f32.mrf.mxu0
    %v4645 = vadd.f32 0.0, %v4644
    %4646 = vdwg.mxu0
    %v4648 = vsel %vm3286, %v4623, 0
    %4650 = vmatpush.msra.mxu0 0.0
    %4651 = vmatpush.msra.mxu0 0.0
    %4652 = vmatpush.msra.mxu0 0.0
    %4653 = vmatpush.msra.mxu0 0.0
    %4654 = vmatpush.msra.mxu0 0.0
    %4655 = vmatpush.msra.mxu0 0.0
    %4656 = vmatpush.msra.mxu0 0.0
    %4657 = vmatpush.msra.mxu0 0.0
    %4658 = vmatpush.msra.mxu0 0.0
    %4659 = vmatpush.msra.mxu0 0.0
    %4660 = vmatpush.msra.mxu0 0.0
    %4661 = vmatpush.msra.mxu0 0.0
    %4662 = vmatpush.msra.mxu0 0.0
    %4663 = vmatpush.msra.mxu0 0.0
    %4664 = vmatpush.msra.mxu0 0.0
    %4665 = vmatpush.msra.mxu0 %v4645
    %4666 = vmatmul.f32.gmra.mxu0 %v4648
    %v4667 = vpop.f32.mrf.mxu0
    %v4668 = vadd.f32 0.0, %v4667
    %4669 = vdwg.mxu0
    %v4670 = vadd.f32 %v4617, %v4668
    %vm4671 = vmand %vm4564, %vm4507
    %vm4672 = vmand %vm4671, %vm4509
    %v4673 = vsel %vm4672, 1, 0
    %vm4674 = vcmp.eq.s32.totalorder %v4673, 1
    %vm4675 = vmand %vm4674, %vm1819
    %v4676 = vsel %vm4675, 1.0, 0.0
    %s4677 = scalar_lea.vmem %s5, 80
    %v4678 = vld [vmem:[%s4677] sm:$0xff]
    %v4679 = vld [vmem:[%s4677 + $0x8] sm:$0xff]
    %4680 = vmatpush.msra.mxu0 0.0
    %4681 = vmatpush.msra.mxu0 0.0
    %4682 = vmatpush.msra.mxu0 0.0
    %4683 = vmatpush.msra.mxu0 0.0
    %4684 = vmatpush.msra.mxu0 0.0
    %4685 = vmatpush.msra.mxu0 0.0
    %4686 = vmatpush.msra.mxu0 0.0
    %4687 = vmatpush.msra.mxu0 0.0
    %4688 = vmatpush.msra.mxu0 0.0
    %4689 = vmatpush.msra.mxu0 0.0
    %4690 = vmatpush.msra.mxu0 0.0
    %4691 = vmatpush.msra.mxu0 0.0
    %4692 = vmatpush.msra.mxu0 0.0
    %4693 = vmatpush.msra.mxu0 0.0
    %4694 = vmatpush.msra.mxu0 %v4679
    %4695 = vmatpush.msra.mxu0 %v4678
    %4696 = vmatmul.f32.gmra.mxu0 %v4405
    %v4697 = vpop.f32.mrf.mxu0
    %v4698 = vadd.f32 0.0, %v4697
    %4699 = vdwg.mxu0
    %v4701 = vsel %vm3286, %v4676, 0
    %4703 = vmatpush.msra.mxu0 0.0
    %4704 = vmatpush.msra.mxu0 0.0
    %4705 = vmatpush.msra.mxu0 0.0
    %4706 = vmatpush.msra.mxu0 0.0
    %4707 = vmatpush.msra.mxu0 0.0
    %4708 = vmatpush.msra.mxu0 0.0
    %4709 = vmatpush.msra.mxu0 0.0
    %4710 = vmatpush.msra.mxu0 0.0
    %4711 = vmatpush.msra.mxu0 0.0
    %4712 = vmatpush.msra.mxu0 0.0
    %4713 = vmatpush.msra.mxu0 0.0
    %4714 = vmatpush.msra.mxu0 0.0
    %4715 = vmatpush.msra.mxu0 0.0
    %4716 = vmatpush.msra.mxu0 0.0
    %4717 = vmatpush.msra.mxu0 0.0
    %4718 = vmatpush.msra.mxu0 %v4698
    %4719 = vmatmul.f32.gmra.mxu0 %v4701
    %v4720 = vpop.f32.mrf.mxu0
    %v4721 = vadd.f32 0.0, %v4720
    %4722 = vdwg.mxu0
    %v4723 = vadd.f32 %v4670, %v4721
    %v4724 = vadd.s32 %v4274, 1
    %vm4725 = vcmp.ge.s32.totalorder %v4724, 0
    %vm4726 = vcmp.lt.s32.totalorder %v4724, 2
    %vm4727 = vmand %vm4725, %vm4726
    %vm4728 = vmand %vm4727, %vm4393
    %vm4729 = vmand %vm4728, %vm4395
    %v4730 = vsel %vm4729, 1, 0
    %vm4731 = vcmp.eq.s32.totalorder %v4730, 1
    %vm4732 = vmand %vm4731, %vm1819
    %v4733 = vsel %vm4732, 1.0, 0.0
    %s4734 = scalar_lea.vmem %s5, 96
    %v4735 = vld [vmem:[%s4734] sm:$0xff]
    %v4736 = vld [vmem:[%s4734 + $0x8] sm:$0xff]
    %4737 = vmatpush.msra.mxu0 0.0
    %4738 = vmatpush.msra.mxu0 0.0
    %4739 = vmatpush.msra.mxu0 0.0
    %4740 = vmatpush.msra.mxu0 0.0
    %4741 = vmatpush.msra.mxu0 0.0
    %4742 = vmatpush.msra.mxu0 0.0
    %4743 = vmatpush.msra.mxu0 0.0
    %4744 = vmatpush.msra.mxu0 0.0
    %4745 = vmatpush.msra.mxu0 0.0
    %4746 = vmatpush.msra.mxu0 0.0
    %4747 = vmatpush.msra.mxu0 0.0
    %4748 = vmatpush.msra.mxu0 0.0
    %4749 = vmatpush.msra.mxu0 0.0
    %4750 = vmatpush.msra.mxu0 0.0
    %4751 = vmatpush.msra.mxu0 %v4736
    %4752 = vmatpush.msra.mxu0 %v4735
    %4753 = vmatmul.f32.gmra.mxu0 %v4405
    %v4754 = vpop.f32.mrf.mxu0
    %v4755 = vadd.f32 0.0, %v4754
    %4756 = vdwg.mxu0
    %v4758 = vsel %vm3286, %v4733, 0
    %4760 = vmatpush.msra.mxu0 0.0
    %4761 = vmatpush.msra.mxu0 0.0
    %4762 = vmatpush.msra.mxu0 0.0
    %4763 = vmatpush.msra.mxu0 0.0
    %4764 = vmatpush.msra.mxu0 0.0
    %4765 = vmatpush.msra.mxu0 0.0
    %4766 = vmatpush.msra.mxu0 0.0
    %4767 = vmatpush.msra.mxu0 0.0
    %4768 = vmatpush.msra.mxu0 0.0
    %4769 = vmatpush.msra.mxu0 0.0
    %4770 = vmatpush.msra.mxu0 0.0
    %4771 = vmatpush.msra.mxu0 0.0
    %4772 = vmatpush.msra.mxu0 0.0
    %4773 = vmatpush.msra.mxu0 0.0
    %4774 = vmatpush.msra.mxu0 0.0
    %4775 = vmatpush.msra.mxu0 %v4755
    %4776 = vmatmul.f32.gmra.mxu0 %v4758
    %v4777 = vpop.f32.mrf.mxu0
    %v4778 = vadd.f32 0.0, %v4777
    %4779 = vdwg.mxu0
    %v4780 = vadd.f32 %v4723, %v4778
    %vm4781 = vmand %vm4727, %vm4427
    %vm4782 = vmand %vm4781, %vm4429
    %v4783 = vadd.s32 %v69, 2
    %vm4784 = vcmp.eq.s32.totalorder %v134, %v4783
    %v4785 = vsel %vm4782, 1, 0
    %vm4786 = vcmp.eq.s32.totalorder %v4785, 1
    %vm4787 = vmand %vm4786, %vm4784
    %v4788 = vsel %vm4787, 1.0, 0.0
    %s4789 = scalar_lea.vmem %s5, 112
    %v4790 = vld [vmem:[%s4789] sm:$0xff]
    %v4791 = vld [vmem:[%s4789 + $0x8] sm:$0xff]
    %4792 = vmatpush.msra.mxu0 0.0
    %4793 = vmatpush.msra.mxu0 0.0
    %4794 = vmatpush.msra.mxu0 0.0
    %4795 = vmatpush.msra.mxu0 0.0
    %4796 = vmatpush.msra.mxu0 0.0
    %4797 = vmatpush.msra.mxu0 0.0
    %4798 = vmatpush.msra.mxu0 0.0
    %4799 = vmatpush.msra.mxu0 0.0
    %4800 = vmatpush.msra.mxu0 0.0
    %4801 = vmatpush.msra.mxu0 0.0
    %4802 = vmatpush.msra.mxu0 0.0
    %4803 = vmatpush.msra.mxu0 0.0
    %4804 = vmatpush.msra.mxu0 0.0
    %4805 = vmatpush.msra.mxu0 0.0
    %4806 = vmatpush.msra.mxu0 %v4791
    %4807 = vmatpush.msra.mxu0 %v4790
    %4808 = vmatmul.f32.gmra.mxu0 %v4405
    %v4809 = vpop.f32.mrf.mxu0
    %v4810 = vadd.f32 0.0, %v4809
    %4811 = vdwg.mxu0
    %v4813 = vsel %vm3286, %v4788, 0
    %4815 = vmatpush.msra.mxu0 0.0
    %4816 = vmatpush.msra.mxu0 0.0
    %4817 = vmatpush.msra.mxu0 0.0
    %4818 = vmatpush.msra.mxu0 0.0
    %4819 = vmatpush.msra.mxu0 0.0
    %4820 = vmatpush.msra.mxu0 0.0
    %4821 = vmatpush.msra.mxu0 0.0
    %4822 = vmatpush.msra.mxu0 0.0
    %4823 = vmatpush.msra.mxu0 0.0
    %4824 = vmatpush.msra.mxu0 0.0
    %4825 = vmatpush.msra.mxu0 0.0
    %4826 = vmatpush.msra.mxu0 0.0
    %4827 = vmatpush.msra.mxu0 0.0
    %4828 = vmatpush.msra.mxu0 0.0
    %4829 = vmatpush.msra.mxu0 0.0
    %4830 = vmatpush.msra.mxu0 %v4810
    %4831 = vmatmul.f32.gmra.mxu0 %v4813
    %v4832 = vpop.f32.mrf.mxu0
    %v4833 = vadd.f32 0.0, %v4832
    %4834 = vdwg.mxu0
    %v4835 = vadd.f32 %v4780, %v4833
    %vm4836 = vmand %vm4727, %vm4507
    %vm4837 = vmand %vm4836, %vm4509
    %v4838 = vsel %vm4837, 1, 0
    %vm4839 = vcmp.eq.s32.totalorder %v4838, 1
    %vm4840 = vmand %vm4839, %vm3942
    %v4841 = vsel %vm4840, 1.0, 0.0
    %s4842 = scalar_lea.vmem %s5, 128
    %v4843 = vld [vmem:[%s4842] sm:$0xff]
    %v4844 = vld [vmem:[%s4842 + $0x8] sm:$0xff]
    %4845 = vmatpush.msra.mxu0 0.0
    %4846 = vmatpush.msra.mxu0 0.0
    %4847 = vmatpush.msra.mxu0 0.0
    %4848 = vmatpush.msra.mxu0 0.0
    %4849 = vmatpush.msra.mxu0 0.0
    %4850 = vmatpush.msra.mxu0 0.0
    %4851 = vmatpush.msra.mxu0 0.0
    %4852 = vmatpush.msra.mxu0 0.0
    %4853 = vmatpush.msra.mxu0 0.0
    %4854 = vmatpush.msra.mxu0 0.0
    %4855 = vmatpush.msra.mxu0 0.0
    %4856 = vmatpush.msra.mxu0 0.0
    %4857 = vmatpush.msra.mxu0 0.0
    %4858 = vmatpush.msra.mxu0 0.0
    %4859 = vmatpush.msra.mxu0 %v4844
    %4860 = vmatpush.msra.mxu0 %v4843
    %4861 = vmatmul.f32.gmra.mxu0 %v4405
    %v4862 = vpop.f32.mrf.mxu0
    %v4863 = vadd.f32 0.0, %v4862
    %4864 = vdwg.mxu0
    %v4866 = vsel %vm3286, %v4841, 0
    %4868 = vmatpush.msra.mxu0 0.0
    %4869 = vmatpush.msra.mxu0 0.0
    %4870 = vmatpush.msra.mxu0 0.0
    %4871 = vmatpush.msra.mxu0 0.0
    %4872 = vmatpush.msra.mxu0 0.0
    %4873 = vmatpush.msra.mxu0 0.0
    %4874 = vmatpush.msra.mxu0 0.0
    %4875 = vmatpush.msra.mxu0 0.0
    %4876 = vmatpush.msra.mxu0 0.0
    %4877 = vmatpush.msra.mxu0 0.0
    %4878 = vmatpush.msra.mxu0 0.0
    %4879 = vmatpush.msra.mxu0 0.0
    %4880 = vmatpush.msra.mxu0 0.0
    %4881 = vmatpush.msra.mxu0 0.0
    %4882 = vmatpush.msra.mxu0 0.0
    %4883 = vmatpush.msra.mxu0 %v4863
    %4884 = vmatmul.f32.gmra.mxu0 %v4866
    %v4885 = vpop.f32.mrf.mxu0
    %v4886 = vadd.f32 0.0, %v4885
    %4887 = vdwg.mxu0
    %v4888 = vadd.f32 %v4835, %v4886
    %v4890 = vperm.slane %v4387, 0
    %v4892 = vadd.f32 %v4888, %v4890
    %vm4893 = vcmp.gt.f32.partialorder %v4892, 0.0
    %v4894 = vmul.f32 %v4892, 0.01
    %v4895 = vsel %vm4893, %v4892, %v4894
    %v4896 = vmul.u32 %v69, 4
    %vm4897 = vcmp.eq.s32.totalorder %v134, %v4896
    %v4898 = vsel %vm4897, 1.0, 0.0
    %v4900 = vsel %vm3286, %v4898, 0
    %4902 = vmatpush.msra.mxu0 0.0
    %4903 = vmatpush.msra.mxu0 0.0
    %4904 = vmatpush.msra.mxu0 0.0
    %4905 = vmatpush.msra.mxu0 0.0
    %4906 = vmatpush.msra.mxu0 0.0
    %4907 = vmatpush.msra.mxu0 0.0
    %4908 = vmatpush.msra.mxu0 0.0
    %4909 = vmatpush.msra.mxu0 0.0
    %4910 = vmatpush.msra.mxu0 0.0
    %4911 = vmatpush.msra.mxu0 0.0
    %4912 = vmatpush.msra.mxu0 0.0
    %4913 = vmatpush.msra.mxu0 0.0
    %4914 = vmatpush.msra.mxu0 0.0
    %4915 = vmatpush.msra.mxu0 0.0
    %4916 = vmatpush.msra.mxu0 0.0
    %4917 = vmatpush.msra.mxu0 %v4895
    %4918 = vmatmul.f32.gmra.mxu0 %v4900
    %v4919 = vpop.f32.mrf.mxu0
    %v4920 = vadd.f32 0.0, %v4919
    %4921 = vdwg.mxu0
    %v4922 = vadd.s32 %v4896, 1
    %vm4923 = vcmp.eq.s32.totalorder %v134, %v4922
    %v4924 = vsel %vm4923, 1.0, 0.0
    %v4926 = vsel %vm3286, %v4924, 0
    %4928 = vmatpush.msra.mxu0 0.0
    %4929 = vmatpush.msra.mxu0 0.0
    %4930 = vmatpush.msra.mxu0 0.0
    %4931 = vmatpush.msra.mxu0 0.0
    %4932 = vmatpush.msra.mxu0 0.0
    %4933 = vmatpush.msra.mxu0 0.0
    %4934 = vmatpush.msra.mxu0 0.0
    %4935 = vmatpush.msra.mxu0 0.0
    %4936 = vmatpush.msra.mxu0 0.0
    %4937 = vmatpush.msra.mxu0 0.0
    %4938 = vmatpush.msra.mxu0 0.0
    %4939 = vmatpush.msra.mxu0 0.0
    %4940 = vmatpush.msra.mxu0 0.0
    %4941 = vmatpush.msra.mxu0 0.0
    %4942 = vmatpush.msra.mxu0 0.0
    %4943 = vmatpush.msra.mxu0 %v4895
    %4944 = vmatmul.f32.gmra.mxu0 %v4926
    %v4945 = vpop.f32.mrf.mxu0
    %v4946 = vadd.f32 0.0, %v4945
    %4947 = vdwg.mxu0
    %v4948 = vmax.f32 %v4920, %v4946
    %v4949 = vadd.s32 %v4896, 2
    %vm4950 = vcmp.eq.s32.totalorder %v134, %v4949
    %v4951 = vsel %vm4950, 1.0, 0.0
    %v4953 = vsel %vm3286, %v4951, 0
    %4955 = vmatpush.msra.mxu0 0.0
    %4956 = vmatpush.msra.mxu0 0.0
    %4957 = vmatpush.msra.mxu0 0.0
    %4958 = vmatpush.msra.mxu0 0.0
    %4959 = vmatpush.msra.mxu0 0.0
    %4960 = vmatpush.msra.mxu0 0.0
    %4961 = vmatpush.msra.mxu0 0.0
    %4962 = vmatpush.msra.mxu0 0.0
    %4963 = vmatpush.msra.mxu0 0.0
    %4964 = vmatpush.msra.mxu0 0.0
    %4965 = vmatpush.msra.mxu0 0.0
    %4966 = vmatpush.msra.mxu0 0.0
    %4967 = vmatpush.msra.mxu0 0.0
    %4968 = vmatpush.msra.mxu0 0.0
    %4969 = vmatpush.msra.mxu0 0.0
    %4970 = vmatpush.msra.mxu0 %v4895
    %4971 = vmatmul.f32.gmra.mxu0 %v4953
    %v4972 = vpop.f32.mrf.mxu0
    %v4973 = vadd.f32 0.0, %v4972
    %4974 = vdwg.mxu0
    %v4975 = vmax.f32 %v4948, %v4973
    %v4976 = vadd.s32 %v4896, 3
    %vm4977 = vcmp.eq.s32.totalorder %v134, %v4976
    %v4978 = vsel %vm4977, 1.0, 0.0
    %v4980 = vsel %vm3286, %v4978, 0
    %4982 = vmatpush.msra.mxu0 0.0
    %4983 = vmatpush.msra.mxu0 0.0
    %4984 = vmatpush.msra.mxu0 0.0
    %4985 = vmatpush.msra.mxu0 0.0
    %4986 = vmatpush.msra.mxu0 0.0
    %4987 = vmatpush.msra.mxu0 0.0
    %4988 = vmatpush.msra.mxu0 0.0
    %4989 = vmatpush.msra.mxu0 0.0
    %4990 = vmatpush.msra.mxu0 0.0
    %4991 = vmatpush.msra.mxu0 0.0
    %4992 = vmatpush.msra.mxu0 0.0
    %4993 = vmatpush.msra.mxu0 0.0
    %4994 = vmatpush.msra.mxu0 0.0
    %4995 = vmatpush.msra.mxu0 0.0
    %4996 = vmatpush.msra.mxu0 0.0
    %4997 = vmatpush.msra.mxu0 %v4895
    %4998 = vmatmul.f32.gmra.mxu0 %v4980
    %v4999 = vpop.f32.mrf.mxu0
    %v5000 = vadd.f32 0.0, %v4999
    %5001 = vdwg.mxu0
    %v5002 = vmax.f32 %v4975, %v5000
    %v5003 = vld [vmem:[%s7] sm:$0xff]
    %v5004 = vld [vmem:[%s7 + $0x8] sm:$0xff]
    %v5005 = vld [vmem:[%s7 + $0x10] sm:$0xff]
    %v5006 = vld [vmem:[%s7 + $0x18] sm:$0xff]
    %v5007 = vld [vmem:[%s8] sm:$0x1]
    %v5009 = vperm.slane %v5007, 0
    %v5012 = vsel %vm3399, %v5002, 0
    %5014 = vmatpush.msra.mxu0 0.0
    %5015 = vmatpush.msra.mxu0 0.0
    %5016 = vmatpush.msra.mxu0 0.0
    %5017 = vmatpush.msra.mxu0 0.0
    %5018 = vmatpush.msra.mxu0 0.0
    %5019 = vmatpush.msra.mxu0 0.0
    %5020 = vmatpush.msra.mxu0 0.0
    %5021 = vmatpush.msra.mxu0 0.0
    %5022 = vmatpush.msra.mxu0 0.0
    %5023 = vmatpush.msra.mxu0 0.0
    %5024 = vmatpush.msra.mxu0 0.0
    %5025 = vmatpush.msra.mxu0 0.0
    %5026 = vmatpush.msra.mxu0 %v5006
    %5027 = vmatpush.msra.mxu0 %v5005
    %5028 = vmatpush.msra.mxu0 %v5004
    %5029 = vmatpush.msra.mxu0 %v5003
    %5030 = vmatmul.f32.gmra.mxu0 %v5012
    %v5031 = vpop.f32.mrf.mxu0
    %v5032 = vadd.f32 %v5009, %v5031
    %5033 = vdwg.mxu0
    %vm5034 = vcmp.gt.f32.partialorder %v5032, 0.0
    %v5035 = vmul.f32 %v5032, 0.01
    %v5036 = vsel %vm5034, %v5032, %v5035
    %v5037 = vld [vmem:[%s9] sm:$0xff]
    %v5038 = vld [vmem:[%s9 + $0x8] sm:$0xff]
    %v5039 = vld [vmem:[%s9 + $0x10] sm:$0xff]
    %v5040 = vld [vmem:[%s9 + $0x18] sm:$0xff]
    %v5041 = vld [vmem:[%s9 + $0x20] sm:$0xff]
    %v5042 = vld [vmem:[%s9 + $0x28] sm:$0xff]
    %v5043 = vld [vmem:[%s9 + $0x30] sm:$0xff]
    %v5044 = vld [vmem:[%s9 + $0x38] sm:$0xff]
    %v5045 = vld [vmem:[%s9 + $0x40] sm:$0xff]
    %v5046 = vld [vmem:[%s9 + $0x48] sm:$0xff]
    %v5047 = vld [vmem:[%s9 + $0x50] sm:$0xff]
    %v5048 = vld [vmem:[%s9 + $0x58] sm:$0xff]
    %v5049 = vld [vmem:[%s9 + $0x60] sm:$0xff]
    %v5050 = vld [vmem:[%s9 + $0x68] sm:$0xff]
    %v5051 = vld [vmem:[%s9 + $0x70] sm:$0xff]
    %v5052 = vld [vmem:[%s9 + $0x78] sm:$0xff]
    %v5053 = vld [vmem:[%s10] sm:$0x1]
    %v5055 = vperm.slane %v5053, 0
    %5057 = vmatpush.msra.mxu0 %v5052
    %5058 = vmatpush.msra.mxu0 %v5051
    %5059 = vmatpush.msra.mxu0 %v5050
    %5060 = vmatpush.msra.mxu0 %v5049
    %5061 = vmatpush.msra.mxu0 %v5048
    %5062 = vmatpush.msra.mxu0 %v5047
    %5063 = vmatpush.msra.mxu0 %v5046
    %5064 = vmatpush.msra.mxu0 %v5045
    %5065 = vmatpush.msra.mxu0 %v5044
    %5066 = vmatpush.msra.mxu0 %v5043
    %5067 = vmatpush.msra.mxu0 %v5042
    %5068 = vmatpush.msra.mxu0 %v5041
    %5069 = vmatpush.msra.mxu0 %v5040
    %5070 = vmatpush.msra.mxu0 %v5039
    %5071 = vmatpush.msra.mxu0 %v5038
    %5072 = vmatpush.msra.mxu0 %v5037
    %5073 = vmatmul.f32.gmra.mxu0 %v5036
    %v5074 = vpop.f32.mrf.mxu0
    %v5075 = vadd.f32 %v5055, %v5074
    %5076 = vdwg.mxu0
    %vm5077 = vcmp.gt.f32.partialorder %v5075, 0.0
    %v5078 = vmul.f32 %v5075, 0.01
    %v5079 = vsel %vm5077, %v5075, %v5078
    %v5080 = vld [vmem:[%s11] sm:$0xff]
    %v5081 = vld [vmem:[%s11 + $0x8] sm:$0xff]
    %v5082 = vld [vmem:[%s11 + $0x10] sm:$0xff]
    %v5083 = vld [vmem:[%s11 + $0x18] sm:$0xff]
    %v5084 = vld [vmem:[%s11 + $0x20] sm:$0xff]
    %v5085 = vld [vmem:[%s11 + $0x28] sm:$0xff]
    %v5086 = vld [vmem:[%s11 + $0x30] sm:$0xff]
    %v5087 = vld [vmem:[%s11 + $0x38] sm:$0xff]
    %v5088 = vld [vmem:[%s12] sm:$0x1]
    %v5090 = vperm.slane %v5088, 0
    %vm5092 = vcmask 523264
    %v5094 = vsel %vm5092, %v5079, 0
    %5096 = vmatpush.msra.mxu0 0.0
    %5097 = vmatpush.msra.mxu0 0.0
    %5098 = vmatpush.msra.mxu0 0.0
    %5099 = vmatpush.msra.mxu0 0.0
    %5100 = vmatpush.msra.mxu0 0.0
    %5101 = vmatpush.msra.mxu0 0.0
    %5102 = vmatpush.msra.mxu0 0.0
    %5103 = vmatpush.msra.mxu0 0.0
    %5104 = vmatpush.msra.mxu0 %v5087
    %5105 = vmatpush.msra.mxu0 %v5086
    %5106 = vmatpush.msra.mxu0 %v5085
    %5107 = vmatpush.msra.mxu0 %v5084
    %5108 = vmatpush.msra.mxu0 %v5083
    %5109 = vmatpush.msra.mxu0 %v5082
    %5110 = vmatpush.msra.mxu0 %v5081
    %5111 = vmatpush.msra.mxu0 %v5080
    %5112 = vmatmul.f32.gmra.mxu0 %v5094
    %v5113 = vpop.f32.mrf.mxu0
    %v5114 = vadd.f32 %v5090, %v5113
    %5115 = vdwg.mxu0
    %vm5116 = vcmp.gt.f32.partialorder %v5114, 0.0
    %v5117 = vmul.f32 %v5114, 0.01
    %v5118 = vsel %vm5116, %v5114, %v5117
    %v5119 = vld [vmem:[%s13] sm:$0xff]
    %v5120 = vld [vmem:[%s13 + $0x8] sm:$0xff]
    %v5121 = vld [vmem:[%s13 + $0x10] sm:$0xff]
    %v5122 = vld [vmem:[%s13 + $0x18] sm:$0xff]
    %v5123 = vld [vmem:[%s14] sm:$0x1]
    %v5125 = vperm.slane %v5123, 0
    %v5128 = vsel %vm3399, %v5118, 0
    %5130 = vmatpush.msra.mxu0 0.0
    %5131 = vmatpush.msra.mxu0 0.0
    %5132 = vmatpush.msra.mxu0 0.0
    %5133 = vmatpush.msra.mxu0 0.0
    %5134 = vmatpush.msra.mxu0 0.0
    %5135 = vmatpush.msra.mxu0 0.0
    %5136 = vmatpush.msra.mxu0 0.0
    %5137 = vmatpush.msra.mxu0 0.0
    %5138 = vmatpush.msra.mxu0 0.0
    %5139 = vmatpush.msra.mxu0 0.0
    %5140 = vmatpush.msra.mxu0 0.0
    %5141 = vmatpush.msra.mxu0 0.0
    %5142 = vmatpush.msra.mxu0 %v5122
    %5143 = vmatpush.msra.mxu0 %v5121
    %5144 = vmatpush.msra.mxu0 %v5120
    %5145 = vmatpush.msra.mxu0 %v5119
    %5146 = vmatmul.f32.gmra.mxu0 %v5128
    %v5147 = vpop.f32.mrf.mxu0
    %v5148 = vadd.f32 %v5125, %v5147
    %5149 = vdwg.mxu0
    %vm5150 = vcmask 17408
    %5151 = vst.msk [vmem:[#allocation2] sm:$0x3] %vm5150, %v5148
    // Predicated region
    $region62: #{qnet_forward.1} parent=1 // pred_check
      _
    $region63: #{qnet_forward.1} parent=1 // pred_check_branch
      %5153 = sbr.rel (0) target = $region65
    $region64: #{qnet_forward.1} parent=1 // pred_region
      %5155 = vsyncadd [#allocation3], 0
      %s5157 = sshll.u32 [#allocation2], 4
      %s5158 = int_to_ptr.vmem [resolvable:$true] %s5157
      %s5159 = sshll.u32 %s15, 4
      %s5160 = int_to_ptr.hbm [resolvable:$true] %s5159
      %5162 = dma.vmem_to_hbm [thread:$0]  %s5158, 32, %s5160, [#allocation3]
    $region65: #{qnet_forward.1} parent=1 // pred_fallthru
      _
    // Predicated region
    $region66: #{qnet_forward.1} parent=1 // pred_check
      _
    $region67: #{qnet_forward.1} parent=1 // pred_check_branch
      %5164 = sbr.rel (0) target = $region69
    $region68: #{qnet_forward.1} parent=1 // pred_region
      %5166 = dma.done [#allocation3], 32
    $region69: #{qnet_forward.1} parent=1 // pred_fallthru
      _
    %5167 = vsyncpa [#allocation3], 1

</llo_original>
